<compile_context>
chip_gen: v5e
topology: v5e:2x2
jax: 0.10.0
libtpu: 0.0.40
codegen_flags: <defaults>
</compile_context>

<pallas_src>
import functools

import jax
import jax.numpy as jnp
from jax.experimental import pallas as pl
from jax.experimental.pallas import tpu as pltpu

# ---------------- model hyper-parameters (small synthetic sizes) -------------
VOCAB_SIZE = 64
EMBED_DIM = 128          # embedding_dim
HIDDEN_DIM = 128         # hidden_dim
N_LAYERS = 2
BIDIRECTIONAL = True
OUTPUT_DIM = 3           # len(train_data['sentiment'].unique()) — synthetic
PAD_INDEX = 1            # vocab['<pad>'] with specials ['<unk>', '<pad>']
FC_PAD = 128             # pad fc output to full lane width for the store

BATCH = 8
SEQ_LEN = 8


# ---------------------------- Pallas kernel ----------------------------------
def fused_lstm_kernel(x_ref, mask_ref,
                      wih0_ref, whh0_ref, b0_ref,
                      wih1_ref, whh1_ref, b1_ref,
                      fcw_ref, fcb_ref,
                      logits_ref,
                      xproj, seq_scr, *, T, H):
    """Whole model (minus embedding gather) in one kernel invocation.

    x_ref    : (T, B, E)       f32 time-major embedded input
    mask_ref : (T, B, H)       f32 lane-dense validity mask (1.0 if t < len[b])
    wih{l}   : (IN_l, 8H)      bf16; cols 0:4H fwd gates [i,f,g,o], 4H:8H bwd
    whh{l}   : (2, H, 4H)      bf16; [0]=fwd, [1]=bwd
    b{l}     : (1, 8H)         f32 combined b_ih + b_hh, fwd | bwd
    fcw_ref  : (2H, FC_PAD)    bf16; rows 0:H multiply h_bwd, H:2H h_fwd
    fcb_ref  : (1, FC_PAD)     f32
    logits   : (B, FC_PAD)     f32 output
    xproj    : (T, B, 8H)      f32 scratch — hoisted input projection (reused)
    seq_scr  : (T, B, 2H)      f32 scratch — layer-0 output sequence
    """
    B = x_ref.shape[1]
    f32, bf16 = jnp.float32, jnp.bfloat16

    def lstm_cell(gates, c_prev):
        i_g = jax.nn.sigmoid(gates[:, 0:H])
        f_g = jax.nn.sigmoid(gates[:, H:2 * H])
        g_g = jnp.tanh(gates[:, 2 * H:3 * H])
        o_g = jax.nn.sigmoid(gates[:, 3 * H:4 * H])
        c_new = f_g * c_prev + i_g * g_g
        h_new = o_g * jnp.tanh(c_new)
        return h_new, c_new

    def run_layer(x2d_bf16, wih_ref, b_ref, whh_ref, write_seq):
        # Hoisted input projection for BOTH directions in one matmul:
        # (T*B, IN) @ (IN, 8H).  Only h@Whh remains inside the serial loop.
        xp = jnp.dot(x2d_bf16, wih_ref[...], preferred_element_type=f32)
        xproj[...] = (xp + b_ref[...]).reshape(T, B, 8 * H)

        h_f = jnp.zeros((B, H), f32)
        c_f = jnp.zeros((B, H), f32)
        h_b = jnp.zeros((B, H), f32)
        c_b = jnp.zeros((B, H), f32)

        # Fully static unrolled time loop: every index below is a compile-time
        # constant (no dynamic-slice address generation on the critical path).
        for s in range(T):
            tf = s               # forward time index
            tb = T - 1 - s       # backward time index

            g_f = xproj[tf, :, 0:4 * H] + jnp.dot(
                h_f.astype(bf16), whh_ref[0], preferred_element_type=f32)
            g_b = xproj[tb, :, 4 * H:8 * H] + jnp.dot(
                h_b.astype(bf16), whh_ref[1], preferred_element_type=f32)

            hn_f, cn_f = lstm_cell(g_f, c_f)
            hn_b, cn_b = lstm_cell(g_b, c_b)

            # Packed-sequence masking: carries only advance inside each row's
            # valid length.  Lane-dense mask -> one compare + selects.
            vf = mask_ref[tf] != 0.0
            vb = mask_ref[tb] != 0.0
            h_f = jnp.where(vf, hn_f, h_f)
            c_f = jnp.where(vf, cn_f, c_f)
            h_b = jnp.where(vb, hn_b, h_b)
            c_b = jnp.where(vb, cn_b, c_b)

            if write_seq:
                # pad_packed_sequence semantics: zeros at padded steps.
                seq_scr[tf, :, 0:H] = jnp.where(vf, hn_f, 0.0)
                seq_scr[tb, :, H:2 * H] = jnp.where(vb, hn_b, 0.0)

        return h_f, h_b

    # ---------------- layer 0 (both directions interleaved) ----------------
    x2d = x_ref[...].reshape(T * B, x_ref.shape[2]).astype(bf16)
    run_layer(x2d, wih0_ref, b0_ref, whh0_ref, write_seq=True)

    # ---------------- layer 1 (both directions interleaved) ----------------
    seq2d = seq_scr[...].reshape(T * B, 2 * H).astype(bf16)
    h_f, h_b = run_layer(seq2d, wih1_ref, b1_ref, whh1_ref, write_seq=False)

    # ---- fc head: torch.cat([hidden[-1], hidden[-2]], -1) = [bwd | fwd] ----
    h_cat = jnp.concatenate([h_b, h_f], axis=-1).astype(bf16)     # (B, 2H)
    logits_ref[...] = (jnp.dot(h_cat, fcw_ref[...], preferred_element_type=f32)
                       + fcb_ref[...])


# ------------------------------ wrapper ---------------------------------------
def lstm_model_forward(ids, lengths, params):
    """Equivalent of LSTM.forward(ids, length) in eval mode.

    ids     : (B, T) int32 token ids (batch_first)
    lengths : (B,)   int32 valid lengths
    returns : (B, OUTPUT_DIM) float32 logits
    """
    B, T = ids.shape
    H = HIDDEN_DIM

    emb = params["embedding"][ids]                 # (B, T, E) — XLA gather
    x = jnp.transpose(emb, (1, 0, 2))              # (T, B, E) time-major f32

    # Lane-dense validity mask (broadcast to H lanes once; 32 KiB).
    mask = (jnp.arange(T, dtype=jnp.int32)[:, None]
            < lengths.astype(jnp.int32)[None, :]).astype(jnp.float32)
    mask = jnp.broadcast_to(mask[:, :, None], (T, B, H))

    l0, l1 = params["l0"], params["l1"]
    kernel = functools.partial(fused_lstm_kernel, T=T, H=H)

    logits_pad = pl.pallas_call(
        kernel,
        out_shape=jax.ShapeDtypeStruct((B, FC_PAD), jnp.float32),
        in_specs=[pl.BlockSpec(memory_space=pltpu.MemorySpace.VMEM)] * 10,
        out_specs=pl.BlockSpec(memory_space=pltpu.MemorySpace.VMEM),
        scratch_shapes=[
            pltpu.VMEM((T, B, 8 * H), jnp.float32),   # hoisted input projection
            pltpu.VMEM((T, B, 2 * H), jnp.float32),   # layer-0 output sequence
        ],
    )(x, mask,
      l0["wih"], l0["whh"], l0["b"],
      l1["wih"], l1["whh"], l1["b"],
      params["fc_w"], params["fc_b"])

    return logits_pad[:, :OUTPUT_DIM]


# -------------------------- deterministic params ------------------------------
def init_params(key):
    params = {}
    scale = 1.0 / jnp.sqrt(jnp.float32(HIDDEN_DIM))

    def uni(k, shape, dtype=jnp.float32):
        return jax.random.uniform(k, shape, jnp.float32, -scale, scale).astype(dtype)

    keys = jax.random.split(key, 1 + N_LAYERS * 4 + 2)
    ki = iter(keys)

    emb = jax.random.normal(next(ki), (VOCAB_SIZE, EMBED_DIM), jnp.float32) * 0.1
    emb = emb.at[PAD_INDEX].set(0.0)               # padding_idx row is zero
    params["embedding"] = emb

    for layer in range(N_LAYERS):
        in_dim = EMBED_DIM if layer == 0 else 2 * HIDDEN_DIM
        # Wih for both directions concatenated on the output axis:
        # columns 0:4H = forward gates [i,f,g,o], 4H:8H = backward gates.
        wih = uni(next(ki), (in_dim, 8 * HIDDEN_DIM), jnp.bfloat16)
        whh = uni(next(ki), (2, HIDDEN_DIM, 4 * HIDDEN_DIM), jnp.bfloat16)
        b_ih = uni(next(ki), (1, 8 * HIDDEN_DIM))
        b_hh = uni(next(ki), (1, 8 * HIDDEN_DIM))
        params[f"l{layer}"] = {"wih": wih, "whh": whh, "b": b_ih + b_hh}

    fc_w = uni(next(ki), (2 * HIDDEN_DIM, OUTPUT_DIM))
    fc_b = uni(next(ki), (1, OUTPUT_DIM))
    # Pad OUTPUT_DIM -> 128 lanes so the in-kernel logits store is full-lane.
    params["fc_w"] = (jnp.zeros((2 * HIDDEN_DIM, FC_PAD), jnp.float32)
                      .at[:, :OUTPUT_DIM].set(fc_w).astype(jnp.bfloat16))
    params["fc_b"] = (jnp.zeros((1, FC_PAD), jnp.float32)
                      .at[:, :OUTPUT_DIM].set(fc_b))
    return params


# --------------------------------- main ---------------------------------------
if __name__ == "__main__":
    key = jax.random.PRNGKey(0)
    pkey, idkey = jax.random.split(key)

    params = init_params(pkey)

    lengths = jnp.array([8, 5, 8, 3, 6, 1, 7, 4], dtype=jnp.int32)   # (B,)
    ids = jax.random.randint(idkey, (BATCH, SEQ_LEN), 2, VOCAB_SIZE,
                             dtype=jnp.int32)
    # Apply padding beyond each sequence's valid length.
    t_idx = jnp.arange(SEQ_LEN)[None, :]
    ids = jnp.where(t_idx < lengths[:, None], ids, PAD_INDEX)

    forward = jax.jit(lstm_model_forward)
    logits = forward(ids, lengths, params)
    jax.block_until_ready(logits)

    assert logits.shape == (BATCH, OUTPUT_DIM)
    assert bool(jnp.all(jnp.isfinite(logits)))
    print("KERNEL_OK")
</pallas_src>

<mosaic_0001>
module attributes {stable_mosaic.version = 11 : i64} {
  func.func @fused_lstm_kernel(%arg0: memref<8x8x128xf32, #tpu.memory_space<vmem>>, %arg1: memref<8x8x128xf32, #tpu.memory_space<vmem>>, %arg2: memref<128x1024xbf16, #tpu.memory_space<vmem>>, %arg3: memref<2x128x512xbf16, #tpu.memory_space<vmem>>, %arg4: memref<1x1024xf32, #tpu.memory_space<vmem>>, %arg5: memref<256x1024xbf16, #tpu.memory_space<vmem>>, %arg6: memref<2x128x512xbf16, #tpu.memory_space<vmem>>, %arg7: memref<1x1024xf32, #tpu.memory_space<vmem>>, %arg8: memref<256x128xbf16, #tpu.memory_space<vmem>>, %arg9: memref<1x128xf32, #tpu.memory_space<vmem>>, %arg10: memref<8x128xf32, #tpu.memory_space<vmem>>, %arg11: memref<8x8x1024xf32, #tpu.memory_space<vmem>>, %arg12: memref<8x8x256xf32, #tpu.memory_space<vmem>>) attributes {dimension_semantics = [], scalar_prefetch = 0 : i64, scratch_operands = 2 : i64, tpu.core_type = #tpu.core_type<tc>} {
    %c0 = arith.constant 0 : index
    %c0_0 = arith.constant 0 : index
    %c0_1 = arith.constant 0 : index
    %0 = vector.load %arg0[%c0, %c0_0, %c0_1] : memref<8x8x128xf32, #tpu.memory_space<vmem>>, vector<8x8x128xf32>
    %1 = vector.shape_cast %0 : vector<8x8x128xf32> to vector<64x128xf32>
    %2 = arith.truncf %1 : vector<64x128xf32> to vector<64x128xbf16>
    %c0_2 = arith.constant 0 : index
    %c0_3 = arith.constant 0 : index
    %3 = vector.load %arg2[%c0_2, %c0_3] : memref<128x1024xbf16, #tpu.memory_space<vmem>>, vector<128x1024xbf16>
    %cst = arith.constant dense<0.000000e+00> : vector<64x1024xf32>
    %4 = tpu.matmul %2, %3, %cst {dimension_numbers = #tpu.dot_dimension_numbers<[1], [0], [0], [1], [0, 0, 1, 1], [], []>} : vector<64x128xbf16>, vector<128x1024xbf16>, vector<64x1024xf32> -> vector<64x1024xf32>
    %c0_4 = arith.constant 0 : index
    %c0_5 = arith.constant 0 : index
    %5 = vector.load %arg4[%c0_4, %c0_5] : memref<1x1024xf32, #tpu.memory_space<vmem>>, vector<1x1024xf32>
    %6 = vector.broadcast %5 : vector<1x1024xf32> to vector<64x1024xf32>
    %7 = arith.addf %4, %6 : vector<64x1024xf32>
    %8 = vector.shape_cast %7 : vector<64x1024xf32> to vector<8x8x1024xf32>
    %c0_6 = arith.constant 0 : index
    %c0_7 = arith.constant 0 : index
    %c0_8 = arith.constant 0 : index
    %9 = vector.load %arg11[%c0_6, %c0_7, %c0_8] : memref<8x8x1024xf32, #tpu.memory_space<vmem>>, vector<8x8x1024xf32>
    tpu.vector_store %arg11[%c0_6, %c0_7, %c0_8], %8 {strides = array<i32>} : memref<8x8x1024xf32, #tpu.memory_space<vmem>>, vector<8x8x1024xf32>,
    %cst_9 = arith.constant 0.000000e+00 : f32
    %10 = vector.broadcast %cst_9 : f32 to vector<8x128xf32>
    %cst_10 = arith.constant 0.000000e+00 : f32
    %11 = vector.broadcast %cst_10 : f32 to vector<8x128xf32>
    %cst_11 = arith.constant 0.000000e+00 : f32
    %12 = vector.broadcast %cst_11 : f32 to vector<8x128xf32>
    %cst_12 = arith.constant 0.000000e+00 : f32
    %13 = vector.broadcast %cst_12 : f32 to vector<8x128xf32>
    %c0_13 = arith.constant 0 : index
    %c0_14 = arith.constant 0 : index
    %c0_15 = arith.constant 0 : index
    %14 = vector.load %arg11[%c0_13, %c0_14, %c0_15] : memref<8x8x1024xf32, #tpu.memory_space<vmem>>, vector<1x8x512xf32>
    %15 = vector.shape_cast %14 : vector<1x8x512xf32> to vector<8x512xf32>
    %16 = arith.truncf %10 : vector<8x128xf32> to vector<8x128xbf16>
    %c0_16 = arith.constant 0 : index
    %c0_17 = arith.constant 0 : index
    %c0_18 = arith.constant 0 : index
    %17 = vector.load %arg3[%c0_16, %c0_17, %c0_18] : memref<2x128x512xbf16, #tpu.memory_space<vmem>>, vector<1x128x512xbf16>
    %18 = vector.shape_cast %17 : vector<1x128x512xbf16> to vector<128x512xbf16>
    %cst_19 = arith.constant dense<0.000000e+00> : vector<8x512xf32>
    %19 = tpu.matmul %16, %18, %cst_19 {dimension_numbers = #tpu.dot_dimension_numbers<[1], [0], [0], [1], [0, 0, 1, 1], [], []>} : vector<8x128xbf16>, vector<128x512xbf16>, vector<8x512xf32> -> vector<8x512xf32>
    %20 = arith.addf %15, %19 : vector<8x512xf32>
    %c7 = arith.constant 7 : index
    %c0_20 = arith.constant 0 : index
    %c512 = arith.constant 512 : index
    %21 = vector.load %arg11[%c7, %c0_20, %c512] : memref<8x8x1024xf32, #tpu.memory_space<vmem>>, vector<1x8x512xf32>
    %22 = vector.shape_cast %21 : vector<1x8x512xf32> to vector<8x512xf32>
    %23 = arith.truncf %12 : vector<8x128xf32> to vector<8x128xbf16>
    %c1 = arith.constant 1 : index
    %c0_21 = arith.constant 0 : index
    %c0_22 = arith.constant 0 : index
    %24 = vector.load %arg3[%c1, %c0_21, %c0_22] : memref<2x128x512xbf16, #tpu.memory_space<vmem>>, vector<1x128x512xbf16>
    %25 = vector.shape_cast %24 : vector<1x128x512xbf16> to vector<128x512xbf16>
    %cst_23 = arith.constant dense<0.000000e+00> : vector<8x512xf32>
    %26 = tpu.matmul %23, %25, %cst_23 {dimension_numbers = #tpu.dot_dimension_numbers<[1], [0], [0], [1], [0, 0, 1, 1], [], []>} : vector<8x128xbf16>, vector<128x512xbf16>, vector<8x512xf32> -> vector<8x512xf32>
    %27 = arith.addf %22, %26 : vector<8x512xf32>
    %28 = vector.extract_strided_slice %20 {offsets = [0, 0], sizes = [8, 128], strides = [1, 1]} : vector<8x512xf32> to vector<8x128xf32>
    %29 = arith.negf %28 : vector<8x128xf32>
    %30 = math.exp %29 : vector<8x128xf32>
    %cst_24 = arith.constant 1.000000e+00 : f32
    %31 = vector.broadcast %cst_24 : f32 to vector<8x128xf32>
    %32 = arith.addf %31, %30 : vector<8x128xf32>
    %33 = arith.divf %31, %32 : vector<8x128xf32>
    %34 = vector.extract_strided_slice %20 {offsets = [0, 128], sizes = [8, 128], strides = [1, 1]} : vector<8x512xf32> to vector<8x128xf32>
    %35 = arith.negf %34 : vector<8x128xf32>
    %36 = math.exp %35 : vector<8x128xf32>
    %cst_25 = arith.constant 1.000000e+00 : f32
    %37 = vector.broadcast %cst_25 : f32 to vector<8x128xf32>
    %38 = arith.addf %37, %36 : vector<8x128xf32>
    %39 = arith.divf %37, %38 : vector<8x128xf32>
    %40 = vector.extract_strided_slice %20 {offsets = [0, 256], sizes = [8, 128], strides = [1, 1]} : vector<8x512xf32> to vector<8x128xf32>
    %41 = math.tanh %40 : vector<8x128xf32>
    %42 = vector.extract_strided_slice %20 {offsets = [0, 384], sizes = [8, 128], strides = [1, 1]} : vector<8x512xf32> to vector<8x128xf32>
    %43 = arith.negf %42 : vector<8x128xf32>
    %44 = math.exp %43 : vector<8x128xf32>
    %cst_26 = arith.constant 1.000000e+00 : f32
    %45 = vector.broadcast %cst_26 : f32 to vector<8x128xf32>
    %46 = arith.addf %45, %44 : vector<8x128xf32>
    %47 = arith.divf %45, %46 : vector<8x128xf32>
    %48 = arith.mulf %39, %11 : vector<8x128xf32>
    %49 = arith.mulf %33, %41 : vector<8x128xf32>
    %50 = arith.addf %48, %49 : vector<8x128xf32>
    %51 = math.tanh %50 : vector<8x128xf32>
    %52 = arith.mulf %47, %51 : vector<8x128xf32>
    %53 = vector.extract_strided_slice %27 {offsets = [0, 0], sizes = [8, 128], strides = [1, 1]} : vector<8x512xf32> to vector<8x128xf32>
    %54 = arith.negf %53 : vector<8x128xf32>
    %55 = math.exp %54 : vector<8x128xf32>
    %cst_27 = arith.constant 1.000000e+00 : f32
    %56 = vector.broadcast %cst_27 : f32 to vector<8x128xf32>
    %57 = arith.addf %56, %55 : vector<8x128xf32>
    %58 = arith.divf %56, %57 : vector<8x128xf32>
    %59 = vector.extract_strided_slice %27 {offsets = [0, 128], sizes = [8, 128], strides = [1, 1]} : vector<8x512xf32> to vector<8x128xf32>
    %60 = arith.negf %59 : vector<8x128xf32>
    %61 = math.exp %60 : vector<8x128xf32>
    %cst_28 = arith.constant 1.000000e+00 : f32
    %62 = vector.broadcast %cst_28 : f32 to vector<8x128xf32>
    %63 = arith.addf %62, %61 : vector<8x128xf32>
    %64 = arith.divf %62, %63 : vector<8x128xf32>
    %65 = vector.extract_strided_slice %27 {offsets = [0, 256], sizes = [8, 128], strides = [1, 1]} : vector<8x512xf32> to vector<8x128xf32>
    %66 = math.tanh %65 : vector<8x128xf32>
    %67 = vector.extract_strided_slice %27 {offsets = [0, 384], sizes = [8, 128], strides = [1, 1]} : vector<8x512xf32> to vector<8x128xf32>
    %68 = arith.negf %67 : vector<8x128xf32>
    %69 = math.exp %68 : vector<8x128xf32>
    %cst_29 = arith.constant 1.000000e+00 : f32
    %70 = vector.broadcast %cst_29 : f32 to vector<8x128xf32>
    %71 = arith.addf %70, %69 : vector<8x128xf32>
    %72 = arith.divf %70, %71 : vector<8x128xf32>
    %73 = arith.mulf %64, %13 : vector<8x128xf32>
    %74 = arith.mulf %58, %66 : vector<8x128xf32>
    %75 = arith.addf %73, %74 : vector<8x128xf32>
    %76 = math.tanh %75 : vector<8x128xf32>
    %77 = arith.mulf %72, %76 : vector<8x128xf32>
    %c0_30 = arith.constant 0 : index
    %c0_31 = arith.constant 0 : index
    %c0_32 = arith.constant 0 : index
    %78 = vector.load %arg1[%c0_30, %c0_31, %c0_32] : memref<8x8x128xf32, #tpu.memory_space<vmem>>, vector<1x8x128xf32>
    %79 = vector.shape_cast %78 : vector<1x8x128xf32> to vector<8x128xf32>
    %cst_33 = arith.constant 0.000000e+00 : f32
    %80 = vector.broadcast %cst_33 : f32 to vector<8x128xf32>
    %81 = arith.cmpf one, %79, %80 : vector<8x128xf32>
    %c7_34 = arith.constant 7 : index
    %c0_35 = arith.constant 0 : index
    %c0_36 = arith.constant 0 : index
    %82 = vector.load %arg1[%c7_34, %c0_35, %c0_36] : memref<8x8x128xf32, #tpu.memory_space<vmem>>, vector<1x8x128xf32>
    %83 = vector.shape_cast %82 : vector<1x8x128xf32> to vector<8x128xf32>
    %cst_37 = arith.constant 0.000000e+00 : f32
    %84 = vector.broadcast %cst_37 : f32 to vector<8x128xf32>
    %85 = arith.cmpf one, %83, %84 : vector<8x128xf32>
    %86 = arith.select %81, %52, %10 : vector<8x128xi1>, vector<8x128xf32>
    %87 = arith.select %81, %50, %11 : vector<8x128xi1>, vector<8x128xf32>
    %88 = arith.select %85, %77, %12 : vector<8x128xi1>, vector<8x128xf32>
    %89 = arith.select %85, %75, %13 : vector<8x128xi1>, vector<8x128xf32>
    %cst_38 = arith.constant 0.000000e+00 : f32
    %90 = vector.broadcast %cst_38 : f32 to vector<8x128xf32>
    %91 = arith.select %81, %52, %90 : vector<8x128xi1>, vector<8x128xf32>
    %c0_39 = arith.constant 0 : index
    %c0_40 = arith.constant 0 : index
    %c0_41 = arith.constant 0 : index
    %92 = vector.load %arg12[%c0_39, %c0_40, %c0_41] : memref<8x8x256xf32, #tpu.memory_space<vmem>>, vector<1x8x128xf32>
    %93 = vector.shape_cast %92 : vector<1x8x128xf32> to vector<8x128xf32>
    %94 = vector.shape_cast %91 : vector<8x128xf32> to vector<1x8x128xf32>
    tpu.vector_store %arg12[%c0_39, %c0_40, %c0_41], %94 {strides = array<i32>} : memref<8x8x256xf32, #tpu.memory_space<vmem>>, vector<1x8x128xf32>,
    %cst_42 = arith.constant 0.000000e+00 : f32
    %95 = vector.broadcast %cst_42 : f32 to vector<8x128xf32>
    %96 = arith.select %85, %77, %95 : vector<8x128xi1>, vector<8x128xf32>
    %c7_43 = arith.constant 7 : index
    %c0_44 = arith.constant 0 : index
    %c128 = arith.constant 128 : index
    %97 = vector.load %arg12[%c7_43, %c0_44, %c128] : memref<8x8x256xf32, #tpu.memory_space<vmem>>, vector<1x8x128xf32>
    %98 = vector.shape_cast %97 : vector<1x8x128xf32> to vector<8x128xf32>
    %99 = vector.shape_cast %96 : vector<8x128xf32> to vector<1x8x128xf32>
    tpu.vector_store %arg12[%c7_43, %c0_44, %c128], %99 {strides = array<i32>} : memref<8x8x256xf32, #tpu.memory_space<vmem>>, vector<1x8x128xf32>,
    %c1_45 = arith.constant 1 : index
    %c0_46 = arith.constant 0 : index
    %c0_47 = arith.constant 0 : index
    %100 = vector.load %arg11[%c1_45, %c0_46, %c0_47] : memref<8x8x1024xf32, #tpu.memory_space<vmem>>, vector<1x8x512xf32>
    %101 = vector.shape_cast %100 : vector<1x8x512xf32> to vector<8x512xf32>
    %102 = arith.truncf %86 : vector<8x128xf32> to vector<8x128xbf16>
    %c0_48 = arith.constant 0 : index
    %c0_49 = arith.constant 0 : index
    %c0_50 = arith.constant 0 : index
    %103 = vector.load %arg3[%c0_48, %c0_49, %c0_50] : memref<2x128x512xbf16, #tpu.memory_space<vmem>>, vector<1x128x512xbf16>
    %104 = vector.shape_cast %103 : vector<1x128x512xbf16> to vector<128x512xbf16>
    %cst_51 = arith.constant dense<0.000000e+00> : vector<8x512xf32>
    %105 = tpu.matmul %102, %104, %cst_51 {dimension_numbers = #tpu.dot_dimension_numbers<[1], [0], [0], [1], [0, 0, 1, 1], [], []>} : vector<8x128xbf16>, vector<128x512xbf16>, vector<8x512xf32> -> vector<8x512xf32>
    %106 = arith.addf %101, %105 : vector<8x512xf32>
    %c6 = arith.constant 6 : index
    %c0_52 = arith.constant 0 : index
    %c512_53 = arith.constant 512 : index
    %107 = vector.load %arg11[%c6, %c0_52, %c512_53] : memref<8x8x1024xf32, #tpu.memory_space<vmem>>, vector<1x8x512xf32>
    %108 = vector.shape_cast %107 : vector<1x8x512xf32> to vector<8x512xf32>
    %109 = arith.truncf %88 : vector<8x128xf32> to vector<8x128xbf16>
    %c1_54 = arith.constant 1 : index
    %c0_55 = arith.constant 0 : index
    %c0_56 = arith.constant 0 : index
    %110 = vector.load %arg3[%c1_54, %c0_55, %c0_56] : memref<2x128x512xbf16, #tpu.memory_space<vmem>>, vector<1x128x512xbf16>
    %111 = vector.shape_cast %110 : vector<1x128x512xbf16> to vector<128x512xbf16>
    %cst_57 = arith.constant dense<0.000000e+00> : vector<8x512xf32>
    %112 = tpu.matmul %109, %111, %cst_57 {dimension_numbers = #tpu.dot_dimension_numbers<[1], [0], [0], [1], [0, 0, 1, 1], [], []>} : vector<8x128xbf16>, vector<128x512xbf16>, vector<8x512xf32> -> vector<8x512xf32>
    %113 = arith.addf %108, %112 : vector<8x512xf32>
    %114 = vector.extract_strided_slice %106 {offsets = [0, 0], sizes = [8, 128], strides = [1, 1]} : vector<8x512xf32> to vector<8x128xf32>
    %115 = arith.negf %114 : vector<8x128xf32>
    %116 = math.exp %115 : vector<8x128xf32>
    %cst_58 = arith.constant 1.000000e+00 : f32
    %117 = vector.broadcast %cst_58 : f32 to vector<8x128xf32>
    %118 = arith.addf %117, %116 : vector<8x128xf32>
    %119 = arith.divf %117, %118 : vector<8x128xf32>
    %120 = vector.extract_strided_slice %106 {offsets = [0, 128], sizes = [8, 128], strides = [1, 1]} : vector<8x512xf32> to vector<8x128xf32>
    %121 = arith.negf %120 : vector<8x128xf32>
    %122 = math.exp %121 : vector<8x128xf32>
    %cst_59 = arith.constant 1.000000e+00 : f32
    %123 = vector.broadcast %cst_59 : f32 to vector<8x128xf32>
    %124 = arith.addf %123, %122 : vector<8x128xf32>
    %125 = arith.divf %123, %124 : vector<8x128xf32>
    %126 = vector.extract_strided_slice %106 {offsets = [0, 256], sizes = [8, 128], strides = [1, 1]} : vector<8x512xf32> to vector<8x128xf32>
    %127 = math.tanh %126 : vector<8x128xf32>
    %128 = vector.extract_strided_slice %106 {offsets = [0, 384], sizes = [8, 128], strides = [1, 1]} : vector<8x512xf32> to vector<8x128xf32>
    %129 = arith.negf %128 : vector<8x128xf32>
    %130 = math.exp %129 : vector<8x128xf32>
    %cst_60 = arith.constant 1.000000e+00 : f32
    %131 = vector.broadcast %cst_60 : f32 to vector<8x128xf32>
    %132 = arith.addf %131, %130 : vector<8x128xf32>
    %133 = arith.divf %131, %132 : vector<8x128xf32>
    %134 = arith.mulf %125, %87 : vector<8x128xf32>
    %135 = arith.mulf %119, %127 : vector<8x128xf32>
    %136 = arith.addf %134, %135 : vector<8x128xf32>
    %137 = math.tanh %136 : vector<8x128xf32>
    %138 = arith.mulf %133, %137 : vector<8x128xf32>
    %139 = vector.extract_strided_slice %113 {offsets = [0, 0], sizes = [8, 128], strides = [1, 1]} : vector<8x512xf32> to vector<8x128xf32>
    %140 = arith.negf %139 : vector<8x128xf32>
    %141 = math.exp %140 : vector<8x128xf32>
    %cst_61 = arith.constant 1.000000e+00 : f32
    %142 = vector.broadcast %cst_61 : f32 to vector<8x128xf32>
    %143 = arith.addf %142, %141 : vector<8x128xf32>
    %144 = arith.divf %142, %143 : vector<8x128xf32>
    %145 = vector.extract_strided_slice %113 {offsets = [0, 128], sizes = [8, 128], strides = [1, 1]} : vector<8x512xf32> to vector<8x128xf32>
    %146 = arith.negf %145 : vector<8x128xf32>
    %147 = math.exp %146 : vector<8x128xf32>
    %cst_62 = arith.constant 1.000000e+00 : f32
    %148 = vector.broadcast %cst_62 : f32 to vector<8x128xf32>
    %149 = arith.addf %148, %147 : vector<8x128xf32>
    %150 = arith.divf %148, %149 : vector<8x128xf32>
    %151 = vector.extract_strided_slice %113 {offsets = [0, 256], sizes = [8, 128], strides = [1, 1]} : vector<8x512xf32> to vector<8x128xf32>
    %152 = math.tanh %151 : vector<8x128xf32>
    %153 = vector.extract_strided_slice %113 {offsets = [0, 384], sizes = [8, 128], strides = [1, 1]} : vector<8x512xf32> to vector<8x128xf32>
    %154 = arith.negf %153 : vector<8x128xf32>
    %155 = math.exp %154 : vector<8x128xf32>
    %cst_63 = arith.constant 1.000000e+00 : f32
    %156 = vector.broadcast %cst_63 : f32 to vector<8x128xf32>
    %157 = arith.addf %156, %155 : vector<8x128xf32>
    %158 = arith.divf %156, %157 : vector<8x128xf32>
    %159 = arith.mulf %150, %89 : vector<8x128xf32>
    %160 = arith.mulf %144, %152 : vector<8x128xf32>
    %161 = arith.addf %159, %160 : vector<8x128xf32>
    %162 = math.tanh %161 : vector<8x128xf32>
    %163 = arith.mulf %158, %162 : vector<8x128xf32>
    %c1_64 = arith.constant 1 : index
    %c0_65 = arith.constant 0 : index
    %c0_66 = arith.constant 0 : index
    %164 = vector.load %arg1[%c1_64, %c0_65, %c0_66] : memref<8x8x128xf32, #tpu.memory_space<vmem>>, vector<1x8x128xf32>
    %165 = vector.shape_cast %164 : vector<1x8x128xf32> to vector<8x128xf32>
    %cst_67 = arith.constant 0.000000e+00 : f32
    %166 = vector.broadcast %cst_67 : f32 to vector<8x128xf32>
    %167 = arith.cmpf one, %165, %166 : vector<8x128xf32>
    %c6_68 = arith.constant 6 : index
    %c0_69 = arith.constant 0 : index
    %c0_70 = arith.constant 0 : index
    %168 = vector.load %arg1[%c6_68, %c0_69, %c0_70] : memref<8x8x128xf32, #tpu.memory_space<vmem>>, vector<1x8x128xf32>
    %169 = vector.shape_cast %168 : vector<1x8x128xf32> to vector<8x128xf32>
    %cst_71 = arith.constant 0.000000e+00 : f32
    %170 = vector.broadcast %cst_71 : f32 to vector<8x128xf32>
    %171 = arith.cmpf one, %169, %170 : vector<8x128xf32>
    %172 = arith.select %167, %138, %86 : vector<8x128xi1>, vector<8x128xf32>
    %173 = arith.select %167, %136, %87 : vector<8x128xi1>, vector<8x128xf32>
    %174 = arith.select %171, %163, %88 : vector<8x128xi1>, vector<8x128xf32>
    %175 = arith.select %171, %161, %89 : vector<8x128xi1>, vector<8x128xf32>
    %cst_72 = arith.constant 0.000000e+00 : f32
    %176 = vector.broadcast %cst_72 : f32 to vector<8x128xf32>
    %177 = arith.select %167, %138, %176 : vector<8x128xi1>, vector<8x128xf32>
    %c1_73 = arith.constant 1 : index
    %c0_74 = arith.constant 0 : index
    %c0_75 = arith.constant 0 : index
    %178 = vector.load %arg12[%c1_73, %c0_74, %c0_75] : memref<8x8x256xf32, #tpu.memory_space<vmem>>, vector<1x8x128xf32>
    %179 = vector.shape_cast %178 : vector<1x8x128xf32> to vector<8x128xf32>
    %180 = vector.shape_cast %177 : vector<8x128xf32> to vector<1x8x128xf32>
    tpu.vector_store %arg12[%c1_73, %c0_74, %c0_75], %180 {strides = array<i32>} : memref<8x8x256xf32, #tpu.memory_space<vmem>>, vector<1x8x128xf32>,
    %cst_76 = arith.constant 0.000000e+00 : f32
    %181 = vector.broadcast %cst_76 : f32 to vector<8x128xf32>
    %182 = arith.select %171, %163, %181 : vector<8x128xi1>, vector<8x128xf32>
    %c6_77 = arith.constant 6 : index
    %c0_78 = arith.constant 0 : index
    %c128_79 = arith.constant 128 : index
    %183 = vector.load %arg12[%c6_77, %c0_78, %c128_79] : memref<8x8x256xf32, #tpu.memory_space<vmem>>, vector<1x8x128xf32>
    %184 = vector.shape_cast %183 : vector<1x8x128xf32> to vector<8x128xf32>
    %185 = vector.shape_cast %182 : vector<8x128xf32> to vector<1x8x128xf32>
    tpu.vector_store %arg12[%c6_77, %c0_78, %c128_79], %185 {strides = array<i32>} : memref<8x8x256xf32, #tpu.memory_space<vmem>>, vector<1x8x128xf32>,
    %c2 = arith.constant 2 : index
    %c0_80 = arith.constant 0 : index
    %c0_81 = arith.constant 0 : index
    %186 = vector.load %arg11[%c2, %c0_80, %c0_81] : memref<8x8x1024xf32, #tpu.memory_space<vmem>>, vector<1x8x512xf32>
    %187 = vector.shape_cast %186 : vector<1x8x512xf32> to vector<8x512xf32>
    %188 = arith.truncf %172 : vector<8x128xf32> to vector<8x128xbf16>
    %c0_82 = arith.constant 0 : index
    %c0_83 = arith.constant 0 : index
    %c0_84 = arith.constant 0 : index
    %189 = vector.load %arg3[%c0_82, %c0_83, %c0_84] : memref<2x128x512xbf16, #tpu.memory_space<vmem>>, vector<1x128x512xbf16>
    %190 = vector.shape_cast %189 : vector<1x128x512xbf16> to vector<128x512xbf16>
    %cst_85 = arith.constant dense<0.000000e+00> : vector<8x512xf32>
    %191 = tpu.matmul %188, %190, %cst_85 {dimension_numbers = #tpu.dot_dimension_numbers<[1], [0], [0], [1], [0, 0, 1, 1], [], []>} : vector<8x128xbf16>, vector<128x512xbf16>, vector<8x512xf32> -> vector<8x512xf32>
    %192 = arith.addf %187, %191 : vector<8x512xf32>
    %c5 = arith.constant 5 : index
    %c0_86 = arith.constant 0 : index
    %c512_87 = arith.constant 512 : index
    %193 = vector.load %arg11[%c5, %c0_86, %c512_87] : memref<8x8x1024xf32, #tpu.memory_space<vmem>>, vector<1x8x512xf32>
    %194 = vector.shape_cast %193 : vector<1x8x512xf32> to vector<8x512xf32>
    %195 = arith.truncf %174 : vector<8x128xf32> to vector<8x128xbf16>
    %c1_88 = arith.constant 1 : index
    %c0_89 = arith.constant 0 : index
    %c0_90 = arith.constant 0 : index
    %196 = vector.load %arg3[%c1_88, %c0_89, %c0_90] : memref<2x128x512xbf16, #tpu.memory_space<vmem>>, vector<1x128x512xbf16>
    %197 = vector.shape_cast %196 : vector<1x128x512xbf16> to vector<128x512xbf16>
    %cst_91 = arith.constant dense<0.000000e+00> : vector<8x512xf32>
    %198 = tpu.matmul %195, %197, %cst_91 {dimension_numbers = #tpu.dot_dimension_numbers<[1], [0], [0], [1], [0, 0, 1, 1], [], []>} : vector<8x128xbf16>, vector<128x512xbf16>, vector<8x512xf32> -> vector<8x512xf32>
    %199 = arith.addf %194, %198 : vector<8x512xf32>
    %200 = vector.extract_strided_slice %192 {offsets = [0, 0], sizes = [8, 128], strides = [1, 1]} : vector<8x512xf32> to vector<8x128xf32>
    %201 = arith.negf %200 : vector<8x128xf32>
    %202 = math.exp %201 : vector<8x128xf32>
    %cst_92 = arith.constant 1.000000e+00 : f32
    %203 = vector.broadcast %cst_92 : f32 to vector<8x128xf32>
    %204 = arith.addf %203, %202 : vector<8x128xf32>
    %205 = arith.divf %203, %204 : vector<8x128xf32>
    %206 = vector.extract_strided_slice %192 {offsets = [0, 128], sizes = [8, 128], strides = [1, 1]} : vector<8x512xf32> to vector<8x128xf32>
    %207 = arith.negf %206 : vector<8x128xf32>
    %208 = math.exp %207 : vector<8x128xf32>
    %cst_93 = arith.constant 1.000000e+00 : f32
    %209 = vector.broadcast %cst_93 : f32 to vector<8x128xf32>
    %210 = arith.addf %209, %208 : vector<8x128xf32>
    %211 = arith.divf %209, %210 : vector<8x128xf32>
    %212 = vector.extract_strided_slice %192 {offsets = [0, 256], sizes = [8, 128], strides = [1, 1]} : vector<8x512xf32> to vector<8x128xf32>
    %213 = math.tanh %212 : vector<8x128xf32>
    %214 = vector.extract_strided_slice %192 {offsets = [0, 384], sizes = [8, 128], strides = [1, 1]} : vector<8x512xf32> to vector<8x128xf32>
    %215 = arith.negf %214 : vector<8x128xf32>
    %216 = math.exp %215 : vector<8x128xf32>
    %cst_94 = arith.constant 1.000000e+00 : f32
    %217 = vector.broadcast %cst_94 : f32 to vector<8x128xf32>
    %218 = arith.addf %217, %216 : vector<8x128xf32>
    %219 = arith.divf %217, %218 : vector<8x128xf32>
    %220 = arith.mulf %211, %173 : vector<8x128xf32>
    %221 = arith.mulf %205, %213 : vector<8x128xf32>
    %222 = arith.addf %220, %221 : vector<8x128xf32>
    %223 = math.tanh %222 : vector<8x128xf32>
    %224 = arith.mulf %219, %223 : vector<8x128xf32>
    %225 = vector.extract_strided_slice %199 {offsets = [0, 0], sizes = [8, 128], strides = [1, 1]} : vector<8x512xf32> to vector<8x128xf32>
    %226 = arith.negf %225 : vector<8x128xf32>
    %227 = math.exp %226 : vector<8x128xf32>
    %cst_95 = arith.constant 1.000000e+00 : f32
    %228 = vector.broadcast %cst_95 : f32 to vector<8x128xf32>
    %229 = arith.addf %228, %227 : vector<8x128xf32>
    %230 = arith.divf %228, %229 : vector<8x128xf32>
    %231 = vector.extract_strided_slice %199 {offsets = [0, 128], sizes = [8, 128], strides = [1, 1]} : vector<8x512xf32> to vector<8x128xf32>
    %232 = arith.negf %231 : vector<8x128xf32>
    %233 = math.exp %232 : vector<8x128xf32>
    %cst_96 = arith.constant 1.000000e+00 : f32
    %234 = vector.broadcast %cst_96 : f32 to vector<8x128xf32>
    %235 = arith.addf %234, %233 : vector<8x128xf32>
    %236 = arith.divf %234, %235 : vector<8x128xf32>
    %237 = vector.extract_strided_slice %199 {offsets = [0, 256], sizes = [8, 128], strides = [1, 1]} : vector<8x512xf32> to vector<8x128xf32>
    %238 = math.tanh %237 : vector<8x128xf32>
    %239 = vector.extract_strided_slice %199 {offsets = [0, 384], sizes = [8, 128], strides = [1, 1]} : vector<8x512xf32> to vector<8x128xf32>
    %240 = arith.negf %239 : vector<8x128xf32>
    %241 = math.exp %240 : vector<8x128xf32>
    %cst_97 = arith.constant 1.000000e+00 : f32
    %242 = vector.broadcast %cst_97 : f32 to vector<8x128xf32>
    %243 = arith.addf %242, %241 : vector<8x128xf32>
    %244 = arith.divf %242, %243 : vector<8x128xf32>
    %245 = arith.mulf %236, %175 : vector<8x128xf32>
    %246 = arith.mulf %230, %238 : vector<8x128xf32>
    %247 = arith.addf %245, %246 : vector<8x128xf32>
    %248 = math.tanh %247 : vector<8x128xf32>
    %249 = arith.mulf %244, %248 : vector<8x128xf32>
    %c2_98 = arith.constant 2 : index
    %c0_99 = arith.constant 0 : index
    %c0_100 = arith.constant 0 : index
    %250 = vector.load %arg1[%c2_98, %c0_99, %c0_100] : memref<8x8x128xf32, #tpu.memory_space<vmem>>, vector<1x8x128xf32>
    %251 = vector.shape_cast %250 : vector<1x8x128xf32> to vector<8x128xf32>
    %cst_101 = arith.constant 0.000000e+00 : f32
    %252 = vector.broadcast %cst_101 : f32 to vector<8x128xf32>
    %253 = arith.cmpf one, %251, %252 : vector<8x128xf32>
    %c5_102 = arith.constant 5 : index
    %c0_103 = arith.constant 0 : index
    %c0_104 = arith.constant 0 : index
    %254 = vector.load %arg1[%c5_102, %c0_103, %c0_104] : memref<8x8x128xf32, #tpu.memory_space<vmem>>, vector<1x8x128xf32>
    %255 = vector.shape_cast %254 : vector<1x8x128xf32> to vector<8x128xf32>
    %cst_105 = arith.constant 0.000000e+00 : f32
    %256 = vector.broadcast %cst_105 : f32 to vector<8x128xf32>
    %257 = arith.cmpf one, %255, %256 : vector<8x128xf32>
    %258 = arith.select %253, %224, %172 : vector<8x128xi1>, vector<8x128xf32>
    %259 = arith.select %253, %222, %173 : vector<8x128xi1>, vector<8x128xf32>
    %260 = arith.select %257, %249, %174 : vector<8x128xi1>, vector<8x128xf32>
    %261 = arith.select %257, %247, %175 : vector<8x128xi1>, vector<8x128xf32>
    %cst_106 = arith.constant 0.000000e+00 : f32
    %262 = vector.broadcast %cst_106 : f32 to vector<8x128xf32>
    %263 = arith.select %253, %224, %262 : vector<8x128xi1>, vector<8x128xf32>
    %c2_107 = arith.constant 2 : index
    %c0_108 = arith.constant 0 : index
    %c0_109 = arith.constant 0 : index
    %264 = vector.load %arg12[%c2_107, %c0_108, %c0_109] : memref<8x8x256xf32, #tpu.memory_space<vmem>>, vector<1x8x128xf32>
    %265 = vector.shape_cast %264 : vector<1x8x128xf32> to vector<8x128xf32>
    %266 = vector.shape_cast %263 : vector<8x128xf32> to vector<1x8x128xf32>
    tpu.vector_store %arg12[%c2_107, %c0_108, %c0_109], %266 {strides = array<i32>} : memref<8x8x256xf32, #tpu.memory_space<vmem>>, vector<1x8x128xf32>,
    %cst_110 = arith.constant 0.000000e+00 : f32
    %267 = vector.broadcast %cst_110 : f32 to vector<8x128xf32>
    %268 = arith.select %257, %249, %267 : vector<8x128xi1>, vector<8x128xf32>
    %c5_111 = arith.constant 5 : index
    %c0_112 = arith.constant 0 : index
    %c128_113 = arith.constant 128 : index
    %269 = vector.load %arg12[%c5_111, %c0_112, %c128_113] : memref<8x8x256xf32, #tpu.memory_space<vmem>>, vector<1x8x128xf32>
    %270 = vector.shape_cast %269 : vector<1x8x128xf32> to vector<8x128xf32>
    %271 = vector.shape_cast %268 : vector<8x128xf32> to vector<1x8x128xf32>
    tpu.vector_store %arg12[%c5_111, %c0_112, %c128_113], %271 {strides = array<i32>} : memref<8x8x256xf32, #tpu.memory_space<vmem>>, vector<1x8x128xf32>,
    %c3 = arith.constant 3 : index
    %c0_114 = arith.constant 0 : index
    %c0_115 = arith.constant 0 : index
    %272 = vector.load %arg11[%c3, %c0_114, %c0_115] : memref<8x8x1024xf32, #tpu.memory_space<vmem>>, vector<1x8x512xf32>
    %273 = vector.shape_cast %272 : vector<1x8x512xf32> to vector<8x512xf32>
    %274 = arith.truncf %258 : vector<8x128xf32> to vector<8x128xbf16>
    %c0_116 = arith.constant 0 : index
    %c0_117 = arith.constant 0 : index
    %c0_118 = arith.constant 0 : index
    %275 = vector.load %arg3[%c0_116, %c0_117, %c0_118] : memref<2x128x512xbf16, #tpu.memory_space<vmem>>, vector<1x128x512xbf16>
    %276 = vector.shape_cast %275 : vector<1x128x512xbf16> to vector<128x512xbf16>
    %cst_119 = arith.constant dense<0.000000e+00> : vector<8x512xf32>
    %277 = tpu.matmul %274, %276, %cst_119 {dimension_numbers = #tpu.dot_dimension_numbers<[1], [0], [0], [1], [0, 0, 1, 1], [], []>} : vector<8x128xbf16>, vector<128x512xbf16>, vector<8x512xf32> -> vector<8x512xf32>
    %278 = arith.addf %273, %277 : vector<8x512xf32>
    %c4 = arith.constant 4 : index
    %c0_120 = arith.constant 0 : index
    %c512_121 = arith.constant 512 : index
    %279 = vector.load %arg11[%c4, %c0_120, %c512_121] : memref<8x8x1024xf32, #tpu.memory_space<vmem>>, vector<1x8x512xf32>
    %280 = vector.shape_cast %279 : vector<1x8x512xf32> to vector<8x512xf32>
    %281 = arith.truncf %260 : vector<8x128xf32> to vector<8x128xbf16>
    %c1_122 = arith.constant 1 : index
    %c0_123 = arith.constant 0 : index
    %c0_124 = arith.constant 0 : index
    %282 = vector.load %arg3[%c1_122, %c0_123, %c0_124] : memref<2x128x512xbf16, #tpu.memory_space<vmem>>, vector<1x128x512xbf16>
    %283 = vector.shape_cast %282 : vector<1x128x512xbf16> to vector<128x512xbf16>
    %cst_125 = arith.constant dense<0.000000e+00> : vector<8x512xf32>
    %284 = tpu.matmul %281, %283, %cst_125 {dimension_numbers = #tpu.dot_dimension_numbers<[1], [0], [0], [1], [0, 0, 1, 1], [], []>} : vector<8x128xbf16>, vector<128x512xbf16>, vector<8x512xf32> -> vector<8x512xf32>
    %285 = arith.addf %280, %284 : vector<8x512xf32>
    %286 = vector.extract_strided_slice %278 {offsets = [0, 0], sizes = [8, 128], strides = [1, 1]} : vector<8x512xf32> to vector<8x128xf32>
    %287 = arith.negf %286 : vector<8x128xf32>
    %288 = math.exp %287 : vector<8x128xf32>
    %cst_126 = arith.constant 1.000000e+00 : f32
    %289 = vector.broadcast %cst_126 : f32 to vector<8x128xf32>
    %290 = arith.addf %289, %288 : vector<8x128xf32>
    %291 = arith.divf %289, %290 : vector<8x128xf32>
    %292 = vector.extract_strided_slice %278 {offsets = [0, 128], sizes = [8, 128], strides = [1, 1]} : vector<8x512xf32> to vector<8x128xf32>
    %293 = arith.negf %292 : vector<8x128xf32>
    %294 = math.exp %293 : vector<8x128xf32>
    %cst_127 = arith.constant 1.000000e+00 : f32
    %295 = vector.broadcast %cst_127 : f32 to vector<8x128xf32>
    %296 = arith.addf %295, %294 : vector<8x128xf32>
    %297 = arith.divf %295, %296 : vector<8x128xf32>
    %298 = vector.extract_strided_slice %278 {offsets = [0, 256], sizes = [8, 128], strides = [1, 1]} : vector<8x512xf32> to vector<8x128xf32>
    %299 = math.tanh %298 : vector<8x128xf32>
    %300 = vector.extract_strided_slice %278 {offsets = [0, 384], sizes = [8, 128], strides = [1, 1]} : vector<8x512xf32> to vector<8x128xf32>
    %301 = arith.negf %300 : vector<8x128xf32>
    %302 = math.exp %301 : vector<8x128xf32>
    %cst_128 = arith.constant 1.000000e+00 : f32
    %303 = vector.broadcast %cst_128 : f32 to vector<8x128xf32>
    %304 = arith.addf %303, %302 : vector<8x128xf32>
    %305 = arith.divf %303, %304 : vector<8x128xf32>
    %306 = arith.mulf %297, %259 : vector<8x128xf32>
    %307 = arith.mulf %291, %299 : vector<8x128xf32>
    %308 = arith.addf %306, %307 : vector<8x128xf32>
    %309 = math.tanh %308 : vector<8x128xf32>
    %310 = arith.mulf %305, %309 : vector<8x128xf32>
    %311 = vector.extract_strided_slice %285 {offsets = [0, 0], sizes = [8, 128], strides = [1, 1]} : vector<8x512xf32> to vector<8x128xf32>
    %312 = arith.negf %311 : vector<8x128xf32>
    %313 = math.exp %312 : vector<8x128xf32>
    %cst_129 = arith.constant 1.000000e+00 : f32
    %314 = vector.broadcast %cst_129 : f32 to vector<8x128xf32>
    %315 = arith.addf %314, %313 : vector<8x128xf32>
    %316 = arith.divf %314, %315 : vector<8x128xf32>
    %317 = vector.extract_strided_slice %285 {offsets = [0, 128], sizes = [8, 128], strides = [1, 1]} : vector<8x512xf32> to vector<8x128xf32>
    %318 = arith.negf %317 : vector<8x128xf32>
    %319 = math.exp %318 : vector<8x128xf32>
    %cst_130 = arith.constant 1.000000e+00 : f32
    %320 = vector.broadcast %cst_130 : f32 to vector<8x128xf32>
    %321 = arith.addf %320, %319 : vector<8x128xf32>
    %322 = arith.divf %320, %321 : vector<8x128xf32>
    %323 = vector.extract_strided_slice %285 {offsets = [0, 256], sizes = [8, 128], strides = [1, 1]} : vector<8x512xf32> to vector<8x128xf32>
    %324 = math.tanh %323 : vector<8x128xf32>
    %325 = vector.extract_strided_slice %285 {offsets = [0, 384], sizes = [8, 128], strides = [1, 1]} : vector<8x512xf32> to vector<8x128xf32>
    %326 = arith.negf %325 : vector<8x128xf32>
    %327 = math.exp %326 : vector<8x128xf32>
    %cst_131 = arith.constant 1.000000e+00 : f32
    %328 = vector.broadcast %cst_131 : f32 to vector<8x128xf32>
    %329 = arith.addf %328, %327 : vector<8x128xf32>
    %330 = arith.divf %328, %329 : vector<8x128xf32>
    %331 = arith.mulf %322, %261 : vector<8x128xf32>
    %332 = arith.mulf %316, %324 : vector<8x128xf32>
    %333 = arith.addf %331, %332 : vector<8x128xf32>
    %334 = math.tanh %333 : vector<8x128xf32>
    %335 = arith.mulf %330, %334 : vector<8x128xf32>
    %c3_132 = arith.constant 3 : index
    %c0_133 = arith.constant 0 : index
    %c0_134 = arith.constant 0 : index
    %336 = vector.load %arg1[%c3_132, %c0_133, %c0_134] : memref<8x8x128xf32, #tpu.memory_space<vmem>>, vector<1x8x128xf32>
    %337 = vector.shape_cast %336 : vector<1x8x128xf32> to vector<8x128xf32>
    %cst_135 = arith.constant 0.000000e+00 : f32
    %338 = vector.broadcast %cst_135 : f32 to vector<8x128xf32>
    %339 = arith.cmpf one, %337, %338 : vector<8x128xf32>
    %c4_136 = arith.constant 4 : index
    %c0_137 = arith.constant 0 : index
    %c0_138 = arith.constant 0 : index
    %340 = vector.load %arg1[%c4_136, %c0_137, %c0_138] : memref<8x8x128xf32, #tpu.memory_space<vmem>>, vector<1x8x128xf32>
    %341 = vector.shape_cast %340 : vector<1x8x128xf32> to vector<8x128xf32>
    %cst_139 = arith.constant 0.000000e+00 : f32
    %342 = vector.broadcast %cst_139 : f32 to vector<8x128xf32>
    %343 = arith.cmpf one, %341, %342 : vector<8x128xf32>
    %344 = arith.select %339, %310, %258 : vector<8x128xi1>, vector<8x128xf32>
    %345 = arith.select %339, %308, %259 : vector<8x128xi1>, vector<8x128xf32>
    %346 = arith.select %343, %335, %260 : vector<8x128xi1>, vector<8x128xf32>
    %347 = arith.select %343, %333, %261 : vector<8x128xi1>, vector<8x128xf32>
    %cst_140 = arith.constant 0.000000e+00 : f32
    %348 = vector.broadcast %cst_140 : f32 to vector<8x128xf32>
    %349 = arith.select %339, %310, %348 : vector<8x128xi1>, vector<8x128xf32>
    %c3_141 = arith.constant 3 : index
    %c0_142 = arith.constant 0 : index
    %c0_143 = arith.constant 0 : index
    %350 = vector.load %arg12[%c3_141, %c0_142, %c0_143] : memref<8x8x256xf32, #tpu.memory_space<vmem>>, vector<1x8x128xf32>
    %351 = vector.shape_cast %350 : vector<1x8x128xf32> to vector<8x128xf32>
    %352 = vector.shape_cast %349 : vector<8x128xf32> to vector<1x8x128xf32>
    tpu.vector_store %arg12[%c3_141, %c0_142, %c0_143], %352 {strides = array<i32>} : memref<8x8x256xf32, #tpu.memory_space<vmem>>, vector<1x8x128xf32>,
    %cst_144 = arith.constant 0.000000e+00 : f32
    %353 = vector.broadcast %cst_144 : f32 to vector<8x128xf32>
    %354 = arith.select %343, %335, %353 : vector<8x128xi1>, vector<8x128xf32>
    %c4_145 = arith.constant 4 : index
    %c0_146 = arith.constant 0 : index
    %c128_147 = arith.constant 128 : index
    %355 = vector.load %arg12[%c4_145, %c0_146, %c128_147] : memref<8x8x256xf32, #tpu.memory_space<vmem>>, vector<1x8x128xf32>
    %356 = vector.shape_cast %355 : vector<1x8x128xf32> to vector<8x128xf32>
    %357 = vector.shape_cast %354 : vector<8x128xf32> to vector<1x8x128xf32>
    tpu.vector_store %arg12[%c4_145, %c0_146, %c128_147], %357 {strides = array<i32>} : memref<8x8x256xf32, #tpu.memory_space<vmem>>, vector<1x8x128xf32>,
    %c4_148 = arith.constant 4 : index
    %c0_149 = arith.constant 0 : index
    %c0_150 = arith.constant 0 : index
    %358 = vector.load %arg11[%c4_148, %c0_149, %c0_150] : memref<8x8x1024xf32, #tpu.memory_space<vmem>>, vector<1x8x512xf32>
    %359 = vector.shape_cast %358 : vector<1x8x512xf32> to vector<8x512xf32>
    %360 = arith.truncf %344 : vector<8x128xf32> to vector<8x128xbf16>
    %c0_151 = arith.constant 0 : index
    %c0_152 = arith.constant 0 : index
    %c0_153 = arith.constant 0 : index
    %361 = vector.load %arg3[%c0_151, %c0_152, %c0_153] : memref<2x128x512xbf16, #tpu.memory_space<vmem>>, vector<1x128x512xbf16>
    %362 = vector.shape_cast %361 : vector<1x128x512xbf16> to vector<128x512xbf16>
    %cst_154 = arith.constant dense<0.000000e+00> : vector<8x512xf32>
    %363 = tpu.matmul %360, %362, %cst_154 {dimension_numbers = #tpu.dot_dimension_numbers<[1], [0], [0], [1], [0, 0, 1, 1], [], []>} : vector<8x128xbf16>, vector<128x512xbf16>, vector<8x512xf32> -> vector<8x512xf32>
    %364 = arith.addf %359, %363 : vector<8x512xf32>
    %c3_155 = arith.constant 3 : index
    %c0_156 = arith.constant 0 : index
    %c512_157 = arith.constant 512 : index
    %365 = vector.load %arg11[%c3_155, %c0_156, %c512_157] : memref<8x8x1024xf32, #tpu.memory_space<vmem>>, vector<1x8x512xf32>
    %366 = vector.shape_cast %365 : vector<1x8x512xf32> to vector<8x512xf32>
    %367 = arith.truncf %346 : vector<8x128xf32> to vector<8x128xbf16>
    %c1_158 = arith.constant 1 : index
    %c0_159 = arith.constant 0 : index
    %c0_160 = arith.constant 0 : index
    %368 = vector.load %arg3[%c1_158, %c0_159, %c0_160] : memref<2x128x512xbf16, #tpu.memory_space<vmem>>, vector<1x128x512xbf16>
    %369 = vector.shape_cast %368 : vector<1x128x512xbf16> to vector<128x512xbf16>
    %cst_161 = arith.constant dense<0.000000e+00> : vector<8x512xf32>
    %370 = tpu.matmul %367, %369, %cst_161 {dimension_numbers = #tpu.dot_dimension_numbers<[1], [0], [0], [1], [0, 0, 1, 1], [], []>} : vector<8x128xbf16>, vector<128x512xbf16>, vector<8x512xf32> -> vector<8x512xf32>
    %371 = arith.addf %366, %370 : vector<8x512xf32>
    %372 = vector.extract_strided_slice %364 {offsets = [0, 0], sizes = [8, 128], strides = [1, 1]} : vector<8x512xf32> to vector<8x128xf32>
    %373 = arith.negf %372 : vector<8x128xf32>
    %374 = math.exp %373 : vector<8x128xf32>
    %cst_162 = arith.constant 1.000000e+00 : f32
    %375 = vector.broadcast %cst_162 : f32 to vector<8x128xf32>
    %376 = arith.addf %375, %374 : vector<8x128xf32>
    %377 = arith.divf %375, %376 : vector<8x128xf32>
    %378 = vector.extract_strided_slice %364 {offsets = [0, 128], sizes = [8, 128], strides = [1, 1]} : vector<8x512xf32> to vector<8x128xf32>
    %379 = arith.negf %378 : vector<8x128xf32>
    %380 = math.exp %379 : vector<8x128xf32>
    %cst_163 = arith.constant 1.000000e+00 : f32
    %381 = vector.broadcast %cst_163 : f32 to vector<8x128xf32>
    %382 = arith.addf %381, %380 : vector<8x128xf32>
    %383 = arith.divf %381, %382 : vector<8x128xf32>
    %384 = vector.extract_strided_slice %364 {offsets = [0, 256], sizes = [8, 128], strides = [1, 1]} : vector<8x512xf32> to vector<8x128xf32>
    %385 = math.tanh %384 : vector<8x128xf32>
    %386 = vector.extract_strided_slice %364 {offsets = [0, 384], sizes = [8, 128], strides = [1, 1]} : vector<8x512xf32> to vector<8x128xf32>
    %387 = arith.negf %386 : vector<8x128xf32>
    %388 = math.exp %387 : vector<8x128xf32>
    %cst_164 = arith.constant 1.000000e+00 : f32
    %389 = vector.broadcast %cst_164 : f32 to vector<8x128xf32>
    %390 = arith.addf %389, %388 : vector<8x128xf32>
    %391 = arith.divf %389, %390 : vector<8x128xf32>
    %392 = arith.mulf %383, %345 : vector<8x128xf32>
    %393 = arith.mulf %377, %385 : vector<8x128xf32>
    %394 = arith.addf %392, %393 : vector<8x128xf32>
    %395 = math.tanh %394 : vector<8x128xf32>
    %396 = arith.mulf %391, %395 : vector<8x128xf32>
    %397 = vector.extract_strided_slice %371 {offsets = [0, 0], sizes = [8, 128], strides = [1, 1]} : vector<8x512xf32> to vector<8x128xf32>
    %398 = arith.negf %397 : vector<8x128xf32>
    %399 = math.exp %398 : vector<8x128xf32>
    %cst_165 = arith.constant 1.000000e+00 : f32
    %400 = vector.broadcast %cst_165 : f32 to vector<8x128xf32>
    %401 = arith.addf %400, %399 : vector<8x128xf32>
    %402 = arith.divf %400, %401 : vector<8x128xf32>
    %403 = vector.extract_strided_slice %371 {offsets = [0, 128], sizes = [8, 128], strides = [1, 1]} : vector<8x512xf32> to vector<8x128xf32>
    %404 = arith.negf %403 : vector<8x128xf32>
    %405 = math.exp %404 : vector<8x128xf32>
    %cst_166 = arith.constant 1.000000e+00 : f32
    %406 = vector.broadcast %cst_166 : f32 to vector<8x128xf32>
    %407 = arith.addf %406, %405 : vector<8x128xf32>
    %408 = arith.divf %406, %407 : vector<8x128xf32>
    %409 = vector.extract_strided_slice %371 {offsets = [0, 256], sizes = [8, 128], strides = [1, 1]} : vector<8x512xf32> to vector<8x128xf32>
    %410 = math.tanh %409 : vector<8x128xf32>
    %411 = vector.extract_strided_slice %371 {offsets = [0, 384], sizes = [8, 128], strides = [1, 1]} : vector<8x512xf32> to vector<8x128xf32>
    %412 = arith.negf %411 : vector<8x128xf32>
    %413 = math.exp %412 : vector<8x128xf32>
    %cst_167 = arith.constant 1.000000e+00 : f32
    %414 = vector.broadcast %cst_167 : f32 to vector<8x128xf32>
    %415 = arith.addf %414, %413 : vector<8x128xf32>
    %416 = arith.divf %414, %415 : vector<8x128xf32>
    %417 = arith.mulf %408, %347 : vector<8x128xf32>
    %418 = arith.mulf %402, %410 : vector<8x128xf32>
    %419 = arith.addf %417, %418 : vector<8x128xf32>
    %420 = math.tanh %419 : vector<8x128xf32>
    %421 = arith.mulf %416, %420 : vector<8x128xf32>
    %c4_168 = arith.constant 4 : index
    %c0_169 = arith.constant 0 : index
    %c0_170 = arith.constant 0 : index
    %422 = vector.load %arg1[%c4_168, %c0_169, %c0_170] : memref<8x8x128xf32, #tpu.memory_space<vmem>>, vector<1x8x128xf32>
    %423 = vector.shape_cast %422 : vector<1x8x128xf32> to vector<8x128xf32>
    %cst_171 = arith.constant 0.000000e+00 : f32
    %424 = vector.broadcast %cst_171 : f32 to vector<8x128xf32>
    %425 = arith.cmpf one, %423, %424 : vector<8x128xf32>
    %c3_172 = arith.constant 3 : index
    %c0_173 = arith.constant 0 : index
    %c0_174 = arith.constant 0 : index
    %426 = vector.load %arg1[%c3_172, %c0_173, %c0_174] : memref<8x8x128xf32, #tpu.memory_space<vmem>>, vector<1x8x128xf32>
    %427 = vector.shape_cast %426 : vector<1x8x128xf32> to vector<8x128xf32>
    %cst_175 = arith.constant 0.000000e+00 : f32
    %428 = vector.broadcast %cst_175 : f32 to vector<8x128xf32>
    %429 = arith.cmpf one, %427, %428 : vector<8x128xf32>
    %430 = arith.select %425, %396, %344 : vector<8x128xi1>, vector<8x128xf32>
    %431 = arith.select %425, %394, %345 : vector<8x128xi1>, vector<8x128xf32>
    %432 = arith.select %429, %421, %346 : vector<8x128xi1>, vector<8x128xf32>
    %433 = arith.select %429, %419, %347 : vector<8x128xi1>, vector<8x128xf32>
    %cst_176 = arith.constant 0.000000e+00 : f32
    %434 = vector.broadcast %cst_176 : f32 to vector<8x128xf32>
    %435 = arith.select %425, %396, %434 : vector<8x128xi1>, vector<8x128xf32>
    %c4_177 = arith.constant 4 : index
    %c0_178 = arith.constant 0 : index
    %c0_179 = arith.constant 0 : index
    %436 = vector.load %arg12[%c4_177, %c0_178, %c0_179] : memref<8x8x256xf32, #tpu.memory_space<vmem>>, vector<1x8x128xf32>
    %437 = vector.shape_cast %436 : vector<1x8x128xf32> to vector<8x128xf32>
    %438 = vector.shape_cast %435 : vector<8x128xf32> to vector<1x8x128xf32>
    tpu.vector_store %arg12[%c4_177, %c0_178, %c0_179], %438 {strides = array<i32>} : memref<8x8x256xf32, #tpu.memory_space<vmem>>, vector<1x8x128xf32>,
    %cst_180 = arith.constant 0.000000e+00 : f32
    %439 = vector.broadcast %cst_180 : f32 to vector<8x128xf32>
    %440 = arith.select %429, %421, %439 : vector<8x128xi1>, vector<8x128xf32>
    %c3_181 = arith.constant 3 : index
    %c0_182 = arith.constant 0 : index
    %c128_183 = arith.constant 128 : index
    %441 = vector.load %arg12[%c3_181, %c0_182, %c128_183] : memref<8x8x256xf32, #tpu.memory_space<vmem>>, vector<1x8x128xf32>
    %442 = vector.shape_cast %441 : vector<1x8x128xf32> to vector<8x128xf32>
    %443 = vector.shape_cast %440 : vector<8x128xf32> to vector<1x8x128xf32>
    tpu.vector_store %arg12[%c3_181, %c0_182, %c128_183], %443 {strides = array<i32>} : memref<8x8x256xf32, #tpu.memory_space<vmem>>, vector<1x8x128xf32>,
    %c5_184 = arith.constant 5 : index
    %c0_185 = arith.constant 0 : index
    %c0_186 = arith.constant 0 : index
    %444 = vector.load %arg11[%c5_184, %c0_185, %c0_186] : memref<8x8x1024xf32, #tpu.memory_space<vmem>>, vector<1x8x512xf32>
    %445 = vector.shape_cast %444 : vector<1x8x512xf32> to vector<8x512xf32>
    %446 = arith.truncf %430 : vector<8x128xf32> to vector<8x128xbf16>
    %c0_187 = arith.constant 0 : index
    %c0_188 = arith.constant 0 : index
    %c0_189 = arith.constant 0 : index
    %447 = vector.load %arg3[%c0_187, %c0_188, %c0_189] : memref<2x128x512xbf16, #tpu.memory_space<vmem>>, vector<1x128x512xbf16>
    %448 = vector.shape_cast %447 : vector<1x128x512xbf16> to vector<128x512xbf16>
    %cst_190 = arith.constant dense<0.000000e+00> : vector<8x512xf32>
    %449 = tpu.matmul %446, %448, %cst_190 {dimension_numbers = #tpu.dot_dimension_numbers<[1], [0], [0], [1], [0, 0, 1, 1], [], []>} : vector<8x128xbf16>, vector<128x512xbf16>, vector<8x512xf32> -> vector<8x512xf32>
    %450 = arith.addf %445, %449 : vector<8x512xf32>
    %c2_191 = arith.constant 2 : index
    %c0_192 = arith.constant 0 : index
    %c512_193 = arith.constant 512 : index
    %451 = vector.load %arg11[%c2_191, %c0_192, %c512_193] : memref<8x8x1024xf32, #tpu.memory_space<vmem>>, vector<1x8x512xf32>
    %452 = vector.shape_cast %451 : vector<1x8x512xf32> to vector<8x512xf32>
    %453 = arith.truncf %432 : vector<8x128xf32> to vector<8x128xbf16>
    %c1_194 = arith.constant 1 : index
    %c0_195 = arith.constant 0 : index
    %c0_196 = arith.constant 0 : index
    %454 = vector.load %arg3[%c1_194, %c0_195, %c0_196] : memref<2x128x512xbf16, #tpu.memory_space<vmem>>, vector<1x128x512xbf16>
    %455 = vector.shape_cast %454 : vector<1x128x512xbf16> to vector<128x512xbf16>
    %cst_197 = arith.constant dense<0.000000e+00> : vector<8x512xf32>
    %456 = tpu.matmul %453, %455, %cst_197 {dimension_numbers = #tpu.dot_dimension_numbers<[1], [0], [0], [1], [0, 0, 1, 1], [], []>} : vector<8x128xbf16>, vector<128x512xbf16>, vector<8x512xf32> -> vector<8x512xf32>
    %457 = arith.addf %452, %456 : vector<8x512xf32>
    %458 = vector.extract_strided_slice %450 {offsets = [0, 0], sizes = [8, 128], strides = [1, 1]} : vector<8x512xf32> to vector<8x128xf32>
    %459 = arith.negf %458 : vector<8x128xf32>
    %460 = math.exp %459 : vector<8x128xf32>
    %cst_198 = arith.constant 1.000000e+00 : f32
    %461 = vector.broadcast %cst_198 : f32 to vector<8x128xf32>
    %462 = arith.addf %461, %460 : vector<8x128xf32>
    %463 = arith.divf %461, %462 : vector<8x128xf32>
    %464 = vector.extract_strided_slice %450 {offsets = [0, 128], sizes = [8, 128], strides = [1, 1]} : vector<8x512xf32> to vector<8x128xf32>
    %465 = arith.negf %464 : vector<8x128xf32>
    %466 = math.exp %465 : vector<8x128xf32>
    %cst_199 = arith.constant 1.000000e+00 : f32
    %467 = vector.broadcast %cst_199 : f32 to vector<8x128xf32>
    %468 = arith.addf %467, %466 : vector<8x128xf32>
    %469 = arith.divf %467, %468 : vector<8x128xf32>
    %470 = vector.extract_strided_slice %450 {offsets = [0, 256], sizes = [8, 128], strides = [1, 1]} : vector<8x512xf32> to vector<8x128xf32>
    %471 = math.tanh %470 : vector<8x128xf32>
    %472 = vector.extract_strided_slice %450 {offsets = [0, 384], sizes = [8, 128], strides = [1, 1]} : vector<8x512xf32> to vector<8x128xf32>
    %473 = arith.negf %472 : vector<8x128xf32>
    %474 = math.exp %473 : vector<8x128xf32>
    %cst_200 = arith.constant 1.000000e+00 : f32
    %475 = vector.broadcast %cst_200 : f32 to vector<8x128xf32>
    %476 = arith.addf %475, %474 : vector<8x128xf32>
    %477 = arith.divf %475, %476 : vector<8x128xf32>
    %478 = arith.mulf %469, %431 : vector<8x128xf32>
    %479 = arith.mulf %463, %471 : vector<8x128xf32>
    %480 = arith.addf %478, %479 : vector<8x128xf32>
    %481 = math.tanh %480 : vector<8x128xf32>
    %482 = arith.mulf %477, %481 : vector<8x128xf32>
    %483 = vector.extract_strided_slice %457 {offsets = [0, 0], sizes = [8, 128], strides = [1, 1]} : vector<8x512xf32> to vector<8x128xf32>
    %484 = arith.negf %483 : vector<8x128xf32>
    %485 = math.exp %484 : vector<8x128xf32>
    %cst_201 = arith.constant 1.000000e+00 : f32
    %486 = vector.broadcast %cst_201 : f32 to vector<8x128xf32>
    %487 = arith.addf %486, %485 : vector<8x128xf32>
    %488 = arith.divf %486, %487 : vector<8x128xf32>
    %489 = vector.extract_strided_slice %457 {offsets = [0, 128], sizes = [8, 128], strides = [1, 1]} : vector<8x512xf32> to vector<8x128xf32>
    %490 = arith.negf %489 : vector<8x128xf32>
    %491 = math.exp %490 : vector<8x128xf32>
    %cst_202 = arith.constant 1.000000e+00 : f32
    %492 = vector.broadcast %cst_202 : f32 to vector<8x128xf32>
    %493 = arith.addf %492, %491 : vector<8x128xf32>
    %494 = arith.divf %492, %493 : vector<8x128xf32>
    %495 = vector.extract_strided_slice %457 {offsets = [0, 256], sizes = [8, 128], strides = [1, 1]} : vector<8x512xf32> to vector<8x128xf32>
    %496 = math.tanh %495 : vector<8x128xf32>
    %497 = vector.extract_strided_slice %457 {offsets = [0, 384], sizes = [8, 128], strides = [1, 1]} : vector<8x512xf32> to vector<8x128xf32>
    %498 = arith.negf %497 : vector<8x128xf32>
    %499 = math.exp %498 : vector<8x128xf32>
    %cst_203 = arith.constant 1.000000e+00 : f32
    %500 = vector.broadcast %cst_203 : f32 to vector<8x128xf32>
    %501 = arith.addf %500, %499 : vector<8x128xf32>
    %502 = arith.divf %500, %501 : vector<8x128xf32>
    %503 = arith.mulf %494, %433 : vector<8x128xf32>
    %504 = arith.mulf %488, %496 : vector<8x128xf32>
    %505 = arith.addf %503, %504 : vector<8x128xf32>
    %506 = math.tanh %505 : vector<8x128xf32>
    %507 = arith.mulf %502, %506 : vector<8x128xf32>
    %c5_204 = arith.constant 5 : index
    %c0_205 = arith.constant 0 : index
    %c0_206 = arith.constant 0 : index
    %508 = vector.load %arg1[%c5_204, %c0_205, %c0_206] : memref<8x8x128xf32, #tpu.memory_space<vmem>>, vector<1x8x128xf32>
    %509 = vector.shape_cast %508 : vector<1x8x128xf32> to vector<8x128xf32>
    %cst_207 = arith.constant 0.000000e+00 : f32
    %510 = vector.broadcast %cst_207 : f32 to vector<8x128xf32>
    %511 = arith.cmpf one, %509, %510 : vector<8x128xf32>
    %c2_208 = arith.constant 2 : index
    %c0_209 = arith.constant 0 : index
    %c0_210 = arith.constant 0 : index
    %512 = vector.load %arg1[%c2_208, %c0_209, %c0_210] : memref<8x8x128xf32, #tpu.memory_space<vmem>>, vector<1x8x128xf32>
    %513 = vector.shape_cast %512 : vector<1x8x128xf32> to vector<8x128xf32>
    %cst_211 = arith.constant 0.000000e+00 : f32
    %514 = vector.broadcast %cst_211 : f32 to vector<8x128xf32>
    %515 = arith.cmpf one, %513, %514 : vector<8x128xf32>
    %516 = arith.select %511, %482, %430 : vector<8x128xi1>, vector<8x128xf32>
    %517 = arith.select %511, %480, %431 : vector<8x128xi1>, vector<8x128xf32>
    %518 = arith.select %515, %507, %432 : vector<8x128xi1>, vector<8x128xf32>
    %519 = arith.select %515, %505, %433 : vector<8x128xi1>, vector<8x128xf32>
    %cst_212 = arith.constant 0.000000e+00 : f32
    %520 = vector.broadcast %cst_212 : f32 to vector<8x128xf32>
    %521 = arith.select %511, %482, %520 : vector<8x128xi1>, vector<8x128xf32>
    %c5_213 = arith.constant 5 : index
    %c0_214 = arith.constant 0 : index
    %c0_215 = arith.constant 0 : index
    %522 = vector.load %arg12[%c5_213, %c0_214, %c0_215] : memref<8x8x256xf32, #tpu.memory_space<vmem>>, vector<1x8x128xf32>
    %523 = vector.shape_cast %522 : vector<1x8x128xf32> to vector<8x128xf32>
    %524 = vector.shape_cast %521 : vector<8x128xf32> to vector<1x8x128xf32>
    tpu.vector_store %arg12[%c5_213, %c0_214, %c0_215], %524 {strides = array<i32>} : memref<8x8x256xf32, #tpu.memory_space<vmem>>, vector<1x8x128xf32>,
    %cst_216 = arith.constant 0.000000e+00 : f32
    %525 = vector.broadcast %cst_216 : f32 to vector<8x128xf32>
    %526 = arith.select %515, %507, %525 : vector<8x128xi1>, vector<8x128xf32>
    %c2_217 = arith.constant 2 : index
    %c0_218 = arith.constant 0 : index
    %c128_219 = arith.constant 128 : index
    %527 = vector.load %arg12[%c2_217, %c0_218, %c128_219] : memref<8x8x256xf32, #tpu.memory_space<vmem>>, vector<1x8x128xf32>
    %528 = vector.shape_cast %527 : vector<1x8x128xf32> to vector<8x128xf32>
    %529 = vector.shape_cast %526 : vector<8x128xf32> to vector<1x8x128xf32>
    tpu.vector_store %arg12[%c2_217, %c0_218, %c128_219], %529 {strides = array<i32>} : memref<8x8x256xf32, #tpu.memory_space<vmem>>, vector<1x8x128xf32>,
    %c6_220 = arith.constant 6 : index
    %c0_221 = arith.constant 0 : index
    %c0_222 = arith.constant 0 : index
    %530 = vector.load %arg11[%c6_220, %c0_221, %c0_222] : memref<8x8x1024xf32, #tpu.memory_space<vmem>>, vector<1x8x512xf32>
    %531 = vector.shape_cast %530 : vector<1x8x512xf32> to vector<8x512xf32>
    %532 = arith.truncf %516 : vector<8x128xf32> to vector<8x128xbf16>
    %c0_223 = arith.constant 0 : index
    %c0_224 = arith.constant 0 : index
    %c0_225 = arith.constant 0 : index
    %533 = vector.load %arg3[%c0_223, %c0_224, %c0_225] : memref<2x128x512xbf16, #tpu.memory_space<vmem>>, vector<1x128x512xbf16>
    %534 = vector.shape_cast %533 : vector<1x128x512xbf16> to vector<128x512xbf16>
    %cst_226 = arith.constant dense<0.000000e+00> : vector<8x512xf32>
    %535 = tpu.matmul %532, %534, %cst_226 {dimension_numbers = #tpu.dot_dimension_numbers<[1], [0], [0], [1], [0, 0, 1, 1], [], []>} : vector<8x128xbf16>, vector<128x512xbf16>, vector<8x512xf32> -> vector<8x512xf32>
    %536 = arith.addf %531, %535 : vector<8x512xf32>
    %c1_227 = arith.constant 1 : index
    %c0_228 = arith.constant 0 : index
    %c512_229 = arith.constant 512 : index
    %537 = vector.load %arg11[%c1_227, %c0_228, %c512_229] : memref<8x8x1024xf32, #tpu.memory_space<vmem>>, vector<1x8x512xf32>
    %538 = vector.shape_cast %537 : vector<1x8x512xf32> to vector<8x512xf32>
    %539 = arith.truncf %518 : vector<8x128xf32> to vector<8x128xbf16>
    %c1_230 = arith.constant 1 : index
    %c0_231 = arith.constant 0 : index
    %c0_232 = arith.constant 0 : index
    %540 = vector.load %arg3[%c1_230, %c0_231, %c0_232] : memref<2x128x512xbf16, #tpu.memory_space<vmem>>, vector<1x128x512xbf16>
    %541 = vector.shape_cast %540 : vector<1x128x512xbf16> to vector<128x512xbf16>
    %cst_233 = arith.constant dense<0.000000e+00> : vector<8x512xf32>
    %542 = tpu.matmul %539, %541, %cst_233 {dimension_numbers = #tpu.dot_dimension_numbers<[1], [0], [0], [1], [0, 0, 1, 1], [], []>} : vector<8x128xbf16>, vector<128x512xbf16>, vector<8x512xf32> -> vector<8x512xf32>
    %543 = arith.addf %538, %542 : vector<8x512xf32>
    %544 = vector.extract_strided_slice %536 {offsets = [0, 0], sizes = [8, 128], strides = [1, 1]} : vector<8x512xf32> to vector<8x128xf32>
    %545 = arith.negf %544 : vector<8x128xf32>
    %546 = math.exp %545 : vector<8x128xf32>
    %cst_234 = arith.constant 1.000000e+00 : f32
    %547 = vector.broadcast %cst_234 : f32 to vector<8x128xf32>
    %548 = arith.addf %547, %546 : vector<8x128xf32>
    %549 = arith.divf %547, %548 : vector<8x128xf32>
    %550 = vector.extract_strided_slice %536 {offsets = [0, 128], sizes = [8, 128], strides = [1, 1]} : vector<8x512xf32> to vector<8x128xf32>
    %551 = arith.negf %550 : vector<8x128xf32>
    %552 = math.exp %551 : vector<8x128xf32>
    %cst_235 = arith.constant 1.000000e+00 : f32
    %553 = vector.broadcast %cst_235 : f32 to vector<8x128xf32>
    %554 = arith.addf %553, %552 : vector<8x128xf32>
    %555 = arith.divf %553, %554 : vector<8x128xf32>
    %556 = vector.extract_strided_slice %536 {offsets = [0, 256], sizes = [8, 128], strides = [1, 1]} : vector<8x512xf32> to vector<8x128xf32>
    %557 = math.tanh %556 : vector<8x128xf32>
    %558 = vector.extract_strided_slice %536 {offsets = [0, 384], sizes = [8, 128], strides = [1, 1]} : vector<8x512xf32> to vector<8x128xf32>
    %559 = arith.negf %558 : vector<8x128xf32>
    %560 = math.exp %559 : vector<8x128xf32>
    %cst_236 = arith.constant 1.000000e+00 : f32
    %561 = vector.broadcast %cst_236 : f32 to vector<8x128xf32>
    %562 = arith.addf %561, %560 : vector<8x128xf32>
    %563 = arith.divf %561, %562 : vector<8x128xf32>
    %564 = arith.mulf %555, %517 : vector<8x128xf32>
    %565 = arith.mulf %549, %557 : vector<8x128xf32>
    %566 = arith.addf %564, %565 : vector<8x128xf32>
    %567 = math.tanh %566 : vector<8x128xf32>
    %568 = arith.mulf %563, %567 : vector<8x128xf32>
    %569 = vector.extract_strided_slice %543 {offsets = [0, 0], sizes = [8, 128], strides = [1, 1]} : vector<8x512xf32> to vector<8x128xf32>
    %570 = arith.negf %569 : vector<8x128xf32>
    %571 = math.exp %570 : vector<8x128xf32>
    %cst_237 = arith.constant 1.000000e+00 : f32
    %572 = vector.broadcast %cst_237 : f32 to vector<8x128xf32>
    %573 = arith.addf %572, %571 : vector<8x128xf32>
    %574 = arith.divf %572, %573 : vector<8x128xf32>
    %575 = vector.extract_strided_slice %543 {offsets = [0, 128], sizes = [8, 128], strides = [1, 1]} : vector<8x512xf32> to vector<8x128xf32>
    %576 = arith.negf %575 : vector<8x128xf32>
    %577 = math.exp %576 : vector<8x128xf32>
    %cst_238 = arith.constant 1.000000e+00 : f32
    %578 = vector.broadcast %cst_238 : f32 to vector<8x128xf32>
    %579 = arith.addf %578, %577 : vector<8x128xf32>
    %580 = arith.divf %578, %579 : vector<8x128xf32>
    %581 = vector.extract_strided_slice %543 {offsets = [0, 256], sizes = [8, 128], strides = [1, 1]} : vector<8x512xf32> to vector<8x128xf32>
    %582 = math.tanh %581 : vector<8x128xf32>
    %583 = vector.extract_strided_slice %543 {offsets = [0, 384], sizes = [8, 128], strides = [1, 1]} : vector<8x512xf32> to vector<8x128xf32>
    %584 = arith.negf %583 : vector<8x128xf32>
    %585 = math.exp %584 : vector<8x128xf32>
    %cst_239 = arith.constant 1.000000e+00 : f32
    %586 = vector.broadcast %cst_239 : f32 to vector<8x128xf32>
    %587 = arith.addf %586, %585 : vector<8x128xf32>
    %588 = arith.divf %586, %587 : vector<8x128xf32>
    %589 = arith.mulf %580, %519 : vector<8x128xf32>
    %590 = arith.mulf %574, %582 : vector<8x128xf32>
    %591 = arith.addf %589, %590 : vector<8x128xf32>
    %592 = math.tanh %591 : vector<8x128xf32>
    %593 = arith.mulf %588, %592 : vector<8x128xf32>
    %c6_240 = arith.constant 6 : index
    %c0_241 = arith.constant 0 : index
    %c0_242 = arith.constant 0 : index
    %594 = vector.load %arg1[%c6_240, %c0_241, %c0_242] : memref<8x8x128xf32, #tpu.memory_space<vmem>>, vector<1x8x128xf32>
    %595 = vector.shape_cast %594 : vector<1x8x128xf32> to vector<8x128xf32>
    %cst_243 = arith.constant 0.000000e+00 : f32
    %596 = vector.broadcast %cst_243 : f32 to vector<8x128xf32>
    %597 = arith.cmpf one, %595, %596 : vector<8x128xf32>
    %c1_244 = arith.constant 1 : index
    %c0_245 = arith.constant 0 : index
    %c0_246 = arith.constant 0 : index
    %598 = vector.load %arg1[%c1_244, %c0_245, %c0_246] : memref<8x8x128xf32, #tpu.memory_space<vmem>>, vector<1x8x128xf32>
    %599 = vector.shape_cast %598 : vector<1x8x128xf32> to vector<8x128xf32>
    %cst_247 = arith.constant 0.000000e+00 : f32
    %600 = vector.broadcast %cst_247 : f32 to vector<8x128xf32>
    %601 = arith.cmpf one, %599, %600 : vector<8x128xf32>
    %602 = arith.select %597, %568, %516 : vector<8x128xi1>, vector<8x128xf32>
    %603 = arith.select %597, %566, %517 : vector<8x128xi1>, vector<8x128xf32>
    %604 = arith.select %601, %593, %518 : vector<8x128xi1>, vector<8x128xf32>
    %605 = arith.select %601, %591, %519 : vector<8x128xi1>, vector<8x128xf32>
    %cst_248 = arith.constant 0.000000e+00 : f32
    %606 = vector.broadcast %cst_248 : f32 to vector<8x128xf32>
    %607 = arith.select %597, %568, %606 : vector<8x128xi1>, vector<8x128xf32>
    %c6_249 = arith.constant 6 : index
    %c0_250 = arith.constant 0 : index
    %c0_251 = arith.constant 0 : index
    %608 = vector.load %arg12[%c6_249, %c0_250, %c0_251] : memref<8x8x256xf32, #tpu.memory_space<vmem>>, vector<1x8x128xf32>
    %609 = vector.shape_cast %608 : vector<1x8x128xf32> to vector<8x128xf32>
    %610 = vector.shape_cast %607 : vector<8x128xf32> to vector<1x8x128xf32>
    tpu.vector_store %arg12[%c6_249, %c0_250, %c0_251], %610 {strides = array<i32>} : memref<8x8x256xf32, #tpu.memory_space<vmem>>, vector<1x8x128xf32>,
    %cst_252 = arith.constant 0.000000e+00 : f32
    %611 = vector.broadcast %cst_252 : f32 to vector<8x128xf32>
    %612 = arith.select %601, %593, %611 : vector<8x128xi1>, vector<8x128xf32>
    %c1_253 = arith.constant 1 : index
    %c0_254 = arith.constant 0 : index
    %c128_255 = arith.constant 128 : index
    %613 = vector.load %arg12[%c1_253, %c0_254, %c128_255] : memref<8x8x256xf32, #tpu.memory_space<vmem>>, vector<1x8x128xf32>
    %614 = vector.shape_cast %613 : vector<1x8x128xf32> to vector<8x128xf32>
    %615 = vector.shape_cast %612 : vector<8x128xf32> to vector<1x8x128xf32>
    tpu.vector_store %arg12[%c1_253, %c0_254, %c128_255], %615 {strides = array<i32>} : memref<8x8x256xf32, #tpu.memory_space<vmem>>, vector<1x8x128xf32>,
    %c7_256 = arith.constant 7 : index
    %c0_257 = arith.constant 0 : index
    %c0_258 = arith.constant 0 : index
    %616 = vector.load %arg11[%c7_256, %c0_257, %c0_258] : memref<8x8x1024xf32, #tpu.memory_space<vmem>>, vector<1x8x512xf32>
    %617 = vector.shape_cast %616 : vector<1x8x512xf32> to vector<8x512xf32>
    %618 = arith.truncf %602 : vector<8x128xf32> to vector<8x128xbf16>
    %c0_259 = arith.constant 0 : index
    %c0_260 = arith.constant 0 : index
    %c0_261 = arith.constant 0 : index
    %619 = vector.load %arg3[%c0_259, %c0_260, %c0_261] : memref<2x128x512xbf16, #tpu.memory_space<vmem>>, vector<1x128x512xbf16>
    %620 = vector.shape_cast %619 : vector<1x128x512xbf16> to vector<128x512xbf16>
    %cst_262 = arith.constant dense<0.000000e+00> : vector<8x512xf32>
    %621 = tpu.matmul %618, %620, %cst_262 {dimension_numbers = #tpu.dot_dimension_numbers<[1], [0], [0], [1], [0, 0, 1, 1], [], []>} : vector<8x128xbf16>, vector<128x512xbf16>, vector<8x512xf32> -> vector<8x512xf32>
    %622 = arith.addf %617, %621 : vector<8x512xf32>
    %c0_263 = arith.constant 0 : index
    %c0_264 = arith.constant 0 : index
    %c512_265 = arith.constant 512 : index
    %623 = vector.load %arg11[%c0_263, %c0_264, %c512_265] : memref<8x8x1024xf32, #tpu.memory_space<vmem>>, vector<1x8x512xf32>
    %624 = vector.shape_cast %623 : vector<1x8x512xf32> to vector<8x512xf32>
    %625 = arith.truncf %604 : vector<8x128xf32> to vector<8x128xbf16>
    %c1_266 = arith.constant 1 : index
    %c0_267 = arith.constant 0 : index
    %c0_268 = arith.constant 0 : index
    %626 = vector.load %arg3[%c1_266, %c0_267, %c0_268] : memref<2x128x512xbf16, #tpu.memory_space<vmem>>, vector<1x128x512xbf16>
    %627 = vector.shape_cast %626 : vector<1x128x512xbf16> to vector<128x512xbf16>
    %cst_269 = arith.constant dense<0.000000e+00> : vector<8x512xf32>
    %628 = tpu.matmul %625, %627, %cst_269 {dimension_numbers = #tpu.dot_dimension_numbers<[1], [0], [0], [1], [0, 0, 1, 1], [], []>} : vector<8x128xbf16>, vector<128x512xbf16>, vector<8x512xf32> -> vector<8x512xf32>
    %629 = arith.addf %624, %628 : vector<8x512xf32>
    %630 = vector.extract_strided_slice %622 {offsets = [0, 0], sizes = [8, 128], strides = [1, 1]} : vector<8x512xf32> to vector<8x128xf32>
    %631 = arith.negf %630 : vector<8x128xf32>
    %632 = math.exp %631 : vector<8x128xf32>
    %cst_270 = arith.constant 1.000000e+00 : f32
    %633 = vector.broadcast %cst_270 : f32 to vector<8x128xf32>
    %634 = arith.addf %633, %632 : vector<8x128xf32>
    %635 = arith.divf %633, %634 : vector<8x128xf32>
    %636 = vector.extract_strided_slice %622 {offsets = [0, 128], sizes = [8, 128], strides = [1, 1]} : vector<8x512xf32> to vector<8x128xf32>
    %637 = arith.negf %636 : vector<8x128xf32>
    %638 = math.exp %637 : vector<8x128xf32>
    %cst_271 = arith.constant 1.000000e+00 : f32
    %639 = vector.broadcast %cst_271 : f32 to vector<8x128xf32>
    %640 = arith.addf %639, %638 : vector<8x128xf32>
    %641 = arith.divf %639, %640 : vector<8x128xf32>
    %642 = vector.extract_strided_slice %622 {offsets = [0, 256], sizes = [8, 128], strides = [1, 1]} : vector<8x512xf32> to vector<8x128xf32>
    %643 = math.tanh %642 : vector<8x128xf32>
    %644 = vector.extract_strided_slice %622 {offsets = [0, 384], sizes = [8, 128], strides = [1, 1]} : vector<8x512xf32> to vector<8x128xf32>
    %645 = arith.negf %644 : vector<8x128xf32>
    %646 = math.exp %645 : vector<8x128xf32>
    %cst_272 = arith.constant 1.000000e+00 : f32
    %647 = vector.broadcast %cst_272 : f32 to vector<8x128xf32>
    %648 = arith.addf %647, %646 : vector<8x128xf32>
    %649 = arith.divf %647, %648 : vector<8x128xf32>
    %650 = arith.mulf %641, %603 : vector<8x128xf32>
    %651 = arith.mulf %635, %643 : vector<8x128xf32>
    %652 = arith.addf %650, %651 : vector<8x128xf32>
    %653 = math.tanh %652 : vector<8x128xf32>
    %654 = arith.mulf %649, %653 : vector<8x128xf32>
    %655 = vector.extract_strided_slice %629 {offsets = [0, 0], sizes = [8, 128], strides = [1, 1]} : vector<8x512xf32> to vector<8x128xf32>
    %656 = arith.negf %655 : vector<8x128xf32>
    %657 = math.exp %656 : vector<8x128xf32>
    %cst_273 = arith.constant 1.000000e+00 : f32
    %658 = vector.broadcast %cst_273 : f32 to vector<8x128xf32>
    %659 = arith.addf %658, %657 : vector<8x128xf32>
    %660 = arith.divf %658, %659 : vector<8x128xf32>
    %661 = vector.extract_strided_slice %629 {offsets = [0, 128], sizes = [8, 128], strides = [1, 1]} : vector<8x512xf32> to vector<8x128xf32>
    %662 = arith.negf %661 : vector<8x128xf32>
    %663 = math.exp %662 : vector<8x128xf32>
    %cst_274 = arith.constant 1.000000e+00 : f32
    %664 = vector.broadcast %cst_274 : f32 to vector<8x128xf32>
    %665 = arith.addf %664, %663 : vector<8x128xf32>
    %666 = arith.divf %664, %665 : vector<8x128xf32>
    %667 = vector.extract_strided_slice %629 {offsets = [0, 256], sizes = [8, 128], strides = [1, 1]} : vector<8x512xf32> to vector<8x128xf32>
    %668 = math.tanh %667 : vector<8x128xf32>
    %669 = vector.extract_strided_slice %629 {offsets = [0, 384], sizes = [8, 128], strides = [1, 1]} : vector<8x512xf32> to vector<8x128xf32>
    %670 = arith.negf %669 : vector<8x128xf32>
    %671 = math.exp %670 : vector<8x128xf32>
    %cst_275 = arith.constant 1.000000e+00 : f32
    %672 = vector.broadcast %cst_275 : f32 to vector<8x128xf32>
    %673 = arith.addf %672, %671 : vector<8x128xf32>
    %674 = arith.divf %672, %673 : vector<8x128xf32>
    %675 = arith.mulf %666, %605 : vector<8x128xf32>
    %676 = arith.mulf %660, %668 : vector<8x128xf32>
    %677 = arith.addf %675, %676 : vector<8x128xf32>
    %678 = math.tanh %677 : vector<8x128xf32>
    %679 = arith.mulf %674, %678 : vector<8x128xf32>
    %c7_276 = arith.constant 7 : index
    %c0_277 = arith.constant 0 : index
    %c0_278 = arith.constant 0 : index
    %680 = vector.load %arg1[%c7_276, %c0_277, %c0_278] : memref<8x8x128xf32, #tpu.memory_space<vmem>>, vector<1x8x128xf32>
    %681 = vector.shape_cast %680 : vector<1x8x128xf32> to vector<8x128xf32>
    %cst_279 = arith.constant 0.000000e+00 : f32
    %682 = vector.broadcast %cst_279 : f32 to vector<8x128xf32>
    %683 = arith.cmpf one, %681, %682 : vector<8x128xf32>
    %c0_280 = arith.constant 0 : index
    %c0_281 = arith.constant 0 : index
    %c0_282 = arith.constant 0 : index
    %684 = vector.load %arg1[%c0_280, %c0_281, %c0_282] : memref<8x8x128xf32, #tpu.memory_space<vmem>>, vector<1x8x128xf32>
    %685 = vector.shape_cast %684 : vector<1x8x128xf32> to vector<8x128xf32>
    %cst_283 = arith.constant 0.000000e+00 : f32
    %686 = vector.broadcast %cst_283 : f32 to vector<8x128xf32>
    %687 = arith.cmpf one, %685, %686 : vector<8x128xf32>
    %cst_284 = arith.constant 0.000000e+00 : f32
    %688 = vector.broadcast %cst_284 : f32 to vector<8x128xf32>
    %689 = arith.select %683, %654, %688 : vector<8x128xi1>, vector<8x128xf32>
    %c7_285 = arith.constant 7 : index
    %c0_286 = arith.constant 0 : index
    %c0_287 = arith.constant 0 : index
    %690 = vector.load %arg12[%c7_285, %c0_286, %c0_287] : memref<8x8x256xf32, #tpu.memory_space<vmem>>, vector<1x8x128xf32>
    %691 = vector.shape_cast %690 : vector<1x8x128xf32> to vector<8x128xf32>
    %692 = vector.shape_cast %689 : vector<8x128xf32> to vector<1x8x128xf32>
    tpu.vector_store %arg12[%c7_285, %c0_286, %c0_287], %692 {strides = array<i32>} : memref<8x8x256xf32, #tpu.memory_space<vmem>>, vector<1x8x128xf32>,
    %cst_288 = arith.constant 0.000000e+00 : f32
    %693 = vector.broadcast %cst_288 : f32 to vector<8x128xf32>
    %694 = arith.select %687, %679, %693 : vector<8x128xi1>, vector<8x128xf32>
    %c0_289 = arith.constant 0 : index
    %c0_290 = arith.constant 0 : index
    %c128_291 = arith.constant 128 : index
    %695 = vector.load %arg12[%c0_289, %c0_290, %c128_291] : memref<8x8x256xf32, #tpu.memory_space<vmem>>, vector<1x8x128xf32>
    %696 = vector.shape_cast %695 : vector<1x8x128xf32> to vector<8x128xf32>
    %697 = vector.shape_cast %694 : vector<8x128xf32> to vector<1x8x128xf32>
    tpu.vector_store %arg12[%c0_289, %c0_290, %c128_291], %697 {strides = array<i32>} : memref<8x8x256xf32, #tpu.memory_space<vmem>>, vector<1x8x128xf32>,
    %c0_292 = arith.constant 0 : index
    %c0_293 = arith.constant 0 : index
    %c0_294 = arith.constant 0 : index
    %698 = vector.load %arg12[%c0_292, %c0_293, %c0_294] : memref<8x8x256xf32, #tpu.memory_space<vmem>>, vector<8x8x256xf32>
    %699 = vector.shape_cast %698 : vector<8x8x256xf32> to vector<64x256xf32>
    %700 = arith.truncf %699 : vector<64x256xf32> to vector<64x256xbf16>
    %c0_295 = arith.constant 0 : index
    %c0_296 = arith.constant 0 : index
    %701 = vector.load %arg5[%c0_295, %c0_296] : memref<256x1024xbf16, #tpu.memory_space<vmem>>, vector<256x1024xbf16>
    %cst_297 = arith.constant dense<0.000000e+00> : vector<64x1024xf32>
    %702 = tpu.matmul %700, %701, %cst_297 {dimension_numbers = #tpu.dot_dimension_numbers<[1], [0], [0], [1], [0, 0, 1, 1], [], []>} : vector<64x256xbf16>, vector<256x1024xbf16>, vector<64x1024xf32> -> vector<64x1024xf32>
    %c0_298 = arith.constant 0 : index
    %c0_299 = arith.constant 0 : index
    %703 = vector.load %arg7[%c0_298, %c0_299] : memref<1x1024xf32, #tpu.memory_space<vmem>>, vector<1x1024xf32>
    %704 = vector.broadcast %703 : vector<1x1024xf32> to vector<64x1024xf32>
    %705 = arith.addf %702, %704 : vector<64x1024xf32>
    %706 = vector.shape_cast %705 : vector<64x1024xf32> to vector<8x8x1024xf32>
    %c0_300 = arith.constant 0 : index
    %c0_301 = arith.constant 0 : index
    %c0_302 = arith.constant 0 : index
    %707 = vector.load %arg11[%c0_300, %c0_301, %c0_302] : memref<8x8x1024xf32, #tpu.memory_space<vmem>>, vector<8x8x1024xf32>
    tpu.vector_store %arg11[%c0_300, %c0_301, %c0_302], %706 {strides = array<i32>} : memref<8x8x1024xf32, #tpu.memory_space<vmem>>, vector<8x8x1024xf32>,
    %cst_303 = arith.constant 0.000000e+00 : f32
    %708 = vector.broadcast %cst_303 : f32 to vector<8x128xf32>
    %cst_304 = arith.constant 0.000000e+00 : f32
    %709 = vector.broadcast %cst_304 : f32 to vector<8x128xf32>
    %cst_305 = arith.constant 0.000000e+00 : f32
    %710 = vector.broadcast %cst_305 : f32 to vector<8x128xf32>
    %cst_306 = arith.constant 0.000000e+00 : f32
    %711 = vector.broadcast %cst_306 : f32 to vector<8x128xf32>
    %c0_307 = arith.constant 0 : index
    %c0_308 = arith.constant 0 : index
    %c0_309 = arith.constant 0 : index
    %712 = vector.load %arg11[%c0_307, %c0_308, %c0_309] : memref<8x8x1024xf32, #tpu.memory_space<vmem>>, vector<1x8x512xf32>
    %713 = vector.shape_cast %712 : vector<1x8x512xf32> to vector<8x512xf32>
    %714 = arith.truncf %708 : vector<8x128xf32> to vector<8x128xbf16>
    %c0_310 = arith.constant 0 : index
    %c0_311 = arith.constant 0 : index
    %c0_312 = arith.constant 0 : index
    %715 = vector.load %arg6[%c0_310, %c0_311, %c0_312] : memref<2x128x512xbf16, #tpu.memory_space<vmem>>, vector<1x128x512xbf16>
    %716 = vector.shape_cast %715 : vector<1x128x512xbf16> to vector<128x512xbf16>
    %cst_313 = arith.constant dense<0.000000e+00> : vector<8x512xf32>
    %717 = tpu.matmul %714, %716, %cst_313 {dimension_numbers = #tpu.dot_dimension_numbers<[1], [0], [0], [1], [0, 0, 1, 1], [], []>} : vector<8x128xbf16>, vector<128x512xbf16>, vector<8x512xf32> -> vector<8x512xf32>
    %718 = arith.addf %713, %717 : vector<8x512xf32>
    %c7_314 = arith.constant 7 : index
    %c0_315 = arith.constant 0 : index
    %c512_316 = arith.constant 512 : index
    %719 = vector.load %arg11[%c7_314, %c0_315, %c512_316] : memref<8x8x1024xf32, #tpu.memory_space<vmem>>, vector<1x8x512xf32>
    %720 = vector.shape_cast %719 : vector<1x8x512xf32> to vector<8x512xf32>
    %721 = arith.truncf %710 : vector<8x128xf32> to vector<8x128xbf16>
    %c1_317 = arith.constant 1 : index
    %c0_318 = arith.constant 0 : index
    %c0_319 = arith.constant 0 : index
    %722 = vector.load %arg6[%c1_317, %c0_318, %c0_319] : memref<2x128x512xbf16, #tpu.memory_space<vmem>>, vector<1x128x512xbf16>
    %723 = vector.shape_cast %722 : vector<1x128x512xbf16> to vector<128x512xbf16>
    %cst_320 = arith.constant dense<0.000000e+00> : vector<8x512xf32>
    %724 = tpu.matmul %721, %723, %cst_320 {dimension_numbers = #tpu.dot_dimension_numbers<[1], [0], [0], [1], [0, 0, 1, 1], [], []>} : vector<8x128xbf16>, vector<128x512xbf16>, vector<8x512xf32> -> vector<8x512xf32>
    %725 = arith.addf %720, %724 : vector<8x512xf32>
    %726 = vector.extract_strided_slice %718 {offsets = [0, 0], sizes = [8, 128], strides = [1, 1]} : vector<8x512xf32> to vector<8x128xf32>
    %727 = arith.negf %726 : vector<8x128xf32>
    %728 = math.exp %727 : vector<8x128xf32>
    %cst_321 = arith.constant 1.000000e+00 : f32
    %729 = vector.broadcast %cst_321 : f32 to vector<8x128xf32>
    %730 = arith.addf %729, %728 : vector<8x128xf32>
    %731 = arith.divf %729, %730 : vector<8x128xf32>
    %732 = vector.extract_strided_slice %718 {offsets = [0, 128], sizes = [8, 128], strides = [1, 1]} : vector<8x512xf32> to vector<8x128xf32>
    %733 = arith.negf %732 : vector<8x128xf32>
    %734 = math.exp %733 : vector<8x128xf32>
    %cst_322 = arith.constant 1.000000e+00 : f32
    %735 = vector.broadcast %cst_322 : f32 to vector<8x128xf32>
    %736 = arith.addf %735, %734 : vector<8x128xf32>
    %737 = arith.divf %735, %736 : vector<8x128xf32>
    %738 = vector.extract_strided_slice %718 {offsets = [0, 256], sizes = [8, 128], strides = [1, 1]} : vector<8x512xf32> to vector<8x128xf32>
    %739 = math.tanh %738 : vector<8x128xf32>
    %740 = vector.extract_strided_slice %718 {offsets = [0, 384], sizes = [8, 128], strides = [1, 1]} : vector<8x512xf32> to vector<8x128xf32>
    %741 = arith.negf %740 : vector<8x128xf32>
    %742 = math.exp %741 : vector<8x128xf32>
    %cst_323 = arith.constant 1.000000e+00 : f32
    %743 = vector.broadcast %cst_323 : f32 to vector<8x128xf32>
    %744 = arith.addf %743, %742 : vector<8x128xf32>
    %745 = arith.divf %743, %744 : vector<8x128xf32>
    %746 = arith.mulf %737, %709 : vector<8x128xf32>
    %747 = arith.mulf %731, %739 : vector<8x128xf32>
    %748 = arith.addf %746, %747 : vector<8x128xf32>
    %749 = math.tanh %748 : vector<8x128xf32>
    %750 = arith.mulf %745, %749 : vector<8x128xf32>
    %751 = vector.extract_strided_slice %725 {offsets = [0, 0], sizes = [8, 128], strides = [1, 1]} : vector<8x512xf32> to vector<8x128xf32>
    %752 = arith.negf %751 : vector<8x128xf32>
    %753 = math.exp %752 : vector<8x128xf32>
    %cst_324 = arith.constant 1.000000e+00 : f32
    %754 = vector.broadcast %cst_324 : f32 to vector<8x128xf32>
    %755 = arith.addf %754, %753 : vector<8x128xf32>
    %756 = arith.divf %754, %755 : vector<8x128xf32>
    %757 = vector.extract_strided_slice %725 {offsets = [0, 128], sizes = [8, 128], strides = [1, 1]} : vector<8x512xf32> to vector<8x128xf32>
    %758 = arith.negf %757 : vector<8x128xf32>
    %759 = math.exp %758 : vector<8x128xf32>
    %cst_325 = arith.constant 1.000000e+00 : f32
    %760 = vector.broadcast %cst_325 : f32 to vector<8x128xf32>
    %761 = arith.addf %760, %759 : vector<8x128xf32>
    %762 = arith.divf %760, %761 : vector<8x128xf32>
    %763 = vector.extract_strided_slice %725 {offsets = [0, 256], sizes = [8, 128], strides = [1, 1]} : vector<8x512xf32> to vector<8x128xf32>
    %764 = math.tanh %763 : vector<8x128xf32>
    %765 = vector.extract_strided_slice %725 {offsets = [0, 384], sizes = [8, 128], strides = [1, 1]} : vector<8x512xf32> to vector<8x128xf32>
    %766 = arith.negf %765 : vector<8x128xf32>
    %767 = math.exp %766 : vector<8x128xf32>
    %cst_326 = arith.constant 1.000000e+00 : f32
    %768 = vector.broadcast %cst_326 : f32 to vector<8x128xf32>
    %769 = arith.addf %768, %767 : vector<8x128xf32>
    %770 = arith.divf %768, %769 : vector<8x128xf32>
    %771 = arith.mulf %762, %711 : vector<8x128xf32>
    %772 = arith.mulf %756, %764 : vector<8x128xf32>
    %773 = arith.addf %771, %772 : vector<8x128xf32>
    %774 = math.tanh %773 : vector<8x128xf32>
    %775 = arith.mulf %770, %774 : vector<8x128xf32>
    %c0_327 = arith.constant 0 : index
    %c0_328 = arith.constant 0 : index
    %c0_329 = arith.constant 0 : index
    %776 = vector.load %arg1[%c0_327, %c0_328, %c0_329] : memref<8x8x128xf32, #tpu.memory_space<vmem>>, vector<1x8x128xf32>
    %777 = vector.shape_cast %776 : vector<1x8x128xf32> to vector<8x128xf32>
    %cst_330 = arith.constant 0.000000e+00 : f32
    %778 = vector.broadcast %cst_330 : f32 to vector<8x128xf32>
    %779 = arith.cmpf one, %777, %778 : vector<8x128xf32>
    %c7_331 = arith.constant 7 : index
    %c0_332 = arith.constant 0 : index
    %c0_333 = arith.constant 0 : index
    %780 = vector.load %arg1[%c7_331, %c0_332, %c0_333] : memref<8x8x128xf32, #tpu.memory_space<vmem>>, vector<1x8x128xf32>
    %781 = vector.shape_cast %780 : vector<1x8x128xf32> to vector<8x128xf32>
    %cst_334 = arith.constant 0.000000e+00 : f32
    %782 = vector.broadcast %cst_334 : f32 to vector<8x128xf32>
    %783 = arith.cmpf one, %781, %782 : vector<8x128xf32>
    %784 = arith.select %779, %750, %708 : vector<8x128xi1>, vector<8x128xf32>
    %785 = arith.select %779, %748, %709 : vector<8x128xi1>, vector<8x128xf32>
    %786 = arith.select %783, %775, %710 : vector<8x128xi1>, vector<8x128xf32>
    %787 = arith.select %783, %773, %711 : vector<8x128xi1>, vector<8x128xf32>
    %c1_335 = arith.constant 1 : index
    %c0_336 = arith.constant 0 : index
    %c0_337 = arith.constant 0 : index
    %788 = vector.load %arg11[%c1_335, %c0_336, %c0_337] : memref<8x8x1024xf32, #tpu.memory_space<vmem>>, vector<1x8x512xf32>
    %789 = vector.shape_cast %788 : vector<1x8x512xf32> to vector<8x512xf32>
    %790 = arith.truncf %784 : vector<8x128xf32> to vector<8x128xbf16>
    %c0_338 = arith.constant 0 : index
    %c0_339 = arith.constant 0 : index
    %c0_340 = arith.constant 0 : index
    %791 = vector.load %arg6[%c0_338, %c0_339, %c0_340] : memref<2x128x512xbf16, #tpu.memory_space<vmem>>, vector<1x128x512xbf16>
    %792 = vector.shape_cast %791 : vector<1x128x512xbf16> to vector<128x512xbf16>
    %cst_341 = arith.constant dense<0.000000e+00> : vector<8x512xf32>
    %793 = tpu.matmul %790, %792, %cst_341 {dimension_numbers = #tpu.dot_dimension_numbers<[1], [0], [0], [1], [0, 0, 1, 1], [], []>} : vector<8x128xbf16>, vector<128x512xbf16>, vector<8x512xf32> -> vector<8x512xf32>
    %794 = arith.addf %789, %793 : vector<8x512xf32>
    %c6_342 = arith.constant 6 : index
    %c0_343 = arith.constant 0 : index
    %c512_344 = arith.constant 512 : index
    %795 = vector.load %arg11[%c6_342, %c0_343, %c512_344] : memref<8x8x1024xf32, #tpu.memory_space<vmem>>, vector<1x8x512xf32>
    %796 = vector.shape_cast %795 : vector<1x8x512xf32> to vector<8x512xf32>
    %797 = arith.truncf %786 : vector<8x128xf32> to vector<8x128xbf16>
    %c1_345 = arith.constant 1 : index
    %c0_346 = arith.constant 0 : index
    %c0_347 = arith.constant 0 : index
    %798 = vector.load %arg6[%c1_345, %c0_346, %c0_347] : memref<2x128x512xbf16, #tpu.memory_space<vmem>>, vector<1x128x512xbf16>
    %799 = vector.shape_cast %798 : vector<1x128x512xbf16> to vector<128x512xbf16>
    %cst_348 = arith.constant dense<0.000000e+00> : vector<8x512xf32>
    %800 = tpu.matmul %797, %799, %cst_348 {dimension_numbers = #tpu.dot_dimension_numbers<[1], [0], [0], [1], [0, 0, 1, 1], [], []>} : vector<8x128xbf16>, vector<128x512xbf16>, vector<8x512xf32> -> vector<8x512xf32>
    %801 = arith.addf %796, %800 : vector<8x512xf32>
    %802 = vector.extract_strided_slice %794 {offsets = [0, 0], sizes = [8, 128], strides = [1, 1]} : vector<8x512xf32> to vector<8x128xf32>
    %803 = arith.negf %802 : vector<8x128xf32>
    %804 = math.exp %803 : vector<8x128xf32>
    %cst_349 = arith.constant 1.000000e+00 : f32
    %805 = vector.broadcast %cst_349 : f32 to vector<8x128xf32>
    %806 = arith.addf %805, %804 : vector<8x128xf32>
    %807 = arith.divf %805, %806 : vector<8x128xf32>
    %808 = vector.extract_strided_slice %794 {offsets = [0, 128], sizes = [8, 128], strides = [1, 1]} : vector<8x512xf32> to vector<8x128xf32>
    %809 = arith.negf %808 : vector<8x128xf32>
    %810 = math.exp %809 : vector<8x128xf32>
    %cst_350 = arith.constant 1.000000e+00 : f32
    %811 = vector.broadcast %cst_350 : f32 to vector<8x128xf32>
    %812 = arith.addf %811, %810 : vector<8x128xf32>
    %813 = arith.divf %811, %812 : vector<8x128xf32>
    %814 = vector.extract_strided_slice %794 {offsets = [0, 256], sizes = [8, 128], strides = [1, 1]} : vector<8x512xf32> to vector<8x128xf32>
    %815 = math.tanh %814 : vector<8x128xf32>
    %816 = vector.extract_strided_slice %794 {offsets = [0, 384], sizes = [8, 128], strides = [1, 1]} : vector<8x512xf32> to vector<8x128xf32>
    %817 = arith.negf %816 : vector<8x128xf32>
    %818 = math.exp %817 : vector<8x128xf32>
    %cst_351 = arith.constant 1.000000e+00 : f32
    %819 = vector.broadcast %cst_351 : f32 to vector<8x128xf32>
    %820 = arith.addf %819, %818 : vector<8x128xf32>
    %821 = arith.divf %819, %820 : vector<8x128xf32>
    %822 = arith.mulf %813, %785 : vector<8x128xf32>
    %823 = arith.mulf %807, %815 : vector<8x128xf32>
    %824 = arith.addf %822, %823 : vector<8x128xf32>
    %825 = math.tanh %824 : vector<8x128xf32>
    %826 = arith.mulf %821, %825 : vector<8x128xf32>
    %827 = vector.extract_strided_slice %801 {offsets = [0, 0], sizes = [8, 128], strides = [1, 1]} : vector<8x512xf32> to vector<8x128xf32>
    %828 = arith.negf %827 : vector<8x128xf32>
    %829 = math.exp %828 : vector<8x128xf32>
    %cst_352 = arith.constant 1.000000e+00 : f32
    %830 = vector.broadcast %cst_352 : f32 to vector<8x128xf32>
    %831 = arith.addf %830, %829 : vector<8x128xf32>
    %832 = arith.divf %830, %831 : vector<8x128xf32>
    %833 = vector.extract_strided_slice %801 {offsets = [0, 128], sizes = [8, 128], strides = [1, 1]} : vector<8x512xf32> to vector<8x128xf32>
    %834 = arith.negf %833 : vector<8x128xf32>
    %835 = math.exp %834 : vector<8x128xf32>
    %cst_353 = arith.constant 1.000000e+00 : f32
    %836 = vector.broadcast %cst_353 : f32 to vector<8x128xf32>
    %837 = arith.addf %836, %835 : vector<8x128xf32>
    %838 = arith.divf %836, %837 : vector<8x128xf32>
    %839 = vector.extract_strided_slice %801 {offsets = [0, 256], sizes = [8, 128], strides = [1, 1]} : vector<8x512xf32> to vector<8x128xf32>
    %840 = math.tanh %839 : vector<8x128xf32>
    %841 = vector.extract_strided_slice %801 {offsets = [0, 384], sizes = [8, 128], strides = [1, 1]} : vector<8x512xf32> to vector<8x128xf32>
    %842 = arith.negf %841 : vector<8x128xf32>
    %843 = math.exp %842 : vector<8x128xf32>
    %cst_354 = arith.constant 1.000000e+00 : f32
    %844 = vector.broadcast %cst_354 : f32 to vector<8x128xf32>
    %845 = arith.addf %844, %843 : vector<8x128xf32>
    %846 = arith.divf %844, %845 : vector<8x128xf32>
    %847 = arith.mulf %838, %787 : vector<8x128xf32>
    %848 = arith.mulf %832, %840 : vector<8x128xf32>
    %849 = arith.addf %847, %848 : vector<8x128xf32>
    %850 = math.tanh %849 : vector<8x128xf32>
    %851 = arith.mulf %846, %850 : vector<8x128xf32>
    %c1_355 = arith.constant 1 : index
    %c0_356 = arith.constant 0 : index
    %c0_357 = arith.constant 0 : index
    %852 = vector.load %arg1[%c1_355, %c0_356, %c0_357] : memref<8x8x128xf32, #tpu.memory_space<vmem>>, vector<1x8x128xf32>
    %853 = vector.shape_cast %852 : vector<1x8x128xf32> to vector<8x128xf32>
    %cst_358 = arith.constant 0.000000e+00 : f32
    %854 = vector.broadcast %cst_358 : f32 to vector<8x128xf32>
    %855 = arith.cmpf one, %853, %854 : vector<8x128xf32>
    %c6_359 = arith.constant 6 : index
    %c0_360 = arith.constant 0 : index
    %c0_361 = arith.constant 0 : index
    %856 = vector.load %arg1[%c6_359, %c0_360, %c0_361] : memref<8x8x128xf32, #tpu.memory_space<vmem>>, vector<1x8x128xf32>
    %857 = vector.shape_cast %856 : vector<1x8x128xf32> to vector<8x128xf32>
    %cst_362 = arith.constant 0.000000e+00 : f32
    %858 = vector.broadcast %cst_362 : f32 to vector<8x128xf32>
    %859 = arith.cmpf one, %857, %858 : vector<8x128xf32>
    %860 = arith.select %855, %826, %784 : vector<8x128xi1>, vector<8x128xf32>
    %861 = arith.select %855, %824, %785 : vector<8x128xi1>, vector<8x128xf32>
    %862 = arith.select %859, %851, %786 : vector<8x128xi1>, vector<8x128xf32>
    %863 = arith.select %859, %849, %787 : vector<8x128xi1>, vector<8x128xf32>
    %c2_363 = arith.constant 2 : index
    %c0_364 = arith.constant 0 : index
    %c0_365 = arith.constant 0 : index
    %864 = vector.load %arg11[%c2_363, %c0_364, %c0_365] : memref<8x8x1024xf32, #tpu.memory_space<vmem>>, vector<1x8x512xf32>
    %865 = vector.shape_cast %864 : vector<1x8x512xf32> to vector<8x512xf32>
    %866 = arith.truncf %860 : vector<8x128xf32> to vector<8x128xbf16>
    %c0_366 = arith.constant 0 : index
    %c0_367 = arith.constant 0 : index
    %c0_368 = arith.constant 0 : index
    %867 = vector.load %arg6[%c0_366, %c0_367, %c0_368] : memref<2x128x512xbf16, #tpu.memory_space<vmem>>, vector<1x128x512xbf16>
    %868 = vector.shape_cast %867 : vector<1x128x512xbf16> to vector<128x512xbf16>
    %cst_369 = arith.constant dense<0.000000e+00> : vector<8x512xf32>
    %869 = tpu.matmul %866, %868, %cst_369 {dimension_numbers = #tpu.dot_dimension_numbers<[1], [0], [0], [1], [0, 0, 1, 1], [], []>} : vector<8x128xbf16>, vector<128x512xbf16>, vector<8x512xf32> -> vector<8x512xf32>
    %870 = arith.addf %865, %869 : vector<8x512xf32>
    %c5_370 = arith.constant 5 : index
    %c0_371 = arith.constant 0 : index
    %c512_372 = arith.constant 512 : index
    %871 = vector.load %arg11[%c5_370, %c0_371, %c512_372] : memref<8x8x1024xf32, #tpu.memory_space<vmem>>, vector<1x8x512xf32>
    %872 = vector.shape_cast %871 : vector<1x8x512xf32> to vector<8x512xf32>
    %873 = arith.truncf %862 : vector<8x128xf32> to vector<8x128xbf16>
    %c1_373 = arith.constant 1 : index
    %c0_374 = arith.constant 0 : index
    %c0_375 = arith.constant 0 : index
    %874 = vector.load %arg6[%c1_373, %c0_374, %c0_375] : memref<2x128x512xbf16, #tpu.memory_space<vmem>>, vector<1x128x512xbf16>
    %875 = vector.shape_cast %874 : vector<1x128x512xbf16> to vector<128x512xbf16>
    %cst_376 = arith.constant dense<0.000000e+00> : vector<8x512xf32>
    %876 = tpu.matmul %873, %875, %cst_376 {dimension_numbers = #tpu.dot_dimension_numbers<[1], [0], [0], [1], [0, 0, 1, 1], [], []>} : vector<8x128xbf16>, vector<128x512xbf16>, vector<8x512xf32> -> vector<8x512xf32>
    %877 = arith.addf %872, %876 : vector<8x512xf32>
    %878 = vector.extract_strided_slice %870 {offsets = [0, 0], sizes = [8, 128], strides = [1, 1]} : vector<8x512xf32> to vector<8x128xf32>
    %879 = arith.negf %878 : vector<8x128xf32>
    %880 = math.exp %879 : vector<8x128xf32>
    %cst_377 = arith.constant 1.000000e+00 : f32
    %881 = vector.broadcast %cst_377 : f32 to vector<8x128xf32>
    %882 = arith.addf %881, %880 : vector<8x128xf32>
    %883 = arith.divf %881, %882 : vector<8x128xf32>
    %884 = vector.extract_strided_slice %870 {offsets = [0, 128], sizes = [8, 128], strides = [1, 1]} : vector<8x512xf32> to vector<8x128xf32>
    %885 = arith.negf %884 : vector<8x128xf32>
    %886 = math.exp %885 : vector<8x128xf32>
    %cst_378 = arith.constant 1.000000e+00 : f32
    %887 = vector.broadcast %cst_378 : f32 to vector<8x128xf32>
    %888 = arith.addf %887, %886 : vector<8x128xf32>
    %889 = arith.divf %887, %888 : vector<8x128xf32>
    %890 = vector.extract_strided_slice %870 {offsets = [0, 256], sizes = [8, 128], strides = [1, 1]} : vector<8x512xf32> to vector<8x128xf32>
    %891 = math.tanh %890 : vector<8x128xf32>
    %892 = vector.extract_strided_slice %870 {offsets = [0, 384], sizes = [8, 128], strides = [1, 1]} : vector<8x512xf32> to vector<8x128xf32>
    %893 = arith.negf %892 : vector<8x128xf32>
    %894 = math.exp %893 : vector<8x128xf32>
    %cst_379 = arith.constant 1.000000e+00 : f32
    %895 = vector.broadcast %cst_379 : f32 to vector<8x128xf32>
    %896 = arith.addf %895, %894 : vector<8x128xf32>
    %897 = arith.divf %895, %896 : vector<8x128xf32>
    %898 = arith.mulf %889, %861 : vector<8x128xf32>
    %899 = arith.mulf %883, %891 : vector<8x128xf32>
    %900 = arith.addf %898, %899 : vector<8x128xf32>
    %901 = math.tanh %900 : vector<8x128xf32>
    %902 = arith.mulf %897, %901 : vector<8x128xf32>
    %903 = vector.extract_strided_slice %877 {offsets = [0, 0], sizes = [8, 128], strides = [1, 1]} : vector<8x512xf32> to vector<8x128xf32>
    %904 = arith.negf %903 : vector<8x128xf32>
    %905 = math.exp %904 : vector<8x128xf32>
    %cst_380 = arith.constant 1.000000e+00 : f32
    %906 = vector.broadcast %cst_380 : f32 to vector<8x128xf32>
    %907 = arith.addf %906, %905 : vector<8x128xf32>
    %908 = arith.divf %906, %907 : vector<8x128xf32>
    %909 = vector.extract_strided_slice %877 {offsets = [0, 128], sizes = [8, 128], strides = [1, 1]} : vector<8x512xf32> to vector<8x128xf32>
    %910 = arith.negf %909 : vector<8x128xf32>
    %911 = math.exp %910 : vector<8x128xf32>
    %cst_381 = arith.constant 1.000000e+00 : f32
    %912 = vector.broadcast %cst_381 : f32 to vector<8x128xf32>
    %913 = arith.addf %912, %911 : vector<8x128xf32>
    %914 = arith.divf %912, %913 : vector<8x128xf32>
    %915 = vector.extract_strided_slice %877 {offsets = [0, 256], sizes = [8, 128], strides = [1, 1]} : vector<8x512xf32> to vector<8x128xf32>
    %916 = math.tanh %915 : vector<8x128xf32>
    %917 = vector.extract_strided_slice %877 {offsets = [0, 384], sizes = [8, 128], strides = [1, 1]} : vector<8x512xf32> to vector<8x128xf32>
    %918 = arith.negf %917 : vector<8x128xf32>
    %919 = math.exp %918 : vector<8x128xf32>
    %cst_382 = arith.constant 1.000000e+00 : f32
    %920 = vector.broadcast %cst_382 : f32 to vector<8x128xf32>
    %921 = arith.addf %920, %919 : vector<8x128xf32>
    %922 = arith.divf %920, %921 : vector<8x128xf32>
    %923 = arith.mulf %914, %863 : vector<8x128xf32>
    %924 = arith.mulf %908, %916 : vector<8x128xf32>
    %925 = arith.addf %923, %924 : vector<8x128xf32>
    %926 = math.tanh %925 : vector<8x128xf32>
    %927 = arith.mulf %922, %926 : vector<8x128xf32>
    %c2_383 = arith.constant 2 : index
    %c0_384 = arith.constant 0 : index
    %c0_385 = arith.constant 0 : index
    %928 = vector.load %arg1[%c2_383, %c0_384, %c0_385] : memref<8x8x128xf32, #tpu.memory_space<vmem>>, vector<1x8x128xf32>
    %929 = vector.shape_cast %928 : vector<1x8x128xf32> to vector<8x128xf32>
    %cst_386 = arith.constant 0.000000e+00 : f32
    %930 = vector.broadcast %cst_386 : f32 to vector<8x128xf32>
    %931 = arith.cmpf one, %929, %930 : vector<8x128xf32>
    %c5_387 = arith.constant 5 : index
    %c0_388 = arith.constant 0 : index
    %c0_389 = arith.constant 0 : index
    %932 = vector.load %arg1[%c5_387, %c0_388, %c0_389] : memref<8x8x128xf32, #tpu.memory_space<vmem>>, vector<1x8x128xf32>
    %933 = vector.shape_cast %932 : vector<1x8x128xf32> to vector<8x128xf32>
    %cst_390 = arith.constant 0.000000e+00 : f32
    %934 = vector.broadcast %cst_390 : f32 to vector<8x128xf32>
    %935 = arith.cmpf one, %933, %934 : vector<8x128xf32>
    %936 = arith.select %931, %902, %860 : vector<8x128xi1>, vector<8x128xf32>
    %937 = arith.select %931, %900, %861 : vector<8x128xi1>, vector<8x128xf32>
    %938 = arith.select %935, %927, %862 : vector<8x128xi1>, vector<8x128xf32>
    %939 = arith.select %935, %925, %863 : vector<8x128xi1>, vector<8x128xf32>
    %c3_391 = arith.constant 3 : index
    %c0_392 = arith.constant 0 : index
    %c0_393 = arith.constant 0 : index
    %940 = vector.load %arg11[%c3_391, %c0_392, %c0_393] : memref<8x8x1024xf32, #tpu.memory_space<vmem>>, vector<1x8x512xf32>
    %941 = vector.shape_cast %940 : vector<1x8x512xf32> to vector<8x512xf32>
    %942 = arith.truncf %936 : vector<8x128xf32> to vector<8x128xbf16>
    %c0_394 = arith.constant 0 : index
    %c0_395 = arith.constant 0 : index
    %c0_396 = arith.constant 0 : index
    %943 = vector.load %arg6[%c0_394, %c0_395, %c0_396] : memref<2x128x512xbf16, #tpu.memory_space<vmem>>, vector<1x128x512xbf16>
    %944 = vector.shape_cast %943 : vector<1x128x512xbf16> to vector<128x512xbf16>
    %cst_397 = arith.constant dense<0.000000e+00> : vector<8x512xf32>
    %945 = tpu.matmul %942, %944, %cst_397 {dimension_numbers = #tpu.dot_dimension_numbers<[1], [0], [0], [1], [0, 0, 1, 1], [], []>} : vector<8x128xbf16>, vector<128x512xbf16>, vector<8x512xf32> -> vector<8x512xf32>
    %946 = arith.addf %941, %945 : vector<8x512xf32>
    %c4_398 = arith.constant 4 : index
    %c0_399 = arith.constant 0 : index
    %c512_400 = arith.constant 512 : index
    %947 = vector.load %arg11[%c4_398, %c0_399, %c512_400] : memref<8x8x1024xf32, #tpu.memory_space<vmem>>, vector<1x8x512xf32>
    %948 = vector.shape_cast %947 : vector<1x8x512xf32> to vector<8x512xf32>
    %949 = arith.truncf %938 : vector<8x128xf32> to vector<8x128xbf16>
    %c1_401 = arith.constant 1 : index
    %c0_402 = arith.constant 0 : index
    %c0_403 = arith.constant 0 : index
    %950 = vector.load %arg6[%c1_401, %c0_402, %c0_403] : memref<2x128x512xbf16, #tpu.memory_space<vmem>>, vector<1x128x512xbf16>
    %951 = vector.shape_cast %950 : vector<1x128x512xbf16> to vector<128x512xbf16>
    %cst_404 = arith.constant dense<0.000000e+00> : vector<8x512xf32>
    %952 = tpu.matmul %949, %951, %cst_404 {dimension_numbers = #tpu.dot_dimension_numbers<[1], [0], [0], [1], [0, 0, 1, 1], [], []>} : vector<8x128xbf16>, vector<128x512xbf16>, vector<8x512xf32> -> vector<8x512xf32>
    %953 = arith.addf %948, %952 : vector<8x512xf32>
    %954 = vector.extract_strided_slice %946 {offsets = [0, 0], sizes = [8, 128], strides = [1, 1]} : vector<8x512xf32> to vector<8x128xf32>
    %955 = arith.negf %954 : vector<8x128xf32>
    %956 = math.exp %955 : vector<8x128xf32>
    %cst_405 = arith.constant 1.000000e+00 : f32
    %957 = vector.broadcast %cst_405 : f32 to vector<8x128xf32>
    %958 = arith.addf %957, %956 : vector<8x128xf32>
    %959 = arith.divf %957, %958 : vector<8x128xf32>
    %960 = vector.extract_strided_slice %946 {offsets = [0, 128], sizes = [8, 128], strides = [1, 1]} : vector<8x512xf32> to vector<8x128xf32>
    %961 = arith.negf %960 : vector<8x128xf32>
    %962 = math.exp %961 : vector<8x128xf32>
    %cst_406 = arith.constant 1.000000e+00 : f32
    %963 = vector.broadcast %cst_406 : f32 to vector<8x128xf32>
    %964 = arith.addf %963, %962 : vector<8x128xf32>
    %965 = arith.divf %963, %964 : vector<8x128xf32>
    %966 = vector.extract_strided_slice %946 {offsets = [0, 256], sizes = [8, 128], strides = [1, 1]} : vector<8x512xf32> to vector<8x128xf32>
    %967 = math.tanh %966 : vector<8x128xf32>
    %968 = vector.extract_strided_slice %946 {offsets = [0, 384], sizes = [8, 128], strides = [1, 1]} : vector<8x512xf32> to vector<8x128xf32>
    %969 = arith.negf %968 : vector<8x128xf32>
    %970 = math.exp %969 : vector<8x128xf32>
    %cst_407 = arith.constant 1.000000e+00 : f32
    %971 = vector.broadcast %cst_407 : f32 to vector<8x128xf32>
    %972 = arith.addf %971, %970 : vector<8x128xf32>
    %973 = arith.divf %971, %972 : vector<8x128xf32>
    %974 = arith.mulf %965, %937 : vector<8x128xf32>
    %975 = arith.mulf %959, %967 : vector<8x128xf32>
    %976 = arith.addf %974, %975 : vector<8x128xf32>
    %977 = math.tanh %976 : vector<8x128xf32>
    %978 = arith.mulf %973, %977 : vector<8x128xf32>
    %979 = vector.extract_strided_slice %953 {offsets = [0, 0], sizes = [8, 128], strides = [1, 1]} : vector<8x512xf32> to vector<8x128xf32>
    %980 = arith.negf %979 : vector<8x128xf32>
    %981 = math.exp %980 : vector<8x128xf32>
    %cst_408 = arith.constant 1.000000e+00 : f32
    %982 = vector.broadcast %cst_408 : f32 to vector<8x128xf32>
    %983 = arith.addf %982, %981 : vector<8x128xf32>
    %984 = arith.divf %982, %983 : vector<8x128xf32>
    %985 = vector.extract_strided_slice %953 {offsets = [0, 128], sizes = [8, 128], strides = [1, 1]} : vector<8x512xf32> to vector<8x128xf32>
    %986 = arith.negf %985 : vector<8x128xf32>
    %987 = math.exp %986 : vector<8x128xf32>
    %cst_409 = arith.constant 1.000000e+00 : f32
    %988 = vector.broadcast %cst_409 : f32 to vector<8x128xf32>
    %989 = arith.addf %988, %987 : vector<8x128xf32>
    %990 = arith.divf %988, %989 : vector<8x128xf32>
    %991 = vector.extract_strided_slice %953 {offsets = [0, 256], sizes = [8, 128], strides = [1, 1]} : vector<8x512xf32> to vector<8x128xf32>
    %992 = math.tanh %991 : vector<8x128xf32>
    %993 = vector.extract_strided_slice %953 {offsets = [0, 384], sizes = [8, 128], strides = [1, 1]} : vector<8x512xf32> to vector<8x128xf32>
    %994 = arith.negf %993 : vector<8x128xf32>
    %995 = math.exp %994 : vector<8x128xf32>
    %cst_410 = arith.constant 1.000000e+00 : f32
    %996 = vector.broadcast %cst_410 : f32 to vector<8x128xf32>
    %997 = arith.addf %996, %995 : vector<8x128xf32>
    %998 = arith.divf %996, %997 : vector<8x128xf32>
    %999 = arith.mulf %990, %939 : vector<8x128xf32>
    %1000 = arith.mulf %984, %992 : vector<8x128xf32>
    %1001 = arith.addf %999, %1000 : vector<8x128xf32>
    %1002 = math.tanh %1001 : vector<8x128xf32>
    %1003 = arith.mulf %998, %1002 : vector<8x128xf32>
    %c3_411 = arith.constant 3 : index
    %c0_412 = arith.constant 0 : index
    %c0_413 = arith.constant 0 : index
    %1004 = vector.load %arg1[%c3_411, %c0_412, %c0_413] : memref<8x8x128xf32, #tpu.memory_space<vmem>>, vector<1x8x128xf32>
    %1005 = vector.shape_cast %1004 : vector<1x8x128xf32> to vector<8x128xf32>
    %cst_414 = arith.constant 0.000000e+00 : f32
    %1006 = vector.broadcast %cst_414 : f32 to vector<8x128xf32>
    %1007 = arith.cmpf one, %1005, %1006 : vector<8x128xf32>
    %c4_415 = arith.constant 4 : index
    %c0_416 = arith.constant 0 : index
    %c0_417 = arith.constant 0 : index
    %1008 = vector.load %arg1[%c4_415, %c0_416, %c0_417] : memref<8x8x128xf32, #tpu.memory_space<vmem>>, vector<1x8x128xf32>
    %1009 = vector.shape_cast %1008 : vector<1x8x128xf32> to vector<8x128xf32>
    %cst_418 = arith.constant 0.000000e+00 : f32
    %1010 = vector.broadcast %cst_418 : f32 to vector<8x128xf32>
    %1011 = arith.cmpf one, %1009, %1010 : vector<8x128xf32>
    %1012 = arith.select %1007, %978, %936 : vector<8x128xi1>, vector<8x128xf32>
    %1013 = arith.select %1007, %976, %937 : vector<8x128xi1>, vector<8x128xf32>
    %1014 = arith.select %1011, %1003, %938 : vector<8x128xi1>, vector<8x128xf32>
    %1015 = arith.select %1011, %1001, %939 : vector<8x128xi1>, vector<8x128xf32>
    %c4_419 = arith.constant 4 : index
    %c0_420 = arith.constant 0 : index
    %c0_421 = arith.constant 0 : index
    %1016 = vector.load %arg11[%c4_419, %c0_420, %c0_421] : memref<8x8x1024xf32, #tpu.memory_space<vmem>>, vector<1x8x512xf32>
    %1017 = vector.shape_cast %1016 : vector<1x8x512xf32> to vector<8x512xf32>
    %1018 = arith.truncf %1012 : vector<8x128xf32> to vector<8x128xbf16>
    %c0_422 = arith.constant 0 : index
    %c0_423 = arith.constant 0 : index
    %c0_424 = arith.constant 0 : index
    %1019 = vector.load %arg6[%c0_422, %c0_423, %c0_424] : memref<2x128x512xbf16, #tpu.memory_space<vmem>>, vector<1x128x512xbf16>
    %1020 = vector.shape_cast %1019 : vector<1x128x512xbf16> to vector<128x512xbf16>
    %cst_425 = arith.constant dense<0.000000e+00> : vector<8x512xf32>
    %1021 = tpu.matmul %1018, %1020, %cst_425 {dimension_numbers = #tpu.dot_dimension_numbers<[1], [0], [0], [1], [0, 0, 1, 1], [], []>} : vector<8x128xbf16>, vector<128x512xbf16>, vector<8x512xf32> -> vector<8x512xf32>
    %1022 = arith.addf %1017, %1021 : vector<8x512xf32>
    %c3_426 = arith.constant 3 : index
    %c0_427 = arith.constant 0 : index
    %c512_428 = arith.constant 512 : index
    %1023 = vector.load %arg11[%c3_426, %c0_427, %c512_428] : memref<8x8x1024xf32, #tpu.memory_space<vmem>>, vector<1x8x512xf32>
    %1024 = vector.shape_cast %1023 : vector<1x8x512xf32> to vector<8x512xf32>
    %1025 = arith.truncf %1014 : vector<8x128xf32> to vector<8x128xbf16>
    %c1_429 = arith.constant 1 : index
    %c0_430 = arith.constant 0 : index
    %c0_431 = arith.constant 0 : index
    %1026 = vector.load %arg6[%c1_429, %c0_430, %c0_431] : memref<2x128x512xbf16, #tpu.memory_space<vmem>>, vector<1x128x512xbf16>
    %1027 = vector.shape_cast %1026 : vector<1x128x512xbf16> to vector<128x512xbf16>
    %cst_432 = arith.constant dense<0.000000e+00> : vector<8x512xf32>
    %1028 = tpu.matmul %1025, %1027, %cst_432 {dimension_numbers = #tpu.dot_dimension_numbers<[1], [0], [0], [1], [0, 0, 1, 1], [], []>} : vector<8x128xbf16>, vector<128x512xbf16>, vector<8x512xf32> -> vector<8x512xf32>
    %1029 = arith.addf %1024, %1028 : vector<8x512xf32>
    %1030 = vector.extract_strided_slice %1022 {offsets = [0, 0], sizes = [8, 128], strides = [1, 1]} : vector<8x512xf32> to vector<8x128xf32>
    %1031 = arith.negf %1030 : vector<8x128xf32>
    %1032 = math.exp %1031 : vector<8x128xf32>
    %cst_433 = arith.constant 1.000000e+00 : f32
    %1033 = vector.broadcast %cst_433 : f32 to vector<8x128xf32>
    %1034 = arith.addf %1033, %1032 : vector<8x128xf32>
    %1035 = arith.divf %1033, %1034 : vector<8x128xf32>
    %1036 = vector.extract_strided_slice %1022 {offsets = [0, 128], sizes = [8, 128], strides = [1, 1]} : vector<8x512xf32> to vector<8x128xf32>
    %1037 = arith.negf %1036 : vector<8x128xf32>
    %1038 = math.exp %1037 : vector<8x128xf32>
    %cst_434 = arith.constant 1.000000e+00 : f32
    %1039 = vector.broadcast %cst_434 : f32 to vector<8x128xf32>
    %1040 = arith.addf %1039, %1038 : vector<8x128xf32>
    %1041 = arith.divf %1039, %1040 : vector<8x128xf32>
    %1042 = vector.extract_strided_slice %1022 {offsets = [0, 256], sizes = [8, 128], strides = [1, 1]} : vector<8x512xf32> to vector<8x128xf32>
    %1043 = math.tanh %1042 : vector<8x128xf32>
    %1044 = vector.extract_strided_slice %1022 {offsets = [0, 384], sizes = [8, 128], strides = [1, 1]} : vector<8x512xf32> to vector<8x128xf32>
    %1045 = arith.negf %1044 : vector<8x128xf32>
    %1046 = math.exp %1045 : vector<8x128xf32>
    %cst_435 = arith.constant 1.000000e+00 : f32
    %1047 = vector.broadcast %cst_435 : f32 to vector<8x128xf32>
    %1048 = arith.addf %1047, %1046 : vector<8x128xf32>
    %1049 = arith.divf %1047, %1048 : vector<8x128xf32>
    %1050 = arith.mulf %1041, %1013 : vector<8x128xf32>
    %1051 = arith.mulf %1035, %1043 : vector<8x128xf32>
    %1052 = arith.addf %1050, %1051 : vector<8x128xf32>
    %1053 = math.tanh %1052 : vector<8x128xf32>
    %1054 = arith.mulf %1049, %1053 : vector<8x128xf32>
    %1055 = vector.extract_strided_slice %1029 {offsets = [0, 0], sizes = [8, 128], strides = [1, 1]} : vector<8x512xf32> to vector<8x128xf32>
    %1056 = arith.negf %1055 : vector<8x128xf32>
    %1057 = math.exp %1056 : vector<8x128xf32>
    %cst_436 = arith.constant 1.000000e+00 : f32
    %1058 = vector.broadcast %cst_436 : f32 to vector<8x128xf32>
    %1059 = arith.addf %1058, %1057 : vector<8x128xf32>
    %1060 = arith.divf %1058, %1059 : vector<8x128xf32>
    %1061 = vector.extract_strided_slice %1029 {offsets = [0, 128], sizes = [8, 128], strides = [1, 1]} : vector<8x512xf32> to vector<8x128xf32>
    %1062 = arith.negf %1061 : vector<8x128xf32>
    %1063 = math.exp %1062 : vector<8x128xf32>
    %cst_437 = arith.constant 1.000000e+00 : f32
    %1064 = vector.broadcast %cst_437 : f32 to vector<8x128xf32>
    %1065 = arith.addf %1064, %1063 : vector<8x128xf32>
    %1066 = arith.divf %1064, %1065 : vector<8x128xf32>
    %1067 = vector.extract_strided_slice %1029 {offsets = [0, 256], sizes = [8, 128], strides = [1, 1]} : vector<8x512xf32> to vector<8x128xf32>
    %1068 = math.tanh %1067 : vector<8x128xf32>
    %1069 = vector.extract_strided_slice %1029 {offsets = [0, 384], sizes = [8, 128], strides = [1, 1]} : vector<8x512xf32> to vector<8x128xf32>
    %1070 = arith.negf %1069 : vector<8x128xf32>
    %1071 = math.exp %1070 : vector<8x128xf32>
    %cst_438 = arith.constant 1.000000e+00 : f32
    %1072 = vector.broadcast %cst_438 : f32 to vector<8x128xf32>
    %1073 = arith.addf %1072, %1071 : vector<8x128xf32>
    %1074 = arith.divf %1072, %1073 : vector<8x128xf32>
    %1075 = arith.mulf %1066, %1015 : vector<8x128xf32>
    %1076 = arith.mulf %1060, %1068 : vector<8x128xf32>
    %1077 = arith.addf %1075, %1076 : vector<8x128xf32>
    %1078 = math.tanh %1077 : vector<8x128xf32>
    %1079 = arith.mulf %1074, %1078 : vector<8x128xf32>
    %c4_439 = arith.constant 4 : index
    %c0_440 = arith.constant 0 : index
    %c0_441 = arith.constant 0 : index
    %1080 = vector.load %arg1[%c4_439, %c0_440, %c0_441] : memref<8x8x128xf32, #tpu.memory_space<vmem>>, vector<1x8x128xf32>
    %1081 = vector.shape_cast %1080 : vector<1x8x128xf32> to vector<8x128xf32>
    %cst_442 = arith.constant 0.000000e+00 : f32
    %1082 = vector.broadcast %cst_442 : f32 to vector<8x128xf32>
    %1083 = arith.cmpf one, %1081, %1082 : vector<8x128xf32>
    %c3_443 = arith.constant 3 : index
    %c0_444 = arith.constant 0 : index
    %c0_445 = arith.constant 0 : index
    %1084 = vector.load %arg1[%c3_443, %c0_444, %c0_445] : memref<8x8x128xf32, #tpu.memory_space<vmem>>, vector<1x8x128xf32>
    %1085 = vector.shape_cast %1084 : vector<1x8x128xf32> to vector<8x128xf32>
    %cst_446 = arith.constant 0.000000e+00 : f32
    %1086 = vector.broadcast %cst_446 : f32 to vector<8x128xf32>
    %1087 = arith.cmpf one, %1085, %1086 : vector<8x128xf32>
    %1088 = arith.select %1083, %1054, %1012 : vector<8x128xi1>, vector<8x128xf32>
    %1089 = arith.select %1083, %1052, %1013 : vector<8x128xi1>, vector<8x128xf32>
    %1090 = arith.select %1087, %1079, %1014 : vector<8x128xi1>, vector<8x128xf32>
    %1091 = arith.select %1087, %1077, %1015 : vector<8x128xi1>, vector<8x128xf32>
    %c5_447 = arith.constant 5 : index
    %c0_448 = arith.constant 0 : index
    %c0_449 = arith.constant 0 : index
    %1092 = vector.load %arg11[%c5_447, %c0_448, %c0_449] : memref<8x8x1024xf32, #tpu.memory_space<vmem>>, vector<1x8x512xf32>
    %1093 = vector.shape_cast %1092 : vector<1x8x512xf32> to vector<8x512xf32>
    %1094 = arith.truncf %1088 : vector<8x128xf32> to vector<8x128xbf16>
    %c0_450 = arith.constant 0 : index
    %c0_451 = arith.constant 0 : index
    %c0_452 = arith.constant 0 : index
    %1095 = vector.load %arg6[%c0_450, %c0_451, %c0_452] : memref<2x128x512xbf16, #tpu.memory_space<vmem>>, vector<1x128x512xbf16>
    %1096 = vector.shape_cast %1095 : vector<1x128x512xbf16> to vector<128x512xbf16>
    %cst_453 = arith.constant dense<0.000000e+00> : vector<8x512xf32>
    %1097 = tpu.matmul %1094, %1096, %cst_453 {dimension_numbers = #tpu.dot_dimension_numbers<[1], [0], [0], [1], [0, 0, 1, 1], [], []>} : vector<8x128xbf16>, vector<128x512xbf16>, vector<8x512xf32> -> vector<8x512xf32>
    %1098 = arith.addf %1093, %1097 : vector<8x512xf32>
    %c2_454 = arith.constant 2 : index
    %c0_455 = arith.constant 0 : index
    %c512_456 = arith.constant 512 : index
    %1099 = vector.load %arg11[%c2_454, %c0_455, %c512_456] : memref<8x8x1024xf32, #tpu.memory_space<vmem>>, vector<1x8x512xf32>
    %1100 = vector.shape_cast %1099 : vector<1x8x512xf32> to vector<8x512xf32>
    %1101 = arith.truncf %1090 : vector<8x128xf32> to vector<8x128xbf16>
    %c1_457 = arith.constant 1 : index
    %c0_458 = arith.constant 0 : index
    %c0_459 = arith.constant 0 : index
    %1102 = vector.load %arg6[%c1_457, %c0_458, %c0_459] : memref<2x128x512xbf16, #tpu.memory_space<vmem>>, vector<1x128x512xbf16>
    %1103 = vector.shape_cast %1102 : vector<1x128x512xbf16> to vector<128x512xbf16>
    %cst_460 = arith.constant dense<0.000000e+00> : vector<8x512xf32>
    %1104 = tpu.matmul %1101, %1103, %cst_460 {dimension_numbers = #tpu.dot_dimension_numbers<[1], [0], [0], [1], [0, 0, 1, 1], [], []>} : vector<8x128xbf16>, vector<128x512xbf16>, vector<8x512xf32> -> vector<8x512xf32>
    %1105 = arith.addf %1100, %1104 : vector<8x512xf32>
    %1106 = vector.extract_strided_slice %1098 {offsets = [0, 0], sizes = [8, 128], strides = [1, 1]} : vector<8x512xf32> to vector<8x128xf32>
    %1107 = arith.negf %1106 : vector<8x128xf32>
    %1108 = math.exp %1107 : vector<8x128xf32>
    %cst_461 = arith.constant 1.000000e+00 : f32
    %1109 = vector.broadcast %cst_461 : f32 to vector<8x128xf32>
    %1110 = arith.addf %1109, %1108 : vector<8x128xf32>
    %1111 = arith.divf %1109, %1110 : vector<8x128xf32>
    %1112 = vector.extract_strided_slice %1098 {offsets = [0, 128], sizes = [8, 128], strides = [1, 1]} : vector<8x512xf32> to vector<8x128xf32>
    %1113 = arith.negf %1112 : vector<8x128xf32>
    %1114 = math.exp %1113 : vector<8x128xf32>
    %cst_462 = arith.constant 1.000000e+00 : f32
    %1115 = vector.broadcast %cst_462 : f32 to vector<8x128xf32>
    %1116 = arith.addf %1115, %1114 : vector<8x128xf32>
    %1117 = arith.divf %1115, %1116 : vector<8x128xf32>
    %1118 = vector.extract_strided_slice %1098 {offsets = [0, 256], sizes = [8, 128], strides = [1, 1]} : vector<8x512xf32> to vector<8x128xf32>
    %1119 = math.tanh %1118 : vector<8x128xf32>
    %1120 = vector.extract_strided_slice %1098 {offsets = [0, 384], sizes = [8, 128], strides = [1, 1]} : vector<8x512xf32> to vector<8x128xf32>
    %1121 = arith.negf %1120 : vector<8x128xf32>
    %1122 = math.exp %1121 : vector<8x128xf32>
    %cst_463 = arith.constant 1.000000e+00 : f32
    %1123 = vector.broadcast %cst_463 : f32 to vector<8x128xf32>
    %1124 = arith.addf %1123, %1122 : vector<8x128xf32>
    %1125 = arith.divf %1123, %1124 : vector<8x128xf32>
    %1126 = arith.mulf %1117, %1089 : vector<8x128xf32>
    %1127 = arith.mulf %1111, %1119 : vector<8x128xf32>
    %1128 = arith.addf %1126, %1127 : vector<8x128xf32>
    %1129 = math.tanh %1128 : vector<8x128xf32>
    %1130 = arith.mulf %1125, %1129 : vector<8x128xf32>
    %1131 = vector.extract_strided_slice %1105 {offsets = [0, 0], sizes = [8, 128], strides = [1, 1]} : vector<8x512xf32> to vector<8x128xf32>
    %1132 = arith.negf %1131 : vector<8x128xf32>
    %1133 = math.exp %1132 : vector<8x128xf32>
    %cst_464 = arith.constant 1.000000e+00 : f32
    %1134 = vector.broadcast %cst_464 : f32 to vector<8x128xf32>
    %1135 = arith.addf %1134, %1133 : vector<8x128xf32>
    %1136 = arith.divf %1134, %1135 : vector<8x128xf32>
    %1137 = vector.extract_strided_slice %1105 {offsets = [0, 128], sizes = [8, 128], strides = [1, 1]} : vector<8x512xf32> to vector<8x128xf32>
    %1138 = arith.negf %1137 : vector<8x128xf32>
    %1139 = math.exp %1138 : vector<8x128xf32>
    %cst_465 = arith.constant 1.000000e+00 : f32
    %1140 = vector.broadcast %cst_465 : f32 to vector<8x128xf32>
    %1141 = arith.addf %1140, %1139 : vector<8x128xf32>
    %1142 = arith.divf %1140, %1141 : vector<8x128xf32>
    %1143 = vector.extract_strided_slice %1105 {offsets = [0, 256], sizes = [8, 128], strides = [1, 1]} : vector<8x512xf32> to vector<8x128xf32>
    %1144 = math.tanh %1143 : vector<8x128xf32>
    %1145 = vector.extract_strided_slice %1105 {offsets = [0, 384], sizes = [8, 128], strides = [1, 1]} : vector<8x512xf32> to vector<8x128xf32>
    %1146 = arith.negf %1145 : vector<8x128xf32>
    %1147 = math.exp %1146 : vector<8x128xf32>
    %cst_466 = arith.constant 1.000000e+00 : f32
    %1148 = vector.broadcast %cst_466 : f32 to vector<8x128xf32>
    %1149 = arith.addf %1148, %1147 : vector<8x128xf32>
    %1150 = arith.divf %1148, %1149 : vector<8x128xf32>
    %1151 = arith.mulf %1142, %1091 : vector<8x128xf32>
    %1152 = arith.mulf %1136, %1144 : vector<8x128xf32>
    %1153 = arith.addf %1151, %1152 : vector<8x128xf32>
    %1154 = math.tanh %1153 : vector<8x128xf32>
    %1155 = arith.mulf %1150, %1154 : vector<8x128xf32>
    %c5_467 = arith.constant 5 : index
    %c0_468 = arith.constant 0 : index
    %c0_469 = arith.constant 0 : index
    %1156 = vector.load %arg1[%c5_467, %c0_468, %c0_469] : memref<8x8x128xf32, #tpu.memory_space<vmem>>, vector<1x8x128xf32>
    %1157 = vector.shape_cast %1156 : vector<1x8x128xf32> to vector<8x128xf32>
    %cst_470 = arith.constant 0.000000e+00 : f32
    %1158 = vector.broadcast %cst_470 : f32 to vector<8x128xf32>
    %1159 = arith.cmpf one, %1157, %1158 : vector<8x128xf32>
    %c2_471 = arith.constant 2 : index
    %c0_472 = arith.constant 0 : index
    %c0_473 = arith.constant 0 : index
    %1160 = vector.load %arg1[%c2_471, %c0_472, %c0_473] : memref<8x8x128xf32, #tpu.memory_space<vmem>>, vector<1x8x128xf32>
    %1161 = vector.shape_cast %1160 : vector<1x8x128xf32> to vector<8x128xf32>
    %cst_474 = arith.constant 0.000000e+00 : f32
    %1162 = vector.broadcast %cst_474 : f32 to vector<8x128xf32>
    %1163 = arith.cmpf one, %1161, %1162 : vector<8x128xf32>
    %1164 = arith.select %1159, %1130, %1088 : vector<8x128xi1>, vector<8x128xf32>
    %1165 = arith.select %1159, %1128, %1089 : vector<8x128xi1>, vector<8x128xf32>
    %1166 = arith.select %1163, %1155, %1090 : vector<8x128xi1>, vector<8x128xf32>
    %1167 = arith.select %1163, %1153, %1091 : vector<8x128xi1>, vector<8x128xf32>
    %c6_475 = arith.constant 6 : index
    %c0_476 = arith.constant 0 : index
    %c0_477 = arith.constant 0 : index
    %1168 = vector.load %arg11[%c6_475, %c0_476, %c0_477] : memref<8x8x1024xf32, #tpu.memory_space<vmem>>, vector<1x8x512xf32>
    %1169 = vector.shape_cast %1168 : vector<1x8x512xf32> to vector<8x512xf32>
    %1170 = arith.truncf %1164 : vector<8x128xf32> to vector<8x128xbf16>
    %c0_478 = arith.constant 0 : index
    %c0_479 = arith.constant 0 : index
    %c0_480 = arith.constant 0 : index
    %1171 = vector.load %arg6[%c0_478, %c0_479, %c0_480] : memref<2x128x512xbf16, #tpu.memory_space<vmem>>, vector<1x128x512xbf16>
    %1172 = vector.shape_cast %1171 : vector<1x128x512xbf16> to vector<128x512xbf16>
    %cst_481 = arith.constant dense<0.000000e+00> : vector<8x512xf32>
    %1173 = tpu.matmul %1170, %1172, %cst_481 {dimension_numbers = #tpu.dot_dimension_numbers<[1], [0], [0], [1], [0, 0, 1, 1], [], []>} : vector<8x128xbf16>, vector<128x512xbf16>, vector<8x512xf32> -> vector<8x512xf32>
    %1174 = arith.addf %1169, %1173 : vector<8x512xf32>
    %c1_482 = arith.constant 1 : index
    %c0_483 = arith.constant 0 : index
    %c512_484 = arith.constant 512 : index
    %1175 = vector.load %arg11[%c1_482, %c0_483, %c512_484] : memref<8x8x1024xf32, #tpu.memory_space<vmem>>, vector<1x8x512xf32>
    %1176 = vector.shape_cast %1175 : vector<1x8x512xf32> to vector<8x512xf32>
    %1177 = arith.truncf %1166 : vector<8x128xf32> to vector<8x128xbf16>
    %c1_485 = arith.constant 1 : index
    %c0_486 = arith.constant 0 : index
    %c0_487 = arith.constant 0 : index
    %1178 = vector.load %arg6[%c1_485, %c0_486, %c0_487] : memref<2x128x512xbf16, #tpu.memory_space<vmem>>, vector<1x128x512xbf16>
    %1179 = vector.shape_cast %1178 : vector<1x128x512xbf16> to vector<128x512xbf16>
    %cst_488 = arith.constant dense<0.000000e+00> : vector<8x512xf32>
    %1180 = tpu.matmul %1177, %1179, %cst_488 {dimension_numbers = #tpu.dot_dimension_numbers<[1], [0], [0], [1], [0, 0, 1, 1], [], []>} : vector<8x128xbf16>, vector<128x512xbf16>, vector<8x512xf32> -> vector<8x512xf32>
    %1181 = arith.addf %1176, %1180 : vector<8x512xf32>
    %1182 = vector.extract_strided_slice %1174 {offsets = [0, 0], sizes = [8, 128], strides = [1, 1]} : vector<8x512xf32> to vector<8x128xf32>
    %1183 = arith.negf %1182 : vector<8x128xf32>
    %1184 = math.exp %1183 : vector<8x128xf32>
    %cst_489 = arith.constant 1.000000e+00 : f32
    %1185 = vector.broadcast %cst_489 : f32 to vector<8x128xf32>
    %1186 = arith.addf %1185, %1184 : vector<8x128xf32>
    %1187 = arith.divf %1185, %1186 : vector<8x128xf32>
    %1188 = vector.extract_strided_slice %1174 {offsets = [0, 128], sizes = [8, 128], strides = [1, 1]} : vector<8x512xf32> to vector<8x128xf32>
    %1189 = arith.negf %1188 : vector<8x128xf32>
    %1190 = math.exp %1189 : vector<8x128xf32>
    %cst_490 = arith.constant 1.000000e+00 : f32
    %1191 = vector.broadcast %cst_490 : f32 to vector<8x128xf32>
    %1192 = arith.addf %1191, %1190 : vector<8x128xf32>
    %1193 = arith.divf %1191, %1192 : vector<8x128xf32>
    %1194 = vector.extract_strided_slice %1174 {offsets = [0, 256], sizes = [8, 128], strides = [1, 1]} : vector<8x512xf32> to vector<8x128xf32>
    %1195 = math.tanh %1194 : vector<8x128xf32>
    %1196 = vector.extract_strided_slice %1174 {offsets = [0, 384], sizes = [8, 128], strides = [1, 1]} : vector<8x512xf32> to vector<8x128xf32>
    %1197 = arith.negf %1196 : vector<8x128xf32>
    %1198 = math.exp %1197 : vector<8x128xf32>
    %cst_491 = arith.constant 1.000000e+00 : f32
    %1199 = vector.broadcast %cst_491 : f32 to vector<8x128xf32>
    %1200 = arith.addf %1199, %1198 : vector<8x128xf32>
    %1201 = arith.divf %1199, %1200 : vector<8x128xf32>
    %1202 = arith.mulf %1193, %1165 : vector<8x128xf32>
    %1203 = arith.mulf %1187, %1195 : vector<8x128xf32>
    %1204 = arith.addf %1202, %1203 : vector<8x128xf32>
    %1205 = math.tanh %1204 : vector<8x128xf32>
    %1206 = arith.mulf %1201, %1205 : vector<8x128xf32>
    %1207 = vector.extract_strided_slice %1181 {offsets = [0, 0], sizes = [8, 128], strides = [1, 1]} : vector<8x512xf32> to vector<8x128xf32>
    %1208 = arith.negf %1207 : vector<8x128xf32>
    %1209 = math.exp %1208 : vector<8x128xf32>
    %cst_492 = arith.constant 1.000000e+00 : f32
    %1210 = vector.broadcast %cst_492 : f32 to vector<8x128xf32>
    %1211 = arith.addf %1210, %1209 : vector<8x128xf32>
    %1212 = arith.divf %1210, %1211 : vector<8x128xf32>
    %1213 = vector.extract_strided_slice %1181 {offsets = [0, 128], sizes = [8, 128], strides = [1, 1]} : vector<8x512xf32> to vector<8x128xf32>
    %1214 = arith.negf %1213 : vector<8x128xf32>
    %1215 = math.exp %1214 : vector<8x128xf32>
    %cst_493 = arith.constant 1.000000e+00 : f32
    %1216 = vector.broadcast %cst_493 : f32 to vector<8x128xf32>
    %1217 = arith.addf %1216, %1215 : vector<8x128xf32>
    %1218 = arith.divf %1216, %1217 : vector<8x128xf32>
    %1219 = vector.extract_strided_slice %1181 {offsets = [0, 256], sizes = [8, 128], strides = [1, 1]} : vector<8x512xf32> to vector<8x128xf32>
    %1220 = math.tanh %1219 : vector<8x128xf32>
    %1221 = vector.extract_strided_slice %1181 {offsets = [0, 384], sizes = [8, 128], strides = [1, 1]} : vector<8x512xf32> to vector<8x128xf32>
    %1222 = arith.negf %1221 : vector<8x128xf32>
    %1223 = math.exp %1222 : vector<8x128xf32>
    %cst_494 = arith.constant 1.000000e+00 : f32
    %1224 = vector.broadcast %cst_494 : f32 to vector<8x128xf32>
    %1225 = arith.addf %1224, %1223 : vector<8x128xf32>
    %1226 = arith.divf %1224, %1225 : vector<8x128xf32>
    %1227 = arith.mulf %1218, %1167 : vector<8x128xf32>
    %1228 = arith.mulf %1212, %1220 : vector<8x128xf32>
    %1229 = arith.addf %1227, %1228 : vector<8x128xf32>
    %1230 = math.tanh %1229 : vector<8x128xf32>
    %1231 = arith.mulf %1226, %1230 : vector<8x128xf32>
    %c6_495 = arith.constant 6 : index
    %c0_496 = arith.constant 0 : index
    %c0_497 = arith.constant 0 : index
    %1232 = vector.load %arg1[%c6_495, %c0_496, %c0_497] : memref<8x8x128xf32, #tpu.memory_space<vmem>>, vector<1x8x128xf32>
    %1233 = vector.shape_cast %1232 : vector<1x8x128xf32> to vector<8x128xf32>
    %cst_498 = arith.constant 0.000000e+00 : f32
    %1234 = vector.broadcast %cst_498 : f32 to vector<8x128xf32>
    %1235 = arith.cmpf one, %1233, %1234 : vector<8x128xf32>
    %c1_499 = arith.constant 1 : index
    %c0_500 = arith.constant 0 : index
    %c0_501 = arith.constant 0 : index
    %1236 = vector.load %arg1[%c1_499, %c0_500, %c0_501] : memref<8x8x128xf32, #tpu.memory_space<vmem>>, vector<1x8x128xf32>
    %1237 = vector.shape_cast %1236 : vector<1x8x128xf32> to vector<8x128xf32>
    %cst_502 = arith.constant 0.000000e+00 : f32
    %1238 = vector.broadcast %cst_502 : f32 to vector<8x128xf32>
    %1239 = arith.cmpf one, %1237, %1238 : vector<8x128xf32>
    %1240 = arith.select %1235, %1206, %1164 : vector<8x128xi1>, vector<8x128xf32>
    %1241 = arith.select %1235, %1204, %1165 : vector<8x128xi1>, vector<8x128xf32>
    %1242 = arith.select %1239, %1231, %1166 : vector<8x128xi1>, vector<8x128xf32>
    %1243 = arith.select %1239, %1229, %1167 : vector<8x128xi1>, vector<8x128xf32>
    %c7_503 = arith.constant 7 : index
    %c0_504 = arith.constant 0 : index
    %c0_505 = arith.constant 0 : index
    %1244 = vector.load %arg11[%c7_503, %c0_504, %c0_505] : memref<8x8x1024xf32, #tpu.memory_space<vmem>>, vector<1x8x512xf32>
    %1245 = vector.shape_cast %1244 : vector<1x8x512xf32> to vector<8x512xf32>
    %1246 = arith.truncf %1240 : vector<8x128xf32> to vector<8x128xbf16>
    %c0_506 = arith.constant 0 : index
    %c0_507 = arith.constant 0 : index
    %c0_508 = arith.constant 0 : index
    %1247 = vector.load %arg6[%c0_506, %c0_507, %c0_508] : memref<2x128x512xbf16, #tpu.memory_space<vmem>>, vector<1x128x512xbf16>
    %1248 = vector.shape_cast %1247 : vector<1x128x512xbf16> to vector<128x512xbf16>
    %cst_509 = arith.constant dense<0.000000e+00> : vector<8x512xf32>
    %1249 = tpu.matmul %1246, %1248, %cst_509 {dimension_numbers = #tpu.dot_dimension_numbers<[1], [0], [0], [1], [0, 0, 1, 1], [], []>} : vector<8x128xbf16>, vector<128x512xbf16>, vector<8x512xf32> -> vector<8x512xf32>
    %1250 = arith.addf %1245, %1249 : vector<8x512xf32>
    %c0_510 = arith.constant 0 : index
    %c0_511 = arith.constant 0 : index
    %c512_512 = arith.constant 512 : index
    %1251 = vector.load %arg11[%c0_510, %c0_511, %c512_512] : memref<8x8x1024xf32, #tpu.memory_space<vmem>>, vector<1x8x512xf32>
    %1252 = vector.shape_cast %1251 : vector<1x8x512xf32> to vector<8x512xf32>
    %1253 = arith.truncf %1242 : vector<8x128xf32> to vector<8x128xbf16>
    %c1_513 = arith.constant 1 : index
    %c0_514 = arith.constant 0 : index
    %c0_515 = arith.constant 0 : index
    %1254 = vector.load %arg6[%c1_513, %c0_514, %c0_515] : memref<2x128x512xbf16, #tpu.memory_space<vmem>>, vector<1x128x512xbf16>
    %1255 = vector.shape_cast %1254 : vector<1x128x512xbf16> to vector<128x512xbf16>
    %cst_516 = arith.constant dense<0.000000e+00> : vector<8x512xf32>
    %1256 = tpu.matmul %1253, %1255, %cst_516 {dimension_numbers = #tpu.dot_dimension_numbers<[1], [0], [0], [1], [0, 0, 1, 1], [], []>} : vector<8x128xbf16>, vector<128x512xbf16>, vector<8x512xf32> -> vector<8x512xf32>
    %1257 = arith.addf %1252, %1256 : vector<8x512xf32>
    %1258 = vector.extract_strided_slice %1250 {offsets = [0, 0], sizes = [8, 128], strides = [1, 1]} : vector<8x512xf32> to vector<8x128xf32>
    %1259 = arith.negf %1258 : vector<8x128xf32>
    %1260 = math.exp %1259 : vector<8x128xf32>
    %cst_517 = arith.constant 1.000000e+00 : f32
    %1261 = vector.broadcast %cst_517 : f32 to vector<8x128xf32>
    %1262 = arith.addf %1261, %1260 : vector<8x128xf32>
    %1263 = arith.divf %1261, %1262 : vector<8x128xf32>
    %1264 = vector.extract_strided_slice %1250 {offsets = [0, 128], sizes = [8, 128], strides = [1, 1]} : vector<8x512xf32> to vector<8x128xf32>
    %1265 = arith.negf %1264 : vector<8x128xf32>
    %1266 = math.exp %1265 : vector<8x128xf32>
    %cst_518 = arith.constant 1.000000e+00 : f32
    %1267 = vector.broadcast %cst_518 : f32 to vector<8x128xf32>
    %1268 = arith.addf %1267, %1266 : vector<8x128xf32>
    %1269 = arith.divf %1267, %1268 : vector<8x128xf32>
    %1270 = vector.extract_strided_slice %1250 {offsets = [0, 256], sizes = [8, 128], strides = [1, 1]} : vector<8x512xf32> to vector<8x128xf32>
    %1271 = math.tanh %1270 : vector<8x128xf32>
    %1272 = vector.extract_strided_slice %1250 {offsets = [0, 384], sizes = [8, 128], strides = [1, 1]} : vector<8x512xf32> to vector<8x128xf32>
    %1273 = arith.negf %1272 : vector<8x128xf32>
    %1274 = math.exp %1273 : vector<8x128xf32>
    %cst_519 = arith.constant 1.000000e+00 : f32
    %1275 = vector.broadcast %cst_519 : f32 to vector<8x128xf32>
    %1276 = arith.addf %1275, %1274 : vector<8x128xf32>
    %1277 = arith.divf %1275, %1276 : vector<8x128xf32>
    %1278 = arith.mulf %1269, %1241 : vector<8x128xf32>
    %1279 = arith.mulf %1263, %1271 : vector<8x128xf32>
    %1280 = arith.addf %1278, %1279 : vector<8x128xf32>
    %1281 = math.tanh %1280 : vector<8x128xf32>
    %1282 = arith.mulf %1277, %1281 : vector<8x128xf32>
    %1283 = vector.extract_strided_slice %1257 {offsets = [0, 0], sizes = [8, 128], strides = [1, 1]} : vector<8x512xf32> to vector<8x128xf32>
    %1284 = arith.negf %1283 : vector<8x128xf32>
    %1285 = math.exp %1284 : vector<8x128xf32>
    %cst_520 = arith.constant 1.000000e+00 : f32
    %1286 = vector.broadcast %cst_520 : f32 to vector<8x128xf32>
    %1287 = arith.addf %1286, %1285 : vector<8x128xf32>
    %1288 = arith.divf %1286, %1287 : vector<8x128xf32>
    %1289 = vector.extract_strided_slice %1257 {offsets = [0, 128], sizes = [8, 128], strides = [1, 1]} : vector<8x512xf32> to vector<8x128xf32>
    %1290 = arith.negf %1289 : vector<8x128xf32>
    %1291 = math.exp %1290 : vector<8x128xf32>
    %cst_521 = arith.constant 1.000000e+00 : f32
    %1292 = vector.broadcast %cst_521 : f32 to vector<8x128xf32>
    %1293 = arith.addf %1292, %1291 : vector<8x128xf32>
    %1294 = arith.divf %1292, %1293 : vector<8x128xf32>
    %1295 = vector.extract_strided_slice %1257 {offsets = [0, 256], sizes = [8, 128], strides = [1, 1]} : vector<8x512xf32> to vector<8x128xf32>
    %1296 = math.tanh %1295 : vector<8x128xf32>
    %1297 = vector.extract_strided_slice %1257 {offsets = [0, 384], sizes = [8, 128], strides = [1, 1]} : vector<8x512xf32> to vector<8x128xf32>
    %1298 = arith.negf %1297 : vector<8x128xf32>
    %1299 = math.exp %1298 : vector<8x128xf32>
    %cst_522 = arith.constant 1.000000e+00 : f32
    %1300 = vector.broadcast %cst_522 : f32 to vector<8x128xf32>
    %1301 = arith.addf %1300, %1299 : vector<8x128xf32>
    %1302 = arith.divf %1300, %1301 : vector<8x128xf32>
    %1303 = arith.mulf %1294, %1243 : vector<8x128xf32>
    %1304 = arith.mulf %1288, %1296 : vector<8x128xf32>
    %1305 = arith.addf %1303, %1304 : vector<8x128xf32>
    %1306 = math.tanh %1305 : vector<8x128xf32>
    %1307 = arith.mulf %1302, %1306 : vector<8x128xf32>
    %c7_523 = arith.constant 7 : index
    %c0_524 = arith.constant 0 : index
    %c0_525 = arith.constant 0 : index
    %1308 = vector.load %arg1[%c7_523, %c0_524, %c0_525] : memref<8x8x128xf32, #tpu.memory_space<vmem>>, vector<1x8x128xf32>
    %1309 = vector.shape_cast %1308 : vector<1x8x128xf32> to vector<8x128xf32>
    %cst_526 = arith.constant 0.000000e+00 : f32
    %1310 = vector.broadcast %cst_526 : f32 to vector<8x128xf32>
    %1311 = arith.cmpf one, %1309, %1310 : vector<8x128xf32>
    %c0_527 = arith.constant 0 : index
    %c0_528 = arith.constant 0 : index
    %c0_529 = arith.constant 0 : index
    %1312 = vector.load %arg1[%c0_527, %c0_528, %c0_529] : memref<8x8x128xf32, #tpu.memory_space<vmem>>, vector<1x8x128xf32>
    %1313 = vector.shape_cast %1312 : vector<1x8x128xf32> to vector<8x128xf32>
    %cst_530 = arith.constant 0.000000e+00 : f32
    %1314 = vector.broadcast %cst_530 : f32 to vector<8x128xf32>
    %1315 = arith.cmpf one, %1313, %1314 : vector<8x128xf32>
    %1316 = arith.select %1311, %1282, %1240 : vector<8x128xi1>, vector<8x128xf32>
    %1317 = arith.select %1315, %1307, %1242 : vector<8x128xi1>, vector<8x128xf32>
    %1318 = tpu.concatenate %1317, %1316 in 1 : vector<8x128xf32>, vector<8x128xf32> -> vector<8x256xf32>
    %1319 = arith.truncf %1318 : vector<8x256xf32> to vector<8x256xbf16>
    %c0_531 = arith.constant 0 : index
    %c0_532 = arith.constant 0 : index
    %1320 = vector.load %arg8[%c0_531, %c0_532] : memref<256x128xbf16, #tpu.memory_space<vmem>>, vector<256x128xbf16>
    %cst_533 = arith.constant dense<0.000000e+00> : vector<8x128xf32>
    %1321 = tpu.matmul %1319, %1320, %cst_533 {dimension_numbers = #tpu.dot_dimension_numbers<[1], [0], [0], [1], [0, 0, 1, 1], [], []>} : vector<8x256xbf16>, vector<256x128xbf16>, vector<8x128xf32> -> vector<8x128xf32>
    %c0_534 = arith.constant 0 : index
    %c0_535 = arith.constant 0 : index
    %1322 = vector.load %arg9[%c0_534, %c0_535] : memref<1x128xf32, #tpu.memory_space<vmem>>, vector<1x128xf32>
    %1323 = vector.broadcast %1322 : vector<1x128xf32> to vector<8x128xf32>
    %1324 = arith.addf %1321, %1323 : vector<8x128xf32>
    %c0_536 = arith.constant 0 : index
    %c0_537 = arith.constant 0 : index
    %1325 = vector.load %arg10[%c0_536, %c0_537] : memref<8x128xf32, #tpu.memory_space<vmem>>, vector<8x128xf32>
    tpu.vector_store %arg10[%c0_536, %c0_537], %1324 {strides = array<i32>} : memref<8x128xf32, #tpu.memory_space<vmem>>, vector<8x128xf32>,
    return
  }
}

</mosaic_0001>

<llo_original>
// kernel: lstm_model_forward.1
$region0: #{lstm_model_forward.1}
  #allocation0 [shape = 'u32[]', space=smem, size = 0x4, offset = 0x4, fixed_abs, tag = 'smem constant byte address 0x4 - core index']
  #allocation1 [shape = 'u32[72,128]{1,0:T(1,128)}', space=vmem, size = 0x9000, scoped, tag = 'internal scratch']
  #allocation2 [shape = 'f32[8,8,1024]{2,1,0:T(8,128)}', space=vmem, size = 0x40000, scoped, tag = 'scratch operand']
  #allocation3 [shape = 'f32[8,8,256]{2,1,0:T(8,128)}', space=vmem, size = 0x10000, scoped, tag = 'scratch operand']
  %s0 = inlined_call_operand.vmem [shape: f32[8,8,128], index: 0, kind: input, shape index: {}]
  %s1 = inlined_call_operand.vmem [shape: f32[8,8,128], index: 1, kind: input, shape index: {}]
  %s2 = inlined_call_operand.vmem [shape: bf16[128,1024], index: 2, kind: input, shape index: {}]
  %s3 = inlined_call_operand.hbm [shape: bf16[2,128,512], index: 3, kind: input, shape index: {}]
  %s4 = inlined_call_operand.vmem [shape: f32[1,1024], index: 4, kind: input, shape index: {}]
  %s5 = inlined_call_operand.hbm [shape: bf16[256,1024], index: 5, kind: input, shape index: {}]
  %s6 = inlined_call_operand.hbm [shape: bf16[2,128,512], index: 6, kind: input, shape index: {}]
  %s7 = inlined_call_operand.vmem [shape: f32[1,1024], index: 7, kind: input, shape index: {}]
  %s8 = inlined_call_operand.vmem [shape: bf16[256,128], index: 8, kind: input, shape index: {}]
  %s9 = inlined_call_operand.vmem [shape: f32[1,128], index: 9, kind: input, shape index: {}]
  %s10 = inlined_call_operand.vmem [shape: f32[8,128], index: 10, kind: output, shape index: {}]
  %s11 = sld [smem:[#allocation0]]
  $region62: #{lstm_model_forward.1} parent=0
    _
  %s13 = ssub.s32 1, %s11
  %s14 = scalar_select 0, %s13, %s11
  $region1: #{lstm_model_forward.1} parent=0
    #allocation4 [shape = 'u8[262144]{0}', space=vmem, size = 0x40000, scoped, tag = 'input window, operand 3, single buffered']
    #allocation5 [shape = 's32[1]{0}', space=sflag, size = 0x4, scoped, tag = 'scoped memory for lstm_model_forward.1']
    #allocation6 [shape = 'u8[524288]{0}', space=vmem, size = 0x80000, scoped, tag = 'input window, operand 5, single buffered']
    #allocation7 [shape = 's32[1]{0}', space=sflag, size = 0x4, scoped, tag = 'scoped memory for lstm_model_forward.1']
    #allocation8 [shape = 'u8[262144]{0}', space=vmem, size = 0x40000, scoped, tag = 'input window, operand 6, single buffered']
    %15 = vsyncpa [#allocation5], 0
    %16 = vsyncpa [#allocation7], 0
    // Predicated region
    $region2: #{lstm_model_forward.1} parent=1 // pred_check
      _
    $region3: #{lstm_model_forward.1} parent=1 // pred_check_branch
      %18 = sbr.rel (0) target = $region5
    $region4: #{lstm_model_forward.1} parent=1 // pred_region
      _
    $region5: #{lstm_model_forward.1} parent=1 // pred_fallthru
      _
    // Predicated region
    $region6: #{lstm_model_forward.1} parent=1 // pred_check
      _
    $region7: #{lstm_model_forward.1} parent=1 // pred_check_branch
      %20 = sbr.rel (0) target = $region9
    $region8: #{lstm_model_forward.1} parent=1 // pred_region
      _
    $region9: #{lstm_model_forward.1} parent=1 // pred_fallthru
      _
    // Predicated region
    $region10: #{lstm_model_forward.1} parent=1 // pred_check
      _
    $region11: #{lstm_model_forward.1} parent=1 // pred_check_branch
      %22 = sbr.rel (0) target = $region13
    $region12: #{lstm_model_forward.1} parent=1 // pred_region
      _
    $region13: #{lstm_model_forward.1} parent=1 // pred_fallthru
      _
    // Predicated region
    $region14: #{lstm_model_forward.1} parent=1 // pred_check
      _
    $region15: #{lstm_model_forward.1} parent=1 // pred_check_branch
      %24 = sbr.rel (0) target = $region17
    $region16: #{lstm_model_forward.1} parent=1 // pred_region
      %26 = vsyncadd [#allocation5], 0
      %s27 = sshll.u32 %s3, 4
      %s28 = int_to_ptr.hbm [resolvable:$true] %s27
      %s29 = sshll.u32 [#allocation4], 4
      %s30 = int_to_ptr.vmem [resolvable:$true] %s29
      %35 = dma.hbm_to_vmem [thread:$0]  %s28, 8192, %s30, [#allocation5], 256, 256, 16
    $region17: #{lstm_model_forward.1} parent=1 // pred_fallthru
      _
    // Predicated region
    $region18: #{lstm_model_forward.1} parent=1 // pred_check
      _
    $region19: #{lstm_model_forward.1} parent=1 // pred_check_branch
      %37 = sbr.rel (0) target = $region21
    $region20: #{lstm_model_forward.1} parent=1 // pred_region
      _
    $region21: #{lstm_model_forward.1} parent=1 // pred_fallthru
      _
    // Predicated region
    $region22: #{lstm_model_forward.1} parent=1 // pred_check
      _
    $region23: #{lstm_model_forward.1} parent=1 // pred_check_branch
      %39 = sbr.rel (0) target = $region25
    $region24: #{lstm_model_forward.1} parent=1 // pred_region
      %41 = vsyncadd [#allocation7], 0
      %s42 = sshll.u32 %s5, 4
      %s43 = int_to_ptr.hbm [resolvable:$true] %s42
      %s44 = sshll.u32 [#allocation6], 4
      %s45 = int_to_ptr.vmem [resolvable:$true] %s44
      %50 = dma.hbm_to_vmem [thread:$0]  %s43, 16384, %s45, [#allocation7], 512, 512, 32
    $region25: #{lstm_model_forward.1} parent=1 // pred_fallthru
      _
    // Predicated region
    $region26: #{lstm_model_forward.1} parent=1 // pred_check
      _
    $region27: #{lstm_model_forward.1} parent=1 // pred_check_branch
      %52 = sbr.rel (0) target = $region29
    $region28: #{lstm_model_forward.1} parent=1 // pred_region
      %54 = vsyncadd [#allocation7], 0
      %s55 = sshll.u32 %s6, 4
      %s56 = int_to_ptr.hbm [resolvable:$true] %s55
      %s57 = sshll.u32 [#allocation8], 4
      %s58 = int_to_ptr.vmem [resolvable:$true] %s57
      %63 = dma.hbm_to_vmem [thread:$0]  %s56, 8192, %s58, [#allocation7], 256, 256, 16
    $region29: #{lstm_model_forward.1} parent=1 // pred_fallthru
      _
    // Predicated region
    $region30: #{lstm_model_forward.1} parent=1 // pred_check
      _
    $region31: #{lstm_model_forward.1} parent=1 // pred_check_branch
      %65 = sbr.rel (0) target = $region33
    $region32: #{lstm_model_forward.1} parent=1 // pred_region
      _
    $region33: #{lstm_model_forward.1} parent=1 // pred_fallthru
      _
    // Predicated region
    $region34: #{lstm_model_forward.1} parent=1 // pred_check
      _
    $region35: #{lstm_model_forward.1} parent=1 // pred_check_branch
      %67 = sbr.rel (0) target = $region37
    $region36: #{lstm_model_forward.1} parent=1 // pred_region
      _
    $region37: #{lstm_model_forward.1} parent=1 // pred_fallthru
      _
    // Predicated region
    $region38: #{lstm_model_forward.1} parent=1 // pred_check
      _
    $region39: #{lstm_model_forward.1} parent=1 // pred_check_branch
      %69 = sbr.rel (0) target = $region41
    $region40: #{lstm_model_forward.1} parent=1 // pred_region
      _
    $region41: #{lstm_model_forward.1} parent=1 // pred_fallthru
      _
    // Predicated region
    $region42: #{lstm_model_forward.1} parent=1 // pred_check
      _
    $region43: #{lstm_model_forward.1} parent=1 // pred_check_branch
      %71 = sbr.rel (0) target = $region45
    $region44: #{lstm_model_forward.1} parent=1 // pred_region
      %73 = dma.done [#allocation5], 8192
    $region45: #{lstm_model_forward.1} parent=1 // pred_fallthru
      _
    // Predicated region
    $region46: #{lstm_model_forward.1} parent=1 // pred_check
      _
    $region47: #{lstm_model_forward.1} parent=1 // pred_check_branch
      %75 = sbr.rel (0) target = $region49
    $region48: #{lstm_model_forward.1} parent=1 // pred_region
      %77 = dma.done [#allocation7], 16384
    $region49: #{lstm_model_forward.1} parent=1 // pred_fallthru
      _
    // Predicated region
    $region50: #{lstm_model_forward.1} parent=1 // pred_check
      _
    $region51: #{lstm_model_forward.1} parent=1 // pred_check_branch
      %79 = sbr.rel (0) target = $region53
    $region52: #{lstm_model_forward.1} parent=1 // pred_region
      %81 = dma.done [#allocation7], 8192
    $region53: #{lstm_model_forward.1} parent=1 // pred_fallthru
      _
    %v83 = vld [vmem:[%s0] sm:$0xff]
    %v84 = vld [vmem:[%s0 + $0x8] sm:$0xff]
    %v85 = vld [vmem:[%s0 + $0x10] sm:$0xff]
    %v86 = vld [vmem:[%s0 + $0x18] sm:$0xff]
    %v87 = vld [vmem:[%s0 + $0x20] sm:$0xff]
    %v88 = vld [vmem:[%s0 + $0x28] sm:$0xff]
    %v89 = vld [vmem:[%s0 + $0x30] sm:$0xff]
    %v90 = vld [vmem:[%s0 + $0x38] sm:$0xff]
    %v91 = vpack.c.bf16 %v84, %v83
    %v92 = vpack.c.bf16 %v86, %v85
    %v93 = vpack.c.bf16 %v88, %v87
    %v94 = vpack.c.bf16 %v90, %v89
    %v95 = vld [vmem:[%s2] sm:$0xff]
    %v96 = vld [vmem:[%s2 + $0x8] sm:$0xff]
    %v97 = vld [vmem:[%s2 + $0x10] sm:$0xff]
    %v98 = vld [vmem:[%s2 + $0x18] sm:$0xff]
    %v99 = vld [vmem:[%s2 + $0x20] sm:$0xff]
    %v100 = vld [vmem:[%s2 + $0x28] sm:$0xff]
    %v101 = vld [vmem:[%s2 + $0x30] sm:$0xff]
    %v102 = vld [vmem:[%s2 + $0x38] sm:$0xff]
    %v103 = vld [vmem:[%s2 + $0x40] sm:$0xff]
    %v104 = vld [vmem:[%s2 + $0x48] sm:$0xff]
    %v105 = vld [vmem:[%s2 + $0x50] sm:$0xff]
    %v106 = vld [vmem:[%s2 + $0x58] sm:$0xff]
    %v107 = vld [vmem:[%s2 + $0x60] sm:$0xff]
    %v108 = vld [vmem:[%s2 + $0x68] sm:$0xff]
    %v109 = vld [vmem:[%s2 + $0x70] sm:$0xff]
    %v110 = vld [vmem:[%s2 + $0x78] sm:$0xff]
    %v111 = vld [vmem:[%s2 + $0x80] sm:$0xff]
    %v112 = vld [vmem:[%s2 + $0x88] sm:$0xff]
    %v113 = vld [vmem:[%s2 + $0x90] sm:$0xff]
    %v114 = vld [vmem:[%s2 + $0x98] sm:$0xff]
    %v115 = vld [vmem:[%s2 + $0xa0] sm:$0xff]
    %v116 = vld [vmem:[%s2 + $0xa8] sm:$0xff]
    %v117 = vld [vmem:[%s2 + $0xb0] sm:$0xff]
    %v118 = vld [vmem:[%s2 + $0xb8] sm:$0xff]
    %v119 = vld [vmem:[%s2 + $0xc0] sm:$0xff]
    %v120 = vld [vmem:[%s2 + $0xc8] sm:$0xff]
    %v121 = vld [vmem:[%s2 + $0xd0] sm:$0xff]
    %v122 = vld [vmem:[%s2 + $0xd8] sm:$0xff]
    %v123 = vld [vmem:[%s2 + $0xe0] sm:$0xff]
    %v124 = vld [vmem:[%s2 + $0xe8] sm:$0xff]
    %v125 = vld [vmem:[%s2 + $0xf0] sm:$0xff]
    %v126 = vld [vmem:[%s2 + $0xf8] sm:$0xff]
    %v127 = vld [vmem:[%s2 + $0x100] sm:$0xff]
    %v128 = vld [vmem:[%s2 + $0x108] sm:$0xff]
    %v129 = vld [vmem:[%s2 + $0x110] sm:$0xff]
    %v130 = vld [vmem:[%s2 + $0x118] sm:$0xff]
    %v131 = vld [vmem:[%s2 + $0x120] sm:$0xff]
    %v132 = vld [vmem:[%s2 + $0x128] sm:$0xff]
    %v133 = vld [vmem:[%s2 + $0x130] sm:$0xff]
    %v134 = vld [vmem:[%s2 + $0x138] sm:$0xff]
    %v135 = vld [vmem:[%s2 + $0x140] sm:$0xff]
    %v136 = vld [vmem:[%s2 + $0x148] sm:$0xff]
    %v137 = vld [vmem:[%s2 + $0x150] sm:$0xff]
    %v138 = vld [vmem:[%s2 + $0x158] sm:$0xff]
    %v139 = vld [vmem:[%s2 + $0x160] sm:$0xff]
    %v140 = vld [vmem:[%s2 + $0x168] sm:$0xff]
    %v141 = vld [vmem:[%s2 + $0x170] sm:$0xff]
    %v142 = vld [vmem:[%s2 + $0x178] sm:$0xff]
    %v143 = vld [vmem:[%s2 + $0x180] sm:$0xff]
    %v144 = vld [vmem:[%s2 + $0x188] sm:$0xff]
    %v145 = vld [vmem:[%s2 + $0x190] sm:$0xff]
    %v146 = vld [vmem:[%s2 + $0x198] sm:$0xff]
    %v147 = vld [vmem:[%s2 + $0x1a0] sm:$0xff]
    %v148 = vld [vmem:[%s2 + $0x1a8] sm:$0xff]
    %v149 = vld [vmem:[%s2 + $0x1b0] sm:$0xff]
    %v150 = vld [vmem:[%s2 + $0x1b8] sm:$0xff]
    %v151 = vld [vmem:[%s2 + $0x1c0] sm:$0xff]
    %v152 = vld [vmem:[%s2 + $0x1c8] sm:$0xff]
    %v153 = vld [vmem:[%s2 + $0x1d0] sm:$0xff]
    %v154 = vld [vmem:[%s2 + $0x1d8] sm:$0xff]
    %v155 = vld [vmem:[%s2 + $0x1e0] sm:$0xff]
    %v156 = vld [vmem:[%s2 + $0x1e8] sm:$0xff]
    %v157 = vld [vmem:[%s2 + $0x1f0] sm:$0xff]
    %v158 = vld [vmem:[%s2 + $0x1f8] sm:$0xff]
    %v159 = vld [vmem:[%s4] sm:$0xff]
    %v161 = vperm.slane %v159, 0
    %v162 = vperm.slane %v159, 1
    %v163 = vperm.slane %v159, 2
    %v164 = vperm.slane %v159, 3
    %v165 = vperm.slane %v159, 4
    %v166 = vperm.slane %v159, 5
    %v167 = vperm.slane %v159, 6
    %v168 = vperm.slane %v159, 7
    %v241 = vunpack.c.l.b16 %v95
    %v242 = vunpack.c.h.b16 %v95
    %v243 = vunpack.c.l.b16 %v96
    %v244 = vunpack.c.h.b16 %v96
    %v245 = vunpack.c.l.b16 %v97
    %v246 = vunpack.c.h.b16 %v97
    %v247 = vunpack.c.l.b16 %v98
    %v248 = vunpack.c.h.b16 %v98
    %v249 = vunpack.c.l.b16 %v99
    %v250 = vunpack.c.h.b16 %v99
    %v251 = vunpack.c.l.b16 %v100
    %v252 = vunpack.c.h.b16 %v100
    %v253 = vunpack.c.l.b16 %v101
    %v254 = vunpack.c.h.b16 %v101
    %v255 = vunpack.c.l.b16 %v102
    %v256 = vunpack.c.h.b16 %v102
    %v257 = vunpack.c.l.b16 %v103
    %v258 = vunpack.c.h.b16 %v103
    %v259 = vunpack.c.l.b16 %v104
    %v260 = vunpack.c.h.b16 %v104
    %v261 = vunpack.c.l.b16 %v105
    %v262 = vunpack.c.h.b16 %v105
    %v263 = vunpack.c.l.b16 %v106
    %v264 = vunpack.c.h.b16 %v106
    %v265 = vunpack.c.l.b16 %v107
    %v266 = vunpack.c.h.b16 %v107
    %v267 = vunpack.c.l.b16 %v108
    %v268 = vunpack.c.h.b16 %v108
    %v269 = vunpack.c.l.b16 %v109
    %v270 = vunpack.c.h.b16 %v109
    %v271 = vunpack.c.l.b16 %v110
    %v272 = vunpack.c.h.b16 %v110
    %v273 = vunpack.c.l.b16 %v111
    %v274 = vunpack.c.h.b16 %v111
    %v275 = vunpack.c.l.b16 %v112
    %v276 = vunpack.c.h.b16 %v112
    %v277 = vunpack.c.l.b16 %v113
    %v278 = vunpack.c.h.b16 %v113
    %v279 = vunpack.c.l.b16 %v114
    %v280 = vunpack.c.h.b16 %v114
    %v281 = vunpack.c.l.b16 %v115
    %v282 = vunpack.c.h.b16 %v115
    %v283 = vunpack.c.l.b16 %v116
    %v284 = vunpack.c.h.b16 %v116
    %v285 = vunpack.c.l.b16 %v117
    %v286 = vunpack.c.h.b16 %v117
    %v287 = vunpack.c.l.b16 %v118
    %v288 = vunpack.c.h.b16 %v118
    %v289 = vunpack.c.l.b16 %v119
    %v290 = vunpack.c.h.b16 %v119
    %v291 = vunpack.c.l.b16 %v120
    %v292 = vunpack.c.h.b16 %v120
    %v293 = vunpack.c.l.b16 %v121
    %v294 = vunpack.c.h.b16 %v121
    %v295 = vunpack.c.l.b16 %v122
    %v296 = vunpack.c.h.b16 %v122
    %v297 = vunpack.c.l.b16 %v123
    %v298 = vunpack.c.h.b16 %v123
    %v299 = vunpack.c.l.b16 %v124
    %v300 = vunpack.c.h.b16 %v124
    %v301 = vunpack.c.l.b16 %v125
    %v302 = vunpack.c.h.b16 %v125
    %v303 = vunpack.c.l.b16 %v126
    %v304 = vunpack.c.h.b16 %v126
    %v305 = vunpack.c.l.b16 %v127
    %v306 = vunpack.c.h.b16 %v127
    %v307 = vunpack.c.l.b16 %v128
    %v308 = vunpack.c.h.b16 %v128
    %v309 = vunpack.c.l.b16 %v129
    %v310 = vunpack.c.h.b16 %v129
    %v311 = vunpack.c.l.b16 %v130
    %v312 = vunpack.c.h.b16 %v130
    %v313 = vunpack.c.l.b16 %v131
    %v314 = vunpack.c.h.b16 %v131
    %v315 = vunpack.c.l.b16 %v132
    %v316 = vunpack.c.h.b16 %v132
    %v317 = vunpack.c.l.b16 %v133
    %v318 = vunpack.c.h.b16 %v133
    %v319 = vunpack.c.l.b16 %v134
    %v320 = vunpack.c.h.b16 %v134
    %v321 = vunpack.c.l.b16 %v135
    %v322 = vunpack.c.h.b16 %v135
    %v323 = vunpack.c.l.b16 %v136
    %v324 = vunpack.c.h.b16 %v136
    %v325 = vunpack.c.l.b16 %v137
    %v326 = vunpack.c.h.b16 %v137
    %v327 = vunpack.c.l.b16 %v138
    %v328 = vunpack.c.h.b16 %v138
    %v329 = vunpack.c.l.b16 %v139
    %v330 = vunpack.c.h.b16 %v139
    %v331 = vunpack.c.l.b16 %v140
    %v332 = vunpack.c.h.b16 %v140
    %v333 = vunpack.c.l.b16 %v141
    %v334 = vunpack.c.h.b16 %v141
    %v335 = vunpack.c.l.b16 %v142
    %v336 = vunpack.c.h.b16 %v142
    %v337 = vunpack.c.l.b16 %v143
    %v338 = vunpack.c.h.b16 %v143
    %v339 = vunpack.c.l.b16 %v144
    %v340 = vunpack.c.h.b16 %v144
    %v341 = vunpack.c.l.b16 %v145
    %v342 = vunpack.c.h.b16 %v145
    %v343 = vunpack.c.l.b16 %v146
    %v344 = vunpack.c.h.b16 %v146
    %v345 = vunpack.c.l.b16 %v147
    %v346 = vunpack.c.h.b16 %v147
    %v347 = vunpack.c.l.b16 %v148
    %v348 = vunpack.c.h.b16 %v148
    %v349 = vunpack.c.l.b16 %v149
    %v350 = vunpack.c.h.b16 %v149
    %v351 = vunpack.c.l.b16 %v150
    %v352 = vunpack.c.h.b16 %v150
    %v353 = vunpack.c.l.b16 %v151
    %v354 = vunpack.c.h.b16 %v151
    %v355 = vunpack.c.l.b16 %v152
    %v356 = vunpack.c.h.b16 %v152
    %v357 = vunpack.c.l.b16 %v153
    %v358 = vunpack.c.h.b16 %v153
    %v359 = vunpack.c.l.b16 %v154
    %v360 = vunpack.c.h.b16 %v154
    %v361 = vunpack.c.l.b16 %v155
    %v362 = vunpack.c.h.b16 %v155
    %v363 = vunpack.c.l.b16 %v156
    %v364 = vunpack.c.h.b16 %v156
    %v365 = vunpack.c.l.b16 %v157
    %v366 = vunpack.c.h.b16 %v157
    %v367 = vunpack.c.l.b16 %v158
    %v368 = vunpack.c.h.b16 %v158
    %v369 = vpack.c.b16 %v249, %v241
    %v370 = vpack.c.b16 %v250, %v242
    %v371 = vpack.c.b16 %v251, %v243
    %v372 = vpack.c.b16 %v252, %v244
    %v373 = vpack.c.b16 %v253, %v245
    %v374 = vpack.c.b16 %v254, %v246
    %v375 = vpack.c.b16 %v255, %v247
    %v376 = vpack.c.b16 %v256, %v248
    %v377 = vpack.c.b16 %v265, %v257
    %v378 = vpack.c.b16 %v266, %v258
    %v379 = vpack.c.b16 %v267, %v259
    %v380 = vpack.c.b16 %v268, %v260
    %v381 = vpack.c.b16 %v269, %v261
    %v382 = vpack.c.b16 %v270, %v262
    %v383 = vpack.c.b16 %v271, %v263
    %v384 = vpack.c.b16 %v272, %v264
    %v385 = vpack.c.b16 %v281, %v273
    %v386 = vpack.c.b16 %v282, %v274
    %v387 = vpack.c.b16 %v283, %v275
    %v388 = vpack.c.b16 %v284, %v276
    %v389 = vpack.c.b16 %v285, %v277
    %v390 = vpack.c.b16 %v286, %v278
    %v391 = vpack.c.b16 %v287, %v279
    %v392 = vpack.c.b16 %v288, %v280
    %v393 = vpack.c.b16 %v297, %v289
    %v394 = vpack.c.b16 %v298, %v290
    %v395 = vpack.c.b16 %v299, %v291
    %v396 = vpack.c.b16 %v300, %v292
    %v397 = vpack.c.b16 %v301, %v293
    %v398 = vpack.c.b16 %v302, %v294
    %v399 = vpack.c.b16 %v303, %v295
    %v400 = vpack.c.b16 %v304, %v296
    %v401 = vpack.c.b16 %v313, %v305
    %v402 = vpack.c.b16 %v314, %v306
    %v403 = vpack.c.b16 %v315, %v307
    %v404 = vpack.c.b16 %v316, %v308
    %v405 = vpack.c.b16 %v317, %v309
    %v406 = vpack.c.b16 %v318, %v310
    %v407 = vpack.c.b16 %v319, %v311
    %v408 = vpack.c.b16 %v320, %v312
    %v409 = vpack.c.b16 %v329, %v321
    %v410 = vpack.c.b16 %v330, %v322
    %v411 = vpack.c.b16 %v331, %v323
    %v412 = vpack.c.b16 %v332, %v324
    %v413 = vpack.c.b16 %v333, %v325
    %v414 = vpack.c.b16 %v334, %v326
    %v415 = vpack.c.b16 %v335, %v327
    %v416 = vpack.c.b16 %v336, %v328
    %v417 = vpack.c.b16 %v345, %v337
    %v418 = vpack.c.b16 %v346, %v338
    %v419 = vpack.c.b16 %v347, %v339
    %v420 = vpack.c.b16 %v348, %v340
    %v421 = vpack.c.b16 %v349, %v341
    %v422 = vpack.c.b16 %v350, %v342
    %v423 = vpack.c.b16 %v351, %v343
    %v424 = vpack.c.b16 %v352, %v344
    %v425 = vpack.c.b16 %v361, %v353
    %v426 = vpack.c.b16 %v362, %v354
    %v427 = vpack.c.b16 %v363, %v355
    %v428 = vpack.c.b16 %v364, %v356
    %v429 = vpack.c.b16 %v365, %v357
    %v430 = vpack.c.b16 %v366, %v358
    %v431 = vpack.c.b16 %v367, %v359
    %v432 = vpack.c.b16 %v368, %v360
    %497 = vmatpush.bf16.msra.mxu0 %v425
    %498 = vmatpush.bf16.msra.mxu0 %v417
    %499 = vmatpush.bf16.msra.mxu0 %v409
    %500 = vmatpush.bf16.msra.mxu0 %v401
    %501 = vmatpush.bf16.msra.mxu0 %v393
    %502 = vmatpush.bf16.msra.mxu0 %v385
    %503 = vmatpush.bf16.msra.mxu0 %v377
    %504 = vmatpush.bf16.msra.mxu0 %v369
    %505 = vmatmul.bf16.gmra.mxu0 %v91
    %v506 = vpop.f32.mrf.mxu0
    %v507 = vadd.f32 %v161, %v506
    %v508 = vpop.f32.mrf.mxu0
    %v509 = vadd.f32 %v161, %v508
    %510 = vmatmul.bf16.gmra.mxu0 %v92
    %v511 = vpop.f32.mrf.mxu0
    %v512 = vadd.f32 %v161, %v511
    %v513 = vpop.f32.mrf.mxu0
    %v514 = vadd.f32 %v161, %v513
    %515 = vmatmul.bf16.gmra.mxu0 %v93
    %v516 = vpop.f32.mrf.mxu0
    %v517 = vadd.f32 %v161, %v516
    %v518 = vpop.f32.mrf.mxu0
    %v519 = vadd.f32 %v161, %v518
    %520 = vmatmul.bf16.gmra.mxu0 %v94
    %v521 = vpop.f32.mrf.mxu0
    %v522 = vadd.f32 %v161, %v521
    %v523 = vpop.f32.mrf.mxu0
    %v524 = vadd.f32 %v161, %v523
    %525 = vdwg.mxu0
    %526 = vmatpush.bf16.msra.mxu0 %v426
    %527 = vmatpush.bf16.msra.mxu0 %v418
    %528 = vmatpush.bf16.msra.mxu0 %v410
    %529 = vmatpush.bf16.msra.mxu0 %v402
    %530 = vmatpush.bf16.msra.mxu0 %v394
    %531 = vmatpush.bf16.msra.mxu0 %v386
    %532 = vmatpush.bf16.msra.mxu0 %v378
    %533 = vmatpush.bf16.msra.mxu0 %v370
    %534 = vmatmul.bf16.gmra.mxu0 %v91
    %v535 = vpop.f32.mrf.mxu0
    %v536 = vadd.f32 %v162, %v535
    %v537 = vpop.f32.mrf.mxu0
    %v538 = vadd.f32 %v162, %v537
    %539 = vmatmul.bf16.gmra.mxu0 %v92
    %v540 = vpop.f32.mrf.mxu0
    %v541 = vadd.f32 %v162, %v540
    %v542 = vpop.f32.mrf.mxu0
    %v543 = vadd.f32 %v162, %v542
    %544 = vmatmul.bf16.gmra.mxu0 %v93
    %v545 = vpop.f32.mrf.mxu0
    %v546 = vadd.f32 %v162, %v545
    %v547 = vpop.f32.mrf.mxu0
    %v548 = vadd.f32 %v162, %v547
    %549 = vmatmul.bf16.gmra.mxu0 %v94
    %v550 = vpop.f32.mrf.mxu0
    %v551 = vadd.f32 %v162, %v550
    %v552 = vpop.f32.mrf.mxu0
    %v553 = vadd.f32 %v162, %v552
    %554 = vdwg.mxu0
    %555 = vmatpush.bf16.msra.mxu0 %v427
    %556 = vmatpush.bf16.msra.mxu0 %v419
    %557 = vmatpush.bf16.msra.mxu0 %v411
    %558 = vmatpush.bf16.msra.mxu0 %v403
    %559 = vmatpush.bf16.msra.mxu0 %v395
    %560 = vmatpush.bf16.msra.mxu0 %v387
    %561 = vmatpush.bf16.msra.mxu0 %v379
    %562 = vmatpush.bf16.msra.mxu0 %v371
    %563 = vmatmul.bf16.gmra.mxu0 %v91
    %v564 = vpop.f32.mrf.mxu0
    %v565 = vadd.f32 %v163, %v564
    %v566 = vpop.f32.mrf.mxu0
    %v567 = vadd.f32 %v163, %v566
    %568 = vmatmul.bf16.gmra.mxu0 %v92
    %v569 = vpop.f32.mrf.mxu0
    %v570 = vadd.f32 %v163, %v569
    %v571 = vpop.f32.mrf.mxu0
    %v572 = vadd.f32 %v163, %v571
    %573 = vmatmul.bf16.gmra.mxu0 %v93
    %v574 = vpop.f32.mrf.mxu0
    %v575 = vadd.f32 %v163, %v574
    %v576 = vpop.f32.mrf.mxu0
    %v577 = vadd.f32 %v163, %v576
    %578 = vmatmul.bf16.gmra.mxu0 %v94
    %v579 = vpop.f32.mrf.mxu0
    %v580 = vadd.f32 %v163, %v579
    %v581 = vpop.f32.mrf.mxu0
    %v582 = vadd.f32 %v163, %v581
    %583 = vdwg.mxu0
    %584 = vmatpush.bf16.msra.mxu0 %v428
    %585 = vmatpush.bf16.msra.mxu0 %v420
    %586 = vmatpush.bf16.msra.mxu0 %v412
    %587 = vmatpush.bf16.msra.mxu0 %v404
    %588 = vmatpush.bf16.msra.mxu0 %v396
    %589 = vmatpush.bf16.msra.mxu0 %v388
    %590 = vmatpush.bf16.msra.mxu0 %v380
    %591 = vmatpush.bf16.msra.mxu0 %v372
    %592 = vmatmul.bf16.gmra.mxu0 %v91
    %v593 = vpop.f32.mrf.mxu0
    %v594 = vadd.f32 %v164, %v593
    %v595 = vpop.f32.mrf.mxu0
    %v596 = vadd.f32 %v164, %v595
    %597 = vmatmul.bf16.gmra.mxu0 %v92
    %v598 = vpop.f32.mrf.mxu0
    %v599 = vadd.f32 %v164, %v598
    %v600 = vpop.f32.mrf.mxu0
    %v601 = vadd.f32 %v164, %v600
    %602 = vmatmul.bf16.gmra.mxu0 %v93
    %v603 = vpop.f32.mrf.mxu0
    %v604 = vadd.f32 %v164, %v603
    %v605 = vpop.f32.mrf.mxu0
    %v606 = vadd.f32 %v164, %v605
    %607 = vmatmul.bf16.gmra.mxu0 %v94
    %v608 = vpop.f32.mrf.mxu0
    %v609 = vadd.f32 %v164, %v608
    %v610 = vpop.f32.mrf.mxu0
    %v611 = vadd.f32 %v164, %v610
    %612 = vdwg.mxu0
    %613 = vmatpush.bf16.msra.mxu0 %v429
    %614 = vmatpush.bf16.msra.mxu0 %v421
    %615 = vmatpush.bf16.msra.mxu0 %v413
    %616 = vmatpush.bf16.msra.mxu0 %v405
    %617 = vmatpush.bf16.msra.mxu0 %v397
    %618 = vmatpush.bf16.msra.mxu0 %v389
    %619 = vmatpush.bf16.msra.mxu0 %v381
    %620 = vmatpush.bf16.msra.mxu0 %v373
    %621 = vmatmul.bf16.gmra.mxu0 %v91
    %v622 = vpop.f32.mrf.mxu0
    %v623 = vadd.f32 %v165, %v622
    %v624 = vpop.f32.mrf.mxu0
    %v625 = vadd.f32 %v165, %v624
    %626 = vmatmul.bf16.gmra.mxu0 %v92
    %v627 = vpop.f32.mrf.mxu0
    %v628 = vadd.f32 %v165, %v627
    %v629 = vpop.f32.mrf.mxu0
    %v630 = vadd.f32 %v165, %v629
    %631 = vmatmul.bf16.gmra.mxu0 %v93
    %v632 = vpop.f32.mrf.mxu0
    %v633 = vadd.f32 %v165, %v632
    %v634 = vpop.f32.mrf.mxu0
    %v635 = vadd.f32 %v165, %v634
    %636 = vmatmul.bf16.gmra.mxu0 %v94
    %v637 = vpop.f32.mrf.mxu0
    %v638 = vadd.f32 %v165, %v637
    %v639 = vpop.f32.mrf.mxu0
    %v640 = vadd.f32 %v165, %v639
    %641 = vdwg.mxu0
    %642 = vmatpush.bf16.msra.mxu0 %v430
    %643 = vmatpush.bf16.msra.mxu0 %v422
    %644 = vmatpush.bf16.msra.mxu0 %v414
    %645 = vmatpush.bf16.msra.mxu0 %v406
    %646 = vmatpush.bf16.msra.mxu0 %v398
    %647 = vmatpush.bf16.msra.mxu0 %v390
    %648 = vmatpush.bf16.msra.mxu0 %v382
    %649 = vmatpush.bf16.msra.mxu0 %v374
    %650 = vmatmul.bf16.gmra.mxu0 %v91
    %v651 = vpop.f32.mrf.mxu0
    %v652 = vadd.f32 %v166, %v651
    %v653 = vpop.f32.mrf.mxu0
    %v654 = vadd.f32 %v166, %v653
    %655 = vmatmul.bf16.gmra.mxu0 %v92
    %v656 = vpop.f32.mrf.mxu0
    %v657 = vadd.f32 %v166, %v656
    %v658 = vpop.f32.mrf.mxu0
    %v659 = vadd.f32 %v166, %v658
    %660 = vmatmul.bf16.gmra.mxu0 %v93
    %v661 = vpop.f32.mrf.mxu0
    %v662 = vadd.f32 %v166, %v661
    %v663 = vpop.f32.mrf.mxu0
    %v664 = vadd.f32 %v166, %v663
    %665 = vmatmul.bf16.gmra.mxu0 %v94
    %v666 = vpop.f32.mrf.mxu0
    %v667 = vadd.f32 %v166, %v666
    %v668 = vpop.f32.mrf.mxu0
    %v669 = vadd.f32 %v166, %v668
    %670 = vdwg.mxu0
    %671 = vmatpush.bf16.msra.mxu0 %v431
    %672 = vmatpush.bf16.msra.mxu0 %v423
    %673 = vmatpush.bf16.msra.mxu0 %v415
    %674 = vmatpush.bf16.msra.mxu0 %v407
    %675 = vmatpush.bf16.msra.mxu0 %v399
    %676 = vmatpush.bf16.msra.mxu0 %v391
    %677 = vmatpush.bf16.msra.mxu0 %v383
    %678 = vmatpush.bf16.msra.mxu0 %v375
    %679 = vmatmul.bf16.gmra.mxu0 %v91
    %v680 = vpop.f32.mrf.mxu0
    %v681 = vadd.f32 %v167, %v680
    %v682 = vpop.f32.mrf.mxu0
    %v683 = vadd.f32 %v167, %v682
    %684 = vmatmul.bf16.gmra.mxu0 %v92
    %v685 = vpop.f32.mrf.mxu0
    %v686 = vadd.f32 %v167, %v685
    %v687 = vpop.f32.mrf.mxu0
    %v688 = vadd.f32 %v167, %v687
    %689 = vmatmul.bf16.gmra.mxu0 %v93
    %v690 = vpop.f32.mrf.mxu0
    %v691 = vadd.f32 %v167, %v690
    %v692 = vpop.f32.mrf.mxu0
    %v693 = vadd.f32 %v167, %v692
    %694 = vmatmul.bf16.gmra.mxu0 %v94
    %v695 = vpop.f32.mrf.mxu0
    %v696 = vadd.f32 %v167, %v695
    %v697 = vpop.f32.mrf.mxu0
    %v698 = vadd.f32 %v167, %v697
    %699 = vdwg.mxu0
    %700 = vmatpush.bf16.msra.mxu0 %v432
    %701 = vmatpush.bf16.msra.mxu0 %v424
    %702 = vmatpush.bf16.msra.mxu0 %v416
    %703 = vmatpush.bf16.msra.mxu0 %v408
    %704 = vmatpush.bf16.msra.mxu0 %v400
    %705 = vmatpush.bf16.msra.mxu0 %v392
    %706 = vmatpush.bf16.msra.mxu0 %v384
    %707 = vmatpush.bf16.msra.mxu0 %v376
    %708 = vmatmul.bf16.gmra.mxu0 %v91
    %v709 = vpop.f32.mrf.mxu0
    %v710 = vadd.f32 %v168, %v709
    %v711 = vpop.f32.mrf.mxu0
    %v712 = vadd.f32 %v168, %v711
    %713 = vmatmul.bf16.gmra.mxu0 %v92
    %v714 = vpop.f32.mrf.mxu0
    %v715 = vadd.f32 %v168, %v714
    %v716 = vpop.f32.mrf.mxu0
    %v717 = vadd.f32 %v168, %v716
    %718 = vmatmul.bf16.gmra.mxu0 %v93
    %v719 = vpop.f32.mrf.mxu0
    %v720 = vadd.f32 %v168, %v719
    %v721 = vpop.f32.mrf.mxu0
    %v722 = vadd.f32 %v168, %v721
    %723 = vmatmul.bf16.gmra.mxu0 %v94
    %v724 = vpop.f32.mrf.mxu0
    %v725 = vadd.f32 %v168, %v724
    %v726 = vpop.f32.mrf.mxu0
    %v727 = vadd.f32 %v168, %v726
    %728 = vdwg.mxu0
    %729 = vst [vmem:[#allocation2] sm:$0xff] %v507
    %730 = vst [vmem:[#allocation2 + $0x8] sm:$0xff] %v536
    %731 = vst [vmem:[#allocation2 + $0x10] sm:$0xff] %v565
    %732 = vst [vmem:[#allocation2 + $0x18] sm:$0xff] %v594
    %733 = vst [vmem:[#allocation2 + $0x20] sm:$0xff] %v623
    %734 = vst [vmem:[#allocation2 + $0x28] sm:$0xff] %v652
    %735 = vst [vmem:[#allocation2 + $0x30] sm:$0xff] %v681
    %736 = vst [vmem:[#allocation2 + $0x38] sm:$0xff] %v710
    %737 = vst [vmem:[#allocation2 + $0x40] sm:$0xff] %v509
    %738 = vst [vmem:[#allocation2 + $0x48] sm:$0xff] %v538
    %739 = vst [vmem:[#allocation2 + $0x50] sm:$0xff] %v567
    %740 = vst [vmem:[#allocation2 + $0x58] sm:$0xff] %v596
    %741 = vst [vmem:[#allocation2 + $0x60] sm:$0xff] %v625
    %742 = vst [vmem:[#allocation2 + $0x68] sm:$0xff] %v654
    %743 = vst [vmem:[#allocation2 + $0x70] sm:$0xff] %v683
    %744 = vst [vmem:[#allocation2 + $0x78] sm:$0xff] %v712
    %745 = vst [vmem:[#allocation2 + $0x80] sm:$0xff] %v512
    %746 = vst [vmem:[#allocation2 + $0x88] sm:$0xff] %v541
    %747 = vst [vmem:[#allocation2 + $0x90] sm:$0xff] %v570
    %748 = vst [vmem:[#allocation2 + $0x98] sm:$0xff] %v599
    %749 = vst [vmem:[#allocation2 + $0xa0] sm:$0xff] %v628
    %750 = vst [vmem:[#allocation2 + $0xa8] sm:$0xff] %v657
    %751 = vst [vmem:[#allocation2 + $0xb0] sm:$0xff] %v686
    %752 = vst [vmem:[#allocation2 + $0xb8] sm:$0xff] %v715
    %753 = vst [vmem:[#allocation2 + $0xc0] sm:$0xff] %v514
    %754 = vst [vmem:[#allocation2 + $0xc8] sm:$0xff] %v543
    %755 = vst [vmem:[#allocation2 + $0xd0] sm:$0xff] %v572
    %756 = vst [vmem:[#allocation2 + $0xd8] sm:$0xff] %v601
    %757 = vst [vmem:[#allocation2 + $0xe0] sm:$0xff] %v630
    %758 = vst [vmem:[#allocation2 + $0xe8] sm:$0xff] %v659
    %759 = vst [vmem:[#allocation2 + $0xf0] sm:$0xff] %v688
    %760 = vst [vmem:[#allocation2 + $0xf8] sm:$0xff] %v717
    %761 = vst [vmem:[#allocation2 + $0x100] sm:$0xff] %v517
    %762 = vst [vmem:[#allocation2 + $0x108] sm:$0xff] %v546
    %763 = vst [vmem:[#allocation2 + $0x110] sm:$0xff] %v575
    %764 = vst [vmem:[#allocation2 + $0x118] sm:$0xff] %v604
    %765 = vst [vmem:[#allocation2 + $0x120] sm:$0xff] %v633
    %766 = vst [vmem:[#allocation2 + $0x128] sm:$0xff] %v662
    %767 = vst [vmem:[#allocation2 + $0x130] sm:$0xff] %v691
    %768 = vst [vmem:[#allocation2 + $0x138] sm:$0xff] %v720
    %769 = vst [vmem:[#allocation2 + $0x140] sm:$0xff] %v519
    %770 = vst [vmem:[#allocation2 + $0x148] sm:$0xff] %v548
    %771 = vst [vmem:[#allocation2 + $0x150] sm:$0xff] %v577
    %772 = vst [vmem:[#allocation2 + $0x158] sm:$0xff] %v606
    %773 = vst [vmem:[#allocation2 + $0x160] sm:$0xff] %v635
    %774 = vst [vmem:[#allocation2 + $0x168] sm:$0xff] %v664
    %775 = vst [vmem:[#allocation2 + $0x170] sm:$0xff] %v693
    %776 = vst [vmem:[#allocation2 + $0x178] sm:$0xff] %v722
    %777 = vst [vmem:[#allocation2 + $0x180] sm:$0xff] %v522
    %778 = vst [vmem:[#allocation2 + $0x188] sm:$0xff] %v551
    %779 = vst [vmem:[#allocation2 + $0x190] sm:$0xff] %v580
    %780 = vst [vmem:[#allocation2 + $0x198] sm:$0xff] %v609
    %781 = vst [vmem:[#allocation2 + $0x1a0] sm:$0xff] %v638
    %782 = vst [vmem:[#allocation2 + $0x1a8] sm:$0xff] %v667
    %783 = vst [vmem:[#allocation2 + $0x1b0] sm:$0xff] %v696
    %784 = vst [vmem:[#allocation2 + $0x1b8] sm:$0xff] %v725
    %785 = vst [vmem:[#allocation2 + $0x1c0] sm:$0xff] %v524
    %786 = vst [vmem:[#allocation2 + $0x1c8] sm:$0xff] %v553
    %787 = vst [vmem:[#allocation2 + $0x1d0] sm:$0xff] %v582
    %788 = vst [vmem:[#allocation2 + $0x1d8] sm:$0xff] %v611
    %789 = vst [vmem:[#allocation2 + $0x1e0] sm:$0xff] %v640
    %790 = vst [vmem:[#allocation2 + $0x1e8] sm:$0xff] %v669
    %791 = vst [vmem:[#allocation2 + $0x1f0] sm:$0xff] %v698
    %792 = vst [vmem:[#allocation2 + $0x1f8] sm:$0xff] %v727
    %v793 = vld [vmem:[#allocation2] sm:$0xff]
    %v794 = vld [vmem:[#allocation2 + $0x8] sm:$0xff]
    %v795 = vld [vmem:[#allocation2 + $0x10] sm:$0xff]
    %v796 = vld [vmem:[#allocation2 + $0x18] sm:$0xff]
    %v797 = vld [vmem:[#allocation4] sm:$0xff]
    %v798 = vld [vmem:[#allocation4 + $0x8] sm:$0xff]
    %v799 = vld [vmem:[#allocation4 + $0x10] sm:$0xff]
    %v800 = vld [vmem:[#allocation4 + $0x18] sm:$0xff]
    %v801 = vld [vmem:[#allocation4 + $0x20] sm:$0xff]
    %v802 = vld [vmem:[#allocation4 + $0x28] sm:$0xff]
    %v803 = vld [vmem:[#allocation4 + $0x30] sm:$0xff]
    %v804 = vld [vmem:[#allocation4 + $0x38] sm:$0xff]
    %v805 = vld [vmem:[#allocation4 + $0x40] sm:$0xff]
    %v806 = vld [vmem:[#allocation4 + $0x48] sm:$0xff]
    %v807 = vld [vmem:[#allocation4 + $0x50] sm:$0xff]
    %v808 = vld [vmem:[#allocation4 + $0x58] sm:$0xff]
    %v809 = vld [vmem:[#allocation4 + $0x60] sm:$0xff]
    %v810 = vld [vmem:[#allocation4 + $0x68] sm:$0xff]
    %v811 = vld [vmem:[#allocation4 + $0x70] sm:$0xff]
    %v812 = vld [vmem:[#allocation4 + $0x78] sm:$0xff]
    %v813 = vld [vmem:[#allocation4 + $0x80] sm:$0xff]
    %v814 = vld [vmem:[#allocation4 + $0x88] sm:$0xff]
    %v815 = vld [vmem:[#allocation4 + $0x90] sm:$0xff]
    %v816 = vld [vmem:[#allocation4 + $0x98] sm:$0xff]
    %v817 = vld [vmem:[#allocation4 + $0xa0] sm:$0xff]
    %v818 = vld [vmem:[#allocation4 + $0xa8] sm:$0xff]
    %v819 = vld [vmem:[#allocation4 + $0xb0] sm:$0xff]
    %v820 = vld [vmem:[#allocation4 + $0xb8] sm:$0xff]
    %v821 = vld [vmem:[#allocation4 + $0xc0] sm:$0xff]
    %v822 = vld [vmem:[#allocation4 + $0xc8] sm:$0xff]
    %v823 = vld [vmem:[#allocation4 + $0xd0] sm:$0xff]
    %v824 = vld [vmem:[#allocation4 + $0xd8] sm:$0xff]
    %v825 = vld [vmem:[#allocation4 + $0xe0] sm:$0xff]
    %v826 = vld [vmem:[#allocation4 + $0xe8] sm:$0xff]
    %v827 = vld [vmem:[#allocation4 + $0xf0] sm:$0xff]
    %v828 = vld [vmem:[#allocation4 + $0xf8] sm:$0xff]
    %v861 = vunpack.c.l.b16 %v797
    %v862 = vunpack.c.h.b16 %v797
    %v863 = vunpack.c.l.b16 %v798
    %v864 = vunpack.c.h.b16 %v798
    %v865 = vunpack.c.l.b16 %v799
    %v866 = vunpack.c.h.b16 %v799
    %v867 = vunpack.c.l.b16 %v800
    %v868 = vunpack.c.h.b16 %v800
    %v869 = vunpack.c.l.b16 %v801
    %v870 = vunpack.c.h.b16 %v801
    %v871 = vunpack.c.l.b16 %v802
    %v872 = vunpack.c.h.b16 %v802
    %v873 = vunpack.c.l.b16 %v803
    %v874 = vunpack.c.h.b16 %v803
    %v875 = vunpack.c.l.b16 %v804
    %v876 = vunpack.c.h.b16 %v804
    %v877 = vunpack.c.l.b16 %v805
    %v878 = vunpack.c.h.b16 %v805
    %v879 = vunpack.c.l.b16 %v806
    %v880 = vunpack.c.h.b16 %v806
    %v881 = vunpack.c.l.b16 %v807
    %v882 = vunpack.c.h.b16 %v807
    %v883 = vunpack.c.l.b16 %v808
    %v884 = vunpack.c.h.b16 %v808
    %v885 = vunpack.c.l.b16 %v809
    %v886 = vunpack.c.h.b16 %v809
    %v887 = vunpack.c.l.b16 %v810
    %v888 = vunpack.c.h.b16 %v810
    %v889 = vunpack.c.l.b16 %v811
    %v890 = vunpack.c.h.b16 %v811
    %v891 = vunpack.c.l.b16 %v812
    %v892 = vunpack.c.h.b16 %v812
    %v893 = vunpack.c.l.b16 %v813
    %v894 = vunpack.c.h.b16 %v813
    %v895 = vunpack.c.l.b16 %v814
    %v896 = vunpack.c.h.b16 %v814
    %v897 = vunpack.c.l.b16 %v815
    %v898 = vunpack.c.h.b16 %v815
    %v899 = vunpack.c.l.b16 %v816
    %v900 = vunpack.c.h.b16 %v816
    %v901 = vunpack.c.l.b16 %v817
    %v902 = vunpack.c.h.b16 %v817
    %v903 = vunpack.c.l.b16 %v818
    %v904 = vunpack.c.h.b16 %v818
    %v905 = vunpack.c.l.b16 %v819
    %v906 = vunpack.c.h.b16 %v819
    %v907 = vunpack.c.l.b16 %v820
    %v908 = vunpack.c.h.b16 %v820
    %v909 = vunpack.c.l.b16 %v821
    %v910 = vunpack.c.h.b16 %v821
    %v911 = vunpack.c.l.b16 %v822
    %v912 = vunpack.c.h.b16 %v822
    %v913 = vunpack.c.l.b16 %v823
    %v914 = vunpack.c.h.b16 %v823
    %v915 = vunpack.c.l.b16 %v824
    %v916 = vunpack.c.h.b16 %v824
    %v917 = vunpack.c.l.b16 %v825
    %v918 = vunpack.c.h.b16 %v825
    %v919 = vunpack.c.l.b16 %v826
    %v920 = vunpack.c.h.b16 %v826
    %v921 = vunpack.c.l.b16 %v827
    %v922 = vunpack.c.h.b16 %v827
    %v923 = vunpack.c.l.b16 %v828
    %v924 = vunpack.c.h.b16 %v828
    %v925 = vpack.c.b16 %v865, %v861
    %v926 = vpack.c.b16 %v866, %v862
    %v927 = vpack.c.b16 %v867, %v863
    %v928 = vpack.c.b16 %v868, %v864
    %v929 = vpack.c.b16 %v873, %v869
    %v930 = vpack.c.b16 %v874, %v870
    %v931 = vpack.c.b16 %v875, %v871
    %v932 = vpack.c.b16 %v876, %v872
    %v933 = vpack.c.b16 %v881, %v877
    %v934 = vpack.c.b16 %v882, %v878
    %v935 = vpack.c.b16 %v883, %v879
    %v936 = vpack.c.b16 %v884, %v880
    %v937 = vpack.c.b16 %v889, %v885
    %v938 = vpack.c.b16 %v890, %v886
    %v939 = vpack.c.b16 %v891, %v887
    %v940 = vpack.c.b16 %v892, %v888
    %v941 = vpack.c.b16 %v897, %v893
    %v942 = vpack.c.b16 %v898, %v894
    %v943 = vpack.c.b16 %v899, %v895
    %v944 = vpack.c.b16 %v900, %v896
    %v945 = vpack.c.b16 %v905, %v901
    %v946 = vpack.c.b16 %v906, %v902
    %v947 = vpack.c.b16 %v907, %v903
    %v948 = vpack.c.b16 %v908, %v904
    %v949 = vpack.c.b16 %v913, %v909
    %v950 = vpack.c.b16 %v914, %v910
    %v951 = vpack.c.b16 %v915, %v911
    %v952 = vpack.c.b16 %v916, %v912
    %v953 = vpack.c.b16 %v921, %v917
    %v954 = vpack.c.b16 %v922, %v918
    %v955 = vpack.c.b16 %v923, %v919
    %v956 = vpack.c.b16 %v924, %v920
    %989 = vmatpush.bf16.msra.mxu0 %v953
    %990 = vmatpush.bf16.msra.mxu0 %v949
    %991 = vmatpush.bf16.msra.mxu0 %v945
    %992 = vmatpush.bf16.msra.mxu0 %v941
    %993 = vmatpush.bf16.msra.mxu0 %v937
    %994 = vmatpush.bf16.msra.mxu0 %v933
    %995 = vmatpush.bf16.msra.mxu0 %v929
    %996 = vmatpush.bf16.msra.mxu0 %v925
    %997 = vmatmul.bf16.gmra.mxu0 0
    %v998 = vpop.f32.mrf.mxu0
    %v999 = vadd.f32 0.0, %v998
    %v1000 = vpop.f32.mrf.mxu0
    %1001 = vdwg.mxu0
    %1002 = vmatpush.bf16.msra.mxu0 %v954
    %1003 = vmatpush.bf16.msra.mxu0 %v950
    %1004 = vmatpush.bf16.msra.mxu0 %v946
    %1005 = vmatpush.bf16.msra.mxu0 %v942
    %1006 = vmatpush.bf16.msra.mxu0 %v938
    %1007 = vmatpush.bf16.msra.mxu0 %v934
    %1008 = vmatpush.bf16.msra.mxu0 %v930
    %1009 = vmatpush.bf16.msra.mxu0 %v926
    %1010 = vmatmul.bf16.gmra.mxu0 0
    %v1011 = vpop.f32.mrf.mxu0
    %v1012 = vadd.f32 0.0, %v1011
    %v1013 = vpop.f32.mrf.mxu0
    %1014 = vdwg.mxu0
    %1015 = vmatpush.bf16.msra.mxu0 %v955
    %1016 = vmatpush.bf16.msra.mxu0 %v951
    %1017 = vmatpush.bf16.msra.mxu0 %v947
    %1018 = vmatpush.bf16.msra.mxu0 %v943
    %1019 = vmatpush.bf16.msra.mxu0 %v939
    %1020 = vmatpush.bf16.msra.mxu0 %v935
    %1021 = vmatpush.bf16.msra.mxu0 %v931
    %1022 = vmatpush.bf16.msra.mxu0 %v927
    %1023 = vmatmul.bf16.gmra.mxu0 0
    %v1024 = vpop.f32.mrf.mxu0
    %v1025 = vadd.f32 0.0, %v1024
    %v1026 = vpop.f32.mrf.mxu0
    %1027 = vdwg.mxu0
    %1028 = vmatpush.bf16.msra.mxu0 %v956
    %1029 = vmatpush.bf16.msra.mxu0 %v952
    %1030 = vmatpush.bf16.msra.mxu0 %v948
    %1031 = vmatpush.bf16.msra.mxu0 %v944
    %1032 = vmatpush.bf16.msra.mxu0 %v940
    %1033 = vmatpush.bf16.msra.mxu0 %v936
    %1034 = vmatpush.bf16.msra.mxu0 %v932
    %1035 = vmatpush.bf16.msra.mxu0 %v928
    %1036 = vmatmul.bf16.gmra.mxu0 0
    %v1037 = vpop.f32.mrf.mxu0
    %v1038 = vadd.f32 0.0, %v1037
    %v1039 = vpop.f32.mrf.mxu0
    %1040 = vdwg.mxu0
    %v1041 = vadd.f32 %v793, %v999
    %v1042 = vadd.f32 %v794, %v1012
    %v1043 = vadd.f32 %v795, %v1025
    %v1044 = vadd.f32 %v796, %v1038
    %s1045 = scalar_lea.vmem [#allocation2], 448
    %v1046 = vld [vmem:[%s1045 + $0x20] sm:$0xff]
    %v1047 = vld [vmem:[%s1045 + $0x28] sm:$0xff]
    %v1048 = vld [vmem:[%s1045 + $0x30] sm:$0xff]
    %v1049 = vld [vmem:[%s1045 + $0x38] sm:$0xff]
    %s1050 = scalar_lea.vmem [#allocation4], 256
    %v1051 = vld [vmem:[%s1050] sm:$0xff]
    %v1052 = vld [vmem:[%s1050 + $0x8] sm:$0xff]
    %v1053 = vld [vmem:[%s1050 + $0x10] sm:$0xff]
    %v1054 = vld [vmem:[%s1050 + $0x18] sm:$0xff]
    %v1055 = vld [vmem:[%s1050 + $0x20] sm:$0xff]
    %v1056 = vld [vmem:[%s1050 + $0x28] sm:$0xff]
    %v1057 = vld [vmem:[%s1050 + $0x30] sm:$0xff]
    %v1058 = vld [vmem:[%s1050 + $0x38] sm:$0xff]
    %v1059 = vld [vmem:[%s1050 + $0x40] sm:$0xff]
    %v1060 = vld [vmem:[%s1050 + $0x48] sm:$0xff]
    %v1061 = vld [vmem:[%s1050 + $0x50] sm:$0xff]
    %v1062 = vld [vmem:[%s1050 + $0x58] sm:$0xff]
    %v1063 = vld [vmem:[%s1050 + $0x60] sm:$0xff]
    %v1064 = vld [vmem:[%s1050 + $0x68] sm:$0xff]
    %v1065 = vld [vmem:[%s1050 + $0x70] sm:$0xff]
    %v1066 = vld [vmem:[%s1050 + $0x78] sm:$0xff]
    %v1067 = vld [vmem:[%s1050 + $0x80] sm:$0xff]
    %v1068 = vld [vmem:[%s1050 + $0x88] sm:$0xff]
    %v1069 = vld [vmem:[%s1050 + $0x90] sm:$0xff]
    %v1070 = vld [vmem:[%s1050 + $0x98] sm:$0xff]
    %v1071 = vld [vmem:[%s1050 + $0xa0] sm:$0xff]
    %v1072 = vld [vmem:[%s1050 + $0xa8] sm:$0xff]
    %v1073 = vld [vmem:[%s1050 + $0xb0] sm:$0xff]
    %v1074 = vld [vmem:[%s1050 + $0xb8] sm:$0xff]
    %v1075 = vld [vmem:[%s1050 + $0xc0] sm:$0xff]
    %v1076 = vld [vmem:[%s1050 + $0xc8] sm:$0xff]
    %v1077 = vld [vmem:[%s1050 + $0xd0] sm:$0xff]
    %v1078 = vld [vmem:[%s1050 + $0xd8] sm:$0xff]
    %v1079 = vld [vmem:[%s1050 + $0xe0] sm:$0xff]
    %v1080 = vld [vmem:[%s1050 + $0xe8] sm:$0xff]
    %v1081 = vld [vmem:[%s1050 + $0xf0] sm:$0xff]
    %v1082 = vld [vmem:[%s1050 + $0xf8] sm:$0xff]
    %v1115 = vunpack.c.l.b16 %v1051
    %v1116 = vunpack.c.h.b16 %v1051
    %v1117 = vunpack.c.l.b16 %v1052
    %v1118 = vunpack.c.h.b16 %v1052
    %v1119 = vunpack.c.l.b16 %v1053
    %v1120 = vunpack.c.h.b16 %v1053
    %v1121 = vunpack.c.l.b16 %v1054
    %v1122 = vunpack.c.h.b16 %v1054
    %v1123 = vunpack.c.l.b16 %v1055
    %v1124 = vunpack.c.h.b16 %v1055
    %v1125 = vunpack.c.l.b16 %v1056
    %v1126 = vunpack.c.h.b16 %v1056
    %v1127 = vunpack.c.l.b16 %v1057
    %v1128 = vunpack.c.h.b16 %v1057
    %v1129 = vunpack.c.l.b16 %v1058
    %v1130 = vunpack.c.h.b16 %v1058
    %v1131 = vunpack.c.l.b16 %v1059
    %v1132 = vunpack.c.h.b16 %v1059
    %v1133 = vunpack.c.l.b16 %v1060
    %v1134 = vunpack.c.h.b16 %v1060
    %v1135 = vunpack.c.l.b16 %v1061
    %v1136 = vunpack.c.h.b16 %v1061
    %v1137 = vunpack.c.l.b16 %v1062
    %v1138 = vunpack.c.h.b16 %v1062
    %v1139 = vunpack.c.l.b16 %v1063
    %v1140 = vunpack.c.h.b16 %v1063
    %v1141 = vunpack.c.l.b16 %v1064
    %v1142 = vunpack.c.h.b16 %v1064
    %v1143 = vunpack.c.l.b16 %v1065
    %v1144 = vunpack.c.h.b16 %v1065
    %v1145 = vunpack.c.l.b16 %v1066
    %v1146 = vunpack.c.h.b16 %v1066
    %v1147 = vunpack.c.l.b16 %v1067
    %v1148 = vunpack.c.h.b16 %v1067
    %v1149 = vunpack.c.l.b16 %v1068
    %v1150 = vunpack.c.h.b16 %v1068
    %v1151 = vunpack.c.l.b16 %v1069
    %v1152 = vunpack.c.h.b16 %v1069
    %v1153 = vunpack.c.l.b16 %v1070
    %v1154 = vunpack.c.h.b16 %v1070
    %v1155 = vunpack.c.l.b16 %v1071
    %v1156 = vunpack.c.h.b16 %v1071
    %v1157 = vunpack.c.l.b16 %v1072
    %v1158 = vunpack.c.h.b16 %v1072
    %v1159 = vunpack.c.l.b16 %v1073
    %v1160 = vunpack.c.h.b16 %v1073
    %v1161 = vunpack.c.l.b16 %v1074
    %v1162 = vunpack.c.h.b16 %v1074
    %v1163 = vunpack.c.l.b16 %v1075
    %v1164 = vunpack.c.h.b16 %v1075
    %v1165 = vunpack.c.l.b16 %v1076
    %v1166 = vunpack.c.h.b16 %v1076
    %v1167 = vunpack.c.l.b16 %v1077
    %v1168 = vunpack.c.h.b16 %v1077
    %v1169 = vunpack.c.l.b16 %v1078
    %v1170 = vunpack.c.h.b16 %v1078
    %v1171 = vunpack.c.l.b16 %v1079
    %v1172 = vunpack.c.h.b16 %v1079
    %v1173 = vunpack.c.l.b16 %v1080
    %v1174 = vunpack.c.h.b16 %v1080
    %v1175 = vunpack.c.l.b16 %v1081
    %v1176 = vunpack.c.h.b16 %v1081
    %v1177 = vunpack.c.l.b16 %v1082
    %v1178 = vunpack.c.h.b16 %v1082
    %v1179 = vpack.c.b16 %v1119, %v1115
    %v1180 = vpack.c.b16 %v1120, %v1116
    %v1181 = vpack.c.b16 %v1121, %v1117
    %v1182 = vpack.c.b16 %v1122, %v1118
    %v1183 = vpack.c.b16 %v1127, %v1123
    %v1184 = vpack.c.b16 %v1128, %v1124
    %v1185 = vpack.c.b16 %v1129, %v1125
    %v1186 = vpack.c.b16 %v1130, %v1126
    %v1187 = vpack.c.b16 %v1135, %v1131
    %v1188 = vpack.c.b16 %v1136, %v1132
    %v1189 = vpack.c.b16 %v1137, %v1133
    %v1190 = vpack.c.b16 %v1138, %v1134
    %v1191 = vpack.c.b16 %v1143, %v1139
    %v1192 = vpack.c.b16 %v1144, %v1140
    %v1193 = vpack.c.b16 %v1145, %v1141
    %v1194 = vpack.c.b16 %v1146, %v1142
    %v1195 = vpack.c.b16 %v1151, %v1147
    %v1196 = vpack.c.b16 %v1152, %v1148
    %v1197 = vpack.c.b16 %v1153, %v1149
    %v1198 = vpack.c.b16 %v1154, %v1150
    %v1199 = vpack.c.b16 %v1159, %v1155
    %v1200 = vpack.c.b16 %v1160, %v1156
    %v1201 = vpack.c.b16 %v1161, %v1157
    %v1202 = vpack.c.b16 %v1162, %v1158
    %v1203 = vpack.c.b16 %v1167, %v1163
    %v1204 = vpack.c.b16 %v1168, %v1164
    %v1205 = vpack.c.b16 %v1169, %v1165
    %v1206 = vpack.c.b16 %v1170, %v1166
    %v1207 = vpack.c.b16 %v1175, %v1171
    %v1208 = vpack.c.b16 %v1176, %v1172
    %v1209 = vpack.c.b16 %v1177, %v1173
    %v1210 = vpack.c.b16 %v1178, %v1174
    %1243 = vmatpush.bf16.msra.mxu0 %v1207
    %1244 = vmatpush.bf16.msra.mxu0 %v1203
    %1245 = vmatpush.bf16.msra.mxu0 %v1199
    %1246 = vmatpush.bf16.msra.mxu0 %v1195
    %1247 = vmatpush.bf16.msra.mxu0 %v1191
    %1248 = vmatpush.bf16.msra.mxu0 %v1187
    %1249 = vmatpush.bf16.msra.mxu0 %v1183
    %1250 = vmatpush.bf16.msra.mxu0 %v1179
    %1251 = vmatmul.bf16.gmra.mxu0 0
    %v1252 = vpop.f32.mrf.mxu0
    %v1253 = vadd.f32 0.0, %v1252
    %v1254 = vpop.f32.mrf.mxu0
    %1255 = vdwg.mxu0
    %1256 = vmatpush.bf16.msra.mxu0 %v1208
    %1257 = vmatpush.bf16.msra.mxu0 %v1204
    %1258 = vmatpush.bf16.msra.mxu0 %v1200
    %1259 = vmatpush.bf16.msra.mxu0 %v1196
    %1260 = vmatpush.bf16.msra.mxu0 %v1192
    %1261 = vmatpush.bf16.msra.mxu0 %v1188
    %1262 = vmatpush.bf16.msra.mxu0 %v1184
    %1263 = vmatpush.bf16.msra.mxu0 %v1180
    %1264 = vmatmul.bf16.gmra.mxu0 0
    %v1265 = vpop.f32.mrf.mxu0
    %v1266 = vadd.f32 0.0, %v1265
    %v1267 = vpop.f32.mrf.mxu0
    %1268 = vdwg.mxu0
    %1269 = vmatpush.bf16.msra.mxu0 %v1209
    %1270 = vmatpush.bf16.msra.mxu0 %v1205
    %1271 = vmatpush.bf16.msra.mxu0 %v1201
    %1272 = vmatpush.bf16.msra.mxu0 %v1197
    %1273 = vmatpush.bf16.msra.mxu0 %v1193
    %1274 = vmatpush.bf16.msra.mxu0 %v1189
    %1275 = vmatpush.bf16.msra.mxu0 %v1185
    %1276 = vmatpush.bf16.msra.mxu0 %v1181
    %1277 = vmatmul.bf16.gmra.mxu0 0
    %v1278 = vpop.f32.mrf.mxu0
    %v1279 = vadd.f32 0.0, %v1278
    %v1280 = vpop.f32.mrf.mxu0
    %1281 = vdwg.mxu0
    %1282 = vmatpush.bf16.msra.mxu0 %v1210
    %1283 = vmatpush.bf16.msra.mxu0 %v1206
    %1284 = vmatpush.bf16.msra.mxu0 %v1202
    %1285 = vmatpush.bf16.msra.mxu0 %v1198
    %1286 = vmatpush.bf16.msra.mxu0 %v1194
    %1287 = vmatpush.bf16.msra.mxu0 %v1190
    %1288 = vmatpush.bf16.msra.mxu0 %v1186
    %1289 = vmatpush.bf16.msra.mxu0 %v1182
    %1290 = vmatmul.bf16.gmra.mxu0 0
    %v1291 = vpop.f32.mrf.mxu0
    %v1292 = vadd.f32 0.0, %v1291
    %v1293 = vpop.f32.mrf.mxu0
    %1294 = vdwg.mxu0
    %v1295 = vadd.f32 %v1046, %v1253
    %v1296 = vadd.f32 %v1047, %v1266
    %v1297 = vadd.f32 %v1048, %v1279
    %v1298 = vadd.f32 %v1049, %v1292
    %v1299 = vxor.u32 %v1041, 2147483648
    %v1300 = vmul.f32 %v1299, 1.442695
    %v1301 = vpow.pop %v1300
    %v1302 = vadd.f32 %v1301, 1.0
    %v1303 = vrcp.pop %v1302
    %v1304 = vmul.f32 %v1302, %v1303
    %v1305 = vsub.f32 1.0, %v1304
    %v1306 = vmul.f32 %v1303, %v1305
    %v1307 = vadd.f32 %v1303, %v1306
    %vm1308 = vweird.f32 %v1302
    %vm1309 = vweird.f32 %v1303
    %vm1310 = vmor %vm1308, %vm1309
    %v1311 = vsel %vm1310, %v1303, %v1307
    %v1312 = vand.u32 2147483647, %v1302
    %vm1313 = vcmp.eq.f32.partialorder %v1312, 8.507059e+37
    %v1314 = vand.u32 %v1302, 2147483648
    %v1315 = vor.u32 1.1754944e-38, %v1314
    %v1316 = vsel %vm1313, %v1315, %v1311
    %v1317 = vmul.f32 1.0, %v1316
    %v1318 = vxor.u32 %v1042, 2147483648
    %v1319 = vmul.f32 %v1318, 1.442695
    %v1320 = vpow.pop %v1319
    %v1321 = vadd.f32 %v1320, 1.0
    %v1322 = vrcp.pop %v1321
    %v1323 = vmul.f32 %v1321, %v1322
    %v1324 = vsub.f32 1.0, %v1323
    %v1325 = vmul.f32 %v1322, %v1324
    %v1326 = vadd.f32 %v1322, %v1325
    %vm1327 = vweird.f32 %v1321
    %vm1328 = vweird.f32 %v1322
    %vm1329 = vmor %vm1327, %vm1328
    %v1330 = vsel %vm1329, %v1322, %v1326
    %v1331 = vand.u32 2147483647, %v1321
    %vm1332 = vcmp.eq.f32.partialorder %v1331, 8.507059e+37
    %v1333 = vand.u32 %v1321, 2147483648
    %v1334 = vor.u32 1.1754944e-38, %v1333
    %v1335 = vsel %vm1332, %v1334, %v1330
    %v1336 = vmul.f32 1.0, %v1335
    %v1337 = vtanh.pop %v1043
    %v1338 = vxor.u32 %v1044, 2147483648
    %v1339 = vmul.f32 %v1338, 1.442695
    %v1340 = vpow.pop %v1339
    %v1341 = vadd.f32 %v1340, 1.0
    %v1342 = vrcp.pop %v1341
    %v1343 = vmul.f32 %v1341, %v1342
    %v1344 = vsub.f32 1.0, %v1343
    %v1345 = vmul.f32 %v1342, %v1344
    %v1346 = vadd.f32 %v1342, %v1345
    %vm1347 = vweird.f32 %v1341
    %vm1348 = vweird.f32 %v1342
    %vm1349 = vmor %vm1347, %vm1348
    %v1350 = vsel %vm1349, %v1342, %v1346
    %v1351 = vand.u32 2147483647, %v1341
    %vm1352 = vcmp.eq.f32.partialorder %v1351, 8.507059e+37
    %v1353 = vand.u32 %v1341, 2147483648
    %v1354 = vor.u32 1.1754944e-38, %v1353
    %v1355 = vsel %vm1352, %v1354, %v1350
    %v1356 = vmul.f32 1.0, %v1355
    %v1357 = vmul.f32 %v1336, 0.0
    %v1358 = vmul.f32 %v1317, %v1337
    %v1359 = vadd.f32 %v1357, %v1358
    %v1360 = vtanh.pop %v1359
    %v1361 = vmul.f32 %v1356, %v1360
    %v1362 = vxor.u32 %v1295, 2147483648
    %v1363 = vmul.f32 %v1362, 1.442695
    %v1364 = vpow.pop %v1363
    %v1365 = vadd.f32 %v1364, 1.0
    %v1366 = vrcp.pop %v1365
    %v1367 = vmul.f32 %v1365, %v1366
    %v1368 = vsub.f32 1.0, %v1367
    %v1369 = vmul.f32 %v1366, %v1368
    %v1370 = vadd.f32 %v1366, %v1369
    %vm1371 = vweird.f32 %v1365
    %vm1372 = vweird.f32 %v1366
    %vm1373 = vmor %vm1371, %vm1372
    %v1374 = vsel %vm1373, %v1366, %v1370
    %v1375 = vand.u32 2147483647, %v1365
    %vm1376 = vcmp.eq.f32.partialorder %v1375, 8.507059e+37
    %v1377 = vand.u32 %v1365, 2147483648
    %v1378 = vor.u32 1.1754944e-38, %v1377
    %v1379 = vsel %vm1376, %v1378, %v1374
    %v1380 = vmul.f32 1.0, %v1379
    %v1381 = vxor.u32 %v1296, 2147483648
    %v1382 = vmul.f32 %v1381, 1.442695
    %v1383 = vpow.pop %v1382
    %v1384 = vadd.f32 %v1383, 1.0
    %v1385 = vrcp.pop %v1384
    %v1386 = vmul.f32 %v1384, %v1385
    %v1387 = vsub.f32 1.0, %v1386
    %v1388 = vmul.f32 %v1385, %v1387
    %v1389 = vadd.f32 %v1385, %v1388
    %vm1390 = vweird.f32 %v1384
    %vm1391 = vweird.f32 %v1385
    %vm1392 = vmor %vm1390, %vm1391
    %v1393 = vsel %vm1392, %v1385, %v1389
    %v1394 = vand.u32 2147483647, %v1384
    %vm1395 = vcmp.eq.f32.partialorder %v1394, 8.507059e+37
    %v1396 = vand.u32 %v1384, 2147483648
    %v1397 = vor.u32 1.1754944e-38, %v1396
    %v1398 = vsel %vm1395, %v1397, %v1393
    %v1399 = vmul.f32 1.0, %v1398
    %v1400 = vtanh.pop %v1297
    %v1401 = vxor.u32 %v1298, 2147483648
    %v1402 = vmul.f32 %v1401, 1.442695
    %v1403 = vpow.pop %v1402
    %v1404 = vadd.f32 %v1403, 1.0
    %v1405 = vrcp.pop %v1404
    %v1406 = vmul.f32 %v1404, %v1405
    %v1407 = vsub.f32 1.0, %v1406
    %v1408 = vmul.f32 %v1405, %v1407
    %v1409 = vadd.f32 %v1405, %v1408
    %vm1410 = vweird.f32 %v1404
    %vm1411 = vweird.f32 %v1405
    %vm1412 = vmor %vm1410, %vm1411
    %v1413 = vsel %vm1412, %v1405, %v1409
    %v1414 = vand.u32 2147483647, %v1404
    %vm1415 = vcmp.eq.f32.partialorder %v1414, 8.507059e+37
    %v1416 = vand.u32 %v1404, 2147483648
    %v1417 = vor.u32 1.1754944e-38, %v1416
    %v1418 = vsel %vm1415, %v1417, %v1413
    %v1419 = vmul.f32 1.0, %v1418
    %v1420 = vmul.f32 %v1399, 0.0
    %v1421 = vmul.f32 %v1380, %v1400
    %v1422 = vadd.f32 %v1420, %v1421
    %v1423 = vtanh.pop %v1422
    %v1424 = vmul.f32 %v1419, %v1423
    %v1425 = vld [vmem:[%s1] sm:$0xff]
    %vm1426 = vcmp.ne.f32.partialorder %v1425, 0.0
    %s1427 = scalar_lea.vmem %s1, 56
    %v1428 = vld [vmem:[%s1427] sm:$0xff]
    %vm1429 = vcmp.ne.f32.partialorder %v1428, 0.0
    %v1430 = vsel %vm1426, %v1361, 0.0
    %v1431 = vsel %vm1426, %v1359, 0.0
    %v1432 = vsel %vm1429, %v1424, 0.0
    %v1433 = vsel %vm1429, %v1422, 0.0
    %1434 = vst [vmem:[#allocation3] sm:$0xff] %v1430
    %s1435 = scalar_lea.vmem [#allocation3], 112
    %1436 = vst [vmem:[%s1435 + $0x8] sm:$0xff] %v1432
    %s1437 = scalar_lea.vmem [#allocation2], 64
    %v1438 = vld [vmem:[%s1437] sm:$0xff]
    %v1439 = vld [vmem:[%s1437 + $0x8] sm:$0xff]
    %v1440 = vld [vmem:[%s1437 + $0x10] sm:$0xff]
    %v1441 = vld [vmem:[%s1437 + $0x18] sm:$0xff]
    %v1442 = vpack.c.bf16 %v1430, %v1430
    %v1443 = vld [vmem:[#allocation4] sm:$0xff]
    %v1444 = vld [vmem:[#allocation4 + $0x8] sm:$0xff]
    %v1445 = vld [vmem:[#allocation4 + $0x10] sm:$0xff]
    %v1446 = vld [vmem:[#allocation4 + $0x18] sm:$0xff]
    %v1447 = vld [vmem:[#allocation4 + $0x20] sm:$0xff]
    %v1448 = vld [vmem:[#allocation4 + $0x28] sm:$0xff]
    %v1449 = vld [vmem:[#allocation4 + $0x30] sm:$0xff]
    %v1450 = vld [vmem:[#allocation4 + $0x38] sm:$0xff]
    %v1451 = vld [vmem:[#allocation4 + $0x40] sm:$0xff]
    %v1452 = vld [vmem:[#allocation4 + $0x48] sm:$0xff]
    %v1453 = vld [vmem:[#allocation4 + $0x50] sm:$0xff]
    %v1454 = vld [vmem:[#allocation4 + $0x58] sm:$0xff]
    %v1455 = vld [vmem:[#allocation4 + $0x60] sm:$0xff]
    %v1456 = vld [vmem:[#allocation4 + $0x68] sm:$0xff]
    %v1457 = vld [vmem:[#allocation4 + $0x70] sm:$0xff]
    %v1458 = vld [vmem:[#allocation4 + $0x78] sm:$0xff]
    %v1459 = vld [vmem:[#allocation4 + $0x80] sm:$0xff]
    %v1460 = vld [vmem:[#allocation4 + $0x88] sm:$0xff]
    %v1461 = vld [vmem:[#allocation4 + $0x90] sm:$0xff]
    %v1462 = vld [vmem:[#allocation4 + $0x98] sm:$0xff]
    %v1463 = vld [vmem:[#allocation4 + $0xa0] sm:$0xff]
    %v1464 = vld [vmem:[#allocation4 + $0xa8] sm:$0xff]
    %v1465 = vld [vmem:[#allocation4 + $0xb0] sm:$0xff]
    %v1466 = vld [vmem:[#allocation4 + $0xb8] sm:$0xff]
    %v1467 = vld [vmem:[#allocation4 + $0xc0] sm:$0xff]
    %v1468 = vld [vmem:[#allocation4 + $0xc8] sm:$0xff]
    %v1469 = vld [vmem:[#allocation4 + $0xd0] sm:$0xff]
    %v1470 = vld [vmem:[#allocation4 + $0xd8] sm:$0xff]
    %v1471 = vld [vmem:[#allocation4 + $0xe0] sm:$0xff]
    %v1472 = vld [vmem:[#allocation4 + $0xe8] sm:$0xff]
    %v1473 = vld [vmem:[#allocation4 + $0xf0] sm:$0xff]
    %v1474 = vld [vmem:[#allocation4 + $0xf8] sm:$0xff]
    %v1507 = vunpack.c.l.b16 %v1443
    %v1508 = vunpack.c.h.b16 %v1443
    %v1509 = vunpack.c.l.b16 %v1444
    %v1510 = vunpack.c.h.b16 %v1444
    %v1511 = vunpack.c.l.b16 %v1445
    %v1512 = vunpack.c.h.b16 %v1445
    %v1513 = vunpack.c.l.b16 %v1446
    %v1514 = vunpack.c.h.b16 %v1446
    %v1515 = vunpack.c.l.b16 %v1447
    %v1516 = vunpack.c.h.b16 %v1447
    %v1517 = vunpack.c.l.b16 %v1448
    %v1518 = vunpack.c.h.b16 %v1448
    %v1519 = vunpack.c.l.b16 %v1449
    %v1520 = vunpack.c.h.b16 %v1449
    %v1521 = vunpack.c.l.b16 %v1450
    %v1522 = vunpack.c.h.b16 %v1450
    %v1523 = vunpack.c.l.b16 %v1451
    %v1524 = vunpack.c.h.b16 %v1451
    %v1525 = vunpack.c.l.b16 %v1452
    %v1526 = vunpack.c.h.b16 %v1452
    %v1527 = vunpack.c.l.b16 %v1453
    %v1528 = vunpack.c.h.b16 %v1453
    %v1529 = vunpack.c.l.b16 %v1454
    %v1530 = vunpack.c.h.b16 %v1454
    %v1531 = vunpack.c.l.b16 %v1455
    %v1532 = vunpack.c.h.b16 %v1455
    %v1533 = vunpack.c.l.b16 %v1456
    %v1534 = vunpack.c.h.b16 %v1456
    %v1535 = vunpack.c.l.b16 %v1457
    %v1536 = vunpack.c.h.b16 %v1457
    %v1537 = vunpack.c.l.b16 %v1458
    %v1538 = vunpack.c.h.b16 %v1458
    %v1539 = vunpack.c.l.b16 %v1459
    %v1540 = vunpack.c.h.b16 %v1459
    %v1541 = vunpack.c.l.b16 %v1460
    %v1542 = vunpack.c.h.b16 %v1460
    %v1543 = vunpack.c.l.b16 %v1461
    %v1544 = vunpack.c.h.b16 %v1461
    %v1545 = vunpack.c.l.b16 %v1462
    %v1546 = vunpack.c.h.b16 %v1462
    %v1547 = vunpack.c.l.b16 %v1463
    %v1548 = vunpack.c.h.b16 %v1463
    %v1549 = vunpack.c.l.b16 %v1464
    %v1550 = vunpack.c.h.b16 %v1464
    %v1551 = vunpack.c.l.b16 %v1465
    %v1552 = vunpack.c.h.b16 %v1465
    %v1553 = vunpack.c.l.b16 %v1466
    %v1554 = vunpack.c.h.b16 %v1466
    %v1555 = vunpack.c.l.b16 %v1467
    %v1556 = vunpack.c.h.b16 %v1467
    %v1557 = vunpack.c.l.b16 %v1468
    %v1558 = vunpack.c.h.b16 %v1468
    %v1559 = vunpack.c.l.b16 %v1469
    %v1560 = vunpack.c.h.b16 %v1469
    %v1561 = vunpack.c.l.b16 %v1470
    %v1562 = vunpack.c.h.b16 %v1470
    %v1563 = vunpack.c.l.b16 %v1471
    %v1564 = vunpack.c.h.b16 %v1471
    %v1565 = vunpack.c.l.b16 %v1472
    %v1566 = vunpack.c.h.b16 %v1472
    %v1567 = vunpack.c.l.b16 %v1473
    %v1568 = vunpack.c.h.b16 %v1473
    %v1569 = vunpack.c.l.b16 %v1474
    %v1570 = vunpack.c.h.b16 %v1474
    %v1571 = vpack.c.b16 %v1511, %v1507
    %v1572 = vpack.c.b16 %v1512, %v1508
    %v1573 = vpack.c.b16 %v1513, %v1509
    %v1574 = vpack.c.b16 %v1514, %v1510
    %v1575 = vpack.c.b16 %v1519, %v1515
    %v1576 = vpack.c.b16 %v1520, %v1516
    %v1577 = vpack.c.b16 %v1521, %v1517
    %v1578 = vpack.c.b16 %v1522, %v1518
    %v1579 = vpack.c.b16 %v1527, %v1523
    %v1580 = vpack.c.b16 %v1528, %v1524
    %v1581 = vpack.c.b16 %v1529, %v1525
    %v1582 = vpack.c.b16 %v1530, %v1526
    %v1583 = vpack.c.b16 %v1535, %v1531
    %v1584 = vpack.c.b16 %v1536, %v1532
    %v1585 = vpack.c.b16 %v1537, %v1533
    %v1586 = vpack.c.b16 %v1538, %v1534
    %v1587 = vpack.c.b16 %v1543, %v1539
    %v1588 = vpack.c.b16 %v1544, %v1540
    %v1589 = vpack.c.b16 %v1545, %v1541
    %v1590 = vpack.c.b16 %v1546, %v1542
    %v1591 = vpack.c.b16 %v1551, %v1547
    %v1592 = vpack.c.b16 %v1552, %v1548
    %v1593 = vpack.c.b16 %v1553, %v1549
    %v1594 = vpack.c.b16 %v1554, %v1550
    %v1595 = vpack.c.b16 %v1559, %v1555
    %v1596 = vpack.c.b16 %v1560, %v1556
    %v1597 = vpack.c.b16 %v1561, %v1557
    %v1598 = vpack.c.b16 %v1562, %v1558
    %v1599 = vpack.c.b16 %v1567, %v1563
    %v1600 = vpack.c.b16 %v1568, %v1564
    %v1601 = vpack.c.b16 %v1569, %v1565
    %v1602 = vpack.c.b16 %v1570, %v1566
    %1635 = vmatpush.bf16.msra.mxu0 %v1599
    %1636 = vmatpush.bf16.msra.mxu0 %v1595
    %1637 = vmatpush.bf16.msra.mxu0 %v1591
    %1638 = vmatpush.bf16.msra.mxu0 %v1587
    %1639 = vmatpush.bf16.msra.mxu0 %v1583
    %1640 = vmatpush.bf16.msra.mxu0 %v1579
    %1641 = vmatpush.bf16.msra.mxu0 %v1575
    %1642 = vmatpush.bf16.msra.mxu0 %v1571
    %1643 = vmatmul.bf16.gmra.mxu0 %v1442
    %v1644 = vpop.f32.mrf.mxu0
    %v1645 = vadd.f32 0.0, %v1644
    %v1646 = vpop.f32.mrf.mxu0
    %1647 = vdwg.mxu0
    %1648 = vmatpush.bf16.msra.mxu0 %v1600
    %1649 = vmatpush.bf16.msra.mxu0 %v1596
    %1650 = vmatpush.bf16.msra.mxu0 %v1592
    %1651 = vmatpush.bf16.msra.mxu0 %v1588
    %1652 = vmatpush.bf16.msra.mxu0 %v1584
    %1653 = vmatpush.bf16.msra.mxu0 %v1580
    %1654 = vmatpush.bf16.msra.mxu0 %v1576
    %1655 = vmatpush.bf16.msra.mxu0 %v1572
    %1656 = vmatmul.bf16.gmra.mxu0 %v1442
    %v1657 = vpop.f32.mrf.mxu0
    %v1658 = vadd.f32 0.0, %v1657
    %v1659 = vpop.f32.mrf.mxu0
    %1660 = vdwg.mxu0
    %1661 = vmatpush.bf16.msra.mxu0 %v1601
    %1662 = vmatpush.bf16.msra.mxu0 %v1597
    %1663 = vmatpush.bf16.msra.mxu0 %v1593
    %1664 = vmatpush.bf16.msra.mxu0 %v1589
    %1665 = vmatpush.bf16.msra.mxu0 %v1585
    %1666 = vmatpush.bf16.msra.mxu0 %v1581
    %1667 = vmatpush.bf16.msra.mxu0 %v1577
    %1668 = vmatpush.bf16.msra.mxu0 %v1573
    %1669 = vmatmul.bf16.gmra.mxu0 %v1442
    %v1670 = vpop.f32.mrf.mxu0
    %v1671 = vadd.f32 0.0, %v1670
    %v1672 = vpop.f32.mrf.mxu0
    %1673 = vdwg.mxu0
    %1674 = vmatpush.bf16.msra.mxu0 %v1602
    %1675 = vmatpush.bf16.msra.mxu0 %v1598
    %1676 = vmatpush.bf16.msra.mxu0 %v1594
    %1677 = vmatpush.bf16.msra.mxu0 %v1590
    %1678 = vmatpush.bf16.msra.mxu0 %v1586
    %1679 = vmatpush.bf16.msra.mxu0 %v1582
    %1680 = vmatpush.bf16.msra.mxu0 %v1578
    %1681 = vmatpush.bf16.msra.mxu0 %v1574
    %1682 = vmatmul.bf16.gmra.mxu0 %v1442
    %v1683 = vpop.f32.mrf.mxu0
    %v1684 = vadd.f32 0.0, %v1683
    %v1685 = vpop.f32.mrf.mxu0
    %1686 = vdwg.mxu0
    %v1687 = vadd.f32 %v1438, %v1645
    %v1688 = vadd.f32 %v1439, %v1658
    %v1689 = vadd.f32 %v1440, %v1671
    %v1690 = vadd.f32 %v1441, %v1684
    %s1691 = scalar_lea.vmem [#allocation2], 384
    %v1692 = vld [vmem:[%s1691 + $0x20] sm:$0xff]
    %v1693 = vld [vmem:[%s1691 + $0x28] sm:$0xff]
    %v1694 = vld [vmem:[%s1691 + $0x30] sm:$0xff]
    %v1695 = vld [vmem:[%s1691 + $0x38] sm:$0xff]
    %v1696 = vpack.c.bf16 %v1432, %v1432
    %v1697 = vld [vmem:[%s1050] sm:$0xff]
    %v1698 = vld [vmem:[%s1050 + $0x8] sm:$0xff]
    %v1699 = vld [vmem:[%s1050 + $0x10] sm:$0xff]
    %v1700 = vld [vmem:[%s1050 + $0x18] sm:$0xff]
    %v1701 = vld [vmem:[%s1050 + $0x20] sm:$0xff]
    %v1702 = vld [vmem:[%s1050 + $0x28] sm:$0xff]
    %v1703 = vld [vmem:[%s1050 + $0x30] sm:$0xff]
    %v1704 = vld [vmem:[%s1050 + $0x38] sm:$0xff]
    %v1705 = vld [vmem:[%s1050 + $0x40] sm:$0xff]
    %v1706 = vld [vmem:[%s1050 + $0x48] sm:$0xff]
    %v1707 = vld [vmem:[%s1050 + $0x50] sm:$0xff]
    %v1708 = vld [vmem:[%s1050 + $0x58] sm:$0xff]
    %v1709 = vld [vmem:[%s1050 + $0x60] sm:$0xff]
    %v1710 = vld [vmem:[%s1050 + $0x68] sm:$0xff]
    %v1711 = vld [vmem:[%s1050 + $0x70] sm:$0xff]
    %v1712 = vld [vmem:[%s1050 + $0x78] sm:$0xff]
    %v1713 = vld [vmem:[%s1050 + $0x80] sm:$0xff]
    %v1714 = vld [vmem:[%s1050 + $0x88] sm:$0xff]
    %v1715 = vld [vmem:[%s1050 + $0x90] sm:$0xff]
    %v1716 = vld [vmem:[%s1050 + $0x98] sm:$0xff]
    %v1717 = vld [vmem:[%s1050 + $0xa0] sm:$0xff]
    %v1718 = vld [vmem:[%s1050 + $0xa8] sm:$0xff]
    %v1719 = vld [vmem:[%s1050 + $0xb0] sm:$0xff]
    %v1720 = vld [vmem:[%s1050 + $0xb8] sm:$0xff]
    %v1721 = vld [vmem:[%s1050 + $0xc0] sm:$0xff]
    %v1722 = vld [vmem:[%s1050 + $0xc8] sm:$0xff]
    %v1723 = vld [vmem:[%s1050 + $0xd0] sm:$0xff]
    %v1724 = vld [vmem:[%s1050 + $0xd8] sm:$0xff]
    %v1725 = vld [vmem:[%s1050 + $0xe0] sm:$0xff]
    %v1726 = vld [vmem:[%s1050 + $0xe8] sm:$0xff]
    %v1727 = vld [vmem:[%s1050 + $0xf0] sm:$0xff]
    %v1728 = vld [vmem:[%s1050 + $0xf8] sm:$0xff]
    %v1761 = vunpack.c.l.b16 %v1697
    %v1762 = vunpack.c.h.b16 %v1697
    %v1763 = vunpack.c.l.b16 %v1698
    %v1764 = vunpack.c.h.b16 %v1698
    %v1765 = vunpack.c.l.b16 %v1699
    %v1766 = vunpack.c.h.b16 %v1699
    %v1767 = vunpack.c.l.b16 %v1700
    %v1768 = vunpack.c.h.b16 %v1700
    %v1769 = vunpack.c.l.b16 %v1701
    %v1770 = vunpack.c.h.b16 %v1701
    %v1771 = vunpack.c.l.b16 %v1702
    %v1772 = vunpack.c.h.b16 %v1702
    %v1773 = vunpack.c.l.b16 %v1703
    %v1774 = vunpack.c.h.b16 %v1703
    %v1775 = vunpack.c.l.b16 %v1704
    %v1776 = vunpack.c.h.b16 %v1704
    %v1777 = vunpack.c.l.b16 %v1705
    %v1778 = vunpack.c.h.b16 %v1705
    %v1779 = vunpack.c.l.b16 %v1706
    %v1780 = vunpack.c.h.b16 %v1706
    %v1781 = vunpack.c.l.b16 %v1707
    %v1782 = vunpack.c.h.b16 %v1707
    %v1783 = vunpack.c.l.b16 %v1708
    %v1784 = vunpack.c.h.b16 %v1708
    %v1785 = vunpack.c.l.b16 %v1709
    %v1786 = vunpack.c.h.b16 %v1709
    %v1787 = vunpack.c.l.b16 %v1710
    %v1788 = vunpack.c.h.b16 %v1710
    %v1789 = vunpack.c.l.b16 %v1711
    %v1790 = vunpack.c.h.b16 %v1711
    %v1791 = vunpack.c.l.b16 %v1712
    %v1792 = vunpack.c.h.b16 %v1712
    %v1793 = vunpack.c.l.b16 %v1713
    %v1794 = vunpack.c.h.b16 %v1713
    %v1795 = vunpack.c.l.b16 %v1714
    %v1796 = vunpack.c.h.b16 %v1714
    %v1797 = vunpack.c.l.b16 %v1715
    %v1798 = vunpack.c.h.b16 %v1715
    %v1799 = vunpack.c.l.b16 %v1716
    %v1800 = vunpack.c.h.b16 %v1716
    %v1801 = vunpack.c.l.b16 %v1717
    %v1802 = vunpack.c.h.b16 %v1717
    %v1803 = vunpack.c.l.b16 %v1718
    %v1804 = vunpack.c.h.b16 %v1718
    %v1805 = vunpack.c.l.b16 %v1719
    %v1806 = vunpack.c.h.b16 %v1719
    %v1807 = vunpack.c.l.b16 %v1720
    %v1808 = vunpack.c.h.b16 %v1720
    %v1809 = vunpack.c.l.b16 %v1721
    %v1810 = vunpack.c.h.b16 %v1721
    %v1811 = vunpack.c.l.b16 %v1722
    %v1812 = vunpack.c.h.b16 %v1722
    %v1813 = vunpack.c.l.b16 %v1723
    %v1814 = vunpack.c.h.b16 %v1723
    %v1815 = vunpack.c.l.b16 %v1724
    %v1816 = vunpack.c.h.b16 %v1724
    %v1817 = vunpack.c.l.b16 %v1725
    %v1818 = vunpack.c.h.b16 %v1725
    %v1819 = vunpack.c.l.b16 %v1726
    %v1820 = vunpack.c.h.b16 %v1726
    %v1821 = vunpack.c.l.b16 %v1727
    %v1822 = vunpack.c.h.b16 %v1727
    %v1823 = vunpack.c.l.b16 %v1728
    %v1824 = vunpack.c.h.b16 %v1728
    %v1825 = vpack.c.b16 %v1765, %v1761
    %v1826 = vpack.c.b16 %v1766, %v1762
    %v1827 = vpack.c.b16 %v1767, %v1763
    %v1828 = vpack.c.b16 %v1768, %v1764
    %v1829 = vpack.c.b16 %v1773, %v1769
    %v1830 = vpack.c.b16 %v1774, %v1770
    %v1831 = vpack.c.b16 %v1775, %v1771
    %v1832 = vpack.c.b16 %v1776, %v1772
    %v1833 = vpack.c.b16 %v1781, %v1777
    %v1834 = vpack.c.b16 %v1782, %v1778
    %v1835 = vpack.c.b16 %v1783, %v1779
    %v1836 = vpack.c.b16 %v1784, %v1780
    %v1837 = vpack.c.b16 %v1789, %v1785
    %v1838 = vpack.c.b16 %v1790, %v1786
    %v1839 = vpack.c.b16 %v1791, %v1787
    %v1840 = vpack.c.b16 %v1792, %v1788
    %v1841 = vpack.c.b16 %v1797, %v1793
    %v1842 = vpack.c.b16 %v1798, %v1794
    %v1843 = vpack.c.b16 %v1799, %v1795
    %v1844 = vpack.c.b16 %v1800, %v1796
    %v1845 = vpack.c.b16 %v1805, %v1801
    %v1846 = vpack.c.b16 %v1806, %v1802
    %v1847 = vpack.c.b16 %v1807, %v1803
    %v1848 = vpack.c.b16 %v1808, %v1804
    %v1849 = vpack.c.b16 %v1813, %v1809
    %v1850 = vpack.c.b16 %v1814, %v1810
    %v1851 = vpack.c.b16 %v1815, %v1811
    %v1852 = vpack.c.b16 %v1816, %v1812
    %v1853 = vpack.c.b16 %v1821, %v1817
    %v1854 = vpack.c.b16 %v1822, %v1818
    %v1855 = vpack.c.b16 %v1823, %v1819
    %v1856 = vpack.c.b16 %v1824, %v1820
    %1889 = vmatpush.bf16.msra.mxu0 %v1853
    %1890 = vmatpush.bf16.msra.mxu0 %v1849
    %1891 = vmatpush.bf16.msra.mxu0 %v1845
    %1892 = vmatpush.bf16.msra.mxu0 %v1841
    %1893 = vmatpush.bf16.msra.mxu0 %v1837
    %1894 = vmatpush.bf16.msra.mxu0 %v1833
    %1895 = vmatpush.bf16.msra.mxu0 %v1829
    %1896 = vmatpush.bf16.msra.mxu0 %v1825
    %1897 = vmatmul.bf16.gmra.mxu0 %v1696
    %v1898 = vpop.f32.mrf.mxu0
    %v1899 = vadd.f32 0.0, %v1898
    %v1900 = vpop.f32.mrf.mxu0
    %1901 = vdwg.mxu0
    %1902 = vmatpush.bf16.msra.mxu0 %v1854
    %1903 = vmatpush.bf16.msra.mxu0 %v1850
    %1904 = vmatpush.bf16.msra.mxu0 %v1846
    %1905 = vmatpush.bf16.msra.mxu0 %v1842
    %1906 = vmatpush.bf16.msra.mxu0 %v1838
    %1907 = vmatpush.bf16.msra.mxu0 %v1834
    %1908 = vmatpush.bf16.msra.mxu0 %v1830
    %1909 = vmatpush.bf16.msra.mxu0 %v1826
    %1910 = vmatmul.bf16.gmra.mxu0 %v1696
    %v1911 = vpop.f32.mrf.mxu0
    %v1912 = vadd.f32 0.0, %v1911
    %v1913 = vpop.f32.mrf.mxu0
    %1914 = vdwg.mxu0
    %1915 = vmatpush.bf16.msra.mxu0 %v1855
    %1916 = vmatpush.bf16.msra.mxu0 %v1851
    %1917 = vmatpush.bf16.msra.mxu0 %v1847
    %1918 = vmatpush.bf16.msra.mxu0 %v1843
    %1919 = vmatpush.bf16.msra.mxu0 %v1839
    %1920 = vmatpush.bf16.msra.mxu0 %v1835
    %1921 = vmatpush.bf16.msra.mxu0 %v1831
    %1922 = vmatpush.bf16.msra.mxu0 %v1827
    %1923 = vmatmul.bf16.gmra.mxu0 %v1696
    %v1924 = vpop.f32.mrf.mxu0
    %v1925 = vadd.f32 0.0, %v1924
    %v1926 = vpop.f32.mrf.mxu0
    %1927 = vdwg.mxu0
    %1928 = vmatpush.bf16.msra.mxu0 %v1856
    %1929 = vmatpush.bf16.msra.mxu0 %v1852
    %1930 = vmatpush.bf16.msra.mxu0 %v1848
    %1931 = vmatpush.bf16.msra.mxu0 %v1844
    %1932 = vmatpush.bf16.msra.mxu0 %v1840
    %1933 = vmatpush.bf16.msra.mxu0 %v1836
    %1934 = vmatpush.bf16.msra.mxu0 %v1832
    %1935 = vmatpush.bf16.msra.mxu0 %v1828
    %1936 = vmatmul.bf16.gmra.mxu0 %v1696
    %v1937 = vpop.f32.mrf.mxu0
    %v1938 = vadd.f32 0.0, %v1937
    %v1939 = vpop.f32.mrf.mxu0
    %1940 = vdwg.mxu0
    %v1941 = vadd.f32 %v1692, %v1899
    %v1942 = vadd.f32 %v1693, %v1912
    %v1943 = vadd.f32 %v1694, %v1925
    %v1944 = vadd.f32 %v1695, %v1938
    %v1945 = vxor.u32 %v1687, 2147483648
    %v1946 = vmul.f32 %v1945, 1.442695
    %v1947 = vpow.pop %v1946
    %v1948 = vadd.f32 %v1947, 1.0
    %v1949 = vrcp.pop %v1948
    %v1950 = vmul.f32 %v1948, %v1949
    %v1951 = vsub.f32 1.0, %v1950
    %v1952 = vmul.f32 %v1949, %v1951
    %v1953 = vadd.f32 %v1949, %v1952
    %vm1954 = vweird.f32 %v1948
    %vm1955 = vweird.f32 %v1949
    %vm1956 = vmor %vm1954, %vm1955
    %v1957 = vsel %vm1956, %v1949, %v1953
    %v1958 = vand.u32 2147483647, %v1948
    %vm1959 = vcmp.eq.f32.partialorder %v1958, 8.507059e+37
    %v1960 = vand.u32 %v1948, 2147483648
    %v1961 = vor.u32 1.1754944e-38, %v1960
    %v1962 = vsel %vm1959, %v1961, %v1957
    %v1963 = vmul.f32 1.0, %v1962
    %v1964 = vxor.u32 %v1688, 2147483648
    %v1965 = vmul.f32 %v1964, 1.442695
    %v1966 = vpow.pop %v1965
    %v1967 = vadd.f32 %v1966, 1.0
    %v1968 = vrcp.pop %v1967
    %v1969 = vmul.f32 %v1967, %v1968
    %v1970 = vsub.f32 1.0, %v1969
    %v1971 = vmul.f32 %v1968, %v1970
    %v1972 = vadd.f32 %v1968, %v1971
    %vm1973 = vweird.f32 %v1967
    %vm1974 = vweird.f32 %v1968
    %vm1975 = vmor %vm1973, %vm1974
    %v1976 = vsel %vm1975, %v1968, %v1972
    %v1977 = vand.u32 2147483647, %v1967
    %vm1978 = vcmp.eq.f32.partialorder %v1977, 8.507059e+37
    %v1979 = vand.u32 %v1967, 2147483648
    %v1980 = vor.u32 1.1754944e-38, %v1979
    %v1981 = vsel %vm1978, %v1980, %v1976
    %v1982 = vmul.f32 1.0, %v1981
    %v1983 = vtanh.pop %v1689
    %v1984 = vxor.u32 %v1690, 2147483648
    %v1985 = vmul.f32 %v1984, 1.442695
    %v1986 = vpow.pop %v1985
    %v1987 = vadd.f32 %v1986, 1.0
    %v1988 = vrcp.pop %v1987
    %v1989 = vmul.f32 %v1987, %v1988
    %v1990 = vsub.f32 1.0, %v1989
    %v1991 = vmul.f32 %v1988, %v1990
    %v1992 = vadd.f32 %v1988, %v1991
    %vm1993 = vweird.f32 %v1987
    %vm1994 = vweird.f32 %v1988
    %vm1995 = vmor %vm1993, %vm1994
    %v1996 = vsel %vm1995, %v1988, %v1992
    %v1997 = vand.u32 2147483647, %v1987
    %vm1998 = vcmp.eq.f32.partialorder %v1997, 8.507059e+37
    %v1999 = vand.u32 %v1987, 2147483648
    %v2000 = vor.u32 1.1754944e-38, %v1999
    %v2001 = vsel %vm1998, %v2000, %v1996
    %v2002 = vmul.f32 1.0, %v2001
    %v2003 = vmul.f32 %v1982, %v1431
    %v2004 = vmul.f32 %v1963, %v1983
    %v2005 = vadd.f32 %v2003, %v2004
    %v2006 = vtanh.pop %v2005
    %v2007 = vmul.f32 %v2002, %v2006
    %v2008 = vxor.u32 %v1941, 2147483648
    %v2009 = vmul.f32 %v2008, 1.442695
    %v2010 = vpow.pop %v2009
    %v2011 = vadd.f32 %v2010, 1.0
    %v2012 = vrcp.pop %v2011
    %v2013 = vmul.f32 %v2011, %v2012
    %v2014 = vsub.f32 1.0, %v2013
    %v2015 = vmul.f32 %v2012, %v2014
    %v2016 = vadd.f32 %v2012, %v2015
    %vm2017 = vweird.f32 %v2011
    %vm2018 = vweird.f32 %v2012
    %vm2019 = vmor %vm2017, %vm2018
    %v2020 = vsel %vm2019, %v2012, %v2016
    %v2021 = vand.u32 2147483647, %v2011
    %vm2022 = vcmp.eq.f32.partialorder %v2021, 8.507059e+37
    %v2023 = vand.u32 %v2011, 2147483648
    %v2024 = vor.u32 1.1754944e-38, %v2023
    %v2025 = vsel %vm2022, %v2024, %v2020
    %v2026 = vmul.f32 1.0, %v2025
    %v2027 = vxor.u32 %v1942, 2147483648
    %v2028 = vmul.f32 %v2027, 1.442695
    %v2029 = vpow.pop %v2028
    %v2030 = vadd.f32 %v2029, 1.0
    %v2031 = vrcp.pop %v2030
    %v2032 = vmul.f32 %v2030, %v2031
    %v2033 = vsub.f32 1.0, %v2032
    %v2034 = vmul.f32 %v2031, %v2033
    %v2035 = vadd.f32 %v2031, %v2034
    %vm2036 = vweird.f32 %v2030
    %vm2037 = vweird.f32 %v2031
    %vm2038 = vmor %vm2036, %vm2037
    %v2039 = vsel %vm2038, %v2031, %v2035
    %v2040 = vand.u32 2147483647, %v2030
    %vm2041 = vcmp.eq.f32.partialorder %v2040, 8.507059e+37
    %v2042 = vand.u32 %v2030, 2147483648
    %v2043 = vor.u32 1.1754944e-38, %v2042
    %v2044 = vsel %vm2041, %v2043, %v2039
    %v2045 = vmul.f32 1.0, %v2044
    %v2046 = vtanh.pop %v1943
    %v2047 = vxor.u32 %v1944, 2147483648
    %v2048 = vmul.f32 %v2047, 1.442695
    %v2049 = vpow.pop %v2048
    %v2050 = vadd.f32 %v2049, 1.0
    %v2051 = vrcp.pop %v2050
    %v2052 = vmul.f32 %v2050, %v2051
    %v2053 = vsub.f32 1.0, %v2052
    %v2054 = vmul.f32 %v2051, %v2053
    %v2055 = vadd.f32 %v2051, %v2054
    %vm2056 = vweird.f32 %v2050
    %vm2057 = vweird.f32 %v2051
    %vm2058 = vmor %vm2056, %vm2057
    %v2059 = vsel %vm2058, %v2051, %v2055
    %v2060 = vand.u32 2147483647, %v2050
    %vm2061 = vcmp.eq.f32.partialorder %v2060, 8.507059e+37
    %v2062 = vand.u32 %v2050, 2147483648
    %v2063 = vor.u32 1.1754944e-38, %v2062
    %v2064 = vsel %vm2061, %v2063, %v2059
    %v2065 = vmul.f32 1.0, %v2064
    %v2066 = vmul.f32 %v2045, %v1433
    %v2067 = vmul.f32 %v2026, %v2046
    %v2068 = vadd.f32 %v2066, %v2067
    %v2069 = vtanh.pop %v2068
    %v2070 = vmul.f32 %v2065, %v2069
    %s2071 = scalar_lea.vmem %s1, 8
    %v2072 = vld [vmem:[%s2071] sm:$0xff]
    %vm2073 = vcmp.ne.f32.partialorder %v2072, 0.0
    %s2074 = scalar_lea.vmem %s1, 48
    %v2075 = vld [vmem:[%s2074] sm:$0xff]
    %vm2076 = vcmp.ne.f32.partialorder %v2075, 0.0
    %v2077 = vsel %vm2073, %v2007, %v1430
    %v2078 = vsel %vm2073, %v2005, %v1431
    %v2079 = vsel %vm2076, %v2070, %v1432
    %v2080 = vsel %vm2076, %v2068, %v1433
    %v2081 = vsel %vm2073, %v2007, 0.0
    %s2082 = scalar_lea.vmem [#allocation3], 16
    %2083 = vst [vmem:[%s2082] sm:$0xff] %v2081
    %v2084 = vsel %vm2076, %v2070, 0.0
    %s2085 = scalar_lea.vmem [#allocation3], 96
    %2086 = vst [vmem:[%s2085 + $0x8] sm:$0xff] %v2084
    %s2087 = scalar_lea.vmem [#allocation2], 128
    %v2088 = vld [vmem:[%s2087] sm:$0xff]
    %v2089 = vld [vmem:[%s2087 + $0x8] sm:$0xff]
    %v2090 = vld [vmem:[%s2087 + $0x10] sm:$0xff]
    %v2091 = vld [vmem:[%s2087 + $0x18] sm:$0xff]
    %v2092 = vpack.c.bf16 %v2077, %v2077
    %v2093 = vld [vmem:[#allocation4] sm:$0xff]
    %v2094 = vld [vmem:[#allocation4 + $0x8] sm:$0xff]
    %v2095 = vld [vmem:[#allocation4 + $0x10] sm:$0xff]
    %v2096 = vld [vmem:[#allocation4 + $0x18] sm:$0xff]
    %v2097 = vld [vmem:[#allocation4 + $0x20] sm:$0xff]
    %v2098 = vld [vmem:[#allocation4 + $0x28] sm:$0xff]
    %v2099 = vld [vmem:[#allocation4 + $0x30] sm:$0xff]
    %v2100 = vld [vmem:[#allocation4 + $0x38] sm:$0xff]
    %v2101 = vld [vmem:[#allocation4 + $0x40] sm:$0xff]
    %v2102 = vld [vmem:[#allocation4 + $0x48] sm:$0xff]
    %v2103 = vld [vmem:[#allocation4 + $0x50] sm:$0xff]
    %v2104 = vld [vmem:[#allocation4 + $0x58] sm:$0xff]
    %v2105 = vld [vmem:[#allocation4 + $0x60] sm:$0xff]
    %v2106 = vld [vmem:[#allocation4 + $0x68] sm:$0xff]
    %v2107 = vld [vmem:[#allocation4 + $0x70] sm:$0xff]
    %v2108 = vld [vmem:[#allocation4 + $0x78] sm:$0xff]
    %v2109 = vld [vmem:[#allocation4 + $0x80] sm:$0xff]
    %v2110 = vld [vmem:[#allocation4 + $0x88] sm:$0xff]
    %v2111 = vld [vmem:[#allocation4 + $0x90] sm:$0xff]
    %v2112 = vld [vmem:[#allocation4 + $0x98] sm:$0xff]
    %v2113 = vld [vmem:[#allocation4 + $0xa0] sm:$0xff]
    %v2114 = vld [vmem:[#allocation4 + $0xa8] sm:$0xff]
    %v2115 = vld [vmem:[#allocation4 + $0xb0] sm:$0xff]
    %v2116 = vld [vmem:[#allocation4 + $0xb8] sm:$0xff]
    %v2117 = vld [vmem:[#allocation4 + $0xc0] sm:$0xff]
    %v2118 = vld [vmem:[#allocation4 + $0xc8] sm:$0xff]
    %v2119 = vld [vmem:[#allocation4 + $0xd0] sm:$0xff]
    %v2120 = vld [vmem:[#allocation4 + $0xd8] sm:$0xff]
    %v2121 = vld [vmem:[#allocation4 + $0xe0] sm:$0xff]
    %v2122 = vld [vmem:[#allocation4 + $0xe8] sm:$0xff]
    %v2123 = vld [vmem:[#allocation4 + $0xf0] sm:$0xff]
    %v2124 = vld [vmem:[#allocation4 + $0xf8] sm:$0xff]
    %v2157 = vunpack.c.l.b16 %v2093
    %v2158 = vunpack.c.h.b16 %v2093
    %v2159 = vunpack.c.l.b16 %v2094
    %v2160 = vunpack.c.h.b16 %v2094
    %v2161 = vunpack.c.l.b16 %v2095
    %v2162 = vunpack.c.h.b16 %v2095
    %v2163 = vunpack.c.l.b16 %v2096
    %v2164 = vunpack.c.h.b16 %v2096
    %v2165 = vunpack.c.l.b16 %v2097
    %v2166 = vunpack.c.h.b16 %v2097
    %v2167 = vunpack.c.l.b16 %v2098
    %v2168 = vunpack.c.h.b16 %v2098
    %v2169 = vunpack.c.l.b16 %v2099
    %v2170 = vunpack.c.h.b16 %v2099
    %v2171 = vunpack.c.l.b16 %v2100
    %v2172 = vunpack.c.h.b16 %v2100
    %v2173 = vunpack.c.l.b16 %v2101
    %v2174 = vunpack.c.h.b16 %v2101
    %v2175 = vunpack.c.l.b16 %v2102
    %v2176 = vunpack.c.h.b16 %v2102
    %v2177 = vunpack.c.l.b16 %v2103
    %v2178 = vunpack.c.h.b16 %v2103
    %v2179 = vunpack.c.l.b16 %v2104
    %v2180 = vunpack.c.h.b16 %v2104
    %v2181 = vunpack.c.l.b16 %v2105
    %v2182 = vunpack.c.h.b16 %v2105
    %v2183 = vunpack.c.l.b16 %v2106
    %v2184 = vunpack.c.h.b16 %v2106
    %v2185 = vunpack.c.l.b16 %v2107
    %v2186 = vunpack.c.h.b16 %v2107
    %v2187 = vunpack.c.l.b16 %v2108
    %v2188 = vunpack.c.h.b16 %v2108
    %v2189 = vunpack.c.l.b16 %v2109
    %v2190 = vunpack.c.h.b16 %v2109
    %v2191 = vunpack.c.l.b16 %v2110
    %v2192 = vunpack.c.h.b16 %v2110
    %v2193 = vunpack.c.l.b16 %v2111
    %v2194 = vunpack.c.h.b16 %v2111
    %v2195 = vunpack.c.l.b16 %v2112
    %v2196 = vunpack.c.h.b16 %v2112
    %v2197 = vunpack.c.l.b16 %v2113
    %v2198 = vunpack.c.h.b16 %v2113
    %v2199 = vunpack.c.l.b16 %v2114
    %v2200 = vunpack.c.h.b16 %v2114
    %v2201 = vunpack.c.l.b16 %v2115
    %v2202 = vunpack.c.h.b16 %v2115
    %v2203 = vunpack.c.l.b16 %v2116
    %v2204 = vunpack.c.h.b16 %v2116
    %v2205 = vunpack.c.l.b16 %v2117
    %v2206 = vunpack.c.h.b16 %v2117
    %v2207 = vunpack.c.l.b16 %v2118
    %v2208 = vunpack.c.h.b16 %v2118
    %v2209 = vunpack.c.l.b16 %v2119
    %v2210 = vunpack.c.h.b16 %v2119
    %v2211 = vunpack.c.l.b16 %v2120
    %v2212 = vunpack.c.h.b16 %v2120
    %v2213 = vunpack.c.l.b16 %v2121
    %v2214 = vunpack.c.h.b16 %v2121
    %v2215 = vunpack.c.l.b16 %v2122
    %v2216 = vunpack.c.h.b16 %v2122
    %v2217 = vunpack.c.l.b16 %v2123
    %v2218 = vunpack.c.h.b16 %v2123
    %v2219 = vunpack.c.l.b16 %v2124
    %v2220 = vunpack.c.h.b16 %v2124
    %v2221 = vpack.c.b16 %v2161, %v2157
    %v2222 = vpack.c.b16 %v2162, %v2158
    %v2223 = vpack.c.b16 %v2163, %v2159
    %v2224 = vpack.c.b16 %v2164, %v2160
    %v2225 = vpack.c.b16 %v2169, %v2165
    %v2226 = vpack.c.b16 %v2170, %v2166
    %v2227 = vpack.c.b16 %v2171, %v2167
    %v2228 = vpack.c.b16 %v2172, %v2168
    %v2229 = vpack.c.b16 %v2177, %v2173
    %v2230 = vpack.c.b16 %v2178, %v2174
    %v2231 = vpack.c.b16 %v2179, %v2175
    %v2232 = vpack.c.b16 %v2180, %v2176
    %v2233 = vpack.c.b16 %v2185, %v2181
    %v2234 = vpack.c.b16 %v2186, %v2182
    %v2235 = vpack.c.b16 %v2187, %v2183
    %v2236 = vpack.c.b16 %v2188, %v2184
    %v2237 = vpack.c.b16 %v2193, %v2189
    %v2238 = vpack.c.b16 %v2194, %v2190
    %v2239 = vpack.c.b16 %v2195, %v2191
    %v2240 = vpack.c.b16 %v2196, %v2192
    %v2241 = vpack.c.b16 %v2201, %v2197
    %v2242 = vpack.c.b16 %v2202, %v2198
    %v2243 = vpack.c.b16 %v2203, %v2199
    %v2244 = vpack.c.b16 %v2204, %v2200
    %v2245 = vpack.c.b16 %v2209, %v2205
    %v2246 = vpack.c.b16 %v2210, %v2206
    %v2247 = vpack.c.b16 %v2211, %v2207
    %v2248 = vpack.c.b16 %v2212, %v2208
    %v2249 = vpack.c.b16 %v2217, %v2213
    %v2250 = vpack.c.b16 %v2218, %v2214
    %v2251 = vpack.c.b16 %v2219, %v2215
    %v2252 = vpack.c.b16 %v2220, %v2216
    %2285 = vmatpush.bf16.msra.mxu0 %v2249
    %2286 = vmatpush.bf16.msra.mxu0 %v2245
    %2287 = vmatpush.bf16.msra.mxu0 %v2241
    %2288 = vmatpush.bf16.msra.mxu0 %v2237
    %2289 = vmatpush.bf16.msra.mxu0 %v2233
    %2290 = vmatpush.bf16.msra.mxu0 %v2229
    %2291 = vmatpush.bf16.msra.mxu0 %v2225
    %2292 = vmatpush.bf16.msra.mxu0 %v2221
    %2293 = vmatmul.bf16.gmra.mxu0 %v2092
    %v2294 = vpop.f32.mrf.mxu0
    %v2295 = vadd.f32 0.0, %v2294
    %v2296 = vpop.f32.mrf.mxu0
    %2297 = vdwg.mxu0
    %2298 = vmatpush.bf16.msra.mxu0 %v2250
    %2299 = vmatpush.bf16.msra.mxu0 %v2246
    %2300 = vmatpush.bf16.msra.mxu0 %v2242
    %2301 = vmatpush.bf16.msra.mxu0 %v2238
    %2302 = vmatpush.bf16.msra.mxu0 %v2234
    %2303 = vmatpush.bf16.msra.mxu0 %v2230
    %2304 = vmatpush.bf16.msra.mxu0 %v2226
    %2305 = vmatpush.bf16.msra.mxu0 %v2222
    %2306 = vmatmul.bf16.gmra.mxu0 %v2092
    %v2307 = vpop.f32.mrf.mxu0
    %v2308 = vadd.f32 0.0, %v2307
    %v2309 = vpop.f32.mrf.mxu0
    %2310 = vdwg.mxu0
    %2311 = vmatpush.bf16.msra.mxu0 %v2251
    %2312 = vmatpush.bf16.msra.mxu0 %v2247
    %2313 = vmatpush.bf16.msra.mxu0 %v2243
    %2314 = vmatpush.bf16.msra.mxu0 %v2239
    %2315 = vmatpush.bf16.msra.mxu0 %v2235
    %2316 = vmatpush.bf16.msra.mxu0 %v2231
    %2317 = vmatpush.bf16.msra.mxu0 %v2227
    %2318 = vmatpush.bf16.msra.mxu0 %v2223
    %2319 = vmatmul.bf16.gmra.mxu0 %v2092
    %v2320 = vpop.f32.mrf.mxu0
    %v2321 = vadd.f32 0.0, %v2320
    %v2322 = vpop.f32.mrf.mxu0
    %2323 = vdwg.mxu0
    %2324 = vmatpush.bf16.msra.mxu0 %v2252
    %2325 = vmatpush.bf16.msra.mxu0 %v2248
    %2326 = vmatpush.bf16.msra.mxu0 %v2244
    %2327 = vmatpush.bf16.msra.mxu0 %v2240
    %2328 = vmatpush.bf16.msra.mxu0 %v2236
    %2329 = vmatpush.bf16.msra.mxu0 %v2232
    %2330 = vmatpush.bf16.msra.mxu0 %v2228
    %2331 = vmatpush.bf16.msra.mxu0 %v2224
    %2332 = vmatmul.bf16.gmra.mxu0 %v2092
    %v2333 = vpop.f32.mrf.mxu0
    %v2334 = vadd.f32 0.0, %v2333
    %v2335 = vpop.f32.mrf.mxu0
    %2336 = vdwg.mxu0
    %v2337 = vadd.f32 %v2088, %v2295
    %v2338 = vadd.f32 %v2089, %v2308
    %v2339 = vadd.f32 %v2090, %v2321
    %v2340 = vadd.f32 %v2091, %v2334
    %s2341 = scalar_lea.vmem [#allocation2], 320
    %v2342 = vld [vmem:[%s2341 + $0x20] sm:$0xff]
    %v2343 = vld [vmem:[%s2341 + $0x28] sm:$0xff]
    %v2344 = vld [vmem:[%s2341 + $0x30] sm:$0xff]
    %v2345 = vld [vmem:[%s2341 + $0x38] sm:$0xff]
    %v2346 = vpack.c.bf16 %v2079, %v2079
    %v2347 = vld [vmem:[%s1050] sm:$0xff]
    %v2348 = vld [vmem:[%s1050 + $0x8] sm:$0xff]
    %v2349 = vld [vmem:[%s1050 + $0x10] sm:$0xff]
    %v2350 = vld [vmem:[%s1050 + $0x18] sm:$0xff]
    %v2351 = vld [vmem:[%s1050 + $0x20] sm:$0xff]
    %v2352 = vld [vmem:[%s1050 + $0x28] sm:$0xff]
    %v2353 = vld [vmem:[%s1050 + $0x30] sm:$0xff]
    %v2354 = vld [vmem:[%s1050 + $0x38] sm:$0xff]
    %v2355 = vld [vmem:[%s1050 + $0x40] sm:$0xff]
    %v2356 = vld [vmem:[%s1050 + $0x48] sm:$0xff]
    %v2357 = vld [vmem:[%s1050 + $0x50] sm:$0xff]
    %v2358 = vld [vmem:[%s1050 + $0x58] sm:$0xff]
    %v2359 = vld [vmem:[%s1050 + $0x60] sm:$0xff]
    %v2360 = vld [vmem:[%s1050 + $0x68] sm:$0xff]
    %v2361 = vld [vmem:[%s1050 + $0x70] sm:$0xff]
    %v2362 = vld [vmem:[%s1050 + $0x78] sm:$0xff]
    %v2363 = vld [vmem:[%s1050 + $0x80] sm:$0xff]
    %v2364 = vld [vmem:[%s1050 + $0x88] sm:$0xff]
    %v2365 = vld [vmem:[%s1050 + $0x90] sm:$0xff]
    %v2366 = vld [vmem:[%s1050 + $0x98] sm:$0xff]
    %v2367 = vld [vmem:[%s1050 + $0xa0] sm:$0xff]
    %v2368 = vld [vmem:[%s1050 + $0xa8] sm:$0xff]
    %v2369 = vld [vmem:[%s1050 + $0xb0] sm:$0xff]
    %v2370 = vld [vmem:[%s1050 + $0xb8] sm:$0xff]
    %v2371 = vld [vmem:[%s1050 + $0xc0] sm:$0xff]
    %v2372 = vld [vmem:[%s1050 + $0xc8] sm:$0xff]
    %v2373 = vld [vmem:[%s1050 + $0xd0] sm:$0xff]
    %v2374 = vld [vmem:[%s1050 + $0xd8] sm:$0xff]
    %v2375 = vld [vmem:[%s1050 + $0xe0] sm:$0xff]
    %v2376 = vld [vmem:[%s1050 + $0xe8] sm:$0xff]
    %v2377 = vld [vmem:[%s1050 + $0xf0] sm:$0xff]
    %v2378 = vld [vmem:[%s1050 + $0xf8] sm:$0xff]
    %v2411 = vunpack.c.l.b16 %v2347
    %v2412 = vunpack.c.h.b16 %v2347
    %v2413 = vunpack.c.l.b16 %v2348
    %v2414 = vunpack.c.h.b16 %v2348
    %v2415 = vunpack.c.l.b16 %v2349
    %v2416 = vunpack.c.h.b16 %v2349
    %v2417 = vunpack.c.l.b16 %v2350
    %v2418 = vunpack.c.h.b16 %v2350
    %v2419 = vunpack.c.l.b16 %v2351
    %v2420 = vunpack.c.h.b16 %v2351
    %v2421 = vunpack.c.l.b16 %v2352
    %v2422 = vunpack.c.h.b16 %v2352
    %v2423 = vunpack.c.l.b16 %v2353
    %v2424 = vunpack.c.h.b16 %v2353
    %v2425 = vunpack.c.l.b16 %v2354
    %v2426 = vunpack.c.h.b16 %v2354
    %v2427 = vunpack.c.l.b16 %v2355
    %v2428 = vunpack.c.h.b16 %v2355
    %v2429 = vunpack.c.l.b16 %v2356
    %v2430 = vunpack.c.h.b16 %v2356
    %v2431 = vunpack.c.l.b16 %v2357
    %v2432 = vunpack.c.h.b16 %v2357
    %v2433 = vunpack.c.l.b16 %v2358
    %v2434 = vunpack.c.h.b16 %v2358
    %v2435 = vunpack.c.l.b16 %v2359
    %v2436 = vunpack.c.h.b16 %v2359
    %v2437 = vunpack.c.l.b16 %v2360
    %v2438 = vunpack.c.h.b16 %v2360
    %v2439 = vunpack.c.l.b16 %v2361
    %v2440 = vunpack.c.h.b16 %v2361
    %v2441 = vunpack.c.l.b16 %v2362
    %v2442 = vunpack.c.h.b16 %v2362
    %v2443 = vunpack.c.l.b16 %v2363
    %v2444 = vunpack.c.h.b16 %v2363
    %v2445 = vunpack.c.l.b16 %v2364
    %v2446 = vunpack.c.h.b16 %v2364
    %v2447 = vunpack.c.l.b16 %v2365
    %v2448 = vunpack.c.h.b16 %v2365
    %v2449 = vunpack.c.l.b16 %v2366
    %v2450 = vunpack.c.h.b16 %v2366
    %v2451 = vunpack.c.l.b16 %v2367
    %v2452 = vunpack.c.h.b16 %v2367
    %v2453 = vunpack.c.l.b16 %v2368
    %v2454 = vunpack.c.h.b16 %v2368
    %v2455 = vunpack.c.l.b16 %v2369
    %v2456 = vunpack.c.h.b16 %v2369
    %v2457 = vunpack.c.l.b16 %v2370
    %v2458 = vunpack.c.h.b16 %v2370
    %v2459 = vunpack.c.l.b16 %v2371
    %v2460 = vunpack.c.h.b16 %v2371
    %v2461 = vunpack.c.l.b16 %v2372
    %v2462 = vunpack.c.h.b16 %v2372
    %v2463 = vunpack.c.l.b16 %v2373
    %v2464 = vunpack.c.h.b16 %v2373
    %v2465 = vunpack.c.l.b16 %v2374
    %v2466 = vunpack.c.h.b16 %v2374
    %v2467 = vunpack.c.l.b16 %v2375
    %v2468 = vunpack.c.h.b16 %v2375
    %v2469 = vunpack.c.l.b16 %v2376
    %v2470 = vunpack.c.h.b16 %v2376
    %v2471 = vunpack.c.l.b16 %v2377
    %v2472 = vunpack.c.h.b16 %v2377
    %v2473 = vunpack.c.l.b16 %v2378
    %v2474 = vunpack.c.h.b16 %v2378
    %v2475 = vpack.c.b16 %v2415, %v2411
    %v2476 = vpack.c.b16 %v2416, %v2412
    %v2477 = vpack.c.b16 %v2417, %v2413
    %v2478 = vpack.c.b16 %v2418, %v2414
    %v2479 = vpack.c.b16 %v2423, %v2419
    %v2480 = vpack.c.b16 %v2424, %v2420
    %v2481 = vpack.c.b16 %v2425, %v2421
    %v2482 = vpack.c.b16 %v2426, %v2422
    %v2483 = vpack.c.b16 %v2431, %v2427
    %v2484 = vpack.c.b16 %v2432, %v2428
    %v2485 = vpack.c.b16 %v2433, %v2429
    %v2486 = vpack.c.b16 %v2434, %v2430
    %v2487 = vpack.c.b16 %v2439, %v2435
    %v2488 = vpack.c.b16 %v2440, %v2436
    %v2489 = vpack.c.b16 %v2441, %v2437
    %v2490 = vpack.c.b16 %v2442, %v2438
    %v2491 = vpack.c.b16 %v2447, %v2443
    %v2492 = vpack.c.b16 %v2448, %v2444
    %v2493 = vpack.c.b16 %v2449, %v2445
    %v2494 = vpack.c.b16 %v2450, %v2446
    %v2495 = vpack.c.b16 %v2455, %v2451
    %v2496 = vpack.c.b16 %v2456, %v2452
    %v2497 = vpack.c.b16 %v2457, %v2453
    %v2498 = vpack.c.b16 %v2458, %v2454
    %v2499 = vpack.c.b16 %v2463, %v2459
    %v2500 = vpack.c.b16 %v2464, %v2460
    %v2501 = vpack.c.b16 %v2465, %v2461
    %v2502 = vpack.c.b16 %v2466, %v2462
    %v2503 = vpack.c.b16 %v2471, %v2467
    %v2504 = vpack.c.b16 %v2472, %v2468
    %v2505 = vpack.c.b16 %v2473, %v2469
    %v2506 = vpack.c.b16 %v2474, %v2470
    %2539 = vmatpush.bf16.msra.mxu0 %v2503
    %2540 = vmatpush.bf16.msra.mxu0 %v2499
    %2541 = vmatpush.bf16.msra.mxu0 %v2495
    %2542 = vmatpush.bf16.msra.mxu0 %v2491
    %2543 = vmatpush.bf16.msra.mxu0 %v2487
    %2544 = vmatpush.bf16.msra.mxu0 %v2483
    %2545 = vmatpush.bf16.msra.mxu0 %v2479
    %2546 = vmatpush.bf16.msra.mxu0 %v2475
    %2547 = vmatmul.bf16.gmra.mxu0 %v2346
    %v2548 = vpop.f32.mrf.mxu0
    %v2549 = vadd.f32 0.0, %v2548
    %v2550 = vpop.f32.mrf.mxu0
    %2551 = vdwg.mxu0
    %2552 = vmatpush.bf16.msra.mxu0 %v2504
    %2553 = vmatpush.bf16.msra.mxu0 %v2500
    %2554 = vmatpush.bf16.msra.mxu0 %v2496
    %2555 = vmatpush.bf16.msra.mxu0 %v2492
    %2556 = vmatpush.bf16.msra.mxu0 %v2488
    %2557 = vmatpush.bf16.msra.mxu0 %v2484
    %2558 = vmatpush.bf16.msra.mxu0 %v2480
    %2559 = vmatpush.bf16.msra.mxu0 %v2476
    %2560 = vmatmul.bf16.gmra.mxu0 %v2346
    %v2561 = vpop.f32.mrf.mxu0
    %v2562 = vadd.f32 0.0, %v2561
    %v2563 = vpop.f32.mrf.mxu0
    %2564 = vdwg.mxu0
    %2565 = vmatpush.bf16.msra.mxu0 %v2505
    %2566 = vmatpush.bf16.msra.mxu0 %v2501
    %2567 = vmatpush.bf16.msra.mxu0 %v2497
    %2568 = vmatpush.bf16.msra.mxu0 %v2493
    %2569 = vmatpush.bf16.msra.mxu0 %v2489
    %2570 = vmatpush.bf16.msra.mxu0 %v2485
    %2571 = vmatpush.bf16.msra.mxu0 %v2481
    %2572 = vmatpush.bf16.msra.mxu0 %v2477
    %2573 = vmatmul.bf16.gmra.mxu0 %v2346
    %v2574 = vpop.f32.mrf.mxu0
    %v2575 = vadd.f32 0.0, %v2574
    %v2576 = vpop.f32.mrf.mxu0
    %2577 = vdwg.mxu0
    %2578 = vmatpush.bf16.msra.mxu0 %v2506
    %2579 = vmatpush.bf16.msra.mxu0 %v2502
    %2580 = vmatpush.bf16.msra.mxu0 %v2498
    %2581 = vmatpush.bf16.msra.mxu0 %v2494
    %2582 = vmatpush.bf16.msra.mxu0 %v2490
    %2583 = vmatpush.bf16.msra.mxu0 %v2486
    %2584 = vmatpush.bf16.msra.mxu0 %v2482
    %2585 = vmatpush.bf16.msra.mxu0 %v2478
    %2586 = vmatmul.bf16.gmra.mxu0 %v2346
    %v2587 = vpop.f32.mrf.mxu0
    %v2588 = vadd.f32 0.0, %v2587
    %v2589 = vpop.f32.mrf.mxu0
    %2590 = vdwg.mxu0
    %v2591 = vadd.f32 %v2342, %v2549
    %v2592 = vadd.f32 %v2343, %v2562
    %v2593 = vadd.f32 %v2344, %v2575
    %v2594 = vadd.f32 %v2345, %v2588
    %v2595 = vxor.u32 %v2337, 2147483648
    %v2596 = vmul.f32 %v2595, 1.442695
    %v2597 = vpow.pop %v2596
    %v2598 = vadd.f32 %v2597, 1.0
    %v2599 = vrcp.pop %v2598
    %v2600 = vmul.f32 %v2598, %v2599
    %v2601 = vsub.f32 1.0, %v2600
    %v2602 = vmul.f32 %v2599, %v2601
    %v2603 = vadd.f32 %v2599, %v2602
    %vm2604 = vweird.f32 %v2598
    %vm2605 = vweird.f32 %v2599
    %vm2606 = vmor %vm2604, %vm2605
    %v2607 = vsel %vm2606, %v2599, %v2603
    %v2608 = vand.u32 2147483647, %v2598
    %vm2609 = vcmp.eq.f32.partialorder %v2608, 8.507059e+37
    %v2610 = vand.u32 %v2598, 2147483648
    %v2611 = vor.u32 1.1754944e-38, %v2610
    %v2612 = vsel %vm2609, %v2611, %v2607
    %v2613 = vmul.f32 1.0, %v2612
    %v2614 = vxor.u32 %v2338, 2147483648
    %v2615 = vmul.f32 %v2614, 1.442695
    %v2616 = vpow.pop %v2615
    %v2617 = vadd.f32 %v2616, 1.0
    %v2618 = vrcp.pop %v2617
    %v2619 = vmul.f32 %v2617, %v2618
    %v2620 = vsub.f32 1.0, %v2619
    %v2621 = vmul.f32 %v2618, %v2620
    %v2622 = vadd.f32 %v2618, %v2621
    %vm2623 = vweird.f32 %v2617
    %vm2624 = vweird.f32 %v2618
    %vm2625 = vmor %vm2623, %vm2624
    %v2626 = vsel %vm2625, %v2618, %v2622
    %v2627 = vand.u32 2147483647, %v2617
    %vm2628 = vcmp.eq.f32.partialorder %v2627, 8.507059e+37
    %v2629 = vand.u32 %v2617, 2147483648
    %v2630 = vor.u32 1.1754944e-38, %v2629
    %v2631 = vsel %vm2628, %v2630, %v2626
    %v2632 = vmul.f32 1.0, %v2631
    %v2633 = vtanh.pop %v2339
    %v2634 = vxor.u32 %v2340, 2147483648
    %v2635 = vmul.f32 %v2634, 1.442695
    %v2636 = vpow.pop %v2635
    %v2637 = vadd.f32 %v2636, 1.0
    %v2638 = vrcp.pop %v2637
    %v2639 = vmul.f32 %v2637, %v2638
    %v2640 = vsub.f32 1.0, %v2639
    %v2641 = vmul.f32 %v2638, %v2640
    %v2642 = vadd.f32 %v2638, %v2641
    %vm2643 = vweird.f32 %v2637
    %vm2644 = vweird.f32 %v2638
    %vm2645 = vmor %vm2643, %vm2644
    %v2646 = vsel %vm2645, %v2638, %v2642
    %v2647 = vand.u32 2147483647, %v2637
    %vm2648 = vcmp.eq.f32.partialorder %v2647, 8.507059e+37
    %v2649 = vand.u32 %v2637, 2147483648
    %v2650 = vor.u32 1.1754944e-38, %v2649
    %v2651 = vsel %vm2648, %v2650, %v2646
    %v2652 = vmul.f32 1.0, %v2651
    %v2653 = vmul.f32 %v2632, %v2078
    %v2654 = vmul.f32 %v2613, %v2633
    %v2655 = vadd.f32 %v2653, %v2654
    %v2656 = vtanh.pop %v2655
    %v2657 = vmul.f32 %v2652, %v2656
    %v2658 = vxor.u32 %v2591, 2147483648
    %v2659 = vmul.f32 %v2658, 1.442695
    %v2660 = vpow.pop %v2659
    %v2661 = vadd.f32 %v2660, 1.0
    %v2662 = vrcp.pop %v2661
    %v2663 = vmul.f32 %v2661, %v2662
    %v2664 = vsub.f32 1.0, %v2663
    %v2665 = vmul.f32 %v2662, %v2664
    %v2666 = vadd.f32 %v2662, %v2665
    %vm2667 = vweird.f32 %v2661
    %vm2668 = vweird.f32 %v2662
    %vm2669 = vmor %vm2667, %vm2668
    %v2670 = vsel %vm2669, %v2662, %v2666
    %v2671 = vand.u32 2147483647, %v2661
    %vm2672 = vcmp.eq.f32.partialorder %v2671, 8.507059e+37
    %v2673 = vand.u32 %v2661, 2147483648
    %v2674 = vor.u32 1.1754944e-38, %v2673
    %v2675 = vsel %vm2672, %v2674, %v2670
    %v2676 = vmul.f32 1.0, %v2675
    %v2677 = vxor.u32 %v2592, 2147483648
    %v2678 = vmul.f32 %v2677, 1.442695
    %v2679 = vpow.pop %v2678
    %v2680 = vadd.f32 %v2679, 1.0
    %v2681 = vrcp.pop %v2680
    %v2682 = vmul.f32 %v2680, %v2681
    %v2683 = vsub.f32 1.0, %v2682
    %v2684 = vmul.f32 %v2681, %v2683
    %v2685 = vadd.f32 %v2681, %v2684
    %vm2686 = vweird.f32 %v2680
    %vm2687 = vweird.f32 %v2681
    %vm2688 = vmor %vm2686, %vm2687
    %v2689 = vsel %vm2688, %v2681, %v2685
    %v2690 = vand.u32 2147483647, %v2680
    %vm2691 = vcmp.eq.f32.partialorder %v2690, 8.507059e+37
    %v2692 = vand.u32 %v2680, 2147483648
    %v2693 = vor.u32 1.1754944e-38, %v2692
    %v2694 = vsel %vm2691, %v2693, %v2689
    %v2695 = vmul.f32 1.0, %v2694
    %v2696 = vtanh.pop %v2593
    %v2697 = vxor.u32 %v2594, 2147483648
    %v2698 = vmul.f32 %v2697, 1.442695
    %v2699 = vpow.pop %v2698
    %v2700 = vadd.f32 %v2699, 1.0
    %v2701 = vrcp.pop %v2700
    %v2702 = vmul.f32 %v2700, %v2701
    %v2703 = vsub.f32 1.0, %v2702
    %v2704 = vmul.f32 %v2701, %v2703
    %v2705 = vadd.f32 %v2701, %v2704
    %vm2706 = vweird.f32 %v2700
    %vm2707 = vweird.f32 %v2701
    %vm2708 = vmor %vm2706, %vm2707
    %v2709 = vsel %vm2708, %v2701, %v2705
    %v2710 = vand.u32 2147483647, %v2700
    %vm2711 = vcmp.eq.f32.partialorder %v2710, 8.507059e+37
    %v2712 = vand.u32 %v2700, 2147483648
    %v2713 = vor.u32 1.1754944e-38, %v2712
    %v2714 = vsel %vm2711, %v2713, %v2709
    %v2715 = vmul.f32 1.0, %v2714
    %v2716 = vmul.f32 %v2695, %v2080
    %v2717 = vmul.f32 %v2676, %v2696
    %v2718 = vadd.f32 %v2716, %v2717
    %v2719 = vtanh.pop %v2718
    %v2720 = vmul.f32 %v2715, %v2719
    %s2721 = scalar_lea.vmem %s1, 16
    %v2722 = vld [vmem:[%s2721] sm:$0xff]
    %vm2723 = vcmp.ne.f32.partialorder %v2722, 0.0
    %s2724 = scalar_lea.vmem %s1, 40
    %v2725 = vld [vmem:[%s2724] sm:$0xff]
    %vm2726 = vcmp.ne.f32.partialorder %v2725, 0.0
    %v2727 = vsel %vm2723, %v2657, %v2077
    %v2728 = vsel %vm2723, %v2655, %v2078
    %v2729 = vsel %vm2726, %v2720, %v2079
    %v2730 = vsel %vm2726, %v2718, %v2080
    %v2731 = vsel %vm2723, %v2657, 0.0
    %s2732 = scalar_lea.vmem [#allocation3], 32
    %2733 = vst [vmem:[%s2732] sm:$0xff] %v2731
    %v2734 = vsel %vm2726, %v2720, 0.0
    %s2735 = scalar_lea.vmem [#allocation3], 80
    %2736 = vst [vmem:[%s2735 + $0x8] sm:$0xff] %v2734
    %s2737 = scalar_lea.vmem [#allocation2], 192
    %v2738 = vld [vmem:[%s2737] sm:$0xff]
    %v2739 = vld [vmem:[%s2737 + $0x8] sm:$0xff]
    %v2740 = vld [vmem:[%s2737 + $0x10] sm:$0xff]
    %v2741 = vld [vmem:[%s2737 + $0x18] sm:$0xff]
    %v2742 = vpack.c.bf16 %v2727, %v2727
    %v2743 = vld [vmem:[#allocation4] sm:$0xff]
    %v2744 = vld [vmem:[#allocation4 + $0x8] sm:$0xff]
    %v2745 = vld [vmem:[#allocation4 + $0x10] sm:$0xff]
    %v2746 = vld [vmem:[#allocation4 + $0x18] sm:$0xff]
    %v2747 = vld [vmem:[#allocation4 + $0x20] sm:$0xff]
    %v2748 = vld [vmem:[#allocation4 + $0x28] sm:$0xff]
    %v2749 = vld [vmem:[#allocation4 + $0x30] sm:$0xff]
    %v2750 = vld [vmem:[#allocation4 + $0x38] sm:$0xff]
    %v2751 = vld [vmem:[#allocation4 + $0x40] sm:$0xff]
    %v2752 = vld [vmem:[#allocation4 + $0x48] sm:$0xff]
    %v2753 = vld [vmem:[#allocation4 + $0x50] sm:$0xff]
    %v2754 = vld [vmem:[#allocation4 + $0x58] sm:$0xff]
    %v2755 = vld [vmem:[#allocation4 + $0x60] sm:$0xff]
    %v2756 = vld [vmem:[#allocation4 + $0x68] sm:$0xff]
    %v2757 = vld [vmem:[#allocation4 + $0x70] sm:$0xff]
    %v2758 = vld [vmem:[#allocation4 + $0x78] sm:$0xff]
    %v2759 = vld [vmem:[#allocation4 + $0x80] sm:$0xff]
    %v2760 = vld [vmem:[#allocation4 + $0x88] sm:$0xff]
    %v2761 = vld [vmem:[#allocation4 + $0x90] sm:$0xff]
    %v2762 = vld [vmem:[#allocation4 + $0x98] sm:$0xff]
    %v2763 = vld [vmem:[#allocation4 + $0xa0] sm:$0xff]
    %v2764 = vld [vmem:[#allocation4 + $0xa8] sm:$0xff]
    %v2765 = vld [vmem:[#allocation4 + $0xb0] sm:$0xff]
    %v2766 = vld [vmem:[#allocation4 + $0xb8] sm:$0xff]
    %v2767 = vld [vmem:[#allocation4 + $0xc0] sm:$0xff]
    %v2768 = vld [vmem:[#allocation4 + $0xc8] sm:$0xff]
    %v2769 = vld [vmem:[#allocation4 + $0xd0] sm:$0xff]
    %v2770 = vld [vmem:[#allocation4 + $0xd8] sm:$0xff]
    %v2771 = vld [vmem:[#allocation4 + $0xe0] sm:$0xff]
    %v2772 = vld [vmem:[#allocation4 + $0xe8] sm:$0xff]
    %v2773 = vld [vmem:[#allocation4 + $0xf0] sm:$0xff]
    %v2774 = vld [vmem:[#allocation4 + $0xf8] sm:$0xff]
    %v2807 = vunpack.c.l.b16 %v2743
    %v2808 = vunpack.c.h.b16 %v2743
    %v2809 = vunpack.c.l.b16 %v2744
    %v2810 = vunpack.c.h.b16 %v2744
    %v2811 = vunpack.c.l.b16 %v2745
    %v2812 = vunpack.c.h.b16 %v2745
    %v2813 = vunpack.c.l.b16 %v2746
    %v2814 = vunpack.c.h.b16 %v2746
    %v2815 = vunpack.c.l.b16 %v2747
    %v2816 = vunpack.c.h.b16 %v2747
    %v2817 = vunpack.c.l.b16 %v2748
    %v2818 = vunpack.c.h.b16 %v2748
    %v2819 = vunpack.c.l.b16 %v2749
    %v2820 = vunpack.c.h.b16 %v2749
    %v2821 = vunpack.c.l.b16 %v2750
    %v2822 = vunpack.c.h.b16 %v2750
    %v2823 = vunpack.c.l.b16 %v2751
    %v2824 = vunpack.c.h.b16 %v2751
    %v2825 = vunpack.c.l.b16 %v2752
    %v2826 = vunpack.c.h.b16 %v2752
    %v2827 = vunpack.c.l.b16 %v2753
    %v2828 = vunpack.c.h.b16 %v2753
    %v2829 = vunpack.c.l.b16 %v2754
    %v2830 = vunpack.c.h.b16 %v2754
    %v2831 = vunpack.c.l.b16 %v2755
    %v2832 = vunpack.c.h.b16 %v2755
    %v2833 = vunpack.c.l.b16 %v2756
    %v2834 = vunpack.c.h.b16 %v2756
    %v2835 = vunpack.c.l.b16 %v2757
    %v2836 = vunpack.c.h.b16 %v2757
    %v2837 = vunpack.c.l.b16 %v2758
    %v2838 = vunpack.c.h.b16 %v2758
    %v2839 = vunpack.c.l.b16 %v2759
    %v2840 = vunpack.c.h.b16 %v2759
    %v2841 = vunpack.c.l.b16 %v2760
    %v2842 = vunpack.c.h.b16 %v2760
    %v2843 = vunpack.c.l.b16 %v2761
    %v2844 = vunpack.c.h.b16 %v2761
    %v2845 = vunpack.c.l.b16 %v2762
    %v2846 = vunpack.c.h.b16 %v2762
    %v2847 = vunpack.c.l.b16 %v2763
    %v2848 = vunpack.c.h.b16 %v2763
    %v2849 = vunpack.c.l.b16 %v2764
    %v2850 = vunpack.c.h.b16 %v2764
    %v2851 = vunpack.c.l.b16 %v2765
    %v2852 = vunpack.c.h.b16 %v2765
    %v2853 = vunpack.c.l.b16 %v2766
    %v2854 = vunpack.c.h.b16 %v2766
    %v2855 = vunpack.c.l.b16 %v2767
    %v2856 = vunpack.c.h.b16 %v2767
    %v2857 = vunpack.c.l.b16 %v2768
    %v2858 = vunpack.c.h.b16 %v2768
    %v2859 = vunpack.c.l.b16 %v2769
    %v2860 = vunpack.c.h.b16 %v2769
    %v2861 = vunpack.c.l.b16 %v2770
    %v2862 = vunpack.c.h.b16 %v2770
    %v2863 = vunpack.c.l.b16 %v2771
    %v2864 = vunpack.c.h.b16 %v2771
    %v2865 = vunpack.c.l.b16 %v2772
    %v2866 = vunpack.c.h.b16 %v2772
    %v2867 = vunpack.c.l.b16 %v2773
    %v2868 = vunpack.c.h.b16 %v2773
    %v2869 = vunpack.c.l.b16 %v2774
    %v2870 = vunpack.c.h.b16 %v2774
    %v2871 = vpack.c.b16 %v2811, %v2807
    %v2872 = vpack.c.b16 %v2812, %v2808
    %v2873 = vpack.c.b16 %v2813, %v2809
    %v2874 = vpack.c.b16 %v2814, %v2810
    %v2875 = vpack.c.b16 %v2819, %v2815
    %v2876 = vpack.c.b16 %v2820, %v2816
    %v2877 = vpack.c.b16 %v2821, %v2817
    %v2878 = vpack.c.b16 %v2822, %v2818
    %v2879 = vpack.c.b16 %v2827, %v2823
    %v2880 = vpack.c.b16 %v2828, %v2824
    %v2881 = vpack.c.b16 %v2829, %v2825
    %v2882 = vpack.c.b16 %v2830, %v2826
    %v2883 = vpack.c.b16 %v2835, %v2831
    %v2884 = vpack.c.b16 %v2836, %v2832
    %v2885 = vpack.c.b16 %v2837, %v2833
    %v2886 = vpack.c.b16 %v2838, %v2834
    %v2887 = vpack.c.b16 %v2843, %v2839
    %v2888 = vpack.c.b16 %v2844, %v2840
    %v2889 = vpack.c.b16 %v2845, %v2841
    %v2890 = vpack.c.b16 %v2846, %v2842
    %v2891 = vpack.c.b16 %v2851, %v2847
    %v2892 = vpack.c.b16 %v2852, %v2848
    %v2893 = vpack.c.b16 %v2853, %v2849
    %v2894 = vpack.c.b16 %v2854, %v2850
    %v2895 = vpack.c.b16 %v2859, %v2855
    %v2896 = vpack.c.b16 %v2860, %v2856
    %v2897 = vpack.c.b16 %v2861, %v2857
    %v2898 = vpack.c.b16 %v2862, %v2858
    %v2899 = vpack.c.b16 %v2867, %v2863
    %v2900 = vpack.c.b16 %v2868, %v2864
    %v2901 = vpack.c.b16 %v2869, %v2865
    %v2902 = vpack.c.b16 %v2870, %v2866
    %2935 = vmatpush.bf16.msra.mxu0 %v2899
    %2936 = vmatpush.bf16.msra.mxu0 %v2895
    %2937 = vmatpush.bf16.msra.mxu0 %v2891
    %2938 = vmatpush.bf16.msra.mxu0 %v2887
    %2939 = vmatpush.bf16.msra.mxu0 %v2883
    %2940 = vmatpush.bf16.msra.mxu0 %v2879
    %2941 = vmatpush.bf16.msra.mxu0 %v2875
    %2942 = vmatpush.bf16.msra.mxu0 %v2871
    %2943 = vmatmul.bf16.gmra.mxu0 %v2742
    %v2944 = vpop.f32.mrf.mxu0
    %v2945 = vadd.f32 0.0, %v2944
    %v2946 = vpop.f32.mrf.mxu0
    %2947 = vdwg.mxu0
    %2948 = vmatpush.bf16.msra.mxu0 %v2900
    %2949 = vmatpush.bf16.msra.mxu0 %v2896
    %2950 = vmatpush.bf16.msra.mxu0 %v2892
    %2951 = vmatpush.bf16.msra.mxu0 %v2888
    %2952 = vmatpush.bf16.msra.mxu0 %v2884
    %2953 = vmatpush.bf16.msra.mxu0 %v2880
    %2954 = vmatpush.bf16.msra.mxu0 %v2876
    %2955 = vmatpush.bf16.msra.mxu0 %v2872
    %2956 = vmatmul.bf16.gmra.mxu0 %v2742
    %v2957 = vpop.f32.mrf.mxu0
    %v2958 = vadd.f32 0.0, %v2957
    %v2959 = vpop.f32.mrf.mxu0
    %2960 = vdwg.mxu0
    %2961 = vmatpush.bf16.msra.mxu0 %v2901
    %2962 = vmatpush.bf16.msra.mxu0 %v2897
    %2963 = vmatpush.bf16.msra.mxu0 %v2893
    %2964 = vmatpush.bf16.msra.mxu0 %v2889
    %2965 = vmatpush.bf16.msra.mxu0 %v2885
    %2966 = vmatpush.bf16.msra.mxu0 %v2881
    %2967 = vmatpush.bf16.msra.mxu0 %v2877
    %2968 = vmatpush.bf16.msra.mxu0 %v2873
    %2969 = vmatmul.bf16.gmra.mxu0 %v2742
    %v2970 = vpop.f32.mrf.mxu0
    %v2971 = vadd.f32 0.0, %v2970
    %v2972 = vpop.f32.mrf.mxu0
    %2973 = vdwg.mxu0
    %2974 = vmatpush.bf16.msra.mxu0 %v2902
    %2975 = vmatpush.bf16.msra.mxu0 %v2898
    %2976 = vmatpush.bf16.msra.mxu0 %v2894
    %2977 = vmatpush.bf16.msra.mxu0 %v2890
    %2978 = vmatpush.bf16.msra.mxu0 %v2886
    %2979 = vmatpush.bf16.msra.mxu0 %v2882
    %2980 = vmatpush.bf16.msra.mxu0 %v2878
    %2981 = vmatpush.bf16.msra.mxu0 %v2874
    %2982 = vmatmul.bf16.gmra.mxu0 %v2742
    %v2983 = vpop.f32.mrf.mxu0
    %v2984 = vadd.f32 0.0, %v2983
    %v2985 = vpop.f32.mrf.mxu0
    %2986 = vdwg.mxu0
    %v2987 = vadd.f32 %v2738, %v2945
    %v2988 = vadd.f32 %v2739, %v2958
    %v2989 = vadd.f32 %v2740, %v2971
    %v2990 = vadd.f32 %v2741, %v2984
    %s2991 = scalar_lea.vmem [#allocation2], 256
    %v2992 = vld [vmem:[%s2991 + $0x20] sm:$0xff]
    %v2993 = vld [vmem:[%s2991 + $0x28] sm:$0xff]
    %v2994 = vld [vmem:[%s2991 + $0x30] sm:$0xff]
    %v2995 = vld [vmem:[%s2991 + $0x38] sm:$0xff]
    %v2996 = vpack.c.bf16 %v2729, %v2729
    %v2997 = vld [vmem:[%s1050] sm:$0xff]
    %v2998 = vld [vmem:[%s1050 + $0x8] sm:$0xff]
    %v2999 = vld [vmem:[%s1050 + $0x10] sm:$0xff]
    %v3000 = vld [vmem:[%s1050 + $0x18] sm:$0xff]
    %v3001 = vld [vmem:[%s1050 + $0x20] sm:$0xff]
    %v3002 = vld [vmem:[%s1050 + $0x28] sm:$0xff]
    %v3003 = vld [vmem:[%s1050 + $0x30] sm:$0xff]
    %v3004 = vld [vmem:[%s1050 + $0x38] sm:$0xff]
    %v3005 = vld [vmem:[%s1050 + $0x40] sm:$0xff]
    %v3006 = vld [vmem:[%s1050 + $0x48] sm:$0xff]
    %v3007 = vld [vmem:[%s1050 + $0x50] sm:$0xff]
    %v3008 = vld [vmem:[%s1050 + $0x58] sm:$0xff]
    %v3009 = vld [vmem:[%s1050 + $0x60] sm:$0xff]
    %v3010 = vld [vmem:[%s1050 + $0x68] sm:$0xff]
    %v3011 = vld [vmem:[%s1050 + $0x70] sm:$0xff]
    %v3012 = vld [vmem:[%s1050 + $0x78] sm:$0xff]
    %v3013 = vld [vmem:[%s1050 + $0x80] sm:$0xff]
    %v3014 = vld [vmem:[%s1050 + $0x88] sm:$0xff]
    %v3015 = vld [vmem:[%s1050 + $0x90] sm:$0xff]
    %v3016 = vld [vmem:[%s1050 + $0x98] sm:$0xff]
    %v3017 = vld [vmem:[%s1050 + $0xa0] sm:$0xff]
    %v3018 = vld [vmem:[%s1050 + $0xa8] sm:$0xff]
    %v3019 = vld [vmem:[%s1050 + $0xb0] sm:$0xff]
    %v3020 = vld [vmem:[%s1050 + $0xb8] sm:$0xff]
    %v3021 = vld [vmem:[%s1050 + $0xc0] sm:$0xff]
    %v3022 = vld [vmem:[%s1050 + $0xc8] sm:$0xff]
    %v3023 = vld [vmem:[%s1050 + $0xd0] sm:$0xff]
    %v3024 = vld [vmem:[%s1050 + $0xd8] sm:$0xff]
    %v3025 = vld [vmem:[%s1050 + $0xe0] sm:$0xff]
    %v3026 = vld [vmem:[%s1050 + $0xe8] sm:$0xff]
    %v3027 = vld [vmem:[%s1050 + $0xf0] sm:$0xff]
    %v3028 = vld [vmem:[%s1050 + $0xf8] sm:$0xff]
    %v3061 = vunpack.c.l.b16 %v2997
    %v3062 = vunpack.c.h.b16 %v2997
    %v3063 = vunpack.c.l.b16 %v2998
    %v3064 = vunpack.c.h.b16 %v2998
    %v3065 = vunpack.c.l.b16 %v2999
    %v3066 = vunpack.c.h.b16 %v2999
    %v3067 = vunpack.c.l.b16 %v3000
    %v3068 = vunpack.c.h.b16 %v3000
    %v3069 = vunpack.c.l.b16 %v3001
    %v3070 = vunpack.c.h.b16 %v3001
    %v3071 = vunpack.c.l.b16 %v3002
    %v3072 = vunpack.c.h.b16 %v3002
    %v3073 = vunpack.c.l.b16 %v3003
    %v3074 = vunpack.c.h.b16 %v3003
    %v3075 = vunpack.c.l.b16 %v3004
    %v3076 = vunpack.c.h.b16 %v3004
    %v3077 = vunpack.c.l.b16 %v3005
    %v3078 = vunpack.c.h.b16 %v3005
    %v3079 = vunpack.c.l.b16 %v3006
    %v3080 = vunpack.c.h.b16 %v3006
    %v3081 = vunpack.c.l.b16 %v3007
    %v3082 = vunpack.c.h.b16 %v3007
    %v3083 = vunpack.c.l.b16 %v3008
    %v3084 = vunpack.c.h.b16 %v3008
    %v3085 = vunpack.c.l.b16 %v3009
    %v3086 = vunpack.c.h.b16 %v3009
    %v3087 = vunpack.c.l.b16 %v3010
    %v3088 = vunpack.c.h.b16 %v3010
    %v3089 = vunpack.c.l.b16 %v3011
    %v3090 = vunpack.c.h.b16 %v3011
    %v3091 = vunpack.c.l.b16 %v3012
    %v3092 = vunpack.c.h.b16 %v3012
    %v3093 = vunpack.c.l.b16 %v3013
    %v3094 = vunpack.c.h.b16 %v3013
    %v3095 = vunpack.c.l.b16 %v3014
    %v3096 = vunpack.c.h.b16 %v3014
    %v3097 = vunpack.c.l.b16 %v3015
    %v3098 = vunpack.c.h.b16 %v3015
    %v3099 = vunpack.c.l.b16 %v3016
    %v3100 = vunpack.c.h.b16 %v3016
    %v3101 = vunpack.c.l.b16 %v3017
    %v3102 = vunpack.c.h.b16 %v3017
    %v3103 = vunpack.c.l.b16 %v3018
    %v3104 = vunpack.c.h.b16 %v3018
    %v3105 = vunpack.c.l.b16 %v3019
    %v3106 = vunpack.c.h.b16 %v3019
    %v3107 = vunpack.c.l.b16 %v3020
    %v3108 = vunpack.c.h.b16 %v3020
    %v3109 = vunpack.c.l.b16 %v3021
    %v3110 = vunpack.c.h.b16 %v3021
    %v3111 = vunpack.c.l.b16 %v3022
    %v3112 = vunpack.c.h.b16 %v3022
    %v3113 = vunpack.c.l.b16 %v3023
    %v3114 = vunpack.c.h.b16 %v3023
    %v3115 = vunpack.c.l.b16 %v3024
    %v3116 = vunpack.c.h.b16 %v3024
    %v3117 = vunpack.c.l.b16 %v3025
    %v3118 = vunpack.c.h.b16 %v3025
    %v3119 = vunpack.c.l.b16 %v3026
    %v3120 = vunpack.c.h.b16 %v3026
    %v3121 = vunpack.c.l.b16 %v3027
    %v3122 = vunpack.c.h.b16 %v3027
    %v3123 = vunpack.c.l.b16 %v3028
    %v3124 = vunpack.c.h.b16 %v3028
    %v3125 = vpack.c.b16 %v3065, %v3061
    %v3126 = vpack.c.b16 %v3066, %v3062
    %v3127 = vpack.c.b16 %v3067, %v3063
    %v3128 = vpack.c.b16 %v3068, %v3064
    %v3129 = vpack.c.b16 %v3073, %v3069
    %v3130 = vpack.c.b16 %v3074, %v3070
    %v3131 = vpack.c.b16 %v3075, %v3071
    %v3132 = vpack.c.b16 %v3076, %v3072
    %v3133 = vpack.c.b16 %v3081, %v3077
    %v3134 = vpack.c.b16 %v3082, %v3078
    %v3135 = vpack.c.b16 %v3083, %v3079
    %v3136 = vpack.c.b16 %v3084, %v3080
    %v3137 = vpack.c.b16 %v3089, %v3085
    %v3138 = vpack.c.b16 %v3090, %v3086
    %v3139 = vpack.c.b16 %v3091, %v3087
    %v3140 = vpack.c.b16 %v3092, %v3088
    %v3141 = vpack.c.b16 %v3097, %v3093
    %v3142 = vpack.c.b16 %v3098, %v3094
    %v3143 = vpack.c.b16 %v3099, %v3095
    %v3144 = vpack.c.b16 %v3100, %v3096
    %v3145 = vpack.c.b16 %v3105, %v3101
    %v3146 = vpack.c.b16 %v3106, %v3102
    %v3147 = vpack.c.b16 %v3107, %v3103
    %v3148 = vpack.c.b16 %v3108, %v3104
    %v3149 = vpack.c.b16 %v3113, %v3109
    %v3150 = vpack.c.b16 %v3114, %v3110
    %v3151 = vpack.c.b16 %v3115, %v3111
    %v3152 = vpack.c.b16 %v3116, %v3112
    %v3153 = vpack.c.b16 %v3121, %v3117
    %v3154 = vpack.c.b16 %v3122, %v3118
    %v3155 = vpack.c.b16 %v3123, %v3119
    %v3156 = vpack.c.b16 %v3124, %v3120
    %3189 = vmatpush.bf16.msra.mxu0 %v3153
    %3190 = vmatpush.bf16.msra.mxu0 %v3149
    %3191 = vmatpush.bf16.msra.mxu0 %v3145
    %3192 = vmatpush.bf16.msra.mxu0 %v3141
    %3193 = vmatpush.bf16.msra.mxu0 %v3137
    %3194 = vmatpush.bf16.msra.mxu0 %v3133
    %3195 = vmatpush.bf16.msra.mxu0 %v3129
    %3196 = vmatpush.bf16.msra.mxu0 %v3125
    %3197 = vmatmul.bf16.gmra.mxu0 %v2996
    %v3198 = vpop.f32.mrf.mxu0
    %v3199 = vadd.f32 0.0, %v3198
    %v3200 = vpop.f32.mrf.mxu0
    %3201 = vdwg.mxu0
    %3202 = vmatpush.bf16.msra.mxu0 %v3154
    %3203 = vmatpush.bf16.msra.mxu0 %v3150
    %3204 = vmatpush.bf16.msra.mxu0 %v3146
    %3205 = vmatpush.bf16.msra.mxu0 %v3142
    %3206 = vmatpush.bf16.msra.mxu0 %v3138
    %3207 = vmatpush.bf16.msra.mxu0 %v3134
    %3208 = vmatpush.bf16.msra.mxu0 %v3130
    %3209 = vmatpush.bf16.msra.mxu0 %v3126
    %3210 = vmatmul.bf16.gmra.mxu0 %v2996
    %v3211 = vpop.f32.mrf.mxu0
    %v3212 = vadd.f32 0.0, %v3211
    %v3213 = vpop.f32.mrf.mxu0
    %3214 = vdwg.mxu0
    %3215 = vmatpush.bf16.msra.mxu0 %v3155
    %3216 = vmatpush.bf16.msra.mxu0 %v3151
    %3217 = vmatpush.bf16.msra.mxu0 %v3147
    %3218 = vmatpush.bf16.msra.mxu0 %v3143
    %3219 = vmatpush.bf16.msra.mxu0 %v3139
    %3220 = vmatpush.bf16.msra.mxu0 %v3135
    %3221 = vmatpush.bf16.msra.mxu0 %v3131
    %3222 = vmatpush.bf16.msra.mxu0 %v3127
    %3223 = vmatmul.bf16.gmra.mxu0 %v2996
    %v3224 = vpop.f32.mrf.mxu0
    %v3225 = vadd.f32 0.0, %v3224
    %v3226 = vpop.f32.mrf.mxu0
    %3227 = vdwg.mxu0
    %3228 = vmatpush.bf16.msra.mxu0 %v3156
    %3229 = vmatpush.bf16.msra.mxu0 %v3152
    %3230 = vmatpush.bf16.msra.mxu0 %v3148
    %3231 = vmatpush.bf16.msra.mxu0 %v3144
    %3232 = vmatpush.bf16.msra.mxu0 %v3140
    %3233 = vmatpush.bf16.msra.mxu0 %v3136
    %3234 = vmatpush.bf16.msra.mxu0 %v3132
    %3235 = vmatpush.bf16.msra.mxu0 %v3128
    %3236 = vmatmul.bf16.gmra.mxu0 %v2996
    %v3237 = vpop.f32.mrf.mxu0
    %v3238 = vadd.f32 0.0, %v3237
    %v3239 = vpop.f32.mrf.mxu0
    %3240 = vdwg.mxu0
    %v3241 = vadd.f32 %v2992, %v3199
    %v3242 = vadd.f32 %v2993, %v3212
    %v3243 = vadd.f32 %v2994, %v3225
    %v3244 = vadd.f32 %v2995, %v3238
    %v3245 = vxor.u32 %v2987, 2147483648
    %v3246 = vmul.f32 %v3245, 1.442695
    %v3247 = vpow.pop %v3246
    %v3248 = vadd.f32 %v3247, 1.0
    %v3249 = vrcp.pop %v3248
    %v3250 = vmul.f32 %v3248, %v3249
    %v3251 = vsub.f32 1.0, %v3250
    %v3252 = vmul.f32 %v3249, %v3251
    %v3253 = vadd.f32 %v3249, %v3252
    %vm3254 = vweird.f32 %v3248
    %vm3255 = vweird.f32 %v3249
    %vm3256 = vmor %vm3254, %vm3255
    %v3257 = vsel %vm3256, %v3249, %v3253
    %v3258 = vand.u32 2147483647, %v3248
    %vm3259 = vcmp.eq.f32.partialorder %v3258, 8.507059e+37
    %v3260 = vand.u32 %v3248, 2147483648
    %v3261 = vor.u32 1.1754944e-38, %v3260
    %v3262 = vsel %vm3259, %v3261, %v3257
    %v3263 = vmul.f32 1.0, %v3262
    %v3264 = vxor.u32 %v2988, 2147483648
    %v3265 = vmul.f32 %v3264, 1.442695
    %v3266 = vpow.pop %v3265
    %v3267 = vadd.f32 %v3266, 1.0
    %v3268 = vrcp.pop %v3267
    %v3269 = vmul.f32 %v3267, %v3268
    %v3270 = vsub.f32 1.0, %v3269
    %v3271 = vmul.f32 %v3268, %v3270
    %v3272 = vadd.f32 %v3268, %v3271
    %vm3273 = vweird.f32 %v3267
    %vm3274 = vweird.f32 %v3268
    %vm3275 = vmor %vm3273, %vm3274
    %v3276 = vsel %vm3275, %v3268, %v3272
    %v3277 = vand.u32 2147483647, %v3267
    %vm3278 = vcmp.eq.f32.partialorder %v3277, 8.507059e+37
    %v3279 = vand.u32 %v3267, 2147483648
    %v3280 = vor.u32 1.1754944e-38, %v3279
    %v3281 = vsel %vm3278, %v3280, %v3276
    %v3282 = vmul.f32 1.0, %v3281
    %v3283 = vtanh.pop %v2989
    %v3284 = vxor.u32 %v2990, 2147483648
    %v3285 = vmul.f32 %v3284, 1.442695
    %v3286 = vpow.pop %v3285
    %v3287 = vadd.f32 %v3286, 1.0
    %v3288 = vrcp.pop %v3287
    %v3289 = vmul.f32 %v3287, %v3288
    %v3290 = vsub.f32 1.0, %v3289
    %v3291 = vmul.f32 %v3288, %v3290
    %v3292 = vadd.f32 %v3288, %v3291
    %vm3293 = vweird.f32 %v3287
    %vm3294 = vweird.f32 %v3288
    %vm3295 = vmor %vm3293, %vm3294
    %v3296 = vsel %vm3295, %v3288, %v3292
    %v3297 = vand.u32 2147483647, %v3287
    %vm3298 = vcmp.eq.f32.partialorder %v3297, 8.507059e+37
    %v3299 = vand.u32 %v3287, 2147483648
    %v3300 = vor.u32 1.1754944e-38, %v3299
    %v3301 = vsel %vm3298, %v3300, %v3296
    %v3302 = vmul.f32 1.0, %v3301
    %v3303 = vmul.f32 %v3282, %v2728
    %v3304 = vmul.f32 %v3263, %v3283
    %v3305 = vadd.f32 %v3303, %v3304
    %v3306 = vtanh.pop %v3305
    %v3307 = vmul.f32 %v3302, %v3306
    %v3308 = vxor.u32 %v3241, 2147483648
    %v3309 = vmul.f32 %v3308, 1.442695
    %v3310 = vpow.pop %v3309
    %v3311 = vadd.f32 %v3310, 1.0
    %v3312 = vrcp.pop %v3311
    %v3313 = vmul.f32 %v3311, %v3312
    %v3314 = vsub.f32 1.0, %v3313
    %v3315 = vmul.f32 %v3312, %v3314
    %v3316 = vadd.f32 %v3312, %v3315
    %vm3317 = vweird.f32 %v3311
    %vm3318 = vweird.f32 %v3312
    %vm3319 = vmor %vm3317, %vm3318
    %v3320 = vsel %vm3319, %v3312, %v3316
    %v3321 = vand.u32 2147483647, %v3311
    %vm3322 = vcmp.eq.f32.partialorder %v3321, 8.507059e+37
    %v3323 = vand.u32 %v3311, 2147483648
    %v3324 = vor.u32 1.1754944e-38, %v3323
    %v3325 = vsel %vm3322, %v3324, %v3320
    %v3326 = vmul.f32 1.0, %v3325
    %v3327 = vxor.u32 %v3242, 2147483648
    %v3328 = vmul.f32 %v3327, 1.442695
    %v3329 = vpow.pop %v3328
    %v3330 = vadd.f32 %v3329, 1.0
    %v3331 = vrcp.pop %v3330
    %v3332 = vmul.f32 %v3330, %v3331
    %v3333 = vsub.f32 1.0, %v3332
    %v3334 = vmul.f32 %v3331, %v3333
    %v3335 = vadd.f32 %v3331, %v3334
    %vm3336 = vweird.f32 %v3330
    %vm3337 = vweird.f32 %v3331
    %vm3338 = vmor %vm3336, %vm3337
    %v3339 = vsel %vm3338, %v3331, %v3335
    %v3340 = vand.u32 2147483647, %v3330
    %vm3341 = vcmp.eq.f32.partialorder %v3340, 8.507059e+37
    %v3342 = vand.u32 %v3330, 2147483648
    %v3343 = vor.u32 1.1754944e-38, %v3342
    %v3344 = vsel %vm3341, %v3343, %v3339
    %v3345 = vmul.f32 1.0, %v3344
    %v3346 = vtanh.pop %v3243
    %v3347 = vxor.u32 %v3244, 2147483648
    %v3348 = vmul.f32 %v3347, 1.442695
    %v3349 = vpow.pop %v3348
    %v3350 = vadd.f32 %v3349, 1.0
    %v3351 = vrcp.pop %v3350
    %v3352 = vmul.f32 %v3350, %v3351
    %v3353 = vsub.f32 1.0, %v3352
    %v3354 = vmul.f32 %v3351, %v3353
    %v3355 = vadd.f32 %v3351, %v3354
    %vm3356 = vweird.f32 %v3350
    %vm3357 = vweird.f32 %v3351
    %vm3358 = vmor %vm3356, %vm3357
    %v3359 = vsel %vm3358, %v3351, %v3355
    %v3360 = vand.u32 2147483647, %v3350
    %vm3361 = vcmp.eq.f32.partialorder %v3360, 8.507059e+37
    %v3362 = vand.u32 %v3350, 2147483648
    %v3363 = vor.u32 1.1754944e-38, %v3362
    %v3364 = vsel %vm3361, %v3363, %v3359
    %v3365 = vmul.f32 1.0, %v3364
    %v3366 = vmul.f32 %v3345, %v2730
    %v3367 = vmul.f32 %v3326, %v3346
    %v3368 = vadd.f32 %v3366, %v3367
    %v3369 = vtanh.pop %v3368
    %v3370 = vmul.f32 %v3365, %v3369
    %s3371 = scalar_lea.vmem %s1, 24
    %v3372 = vld [vmem:[%s3371] sm:$0xff]
    %vm3373 = vcmp.ne.f32.partialorder %v3372, 0.0
    %s3374 = scalar_lea.vmem %s1, 32
    %v3375 = vld [vmem:[%s3374] sm:$0xff]
    %vm3376 = vcmp.ne.f32.partialorder %v3375, 0.0
    %v3377 = vsel %vm3373, %v3307, %v2727
    %v3378 = vsel %vm3373, %v3305, %v2728
    %v3379 = vsel %vm3376, %v3370, %v2729
    %v3380 = vsel %vm3376, %v3368, %v2730
    %v3381 = vsel %vm3373, %v3307, 0.0
    %s3382 = scalar_lea.vmem [#allocation3], 48
    %3383 = vst [vmem:[%s3382] sm:$0xff] %v3381
    %v3384 = vsel %vm3376, %v3370, 0.0
    %s3385 = scalar_lea.vmem [#allocation3], 64
    %3386 = vst [vmem:[%s3385 + $0x8] sm:$0xff] %v3384
    %v3387 = vld [vmem:[%s2991] sm:$0xff]
    %v3388 = vld [vmem:[%s2991 + $0x8] sm:$0xff]
    %v3389 = vld [vmem:[%s2991 + $0x10] sm:$0xff]
    %v3390 = vld [vmem:[%s2991 + $0x18] sm:$0xff]
    %v3391 = vpack.c.bf16 %v3377, %v3377
    %v3392 = vld [vmem:[#allocation4] sm:$0xff]
    %v3393 = vld [vmem:[#allocation4 + $0x8] sm:$0xff]
    %v3394 = vld [vmem:[#allocation4 + $0x10] sm:$0xff]
    %v3395 = vld [vmem:[#allocation4 + $0x18] sm:$0xff]
    %v3396 = vld [vmem:[#allocation4 + $0x20] sm:$0xff]
    %v3397 = vld [vmem:[#allocation4 + $0x28] sm:$0xff]
    %v3398 = vld [vmem:[#allocation4 + $0x30] sm:$0xff]
    %v3399 = vld [vmem:[#allocation4 + $0x38] sm:$0xff]
    %v3400 = vld [vmem:[#allocation4 + $0x40] sm:$0xff]
    %v3401 = vld [vmem:[#allocation4 + $0x48] sm:$0xff]
    %v3402 = vld [vmem:[#allocation4 + $0x50] sm:$0xff]
    %v3403 = vld [vmem:[#allocation4 + $0x58] sm:$0xff]
    %v3404 = vld [vmem:[#allocation4 + $0x60] sm:$0xff]
    %v3405 = vld [vmem:[#allocation4 + $0x68] sm:$0xff]
    %v3406 = vld [vmem:[#allocation4 + $0x70] sm:$0xff]
    %v3407 = vld [vmem:[#allocation4 + $0x78] sm:$0xff]
    %v3408 = vld [vmem:[#allocation4 + $0x80] sm:$0xff]
    %v3409 = vld [vmem:[#allocation4 + $0x88] sm:$0xff]
    %v3410 = vld [vmem:[#allocation4 + $0x90] sm:$0xff]
    %v3411 = vld [vmem:[#allocation4 + $0x98] sm:$0xff]
    %v3412 = vld [vmem:[#allocation4 + $0xa0] sm:$0xff]
    %v3413 = vld [vmem:[#allocation4 + $0xa8] sm:$0xff]
    %v3414 = vld [vmem:[#allocation4 + $0xb0] sm:$0xff]
    %v3415 = vld [vmem:[#allocation4 + $0xb8] sm:$0xff]
    %v3416 = vld [vmem:[#allocation4 + $0xc0] sm:$0xff]
    %v3417 = vld [vmem:[#allocation4 + $0xc8] sm:$0xff]
    %v3418 = vld [vmem:[#allocation4 + $0xd0] sm:$0xff]
    %v3419 = vld [vmem:[#allocation4 + $0xd8] sm:$0xff]
    %v3420 = vld [vmem:[#allocation4 + $0xe0] sm:$0xff]
    %v3421 = vld [vmem:[#allocation4 + $0xe8] sm:$0xff]
    %v3422 = vld [vmem:[#allocation4 + $0xf0] sm:$0xff]
    %v3423 = vld [vmem:[#allocation4 + $0xf8] sm:$0xff]
    %v3456 = vunpack.c.l.b16 %v3392
    %v3457 = vunpack.c.h.b16 %v3392
    %v3458 = vunpack.c.l.b16 %v3393
    %v3459 = vunpack.c.h.b16 %v3393
    %v3460 = vunpack.c.l.b16 %v3394
    %v3461 = vunpack.c.h.b16 %v3394
    %v3462 = vunpack.c.l.b16 %v3395
    %v3463 = vunpack.c.h.b16 %v3395
    %v3464 = vunpack.c.l.b16 %v3396
    %v3465 = vunpack.c.h.b16 %v3396
    %v3466 = vunpack.c.l.b16 %v3397
    %v3467 = vunpack.c.h.b16 %v3397
    %v3468 = vunpack.c.l.b16 %v3398
    %v3469 = vunpack.c.h.b16 %v3398
    %v3470 = vunpack.c.l.b16 %v3399
    %v3471 = vunpack.c.h.b16 %v3399
    %v3472 = vunpack.c.l.b16 %v3400
    %v3473 = vunpack.c.h.b16 %v3400
    %v3474 = vunpack.c.l.b16 %v3401
    %v3475 = vunpack.c.h.b16 %v3401
    %v3476 = vunpack.c.l.b16 %v3402
    %v3477 = vunpack.c.h.b16 %v3402
    %v3478 = vunpack.c.l.b16 %v3403
    %v3479 = vunpack.c.h.b16 %v3403
    %v3480 = vunpack.c.l.b16 %v3404
    %v3481 = vunpack.c.h.b16 %v3404
    %v3482 = vunpack.c.l.b16 %v3405
    %v3483 = vunpack.c.h.b16 %v3405
    %v3484 = vunpack.c.l.b16 %v3406
    %v3485 = vunpack.c.h.b16 %v3406
    %v3486 = vunpack.c.l.b16 %v3407
    %v3487 = vunpack.c.h.b16 %v3407
    %v3488 = vunpack.c.l.b16 %v3408
    %v3489 = vunpack.c.h.b16 %v3408
    %v3490 = vunpack.c.l.b16 %v3409
    %v3491 = vunpack.c.h.b16 %v3409
    %v3492 = vunpack.c.l.b16 %v3410
    %v3493 = vunpack.c.h.b16 %v3410
    %v3494 = vunpack.c.l.b16 %v3411
    %v3495 = vunpack.c.h.b16 %v3411
    %v3496 = vunpack.c.l.b16 %v3412
    %v3497 = vunpack.c.h.b16 %v3412
    %v3498 = vunpack.c.l.b16 %v3413
    %v3499 = vunpack.c.h.b16 %v3413
    %v3500 = vunpack.c.l.b16 %v3414
    %v3501 = vunpack.c.h.b16 %v3414
    %v3502 = vunpack.c.l.b16 %v3415
    %v3503 = vunpack.c.h.b16 %v3415
    %v3504 = vunpack.c.l.b16 %v3416
    %v3505 = vunpack.c.h.b16 %v3416
    %v3506 = vunpack.c.l.b16 %v3417
    %v3507 = vunpack.c.h.b16 %v3417
    %v3508 = vunpack.c.l.b16 %v3418
    %v3509 = vunpack.c.h.b16 %v3418
    %v3510 = vunpack.c.l.b16 %v3419
    %v3511 = vunpack.c.h.b16 %v3419
    %v3512 = vunpack.c.l.b16 %v3420
    %v3513 = vunpack.c.h.b16 %v3420
    %v3514 = vunpack.c.l.b16 %v3421
    %v3515 = vunpack.c.h.b16 %v3421
    %v3516 = vunpack.c.l.b16 %v3422
    %v3517 = vunpack.c.h.b16 %v3422
    %v3518 = vunpack.c.l.b16 %v3423
    %v3519 = vunpack.c.h.b16 %v3423
    %v3520 = vpack.c.b16 %v3460, %v3456
    %v3521 = vpack.c.b16 %v3461, %v3457
    %v3522 = vpack.c.b16 %v3462, %v3458
    %v3523 = vpack.c.b16 %v3463, %v3459
    %v3524 = vpack.c.b16 %v3468, %v3464
    %v3525 = vpack.c.b16 %v3469, %v3465
    %v3526 = vpack.c.b16 %v3470, %v3466
    %v3527 = vpack.c.b16 %v3471, %v3467
    %v3528 = vpack.c.b16 %v3476, %v3472
    %v3529 = vpack.c.b16 %v3477, %v3473
    %v3530 = vpack.c.b16 %v3478, %v3474
    %v3531 = vpack.c.b16 %v3479, %v3475
    %v3532 = vpack.c.b16 %v3484, %v3480
    %v3533 = vpack.c.b16 %v3485, %v3481
    %v3534 = vpack.c.b16 %v3486, %v3482
    %v3535 = vpack.c.b16 %v3487, %v3483
    %v3536 = vpack.c.b16 %v3492, %v3488
    %v3537 = vpack.c.b16 %v3493, %v3489
    %v3538 = vpack.c.b16 %v3494, %v3490
    %v3539 = vpack.c.b16 %v3495, %v3491
    %v3540 = vpack.c.b16 %v3500, %v3496
    %v3541 = vpack.c.b16 %v3501, %v3497
    %v3542 = vpack.c.b16 %v3502, %v3498
    %v3543 = vpack.c.b16 %v3503, %v3499
    %v3544 = vpack.c.b16 %v3508, %v3504
    %v3545 = vpack.c.b16 %v3509, %v3505
    %v3546 = vpack.c.b16 %v3510, %v3506
    %v3547 = vpack.c.b16 %v3511, %v3507
    %v3548 = vpack.c.b16 %v3516, %v3512
    %v3549 = vpack.c.b16 %v3517, %v3513
    %v3550 = vpack.c.b16 %v3518, %v3514
    %v3551 = vpack.c.b16 %v3519, %v3515
    %3584 = vmatpush.bf16.msra.mxu0 %v3548
    %3585 = vmatpush.bf16.msra.mxu0 %v3544
    %3586 = vmatpush.bf16.msra.mxu0 %v3540
    %3587 = vmatpush.bf16.msra.mxu0 %v3536
    %3588 = vmatpush.bf16.msra.mxu0 %v3532
    %3589 = vmatpush.bf16.msra.mxu0 %v3528
    %3590 = vmatpush.bf16.msra.mxu0 %v3524
    %3591 = vmatpush.bf16.msra.mxu0 %v3520
    %3592 = vmatmul.bf16.gmra.mxu0 %v3391
    %v3593 = vpop.f32.mrf.mxu0
    %v3594 = vadd.f32 0.0, %v3593
    %v3595 = vpop.f32.mrf.mxu0
    %3596 = vdwg.mxu0
    %3597 = vmatpush.bf16.msra.mxu0 %v3549
    %3598 = vmatpush.bf16.msra.mxu0 %v3545
    %3599 = vmatpush.bf16.msra.mxu0 %v3541
    %3600 = vmatpush.bf16.msra.mxu0 %v3537
    %3601 = vmatpush.bf16.msra.mxu0 %v3533
    %3602 = vmatpush.bf16.msra.mxu0 %v3529
    %3603 = vmatpush.bf16.msra.mxu0 %v3525
    %3604 = vmatpush.bf16.msra.mxu0 %v3521
    %3605 = vmatmul.bf16.gmra.mxu0 %v3391
    %v3606 = vpop.f32.mrf.mxu0
    %v3607 = vadd.f32 0.0, %v3606
    %v3608 = vpop.f32.mrf.mxu0
    %3609 = vdwg.mxu0
    %3610 = vmatpush.bf16.msra.mxu0 %v3550
    %3611 = vmatpush.bf16.msra.mxu0 %v3546
    %3612 = vmatpush.bf16.msra.mxu0 %v3542
    %3613 = vmatpush.bf16.msra.mxu0 %v3538
    %3614 = vmatpush.bf16.msra.mxu0 %v3534
    %3615 = vmatpush.bf16.msra.mxu0 %v3530
    %3616 = vmatpush.bf16.msra.mxu0 %v3526
    %3617 = vmatpush.bf16.msra.mxu0 %v3522
    %3618 = vmatmul.bf16.gmra.mxu0 %v3391
    %v3619 = vpop.f32.mrf.mxu0
    %v3620 = vadd.f32 0.0, %v3619
    %v3621 = vpop.f32.mrf.mxu0
    %3622 = vdwg.mxu0
    %3623 = vmatpush.bf16.msra.mxu0 %v3551
    %3624 = vmatpush.bf16.msra.mxu0 %v3547
    %3625 = vmatpush.bf16.msra.mxu0 %v3543
    %3626 = vmatpush.bf16.msra.mxu0 %v3539
    %3627 = vmatpush.bf16.msra.mxu0 %v3535
    %3628 = vmatpush.bf16.msra.mxu0 %v3531
    %3629 = vmatpush.bf16.msra.mxu0 %v3527
    %3630 = vmatpush.bf16.msra.mxu0 %v3523
    %3631 = vmatmul.bf16.gmra.mxu0 %v3391
    %v3632 = vpop.f32.mrf.mxu0
    %v3633 = vadd.f32 0.0, %v3632
    %v3634 = vpop.f32.mrf.mxu0
    %3635 = vdwg.mxu0
    %v3636 = vadd.f32 %v3387, %v3594
    %v3637 = vadd.f32 %v3388, %v3607
    %v3638 = vadd.f32 %v3389, %v3620
    %v3639 = vadd.f32 %v3390, %v3633
    %v3640 = vld [vmem:[%s2737 + $0x20] sm:$0xff]
    %v3641 = vld [vmem:[%s2737 + $0x28] sm:$0xff]
    %v3642 = vld [vmem:[%s2737 + $0x30] sm:$0xff]
    %v3643 = vld [vmem:[%s2737 + $0x38] sm:$0xff]
    %v3644 = vpack.c.bf16 %v3379, %v3379
    %v3645 = vld [vmem:[%s1050] sm:$0xff]
    %v3646 = vld [vmem:[%s1050 + $0x8] sm:$0xff]
    %v3647 = vld [vmem:[%s1050 + $0x10] sm:$0xff]
    %v3648 = vld [vmem:[%s1050 + $0x18] sm:$0xff]
    %v3649 = vld [vmem:[%s1050 + $0x20] sm:$0xff]
    %v3650 = vld [vmem:[%s1050 + $0x28] sm:$0xff]
    %v3651 = vld [vmem:[%s1050 + $0x30] sm:$0xff]
    %v3652 = vld [vmem:[%s1050 + $0x38] sm:$0xff]
    %v3653 = vld [vmem:[%s1050 + $0x40] sm:$0xff]
    %v3654 = vld [vmem:[%s1050 + $0x48] sm:$0xff]
    %v3655 = vld [vmem:[%s1050 + $0x50] sm:$0xff]
    %v3656 = vld [vmem:[%s1050 + $0x58] sm:$0xff]
    %v3657 = vld [vmem:[%s1050 + $0x60] sm:$0xff]
    %v3658 = vld [vmem:[%s1050 + $0x68] sm:$0xff]
    %v3659 = vld [vmem:[%s1050 + $0x70] sm:$0xff]
    %v3660 = vld [vmem:[%s1050 + $0x78] sm:$0xff]
    %v3661 = vld [vmem:[%s1050 + $0x80] sm:$0xff]
    %v3662 = vld [vmem:[%s1050 + $0x88] sm:$0xff]
    %v3663 = vld [vmem:[%s1050 + $0x90] sm:$0xff]
    %v3664 = vld [vmem:[%s1050 + $0x98] sm:$0xff]
    %v3665 = vld [vmem:[%s1050 + $0xa0] sm:$0xff]
    %v3666 = vld [vmem:[%s1050 + $0xa8] sm:$0xff]
    %v3667 = vld [vmem:[%s1050 + $0xb0] sm:$0xff]
    %v3668 = vld [vmem:[%s1050 + $0xb8] sm:$0xff]
    %v3669 = vld [vmem:[%s1050 + $0xc0] sm:$0xff]
    %v3670 = vld [vmem:[%s1050 + $0xc8] sm:$0xff]
    %v3671 = vld [vmem:[%s1050 + $0xd0] sm:$0xff]
    %v3672 = vld [vmem:[%s1050 + $0xd8] sm:$0xff]
    %v3673 = vld [vmem:[%s1050 + $0xe0] sm:$0xff]
    %v3674 = vld [vmem:[%s1050 + $0xe8] sm:$0xff]
    %v3675 = vld [vmem:[%s1050 + $0xf0] sm:$0xff]
    %v3676 = vld [vmem:[%s1050 + $0xf8] sm:$0xff]
    %v3709 = vunpack.c.l.b16 %v3645
    %v3710 = vunpack.c.h.b16 %v3645
    %v3711 = vunpack.c.l.b16 %v3646
    %v3712 = vunpack.c.h.b16 %v3646
    %v3713 = vunpack.c.l.b16 %v3647
    %v3714 = vunpack.c.h.b16 %v3647
    %v3715 = vunpack.c.l.b16 %v3648
    %v3716 = vunpack.c.h.b16 %v3648
    %v3717 = vunpack.c.l.b16 %v3649
    %v3718 = vunpack.c.h.b16 %v3649
    %v3719 = vunpack.c.l.b16 %v3650
    %v3720 = vunpack.c.h.b16 %v3650
    %v3721 = vunpack.c.l.b16 %v3651
    %v3722 = vunpack.c.h.b16 %v3651
    %v3723 = vunpack.c.l.b16 %v3652
    %v3724 = vunpack.c.h.b16 %v3652
    %v3725 = vunpack.c.l.b16 %v3653
    %v3726 = vunpack.c.h.b16 %v3653
    %v3727 = vunpack.c.l.b16 %v3654
    %v3728 = vunpack.c.h.b16 %v3654
    %v3729 = vunpack.c.l.b16 %v3655
    %v3730 = vunpack.c.h.b16 %v3655
    %v3731 = vunpack.c.l.b16 %v3656
    %v3732 = vunpack.c.h.b16 %v3656
    %v3733 = vunpack.c.l.b16 %v3657
    %v3734 = vunpack.c.h.b16 %v3657
    %v3735 = vunpack.c.l.b16 %v3658
    %v3736 = vunpack.c.h.b16 %v3658
    %v3737 = vunpack.c.l.b16 %v3659
    %v3738 = vunpack.c.h.b16 %v3659
    %v3739 = vunpack.c.l.b16 %v3660
    %v3740 = vunpack.c.h.b16 %v3660
    %v3741 = vunpack.c.l.b16 %v3661
    %v3742 = vunpack.c.h.b16 %v3661
    %v3743 = vunpack.c.l.b16 %v3662
    %v3744 = vunpack.c.h.b16 %v3662
    %v3745 = vunpack.c.l.b16 %v3663
    %v3746 = vunpack.c.h.b16 %v3663
    %v3747 = vunpack.c.l.b16 %v3664
    %v3748 = vunpack.c.h.b16 %v3664
    %v3749 = vunpack.c.l.b16 %v3665
    %v3750 = vunpack.c.h.b16 %v3665
    %v3751 = vunpack.c.l.b16 %v3666
    %v3752 = vunpack.c.h.b16 %v3666
    %v3753 = vunpack.c.l.b16 %v3667
    %v3754 = vunpack.c.h.b16 %v3667
    %v3755 = vunpack.c.l.b16 %v3668
    %v3756 = vunpack.c.h.b16 %v3668
    %v3757 = vunpack.c.l.b16 %v3669
    %v3758 = vunpack.c.h.b16 %v3669
    %v3759 = vunpack.c.l.b16 %v3670
    %v3760 = vunpack.c.h.b16 %v3670
    %v3761 = vunpack.c.l.b16 %v3671
    %v3762 = vunpack.c.h.b16 %v3671
    %v3763 = vunpack.c.l.b16 %v3672
    %v3764 = vunpack.c.h.b16 %v3672
    %v3765 = vunpack.c.l.b16 %v3673
    %v3766 = vunpack.c.h.b16 %v3673
    %v3767 = vunpack.c.l.b16 %v3674
    %v3768 = vunpack.c.h.b16 %v3674
    %v3769 = vunpack.c.l.b16 %v3675
    %v3770 = vunpack.c.h.b16 %v3675
    %v3771 = vunpack.c.l.b16 %v3676
    %v3772 = vunpack.c.h.b16 %v3676
    %v3773 = vpack.c.b16 %v3713, %v3709
    %v3774 = vpack.c.b16 %v3714, %v3710
    %v3775 = vpack.c.b16 %v3715, %v3711
    %v3776 = vpack.c.b16 %v3716, %v3712
    %v3777 = vpack.c.b16 %v3721, %v3717
    %v3778 = vpack.c.b16 %v3722, %v3718
    %v3779 = vpack.c.b16 %v3723, %v3719
    %v3780 = vpack.c.b16 %v3724, %v3720
    %v3781 = vpack.c.b16 %v3729, %v3725
    %v3782 = vpack.c.b16 %v3730, %v3726
    %v3783 = vpack.c.b16 %v3731, %v3727
    %v3784 = vpack.c.b16 %v3732, %v3728
    %v3785 = vpack.c.b16 %v3737, %v3733
    %v3786 = vpack.c.b16 %v3738, %v3734
    %v3787 = vpack.c.b16 %v3739, %v3735
    %v3788 = vpack.c.b16 %v3740, %v3736
    %v3789 = vpack.c.b16 %v3745, %v3741
    %v3790 = vpack.c.b16 %v3746, %v3742
    %v3791 = vpack.c.b16 %v3747, %v3743
    %v3792 = vpack.c.b16 %v3748, %v3744
    %v3793 = vpack.c.b16 %v3753, %v3749
    %v3794 = vpack.c.b16 %v3754, %v3750
    %v3795 = vpack.c.b16 %v3755, %v3751
    %v3796 = vpack.c.b16 %v3756, %v3752
    %v3797 = vpack.c.b16 %v3761, %v3757
    %v3798 = vpack.c.b16 %v3762, %v3758
    %v3799 = vpack.c.b16 %v3763, %v3759
    %v3800 = vpack.c.b16 %v3764, %v3760
    %v3801 = vpack.c.b16 %v3769, %v3765
    %v3802 = vpack.c.b16 %v3770, %v3766
    %v3803 = vpack.c.b16 %v3771, %v3767
    %v3804 = vpack.c.b16 %v3772, %v3768
    %3837 = vmatpush.bf16.msra.mxu0 %v3801
    %3838 = vmatpush.bf16.msra.mxu0 %v3797
    %3839 = vmatpush.bf16.msra.mxu0 %v3793
    %3840 = vmatpush.bf16.msra.mxu0 %v3789
    %3841 = vmatpush.bf16.msra.mxu0 %v3785
    %3842 = vmatpush.bf16.msra.mxu0 %v3781
    %3843 = vmatpush.bf16.msra.mxu0 %v3777
    %3844 = vmatpush.bf16.msra.mxu0 %v3773
    %3845 = vmatmul.bf16.gmra.mxu0 %v3644
    %v3846 = vpop.f32.mrf.mxu0
    %v3847 = vadd.f32 0.0, %v3846
    %v3848 = vpop.f32.mrf.mxu0
    %3849 = vdwg.mxu0
    %3850 = vmatpush.bf16.msra.mxu0 %v3802
    %3851 = vmatpush.bf16.msra.mxu0 %v3798
    %3852 = vmatpush.bf16.msra.mxu0 %v3794
    %3853 = vmatpush.bf16.msra.mxu0 %v3790
    %3854 = vmatpush.bf16.msra.mxu0 %v3786
    %3855 = vmatpush.bf16.msra.mxu0 %v3782
    %3856 = vmatpush.bf16.msra.mxu0 %v3778
    %3857 = vmatpush.bf16.msra.mxu0 %v3774
    %3858 = vmatmul.bf16.gmra.mxu0 %v3644
    %v3859 = vpop.f32.mrf.mxu0
    %v3860 = vadd.f32 0.0, %v3859
    %v3861 = vpop.f32.mrf.mxu0
    %3862 = vdwg.mxu0
    %3863 = vmatpush.bf16.msra.mxu0 %v3803
    %3864 = vmatpush.bf16.msra.mxu0 %v3799
    %3865 = vmatpush.bf16.msra.mxu0 %v3795
    %3866 = vmatpush.bf16.msra.mxu0 %v3791
    %3867 = vmatpush.bf16.msra.mxu0 %v3787
    %3868 = vmatpush.bf16.msra.mxu0 %v3783
    %3869 = vmatpush.bf16.msra.mxu0 %v3779
    %3870 = vmatpush.bf16.msra.mxu0 %v3775
    %3871 = vmatmul.bf16.gmra.mxu0 %v3644
    %v3872 = vpop.f32.mrf.mxu0
    %v3873 = vadd.f32 0.0, %v3872
    %v3874 = vpop.f32.mrf.mxu0
    %3875 = vdwg.mxu0
    %3876 = vmatpush.bf16.msra.mxu0 %v3804
    %3877 = vmatpush.bf16.msra.mxu0 %v3800
    %3878 = vmatpush.bf16.msra.mxu0 %v3796
    %3879 = vmatpush.bf16.msra.mxu0 %v3792
    %3880 = vmatpush.bf16.msra.mxu0 %v3788
    %3881 = vmatpush.bf16.msra.mxu0 %v3784
    %3882 = vmatpush.bf16.msra.mxu0 %v3780
    %3883 = vmatpush.bf16.msra.mxu0 %v3776
    %3884 = vmatmul.bf16.gmra.mxu0 %v3644
    %v3885 = vpop.f32.mrf.mxu0
    %v3886 = vadd.f32 0.0, %v3885
    %v3887 = vpop.f32.mrf.mxu0
    %3888 = vdwg.mxu0
    %v3889 = vadd.f32 %v3640, %v3847
    %v3890 = vadd.f32 %v3641, %v3860
    %v3891 = vadd.f32 %v3642, %v3873
    %v3892 = vadd.f32 %v3643, %v3886
    %v3893 = vxor.u32 %v3636, 2147483648
    %v3894 = vmul.f32 %v3893, 1.442695
    %v3895 = vpow.pop %v3894
    %v3896 = vadd.f32 %v3895, 1.0
    %v3897 = vrcp.pop %v3896
    %v3898 = vmul.f32 %v3896, %v3897
    %v3899 = vsub.f32 1.0, %v3898
    %v3900 = vmul.f32 %v3897, %v3899
    %v3901 = vadd.f32 %v3897, %v3900
    %vm3902 = vweird.f32 %v3896
    %vm3903 = vweird.f32 %v3897
    %vm3904 = vmor %vm3902, %vm3903
    %v3905 = vsel %vm3904, %v3897, %v3901
    %v3906 = vand.u32 2147483647, %v3896
    %vm3907 = vcmp.eq.f32.partialorder %v3906, 8.507059e+37
    %v3908 = vand.u32 %v3896, 2147483648
    %v3909 = vor.u32 1.1754944e-38, %v3908
    %v3910 = vsel %vm3907, %v3909, %v3905
    %v3911 = vmul.f32 1.0, %v3910
    %v3912 = vxor.u32 %v3637, 2147483648
    %v3913 = vmul.f32 %v3912, 1.442695
    %v3914 = vpow.pop %v3913
    %v3915 = vadd.f32 %v3914, 1.0
    %v3916 = vrcp.pop %v3915
    %v3917 = vmul.f32 %v3915, %v3916
    %v3918 = vsub.f32 1.0, %v3917
    %v3919 = vmul.f32 %v3916, %v3918
    %v3920 = vadd.f32 %v3916, %v3919
    %vm3921 = vweird.f32 %v3915
    %vm3922 = vweird.f32 %v3916
    %vm3923 = vmor %vm3921, %vm3922
    %v3924 = vsel %vm3923, %v3916, %v3920
    %v3925 = vand.u32 2147483647, %v3915
    %vm3926 = vcmp.eq.f32.partialorder %v3925, 8.507059e+37
    %v3927 = vand.u32 %v3915, 2147483648
    %v3928 = vor.u32 1.1754944e-38, %v3927
    %v3929 = vsel %vm3926, %v3928, %v3924
    %v3930 = vmul.f32 1.0, %v3929
    %v3931 = vtanh.pop %v3638
    %v3932 = vxor.u32 %v3639, 2147483648
    %v3933 = vmul.f32 %v3932, 1.442695
    %v3934 = vpow.pop %v3933
    %v3935 = vadd.f32 %v3934, 1.0
    %v3936 = vrcp.pop %v3935
    %v3937 = vmul.f32 %v3935, %v3936
    %v3938 = vsub.f32 1.0, %v3937
    %v3939 = vmul.f32 %v3936, %v3938
    %v3940 = vadd.f32 %v3936, %v3939
    %vm3941 = vweird.f32 %v3935
    %vm3942 = vweird.f32 %v3936
    %vm3943 = vmor %vm3941, %vm3942
    %v3944 = vsel %vm3943, %v3936, %v3940
    %v3945 = vand.u32 2147483647, %v3935
    %vm3946 = vcmp.eq.f32.partialorder %v3945, 8.507059e+37
    %v3947 = vand.u32 %v3935, 2147483648
    %v3948 = vor.u32 1.1754944e-38, %v3947
    %v3949 = vsel %vm3946, %v3948, %v3944
    %v3950 = vmul.f32 1.0, %v3949
    %v3951 = vmul.f32 %v3930, %v3378
    %v3952 = vmul.f32 %v3911, %v3931
    %v3953 = vadd.f32 %v3951, %v3952
    %v3954 = vtanh.pop %v3953
    %v3955 = vmul.f32 %v3950, %v3954
    %v3956 = vxor.u32 %v3889, 2147483648
    %v3957 = vmul.f32 %v3956, 1.442695
    %v3958 = vpow.pop %v3957
    %v3959 = vadd.f32 %v3958, 1.0
    %v3960 = vrcp.pop %v3959
    %v3961 = vmul.f32 %v3959, %v3960
    %v3962 = vsub.f32 1.0, %v3961
    %v3963 = vmul.f32 %v3960, %v3962
    %v3964 = vadd.f32 %v3960, %v3963
    %vm3965 = vweird.f32 %v3959
    %vm3966 = vweird.f32 %v3960
    %vm3967 = vmor %vm3965, %vm3966
    %v3968 = vsel %vm3967, %v3960, %v3964
    %v3969 = vand.u32 2147483647, %v3959
    %vm3970 = vcmp.eq.f32.partialorder %v3969, 8.507059e+37
    %v3971 = vand.u32 %v3959, 2147483648
    %v3972 = vor.u32 1.1754944e-38, %v3971
    %v3973 = vsel %vm3970, %v3972, %v3968
    %v3974 = vmul.f32 1.0, %v3973
    %v3975 = vxor.u32 %v3890, 2147483648
    %v3976 = vmul.f32 %v3975, 1.442695
    %v3977 = vpow.pop %v3976
    %v3978 = vadd.f32 %v3977, 1.0
    %v3979 = vrcp.pop %v3978
    %v3980 = vmul.f32 %v3978, %v3979
    %v3981 = vsub.f32 1.0, %v3980
    %v3982 = vmul.f32 %v3979, %v3981
    %v3983 = vadd.f32 %v3979, %v3982
    %vm3984 = vweird.f32 %v3978
    %vm3985 = vweird.f32 %v3979
    %vm3986 = vmor %vm3984, %vm3985
    %v3987 = vsel %vm3986, %v3979, %v3983
    %v3988 = vand.u32 2147483647, %v3978
    %vm3989 = vcmp.eq.f32.partialorder %v3988, 8.507059e+37
    %v3990 = vand.u32 %v3978, 2147483648
    %v3991 = vor.u32 1.1754944e-38, %v3990
    %v3992 = vsel %vm3989, %v3991, %v3987
    %v3993 = vmul.f32 1.0, %v3992
    %v3994 = vtanh.pop %v3891
    %v3995 = vxor.u32 %v3892, 2147483648
    %v3996 = vmul.f32 %v3995, 1.442695
    %v3997 = vpow.pop %v3996
    %v3998 = vadd.f32 %v3997, 1.0
    %v3999 = vrcp.pop %v3998
    %v4000 = vmul.f32 %v3998, %v3999
    %v4001 = vsub.f32 1.0, %v4000
    %v4002 = vmul.f32 %v3999, %v4001
    %v4003 = vadd.f32 %v3999, %v4002
    %vm4004 = vweird.f32 %v3998
    %vm4005 = vweird.f32 %v3999
    %vm4006 = vmor %vm4004, %vm4005
    %v4007 = vsel %vm4006, %v3999, %v4003
    %v4008 = vand.u32 2147483647, %v3998
    %vm4009 = vcmp.eq.f32.partialorder %v4008, 8.507059e+37
    %v4010 = vand.u32 %v3998, 2147483648
    %v4011 = vor.u32 1.1754944e-38, %v4010
    %v4012 = vsel %vm4009, %v4011, %v4007
    %v4013 = vmul.f32 1.0, %v4012
    %v4014 = vmul.f32 %v3993, %v3380
    %v4015 = vmul.f32 %v3974, %v3994
    %v4016 = vadd.f32 %v4014, %v4015
    %v4017 = vtanh.pop %v4016
    %v4018 = vmul.f32 %v4013, %v4017
    %v4019 = vld [vmem:[%s3374] sm:$0xff]
    %vm4020 = vcmp.ne.f32.partialorder %v4019, 0.0
    %v4021 = vld [vmem:[%s3371] sm:$0xff]
    %vm4022 = vcmp.ne.f32.partialorder %v4021, 0.0
    %v4023 = vsel %vm4020, %v3955, %v3377
    %v4024 = vsel %vm4020, %v3953, %v3378
    %v4025 = vsel %vm4022, %v4018, %v3379
    %v4026 = vsel %vm4022, %v4016, %v3380
    %v4027 = vsel %vm4020, %v3955, 0.0
    %4028 = vst [vmem:[%s3385] sm:$0xff] %v4027
    %v4029 = vsel %vm4022, %v4018, 0.0
    %4030 = vst [vmem:[%s3382 + $0x8] sm:$0xff] %v4029
    %v4031 = vld [vmem:[%s2341] sm:$0xff]
    %v4032 = vld [vmem:[%s2341 + $0x8] sm:$0xff]
    %v4033 = vld [vmem:[%s2341 + $0x10] sm:$0xff]
    %v4034 = vld [vmem:[%s2341 + $0x18] sm:$0xff]
    %v4035 = vpack.c.bf16 %v4023, %v4023
    %v4036 = vld [vmem:[#allocation4] sm:$0xff]
    %v4037 = vld [vmem:[#allocation4 + $0x8] sm:$0xff]
    %v4038 = vld [vmem:[#allocation4 + $0x10] sm:$0xff]
    %v4039 = vld [vmem:[#allocation4 + $0x18] sm:$0xff]
    %v4040 = vld [vmem:[#allocation4 + $0x20] sm:$0xff]
    %v4041 = vld [vmem:[#allocation4 + $0x28] sm:$0xff]
    %v4042 = vld [vmem:[#allocation4 + $0x30] sm:$0xff]
    %v4043 = vld [vmem:[#allocation4 + $0x38] sm:$0xff]
    %v4044 = vld [vmem:[#allocation4 + $0x40] sm:$0xff]
    %v4045 = vld [vmem:[#allocation4 + $0x48] sm:$0xff]
    %v4046 = vld [vmem:[#allocation4 + $0x50] sm:$0xff]
    %v4047 = vld [vmem:[#allocation4 + $0x58] sm:$0xff]
    %v4048 = vld [vmem:[#allocation4 + $0x60] sm:$0xff]
    %v4049 = vld [vmem:[#allocation4 + $0x68] sm:$0xff]
    %v4050 = vld [vmem:[#allocation4 + $0x70] sm:$0xff]
    %v4051 = vld [vmem:[#allocation4 + $0x78] sm:$0xff]
    %v4052 = vld [vmem:[#allocation4 + $0x80] sm:$0xff]
    %v4053 = vld [vmem:[#allocation4 + $0x88] sm:$0xff]
    %v4054 = vld [vmem:[#allocation4 + $0x90] sm:$0xff]
    %v4055 = vld [vmem:[#allocation4 + $0x98] sm:$0xff]
    %v4056 = vld [vmem:[#allocation4 + $0xa0] sm:$0xff]
    %v4057 = vld [vmem:[#allocation4 + $0xa8] sm:$0xff]
    %v4058 = vld [vmem:[#allocation4 + $0xb0] sm:$0xff]
    %v4059 = vld [vmem:[#allocation4 + $0xb8] sm:$0xff]
    %v4060 = vld [vmem:[#allocation4 + $0xc0] sm:$0xff]
    %v4061 = vld [vmem:[#allocation4 + $0xc8] sm:$0xff]
    %v4062 = vld [vmem:[#allocation4 + $0xd0] sm:$0xff]
    %v4063 = vld [vmem:[#allocation4 + $0xd8] sm:$0xff]
    %v4064 = vld [vmem:[#allocation4 + $0xe0] sm:$0xff]
    %v4065 = vld [vmem:[#allocation4 + $0xe8] sm:$0xff]
    %v4066 = vld [vmem:[#allocation4 + $0xf0] sm:$0xff]
    %v4067 = vld [vmem:[#allocation4 + $0xf8] sm:$0xff]
    %v4100 = vunpack.c.l.b16 %v4036
    %v4101 = vunpack.c.h.b16 %v4036
    %v4102 = vunpack.c.l.b16 %v4037
    %v4103 = vunpack.c.h.b16 %v4037
    %v4104 = vunpack.c.l.b16 %v4038
    %v4105 = vunpack.c.h.b16 %v4038
    %v4106 = vunpack.c.l.b16 %v4039
    %v4107 = vunpack.c.h.b16 %v4039
    %v4108 = vunpack.c.l.b16 %v4040
    %v4109 = vunpack.c.h.b16 %v4040
    %v4110 = vunpack.c.l.b16 %v4041
    %v4111 = vunpack.c.h.b16 %v4041
    %v4112 = vunpack.c.l.b16 %v4042
    %v4113 = vunpack.c.h.b16 %v4042
    %v4114 = vunpack.c.l.b16 %v4043
    %v4115 = vunpack.c.h.b16 %v4043
    %v4116 = vunpack.c.l.b16 %v4044
    %v4117 = vunpack.c.h.b16 %v4044
    %v4118 = vunpack.c.l.b16 %v4045
    %v4119 = vunpack.c.h.b16 %v4045
    %v4120 = vunpack.c.l.b16 %v4046
    %v4121 = vunpack.c.h.b16 %v4046
    %v4122 = vunpack.c.l.b16 %v4047
    %v4123 = vunpack.c.h.b16 %v4047
    %v4124 = vunpack.c.l.b16 %v4048
    %v4125 = vunpack.c.h.b16 %v4048
    %v4126 = vunpack.c.l.b16 %v4049
    %v4127 = vunpack.c.h.b16 %v4049
    %v4128 = vunpack.c.l.b16 %v4050
    %v4129 = vunpack.c.h.b16 %v4050
    %v4130 = vunpack.c.l.b16 %v4051
    %v4131 = vunpack.c.h.b16 %v4051
    %v4132 = vunpack.c.l.b16 %v4052
    %v4133 = vunpack.c.h.b16 %v4052
    %v4134 = vunpack.c.l.b16 %v4053
    %v4135 = vunpack.c.h.b16 %v4053
    %v4136 = vunpack.c.l.b16 %v4054
    %v4137 = vunpack.c.h.b16 %v4054
    %v4138 = vunpack.c.l.b16 %v4055
    %v4139 = vunpack.c.h.b16 %v4055
    %v4140 = vunpack.c.l.b16 %v4056
    %v4141 = vunpack.c.h.b16 %v4056
    %v4142 = vunpack.c.l.b16 %v4057
    %v4143 = vunpack.c.h.b16 %v4057
    %v4144 = vunpack.c.l.b16 %v4058
    %v4145 = vunpack.c.h.b16 %v4058
    %v4146 = vunpack.c.l.b16 %v4059
    %v4147 = vunpack.c.h.b16 %v4059
    %v4148 = vunpack.c.l.b16 %v4060
    %v4149 = vunpack.c.h.b16 %v4060
    %v4150 = vunpack.c.l.b16 %v4061
    %v4151 = vunpack.c.h.b16 %v4061
    %v4152 = vunpack.c.l.b16 %v4062
    %v4153 = vunpack.c.h.b16 %v4062
    %v4154 = vunpack.c.l.b16 %v4063
    %v4155 = vunpack.c.h.b16 %v4063
    %v4156 = vunpack.c.l.b16 %v4064
    %v4157 = vunpack.c.h.b16 %v4064
    %v4158 = vunpack.c.l.b16 %v4065
    %v4159 = vunpack.c.h.b16 %v4065
    %v4160 = vunpack.c.l.b16 %v4066
    %v4161 = vunpack.c.h.b16 %v4066
    %v4162 = vunpack.c.l.b16 %v4067
    %v4163 = vunpack.c.h.b16 %v4067
    %v4164 = vpack.c.b16 %v4104, %v4100
    %v4165 = vpack.c.b16 %v4105, %v4101
    %v4166 = vpack.c.b16 %v4106, %v4102
    %v4167 = vpack.c.b16 %v4107, %v4103
    %v4168 = vpack.c.b16 %v4112, %v4108
    %v4169 = vpack.c.b16 %v4113, %v4109
    %v4170 = vpack.c.b16 %v4114, %v4110
    %v4171 = vpack.c.b16 %v4115, %v4111
    %v4172 = vpack.c.b16 %v4120, %v4116
    %v4173 = vpack.c.b16 %v4121, %v4117
    %v4174 = vpack.c.b16 %v4122, %v4118
    %v4175 = vpack.c.b16 %v4123, %v4119
    %v4176 = vpack.c.b16 %v4128, %v4124
    %v4177 = vpack.c.b16 %v4129, %v4125
    %v4178 = vpack.c.b16 %v4130, %v4126
    %v4179 = vpack.c.b16 %v4131, %v4127
    %v4180 = vpack.c.b16 %v4136, %v4132
    %v4181 = vpack.c.b16 %v4137, %v4133
    %v4182 = vpack.c.b16 %v4138, %v4134
    %v4183 = vpack.c.b16 %v4139, %v4135
    %v4184 = vpack.c.b16 %v4144, %v4140
    %v4185 = vpack.c.b16 %v4145, %v4141
    %v4186 = vpack.c.b16 %v4146, %v4142
    %v4187 = vpack.c.b16 %v4147, %v4143
    %v4188 = vpack.c.b16 %v4152, %v4148
    %v4189 = vpack.c.b16 %v4153, %v4149
    %v4190 = vpack.c.b16 %v4154, %v4150
    %v4191 = vpack.c.b16 %v4155, %v4151
    %v4192 = vpack.c.b16 %v4160, %v4156
    %v4193 = vpack.c.b16 %v4161, %v4157
    %v4194 = vpack.c.b16 %v4162, %v4158
    %v4195 = vpack.c.b16 %v4163, %v4159
    %4228 = vmatpush.bf16.msra.mxu0 %v4192
    %4229 = vmatpush.bf16.msra.mxu0 %v4188
    %4230 = vmatpush.bf16.msra.mxu0 %v4184
    %4231 = vmatpush.bf16.msra.mxu0 %v4180
    %4232 = vmatpush.bf16.msra.mxu0 %v4176
    %4233 = vmatpush.bf16.msra.mxu0 %v4172
    %4234 = vmatpush.bf16.msra.mxu0 %v4168
    %4235 = vmatpush.bf16.msra.mxu0 %v4164
    %4236 = vmatmul.bf16.gmra.mxu0 %v4035
    %v4237 = vpop.f32.mrf.mxu0
    %v4238 = vadd.f32 0.0, %v4237
    %v4239 = vpop.f32.mrf.mxu0
    %4240 = vdwg.mxu0
    %4241 = vmatpush.bf16.msra.mxu0 %v4193
    %4242 = vmatpush.bf16.msra.mxu0 %v4189
    %4243 = vmatpush.bf16.msra.mxu0 %v4185
    %4244 = vmatpush.bf16.msra.mxu0 %v4181
    %4245 = vmatpush.bf16.msra.mxu0 %v4177
    %4246 = vmatpush.bf16.msra.mxu0 %v4173
    %4247 = vmatpush.bf16.msra.mxu0 %v4169
    %4248 = vmatpush.bf16.msra.mxu0 %v4165
    %4249 = vmatmul.bf16.gmra.mxu0 %v4035
    %v4250 = vpop.f32.mrf.mxu0
    %v4251 = vadd.f32 0.0, %v4250
    %v4252 = vpop.f32.mrf.mxu0
    %4253 = vdwg.mxu0
    %4254 = vmatpush.bf16.msra.mxu0 %v4194
    %4255 = vmatpush.bf16.msra.mxu0 %v4190
    %4256 = vmatpush.bf16.msra.mxu0 %v4186
    %4257 = vmatpush.bf16.msra.mxu0 %v4182
    %4258 = vmatpush.bf16.msra.mxu0 %v4178
    %4259 = vmatpush.bf16.msra.mxu0 %v4174
    %4260 = vmatpush.bf16.msra.mxu0 %v4170
    %4261 = vmatpush.bf16.msra.mxu0 %v4166
    %4262 = vmatmul.bf16.gmra.mxu0 %v4035
    %v4263 = vpop.f32.mrf.mxu0
    %v4264 = vadd.f32 0.0, %v4263
    %v4265 = vpop.f32.mrf.mxu0
    %4266 = vdwg.mxu0
    %4267 = vmatpush.bf16.msra.mxu0 %v4195
    %4268 = vmatpush.bf16.msra.mxu0 %v4191
    %4269 = vmatpush.bf16.msra.mxu0 %v4187
    %4270 = vmatpush.bf16.msra.mxu0 %v4183
    %4271 = vmatpush.bf16.msra.mxu0 %v4179
    %4272 = vmatpush.bf16.msra.mxu0 %v4175
    %4273 = vmatpush.bf16.msra.mxu0 %v4171
    %4274 = vmatpush.bf16.msra.mxu0 %v4167
    %4275 = vmatmul.bf16.gmra.mxu0 %v4035
    %v4276 = vpop.f32.mrf.mxu0
    %v4277 = vadd.f32 0.0, %v4276
    %v4278 = vpop.f32.mrf.mxu0
    %4279 = vdwg.mxu0
    %v4280 = vadd.f32 %v4031, %v4238
    %v4281 = vadd.f32 %v4032, %v4251
    %v4282 = vadd.f32 %v4033, %v4264
    %v4283 = vadd.f32 %v4034, %v4277
    %v4284 = vld [vmem:[%s2087 + $0x20] sm:$0xff]
    %v4285 = vld [vmem:[%s2087 + $0x28] sm:$0xff]
    %v4286 = vld [vmem:[%s2087 + $0x30] sm:$0xff]
    %v4287 = vld [vmem:[%s2087 + $0x38] sm:$0xff]
    %v4288 = vpack.c.bf16 %v4025, %v4025
    %v4289 = vld [vmem:[%s1050] sm:$0xff]
    %v4290 = vld [vmem:[%s1050 + $0x8] sm:$0xff]
    %v4291 = vld [vmem:[%s1050 + $0x10] sm:$0xff]
    %v4292 = vld [vmem:[%s1050 + $0x18] sm:$0xff]
    %v4293 = vld [vmem:[%s1050 + $0x20] sm:$0xff]
    %v4294 = vld [vmem:[%s1050 + $0x28] sm:$0xff]
    %v4295 = vld [vmem:[%s1050 + $0x30] sm:$0xff]
    %v4296 = vld [vmem:[%s1050 + $0x38] sm:$0xff]
    %v4297 = vld [vmem:[%s1050 + $0x40] sm:$0xff]
    %v4298 = vld [vmem:[%s1050 + $0x48] sm:$0xff]
    %v4299 = vld [vmem:[%s1050 + $0x50] sm:$0xff]
    %v4300 = vld [vmem:[%s1050 + $0x58] sm:$0xff]
    %v4301 = vld [vmem:[%s1050 + $0x60] sm:$0xff]
    %v4302 = vld [vmem:[%s1050 + $0x68] sm:$0xff]
    %v4303 = vld [vmem:[%s1050 + $0x70] sm:$0xff]
    %v4304 = vld [vmem:[%s1050 + $0x78] sm:$0xff]
    %v4305 = vld [vmem:[%s1050 + $0x80] sm:$0xff]
    %v4306 = vld [vmem:[%s1050 + $0x88] sm:$0xff]
    %v4307 = vld [vmem:[%s1050 + $0x90] sm:$0xff]
    %v4308 = vld [vmem:[%s1050 + $0x98] sm:$0xff]
    %v4309 = vld [vmem:[%s1050 + $0xa0] sm:$0xff]
    %v4310 = vld [vmem:[%s1050 + $0xa8] sm:$0xff]
    %v4311 = vld [vmem:[%s1050 + $0xb0] sm:$0xff]
    %v4312 = vld [vmem:[%s1050 + $0xb8] sm:$0xff]
    %v4313 = vld [vmem:[%s1050 + $0xc0] sm:$0xff]
    %v4314 = vld [vmem:[%s1050 + $0xc8] sm:$0xff]
    %v4315 = vld [vmem:[%s1050 + $0xd0] sm:$0xff]
    %v4316 = vld [vmem:[%s1050 + $0xd8] sm:$0xff]
    %v4317 = vld [vmem:[%s1050 + $0xe0] sm:$0xff]
    %v4318 = vld [vmem:[%s1050 + $0xe8] sm:$0xff]
    %v4319 = vld [vmem:[%s1050 + $0xf0] sm:$0xff]
    %v4320 = vld [vmem:[%s1050 + $0xf8] sm:$0xff]
    %v4353 = vunpack.c.l.b16 %v4289
    %v4354 = vunpack.c.h.b16 %v4289
    %v4355 = vunpack.c.l.b16 %v4290
    %v4356 = vunpack.c.h.b16 %v4290
    %v4357 = vunpack.c.l.b16 %v4291
    %v4358 = vunpack.c.h.b16 %v4291
    %v4359 = vunpack.c.l.b16 %v4292
    %v4360 = vunpack.c.h.b16 %v4292
    %v4361 = vunpack.c.l.b16 %v4293
    %v4362 = vunpack.c.h.b16 %v4293
    %v4363 = vunpack.c.l.b16 %v4294
    %v4364 = vunpack.c.h.b16 %v4294
    %v4365 = vunpack.c.l.b16 %v4295
    %v4366 = vunpack.c.h.b16 %v4295
    %v4367 = vunpack.c.l.b16 %v4296
    %v4368 = vunpack.c.h.b16 %v4296
    %v4369 = vunpack.c.l.b16 %v4297
    %v4370 = vunpack.c.h.b16 %v4297
    %v4371 = vunpack.c.l.b16 %v4298
    %v4372 = vunpack.c.h.b16 %v4298
    %v4373 = vunpack.c.l.b16 %v4299
    %v4374 = vunpack.c.h.b16 %v4299
    %v4375 = vunpack.c.l.b16 %v4300
    %v4376 = vunpack.c.h.b16 %v4300
    %v4377 = vunpack.c.l.b16 %v4301
    %v4378 = vunpack.c.h.b16 %v4301
    %v4379 = vunpack.c.l.b16 %v4302
    %v4380 = vunpack.c.h.b16 %v4302
    %v4381 = vunpack.c.l.b16 %v4303
    %v4382 = vunpack.c.h.b16 %v4303
    %v4383 = vunpack.c.l.b16 %v4304
    %v4384 = vunpack.c.h.b16 %v4304
    %v4385 = vunpack.c.l.b16 %v4305
    %v4386 = vunpack.c.h.b16 %v4305
    %v4387 = vunpack.c.l.b16 %v4306
    %v4388 = vunpack.c.h.b16 %v4306
    %v4389 = vunpack.c.l.b16 %v4307
    %v4390 = vunpack.c.h.b16 %v4307
    %v4391 = vunpack.c.l.b16 %v4308
    %v4392 = vunpack.c.h.b16 %v4308
    %v4393 = vunpack.c.l.b16 %v4309
    %v4394 = vunpack.c.h.b16 %v4309
    %v4395 = vunpack.c.l.b16 %v4310
    %v4396 = vunpack.c.h.b16 %v4310
    %v4397 = vunpack.c.l.b16 %v4311
    %v4398 = vunpack.c.h.b16 %v4311
    %v4399 = vunpack.c.l.b16 %v4312
    %v4400 = vunpack.c.h.b16 %v4312
    %v4401 = vunpack.c.l.b16 %v4313
    %v4402 = vunpack.c.h.b16 %v4313
    %v4403 = vunpack.c.l.b16 %v4314
    %v4404 = vunpack.c.h.b16 %v4314
    %v4405 = vunpack.c.l.b16 %v4315
    %v4406 = vunpack.c.h.b16 %v4315
    %v4407 = vunpack.c.l.b16 %v4316
    %v4408 = vunpack.c.h.b16 %v4316
    %v4409 = vunpack.c.l.b16 %v4317
    %v4410 = vunpack.c.h.b16 %v4317
    %v4411 = vunpack.c.l.b16 %v4318
    %v4412 = vunpack.c.h.b16 %v4318
    %v4413 = vunpack.c.l.b16 %v4319
    %v4414 = vunpack.c.h.b16 %v4319
    %v4415 = vunpack.c.l.b16 %v4320
    %v4416 = vunpack.c.h.b16 %v4320
    %v4417 = vpack.c.b16 %v4357, %v4353
    %v4418 = vpack.c.b16 %v4358, %v4354
    %v4419 = vpack.c.b16 %v4359, %v4355
    %v4420 = vpack.c.b16 %v4360, %v4356
    %v4421 = vpack.c.b16 %v4365, %v4361
    %v4422 = vpack.c.b16 %v4366, %v4362
    %v4423 = vpack.c.b16 %v4367, %v4363
    %v4424 = vpack.c.b16 %v4368, %v4364
    %v4425 = vpack.c.b16 %v4373, %v4369
    %v4426 = vpack.c.b16 %v4374, %v4370
    %v4427 = vpack.c.b16 %v4375, %v4371
    %v4428 = vpack.c.b16 %v4376, %v4372
    %v4429 = vpack.c.b16 %v4381, %v4377
    %v4430 = vpack.c.b16 %v4382, %v4378
    %v4431 = vpack.c.b16 %v4383, %v4379
    %v4432 = vpack.c.b16 %v4384, %v4380
    %v4433 = vpack.c.b16 %v4389, %v4385
    %v4434 = vpack.c.b16 %v4390, %v4386
    %v4435 = vpack.c.b16 %v4391, %v4387
    %v4436 = vpack.c.b16 %v4392, %v4388
    %v4437 = vpack.c.b16 %v4397, %v4393
    %v4438 = vpack.c.b16 %v4398, %v4394
    %v4439 = vpack.c.b16 %v4399, %v4395
    %v4440 = vpack.c.b16 %v4400, %v4396
    %v4441 = vpack.c.b16 %v4405, %v4401
    %v4442 = vpack.c.b16 %v4406, %v4402
    %v4443 = vpack.c.b16 %v4407, %v4403
    %v4444 = vpack.c.b16 %v4408, %v4404
    %v4445 = vpack.c.b16 %v4413, %v4409
    %v4446 = vpack.c.b16 %v4414, %v4410
    %v4447 = vpack.c.b16 %v4415, %v4411
    %v4448 = vpack.c.b16 %v4416, %v4412
    %4481 = vmatpush.bf16.msra.mxu0 %v4445
    %4482 = vmatpush.bf16.msra.mxu0 %v4441
    %4483 = vmatpush.bf16.msra.mxu0 %v4437
    %4484 = vmatpush.bf16.msra.mxu0 %v4433
    %4485 = vmatpush.bf16.msra.mxu0 %v4429
    %4486 = vmatpush.bf16.msra.mxu0 %v4425
    %4487 = vmatpush.bf16.msra.mxu0 %v4421
    %4488 = vmatpush.bf16.msra.mxu0 %v4417
    %4489 = vmatmul.bf16.gmra.mxu0 %v4288
    %v4490 = vpop.f32.mrf.mxu0
    %v4491 = vadd.f32 0.0, %v4490
    %v4492 = vpop.f32.mrf.mxu0
    %4493 = vdwg.mxu0
    %4494 = vmatpush.bf16.msra.mxu0 %v4446
    %4495 = vmatpush.bf16.msra.mxu0 %v4442
    %4496 = vmatpush.bf16.msra.mxu0 %v4438
    %4497 = vmatpush.bf16.msra.mxu0 %v4434
    %4498 = vmatpush.bf16.msra.mxu0 %v4430
    %4499 = vmatpush.bf16.msra.mxu0 %v4426
    %4500 = vmatpush.bf16.msra.mxu0 %v4422
    %4501 = vmatpush.bf16.msra.mxu0 %v4418
    %4502 = vmatmul.bf16.gmra.mxu0 %v4288
    %v4503 = vpop.f32.mrf.mxu0
    %v4504 = vadd.f32 0.0, %v4503
    %v4505 = vpop.f32.mrf.mxu0
    %4506 = vdwg.mxu0
    %4507 = vmatpush.bf16.msra.mxu0 %v4447
    %4508 = vmatpush.bf16.msra.mxu0 %v4443
    %4509 = vmatpush.bf16.msra.mxu0 %v4439
    %4510 = vmatpush.bf16.msra.mxu0 %v4435
    %4511 = vmatpush.bf16.msra.mxu0 %v4431
    %4512 = vmatpush.bf16.msra.mxu0 %v4427
    %4513 = vmatpush.bf16.msra.mxu0 %v4423
    %4514 = vmatpush.bf16.msra.mxu0 %v4419
    %4515 = vmatmul.bf16.gmra.mxu0 %v4288
    %v4516 = vpop.f32.mrf.mxu0
    %v4517 = vadd.f32 0.0, %v4516
    %v4518 = vpop.f32.mrf.mxu0
    %4519 = vdwg.mxu0
    %4520 = vmatpush.bf16.msra.mxu0 %v4448
    %4521 = vmatpush.bf16.msra.mxu0 %v4444
    %4522 = vmatpush.bf16.msra.mxu0 %v4440
    %4523 = vmatpush.bf16.msra.mxu0 %v4436
    %4524 = vmatpush.bf16.msra.mxu0 %v4432
    %4525 = vmatpush.bf16.msra.mxu0 %v4428
    %4526 = vmatpush.bf16.msra.mxu0 %v4424
    %4527 = vmatpush.bf16.msra.mxu0 %v4420
    %4528 = vmatmul.bf16.gmra.mxu0 %v4288
    %v4529 = vpop.f32.mrf.mxu0
    %v4530 = vadd.f32 0.0, %v4529
    %v4531 = vpop.f32.mrf.mxu0
    %4532 = vdwg.mxu0
    %v4533 = vadd.f32 %v4284, %v4491
    %v4534 = vadd.f32 %v4285, %v4504
    %v4535 = vadd.f32 %v4286, %v4517
    %v4536 = vadd.f32 %v4287, %v4530
    %v4537 = vxor.u32 %v4280, 2147483648
    %v4538 = vmul.f32 %v4537, 1.442695
    %v4539 = vpow.pop %v4538
    %v4540 = vadd.f32 %v4539, 1.0
    %v4541 = vrcp.pop %v4540
    %v4542 = vmul.f32 %v4540, %v4541
    %v4543 = vsub.f32 1.0, %v4542
    %v4544 = vmul.f32 %v4541, %v4543
    %v4545 = vadd.f32 %v4541, %v4544
    %vm4546 = vweird.f32 %v4540
    %vm4547 = vweird.f32 %v4541
    %vm4548 = vmor %vm4546, %vm4547
    %v4549 = vsel %vm4548, %v4541, %v4545
    %v4550 = vand.u32 2147483647, %v4540
    %vm4551 = vcmp.eq.f32.partialorder %v4550, 8.507059e+37
    %v4552 = vand.u32 %v4540, 2147483648
    %v4553 = vor.u32 1.1754944e-38, %v4552
    %v4554 = vsel %vm4551, %v4553, %v4549
    %v4555 = vmul.f32 1.0, %v4554
    %v4556 = vxor.u32 %v4281, 2147483648
    %v4557 = vmul.f32 %v4556, 1.442695
    %v4558 = vpow.pop %v4557
    %v4559 = vadd.f32 %v4558, 1.0
    %v4560 = vrcp.pop %v4559
    %v4561 = vmul.f32 %v4559, %v4560
    %v4562 = vsub.f32 1.0, %v4561
    %v4563 = vmul.f32 %v4560, %v4562
    %v4564 = vadd.f32 %v4560, %v4563
    %vm4565 = vweird.f32 %v4559
    %vm4566 = vweird.f32 %v4560
    %vm4567 = vmor %vm4565, %vm4566
    %v4568 = vsel %vm4567, %v4560, %v4564
    %v4569 = vand.u32 2147483647, %v4559
    %vm4570 = vcmp.eq.f32.partialorder %v4569, 8.507059e+37
    %v4571 = vand.u32 %v4559, 2147483648
    %v4572 = vor.u32 1.1754944e-38, %v4571
    %v4573 = vsel %vm4570, %v4572, %v4568
    %v4574 = vmul.f32 1.0, %v4573
    %v4575 = vtanh.pop %v4282
    %v4576 = vxor.u32 %v4283, 2147483648
    %v4577 = vmul.f32 %v4576, 1.442695
    %v4578 = vpow.pop %v4577
    %v4579 = vadd.f32 %v4578, 1.0
    %v4580 = vrcp.pop %v4579
    %v4581 = vmul.f32 %v4579, %v4580
    %v4582 = vsub.f32 1.0, %v4581
    %v4583 = vmul.f32 %v4580, %v4582
    %v4584 = vadd.f32 %v4580, %v4583
    %vm4585 = vweird.f32 %v4579
    %vm4586 = vweird.f32 %v4580
    %vm4587 = vmor %vm4585, %vm4586
    %v4588 = vsel %vm4587, %v4580, %v4584
    %v4589 = vand.u32 2147483647, %v4579
    %vm4590 = vcmp.eq.f32.partialorder %v4589, 8.507059e+37
    %v4591 = vand.u32 %v4579, 2147483648
    %v4592 = vor.u32 1.1754944e-38, %v4591
    %v4593 = vsel %vm4590, %v4592, %v4588
    %v4594 = vmul.f32 1.0, %v4593
    %v4595 = vmul.f32 %v4574, %v4024
    %v4596 = vmul.f32 %v4555, %v4575
    %v4597 = vadd.f32 %v4595, %v4596
    %v4598 = vtanh.pop %v4597
    %v4599 = vmul.f32 %v4594, %v4598
    %v4600 = vxor.u32 %v4533, 2147483648
    %v4601 = vmul.f32 %v4600, 1.442695
    %v4602 = vpow.pop %v4601
    %v4603 = vadd.f32 %v4602, 1.0
    %v4604 = vrcp.pop %v4603
    %v4605 = vmul.f32 %v4603, %v4604
    %v4606 = vsub.f32 1.0, %v4605
    %v4607 = vmul.f32 %v4604, %v4606
    %v4608 = vadd.f32 %v4604, %v4607
    %vm4609 = vweird.f32 %v4603
    %vm4610 = vweird.f32 %v4604
    %vm4611 = vmor %vm4609, %vm4610
    %v4612 = vsel %vm4611, %v4604, %v4608
    %v4613 = vand.u32 2147483647, %v4603
    %vm4614 = vcmp.eq.f32.partialorder %v4613, 8.507059e+37
    %v4615 = vand.u32 %v4603, 2147483648
    %v4616 = vor.u32 1.1754944e-38, %v4615
    %v4617 = vsel %vm4614, %v4616, %v4612
    %v4618 = vmul.f32 1.0, %v4617
    %v4619 = vxor.u32 %v4534, 2147483648
    %v4620 = vmul.f32 %v4619, 1.442695
    %v4621 = vpow.pop %v4620
    %v4622 = vadd.f32 %v4621, 1.0
    %v4623 = vrcp.pop %v4622
    %v4624 = vmul.f32 %v4622, %v4623
    %v4625 = vsub.f32 1.0, %v4624
    %v4626 = vmul.f32 %v4623, %v4625
    %v4627 = vadd.f32 %v4623, %v4626
    %vm4628 = vweird.f32 %v4622
    %vm4629 = vweird.f32 %v4623
    %vm4630 = vmor %vm4628, %vm4629
    %v4631 = vsel %vm4630, %v4623, %v4627
    %v4632 = vand.u32 2147483647, %v4622
    %vm4633 = vcmp.eq.f32.partialorder %v4632, 8.507059e+37
    %v4634 = vand.u32 %v4622, 2147483648
    %v4635 = vor.u32 1.1754944e-38, %v4634
    %v4636 = vsel %vm4633, %v4635, %v4631
    %v4637 = vmul.f32 1.0, %v4636
    %v4638 = vtanh.pop %v4535
    %v4639 = vxor.u32 %v4536, 2147483648
    %v4640 = vmul.f32 %v4639, 1.442695
    %v4641 = vpow.pop %v4640
    %v4642 = vadd.f32 %v4641, 1.0
    %v4643 = vrcp.pop %v4642
    %v4644 = vmul.f32 %v4642, %v4643
    %v4645 = vsub.f32 1.0, %v4644
    %v4646 = vmul.f32 %v4643, %v4645
    %v4647 = vadd.f32 %v4643, %v4646
    %vm4648 = vweird.f32 %v4642
    %vm4649 = vweird.f32 %v4643
    %vm4650 = vmor %vm4648, %vm4649
    %v4651 = vsel %vm4650, %v4643, %v4647
    %v4652 = vand.u32 2147483647, %v4642
    %vm4653 = vcmp.eq.f32.partialorder %v4652, 8.507059e+37
    %v4654 = vand.u32 %v4642, 2147483648
    %v4655 = vor.u32 1.1754944e-38, %v4654
    %v4656 = vsel %vm4653, %v4655, %v4651
    %v4657 = vmul.f32 1.0, %v4656
    %v4658 = vmul.f32 %v4637, %v4026
    %v4659 = vmul.f32 %v4618, %v4638
    %v4660 = vadd.f32 %v4658, %v4659
    %v4661 = vtanh.pop %v4660
    %v4662 = vmul.f32 %v4657, %v4661
    %v4663 = vld [vmem:[%s2724] sm:$0xff]
    %vm4664 = vcmp.ne.f32.partialorder %v4663, 0.0
    %v4665 = vld [vmem:[%s2721] sm:$0xff]
    %vm4666 = vcmp.ne.f32.partialorder %v4665, 0.0
    %v4667 = vsel %vm4664, %v4599, %v4023
    %v4668 = vsel %vm4664, %v4597, %v4024
    %v4669 = vsel %vm4666, %v4662, %v4025
    %v4670 = vsel %vm4666, %v4660, %v4026
    %v4671 = vsel %vm4664, %v4599, 0.0
    %4672 = vst [vmem:[%s2735] sm:$0xff] %v4671
    %v4673 = vsel %vm4666, %v4662, 0.0
    %4674 = vst [vmem:[%s2732 + $0x8] sm:$0xff] %v4673
    %v4675 = vld [vmem:[%s1691] sm:$0xff]
    %v4676 = vld [vmem:[%s1691 + $0x8] sm:$0xff]
    %v4677 = vld [vmem:[%s1691 + $0x10] sm:$0xff]
    %v4678 = vld [vmem:[%s1691 + $0x18] sm:$0xff]
    %v4679 = vpack.c.bf16 %v4667, %v4667
    %v4680 = vld [vmem:[#allocation4] sm:$0xff]
    %v4681 = vld [vmem:[#allocation4 + $0x8] sm:$0xff]
    %v4682 = vld [vmem:[#allocation4 + $0x10] sm:$0xff]
    %v4683 = vld [vmem:[#allocation4 + $0x18] sm:$0xff]
    %v4684 = vld [vmem:[#allocation4 + $0x20] sm:$0xff]
    %v4685 = vld [vmem:[#allocation4 + $0x28] sm:$0xff]
    %v4686 = vld [vmem:[#allocation4 + $0x30] sm:$0xff]
    %v4687 = vld [vmem:[#allocation4 + $0x38] sm:$0xff]
    %v4688 = vld [vmem:[#allocation4 + $0x40] sm:$0xff]
    %v4689 = vld [vmem:[#allocation4 + $0x48] sm:$0xff]
    %v4690 = vld [vmem:[#allocation4 + $0x50] sm:$0xff]
    %v4691 = vld [vmem:[#allocation4 + $0x58] sm:$0xff]
    %v4692 = vld [vmem:[#allocation4 + $0x60] sm:$0xff]
    %v4693 = vld [vmem:[#allocation4 + $0x68] sm:$0xff]
    %v4694 = vld [vmem:[#allocation4 + $0x70] sm:$0xff]
    %v4695 = vld [vmem:[#allocation4 + $0x78] sm:$0xff]
    %v4696 = vld [vmem:[#allocation4 + $0x80] sm:$0xff]
    %v4697 = vld [vmem:[#allocation4 + $0x88] sm:$0xff]
    %v4698 = vld [vmem:[#allocation4 + $0x90] sm:$0xff]
    %v4699 = vld [vmem:[#allocation4 + $0x98] sm:$0xff]
    %v4700 = vld [vmem:[#allocation4 + $0xa0] sm:$0xff]
    %v4701 = vld [vmem:[#allocation4 + $0xa8] sm:$0xff]
    %v4702 = vld [vmem:[#allocation4 + $0xb0] sm:$0xff]
    %v4703 = vld [vmem:[#allocation4 + $0xb8] sm:$0xff]
    %v4704 = vld [vmem:[#allocation4 + $0xc0] sm:$0xff]
    %v4705 = vld [vmem:[#allocation4 + $0xc8] sm:$0xff]
    %v4706 = vld [vmem:[#allocation4 + $0xd0] sm:$0xff]
    %v4707 = vld [vmem:[#allocation4 + $0xd8] sm:$0xff]
    %v4708 = vld [vmem:[#allocation4 + $0xe0] sm:$0xff]
    %v4709 = vld [vmem:[#allocation4 + $0xe8] sm:$0xff]
    %v4710 = vld [vmem:[#allocation4 + $0xf0] sm:$0xff]
    %v4711 = vld [vmem:[#allocation4 + $0xf8] sm:$0xff]
    %v4744 = vunpack.c.l.b16 %v4680
    %v4745 = vunpack.c.h.b16 %v4680
    %v4746 = vunpack.c.l.b16 %v4681
    %v4747 = vunpack.c.h.b16 %v4681
    %v4748 = vunpack.c.l.b16 %v4682
    %v4749 = vunpack.c.h.b16 %v4682
    %v4750 = vunpack.c.l.b16 %v4683
    %v4751 = vunpack.c.h.b16 %v4683
    %v4752 = vunpack.c.l.b16 %v4684
    %v4753 = vunpack.c.h.b16 %v4684
    %v4754 = vunpack.c.l.b16 %v4685
    %v4755 = vunpack.c.h.b16 %v4685
    %v4756 = vunpack.c.l.b16 %v4686
    %v4757 = vunpack.c.h.b16 %v4686
    %v4758 = vunpack.c.l.b16 %v4687
    %v4759 = vunpack.c.h.b16 %v4687
    %v4760 = vunpack.c.l.b16 %v4688
    %v4761 = vunpack.c.h.b16 %v4688
    %v4762 = vunpack.c.l.b16 %v4689
    %v4763 = vunpack.c.h.b16 %v4689
    %v4764 = vunpack.c.l.b16 %v4690
    %v4765 = vunpack.c.h.b16 %v4690
    %v4766 = vunpack.c.l.b16 %v4691
    %v4767 = vunpack.c.h.b16 %v4691
    %v4768 = vunpack.c.l.b16 %v4692
    %v4769 = vunpack.c.h.b16 %v4692
    %v4770 = vunpack.c.l.b16 %v4693
    %v4771 = vunpack.c.h.b16 %v4693
    %v4772 = vunpack.c.l.b16 %v4694
    %v4773 = vunpack.c.h.b16 %v4694
    %v4774 = vunpack.c.l.b16 %v4695
    %v4775 = vunpack.c.h.b16 %v4695
    %v4776 = vunpack.c.l.b16 %v4696
    %v4777 = vunpack.c.h.b16 %v4696
    %v4778 = vunpack.c.l.b16 %v4697
    %v4779 = vunpack.c.h.b16 %v4697
    %v4780 = vunpack.c.l.b16 %v4698
    %v4781 = vunpack.c.h.b16 %v4698
    %v4782 = vunpack.c.l.b16 %v4699
    %v4783 = vunpack.c.h.b16 %v4699
    %v4784 = vunpack.c.l.b16 %v4700
    %v4785 = vunpack.c.h.b16 %v4700
    %v4786 = vunpack.c.l.b16 %v4701
    %v4787 = vunpack.c.h.b16 %v4701
    %v4788 = vunpack.c.l.b16 %v4702
    %v4789 = vunpack.c.h.b16 %v4702
    %v4790 = vunpack.c.l.b16 %v4703
    %v4791 = vunpack.c.h.b16 %v4703
    %v4792 = vunpack.c.l.b16 %v4704
    %v4793 = vunpack.c.h.b16 %v4704
    %v4794 = vunpack.c.l.b16 %v4705
    %v4795 = vunpack.c.h.b16 %v4705
    %v4796 = vunpack.c.l.b16 %v4706
    %v4797 = vunpack.c.h.b16 %v4706
    %v4798 = vunpack.c.l.b16 %v4707
    %v4799 = vunpack.c.h.b16 %v4707
    %v4800 = vunpack.c.l.b16 %v4708
    %v4801 = vunpack.c.h.b16 %v4708
    %v4802 = vunpack.c.l.b16 %v4709
    %v4803 = vunpack.c.h.b16 %v4709
    %v4804 = vunpack.c.l.b16 %v4710
    %v4805 = vunpack.c.h.b16 %v4710
    %v4806 = vunpack.c.l.b16 %v4711
    %v4807 = vunpack.c.h.b16 %v4711
    %v4808 = vpack.c.b16 %v4748, %v4744
    %v4809 = vpack.c.b16 %v4749, %v4745
    %v4810 = vpack.c.b16 %v4750, %v4746
    %v4811 = vpack.c.b16 %v4751, %v4747
    %v4812 = vpack.c.b16 %v4756, %v4752
    %v4813 = vpack.c.b16 %v4757, %v4753
    %v4814 = vpack.c.b16 %v4758, %v4754
    %v4815 = vpack.c.b16 %v4759, %v4755
    %v4816 = vpack.c.b16 %v4764, %v4760
    %v4817 = vpack.c.b16 %v4765, %v4761
    %v4818 = vpack.c.b16 %v4766, %v4762
    %v4819 = vpack.c.b16 %v4767, %v4763
    %v4820 = vpack.c.b16 %v4772, %v4768
    %v4821 = vpack.c.b16 %v4773, %v4769
    %v4822 = vpack.c.b16 %v4774, %v4770
    %v4823 = vpack.c.b16 %v4775, %v4771
    %v4824 = vpack.c.b16 %v4780, %v4776
    %v4825 = vpack.c.b16 %v4781, %v4777
    %v4826 = vpack.c.b16 %v4782, %v4778
    %v4827 = vpack.c.b16 %v4783, %v4779
    %v4828 = vpack.c.b16 %v4788, %v4784
    %v4829 = vpack.c.b16 %v4789, %v4785
    %v4830 = vpack.c.b16 %v4790, %v4786
    %v4831 = vpack.c.b16 %v4791, %v4787
    %v4832 = vpack.c.b16 %v4796, %v4792
    %v4833 = vpack.c.b16 %v4797, %v4793
    %v4834 = vpack.c.b16 %v4798, %v4794
    %v4835 = vpack.c.b16 %v4799, %v4795
    %v4836 = vpack.c.b16 %v4804, %v4800
    %v4837 = vpack.c.b16 %v4805, %v4801
    %v4838 = vpack.c.b16 %v4806, %v4802
    %v4839 = vpack.c.b16 %v4807, %v4803
    %4872 = vmatpush.bf16.msra.mxu0 %v4836
    %4873 = vmatpush.bf16.msra.mxu0 %v4832
    %4874 = vmatpush.bf16.msra.mxu0 %v4828
    %4875 = vmatpush.bf16.msra.mxu0 %v4824
    %4876 = vmatpush.bf16.msra.mxu0 %v4820
    %4877 = vmatpush.bf16.msra.mxu0 %v4816
    %4878 = vmatpush.bf16.msra.mxu0 %v4812
    %4879 = vmatpush.bf16.msra.mxu0 %v4808
    %4880 = vmatmul.bf16.gmra.mxu0 %v4679
    %v4881 = vpop.f32.mrf.mxu0
    %v4882 = vadd.f32 0.0, %v4881
    %v4883 = vpop.f32.mrf.mxu0
    %4884 = vdwg.mxu0
    %4885 = vmatpush.bf16.msra.mxu0 %v4837
    %4886 = vmatpush.bf16.msra.mxu0 %v4833
    %4887 = vmatpush.bf16.msra.mxu0 %v4829
    %4888 = vmatpush.bf16.msra.mxu0 %v4825
    %4889 = vmatpush.bf16.msra.mxu0 %v4821
    %4890 = vmatpush.bf16.msra.mxu0 %v4817
    %4891 = vmatpush.bf16.msra.mxu0 %v4813
    %4892 = vmatpush.bf16.msra.mxu0 %v4809
    %4893 = vmatmul.bf16.gmra.mxu0 %v4679
    %v4894 = vpop.f32.mrf.mxu0
    %v4895 = vadd.f32 0.0, %v4894
    %v4896 = vpop.f32.mrf.mxu0
    %4897 = vdwg.mxu0
    %4898 = vmatpush.bf16.msra.mxu0 %v4838
    %4899 = vmatpush.bf16.msra.mxu0 %v4834
    %4900 = vmatpush.bf16.msra.mxu0 %v4830
    %4901 = vmatpush.bf16.msra.mxu0 %v4826
    %4902 = vmatpush.bf16.msra.mxu0 %v4822
    %4903 = vmatpush.bf16.msra.mxu0 %v4818
    %4904 = vmatpush.bf16.msra.mxu0 %v4814
    %4905 = vmatpush.bf16.msra.mxu0 %v4810
    %4906 = vmatmul.bf16.gmra.mxu0 %v4679
    %v4907 = vpop.f32.mrf.mxu0
    %v4908 = vadd.f32 0.0, %v4907
    %v4909 = vpop.f32.mrf.mxu0
    %4910 = vdwg.mxu0
    %4911 = vmatpush.bf16.msra.mxu0 %v4839
    %4912 = vmatpush.bf16.msra.mxu0 %v4835
    %4913 = vmatpush.bf16.msra.mxu0 %v4831
    %4914 = vmatpush.bf16.msra.mxu0 %v4827
    %4915 = vmatpush.bf16.msra.mxu0 %v4823
    %4916 = vmatpush.bf16.msra.mxu0 %v4819
    %4917 = vmatpush.bf16.msra.mxu0 %v4815
    %4918 = vmatpush.bf16.msra.mxu0 %v4811
    %4919 = vmatmul.bf16.gmra.mxu0 %v4679
    %v4920 = vpop.f32.mrf.mxu0
    %v4921 = vadd.f32 0.0, %v4920
    %v4922 = vpop.f32.mrf.mxu0
    %4923 = vdwg.mxu0
    %v4924 = vadd.f32 %v4675, %v4882
    %v4925 = vadd.f32 %v4676, %v4895
    %v4926 = vadd.f32 %v4677, %v4908
    %v4927 = vadd.f32 %v4678, %v4921
    %v4928 = vld [vmem:[%s1437 + $0x20] sm:$0xff]
    %v4929 = vld [vmem:[%s1437 + $0x28] sm:$0xff]
    %v4930 = vld [vmem:[%s1437 + $0x30] sm:$0xff]
    %v4931 = vld [vmem:[%s1437 + $0x38] sm:$0xff]
    %v4932 = vpack.c.bf16 %v4669, %v4669
    %v4933 = vld [vmem:[%s1050] sm:$0xff]
    %v4934 = vld [vmem:[%s1050 + $0x8] sm:$0xff]
    %v4935 = vld [vmem:[%s1050 + $0x10] sm:$0xff]
    %v4936 = vld [vmem:[%s1050 + $0x18] sm:$0xff]
    %v4937 = vld [vmem:[%s1050 + $0x20] sm:$0xff]
    %v4938 = vld [vmem:[%s1050 + $0x28] sm:$0xff]
    %v4939 = vld [vmem:[%s1050 + $0x30] sm:$0xff]
    %v4940 = vld [vmem:[%s1050 + $0x38] sm:$0xff]
    %v4941 = vld [vmem:[%s1050 + $0x40] sm:$0xff]
    %v4942 = vld [vmem:[%s1050 + $0x48] sm:$0xff]
    %v4943 = vld [vmem:[%s1050 + $0x50] sm:$0xff]
    %v4944 = vld [vmem:[%s1050 + $0x58] sm:$0xff]
    %v4945 = vld [vmem:[%s1050 + $0x60] sm:$0xff]
    %v4946 = vld [vmem:[%s1050 + $0x68] sm:$0xff]
    %v4947 = vld [vmem:[%s1050 + $0x70] sm:$0xff]
    %v4948 = vld [vmem:[%s1050 + $0x78] sm:$0xff]
    %v4949 = vld [vmem:[%s1050 + $0x80] sm:$0xff]
    %v4950 = vld [vmem:[%s1050 + $0x88] sm:$0xff]
    %v4951 = vld [vmem:[%s1050 + $0x90] sm:$0xff]
    %v4952 = vld [vmem:[%s1050 + $0x98] sm:$0xff]
    %v4953 = vld [vmem:[%s1050 + $0xa0] sm:$0xff]
    %v4954 = vld [vmem:[%s1050 + $0xa8] sm:$0xff]
    %v4955 = vld [vmem:[%s1050 + $0xb0] sm:$0xff]
    %v4956 = vld [vmem:[%s1050 + $0xb8] sm:$0xff]
    %v4957 = vld [vmem:[%s1050 + $0xc0] sm:$0xff]
    %v4958 = vld [vmem:[%s1050 + $0xc8] sm:$0xff]
    %v4959 = vld [vmem:[%s1050 + $0xd0] sm:$0xff]
    %v4960 = vld [vmem:[%s1050 + $0xd8] sm:$0xff]
    %v4961 = vld [vmem:[%s1050 + $0xe0] sm:$0xff]
    %v4962 = vld [vmem:[%s1050 + $0xe8] sm:$0xff]
    %v4963 = vld [vmem:[%s1050 + $0xf0] sm:$0xff]
    %v4964 = vld [vmem:[%s1050 + $0xf8] sm:$0xff]
    %v4997 = vunpack.c.l.b16 %v4933
    %v4998 = vunpack.c.h.b16 %v4933
    %v4999 = vunpack.c.l.b16 %v4934
    %v5000 = vunpack.c.h.b16 %v4934
    %v5001 = vunpack.c.l.b16 %v4935
    %v5002 = vunpack.c.h.b16 %v4935
    %v5003 = vunpack.c.l.b16 %v4936
    %v5004 = vunpack.c.h.b16 %v4936
    %v5005 = vunpack.c.l.b16 %v4937
    %v5006 = vunpack.c.h.b16 %v4937
    %v5007 = vunpack.c.l.b16 %v4938
    %v5008 = vunpack.c.h.b16 %v4938
    %v5009 = vunpack.c.l.b16 %v4939
    %v5010 = vunpack.c.h.b16 %v4939
    %v5011 = vunpack.c.l.b16 %v4940
    %v5012 = vunpack.c.h.b16 %v4940
    %v5013 = vunpack.c.l.b16 %v4941
    %v5014 = vunpack.c.h.b16 %v4941
    %v5015 = vunpack.c.l.b16 %v4942
    %v5016 = vunpack.c.h.b16 %v4942
    %v5017 = vunpack.c.l.b16 %v4943
    %v5018 = vunpack.c.h.b16 %v4943
    %v5019 = vunpack.c.l.b16 %v4944
    %v5020 = vunpack.c.h.b16 %v4944
    %v5021 = vunpack.c.l.b16 %v4945
    %v5022 = vunpack.c.h.b16 %v4945
    %v5023 = vunpack.c.l.b16 %v4946
    %v5024 = vunpack.c.h.b16 %v4946
    %v5025 = vunpack.c.l.b16 %v4947
    %v5026 = vunpack.c.h.b16 %v4947
    %v5027 = vunpack.c.l.b16 %v4948
    %v5028 = vunpack.c.h.b16 %v4948
    %v5029 = vunpack.c.l.b16 %v4949
    %v5030 = vunpack.c.h.b16 %v4949
    %v5031 = vunpack.c.l.b16 %v4950
    %v5032 = vunpack.c.h.b16 %v4950
    %v5033 = vunpack.c.l.b16 %v4951
    %v5034 = vunpack.c.h.b16 %v4951
    %v5035 = vunpack.c.l.b16 %v4952
    %v5036 = vunpack.c.h.b16 %v4952
    %v5037 = vunpack.c.l.b16 %v4953
    %v5038 = vunpack.c.h.b16 %v4953
    %v5039 = vunpack.c.l.b16 %v4954
    %v5040 = vunpack.c.h.b16 %v4954
    %v5041 = vunpack.c.l.b16 %v4955
    %v5042 = vunpack.c.h.b16 %v4955
    %v5043 = vunpack.c.l.b16 %v4956
    %v5044 = vunpack.c.h.b16 %v4956
    %v5045 = vunpack.c.l.b16 %v4957
    %v5046 = vunpack.c.h.b16 %v4957
    %v5047 = vunpack.c.l.b16 %v4958
    %v5048 = vunpack.c.h.b16 %v4958
    %v5049 = vunpack.c.l.b16 %v4959
    %v5050 = vunpack.c.h.b16 %v4959
    %v5051 = vunpack.c.l.b16 %v4960
    %v5052 = vunpack.c.h.b16 %v4960
    %v5053 = vunpack.c.l.b16 %v4961
    %v5054 = vunpack.c.h.b16 %v4961
    %v5055 = vunpack.c.l.b16 %v4962
    %v5056 = vunpack.c.h.b16 %v4962
    %v5057 = vunpack.c.l.b16 %v4963
    %v5058 = vunpack.c.h.b16 %v4963
    %v5059 = vunpack.c.l.b16 %v4964
    %v5060 = vunpack.c.h.b16 %v4964
    %v5061 = vpack.c.b16 %v5001, %v4997
    %v5062 = vpack.c.b16 %v5002, %v4998
    %v5063 = vpack.c.b16 %v5003, %v4999
    %v5064 = vpack.c.b16 %v5004, %v5000
    %v5065 = vpack.c.b16 %v5009, %v5005
    %v5066 = vpack.c.b16 %v5010, %v5006
    %v5067 = vpack.c.b16 %v5011, %v5007
    %v5068 = vpack.c.b16 %v5012, %v5008
    %v5069 = vpack.c.b16 %v5017, %v5013
    %v5070 = vpack.c.b16 %v5018, %v5014
    %v5071 = vpack.c.b16 %v5019, %v5015
    %v5072 = vpack.c.b16 %v5020, %v5016
    %v5073 = vpack.c.b16 %v5025, %v5021
    %v5074 = vpack.c.b16 %v5026, %v5022
    %v5075 = vpack.c.b16 %v5027, %v5023
    %v5076 = vpack.c.b16 %v5028, %v5024
    %v5077 = vpack.c.b16 %v5033, %v5029
    %v5078 = vpack.c.b16 %v5034, %v5030
    %v5079 = vpack.c.b16 %v5035, %v5031
    %v5080 = vpack.c.b16 %v5036, %v5032
    %v5081 = vpack.c.b16 %v5041, %v5037
    %v5082 = vpack.c.b16 %v5042, %v5038
    %v5083 = vpack.c.b16 %v5043, %v5039
    %v5084 = vpack.c.b16 %v5044, %v5040
    %v5085 = vpack.c.b16 %v5049, %v5045
    %v5086 = vpack.c.b16 %v5050, %v5046
    %v5087 = vpack.c.b16 %v5051, %v5047
    %v5088 = vpack.c.b16 %v5052, %v5048
    %v5089 = vpack.c.b16 %v5057, %v5053
    %v5090 = vpack.c.b16 %v5058, %v5054
    %v5091 = vpack.c.b16 %v5059, %v5055
    %v5092 = vpack.c.b16 %v5060, %v5056
    %5125 = vmatpush.bf16.msra.mxu0 %v5089
    %5126 = vmatpush.bf16.msra.mxu0 %v5085
    %5127 = vmatpush.bf16.msra.mxu0 %v5081
    %5128 = vmatpush.bf16.msra.mxu0 %v5077
    %5129 = vmatpush.bf16.msra.mxu0 %v5073
    %5130 = vmatpush.bf16.msra.mxu0 %v5069
    %5131 = vmatpush.bf16.msra.mxu0 %v5065
    %5132 = vmatpush.bf16.msra.mxu0 %v5061
    %5133 = vmatmul.bf16.gmra.mxu0 %v4932
    %v5134 = vpop.f32.mrf.mxu0
    %v5135 = vadd.f32 0.0, %v5134
    %v5136 = vpop.f32.mrf.mxu0
    %5137 = vdwg.mxu0
    %5138 = vmatpush.bf16.msra.mxu0 %v5090
    %5139 = vmatpush.bf16.msra.mxu0 %v5086
    %5140 = vmatpush.bf16.msra.mxu0 %v5082
    %5141 = vmatpush.bf16.msra.mxu0 %v5078
    %5142 = vmatpush.bf16.msra.mxu0 %v5074
    %5143 = vmatpush.bf16.msra.mxu0 %v5070
    %5144 = vmatpush.bf16.msra.mxu0 %v5066
    %5145 = vmatpush.bf16.msra.mxu0 %v5062
    %5146 = vmatmul.bf16.gmra.mxu0 %v4932
    %v5147 = vpop.f32.mrf.mxu0
    %v5148 = vadd.f32 0.0, %v5147
    %v5149 = vpop.f32.mrf.mxu0
    %5150 = vdwg.mxu0
    %5151 = vmatpush.bf16.msra.mxu0 %v5091
    %5152 = vmatpush.bf16.msra.mxu0 %v5087
    %5153 = vmatpush.bf16.msra.mxu0 %v5083
    %5154 = vmatpush.bf16.msra.mxu0 %v5079
    %5155 = vmatpush.bf16.msra.mxu0 %v5075
    %5156 = vmatpush.bf16.msra.mxu0 %v5071
    %5157 = vmatpush.bf16.msra.mxu0 %v5067
    %5158 = vmatpush.bf16.msra.mxu0 %v5063
    %5159 = vmatmul.bf16.gmra.mxu0 %v4932
    %v5160 = vpop.f32.mrf.mxu0
    %v5161 = vadd.f32 0.0, %v5160
    %v5162 = vpop.f32.mrf.mxu0
    %5163 = vdwg.mxu0
    %5164 = vmatpush.bf16.msra.mxu0 %v5092
    %5165 = vmatpush.bf16.msra.mxu0 %v5088
    %5166 = vmatpush.bf16.msra.mxu0 %v5084
    %5167 = vmatpush.bf16.msra.mxu0 %v5080
    %5168 = vmatpush.bf16.msra.mxu0 %v5076
    %5169 = vmatpush.bf16.msra.mxu0 %v5072
    %5170 = vmatpush.bf16.msra.mxu0 %v5068
    %5171 = vmatpush.bf16.msra.mxu0 %v5064
    %5172 = vmatmul.bf16.gmra.mxu0 %v4932
    %v5173 = vpop.f32.mrf.mxu0
    %v5174 = vadd.f32 0.0, %v5173
    %v5175 = vpop.f32.mrf.mxu0
    %5176 = vdwg.mxu0
    %v5177 = vadd.f32 %v4928, %v5135
    %v5178 = vadd.f32 %v4929, %v5148
    %v5179 = vadd.f32 %v4930, %v5161
    %v5180 = vadd.f32 %v4931, %v5174
    %v5181 = vxor.u32 %v4924, 2147483648
    %v5182 = vmul.f32 %v5181, 1.442695
    %v5183 = vpow.pop %v5182
    %v5184 = vadd.f32 %v5183, 1.0
    %v5185 = vrcp.pop %v5184
    %v5186 = vmul.f32 %v5184, %v5185
    %v5187 = vsub.f32 1.0, %v5186
    %v5188 = vmul.f32 %v5185, %v5187
    %v5189 = vadd.f32 %v5185, %v5188
    %vm5190 = vweird.f32 %v5184
    %vm5191 = vweird.f32 %v5185
    %vm5192 = vmor %vm5190, %vm5191
    %v5193 = vsel %vm5192, %v5185, %v5189
    %v5194 = vand.u32 2147483647, %v5184
    %vm5195 = vcmp.eq.f32.partialorder %v5194, 8.507059e+37
    %v5196 = vand.u32 %v5184, 2147483648
    %v5197 = vor.u32 1.1754944e-38, %v5196
    %v5198 = vsel %vm5195, %v5197, %v5193
    %v5199 = vmul.f32 1.0, %v5198
    %v5200 = vxor.u32 %v4925, 2147483648
    %v5201 = vmul.f32 %v5200, 1.442695
    %v5202 = vpow.pop %v5201
    %v5203 = vadd.f32 %v5202, 1.0
    %v5204 = vrcp.pop %v5203
    %v5205 = vmul.f32 %v5203, %v5204
    %v5206 = vsub.f32 1.0, %v5205
    %v5207 = vmul.f32 %v5204, %v5206
    %v5208 = vadd.f32 %v5204, %v5207
    %vm5209 = vweird.f32 %v5203
    %vm5210 = vweird.f32 %v5204
    %vm5211 = vmor %vm5209, %vm5210
    %v5212 = vsel %vm5211, %v5204, %v5208
    %v5213 = vand.u32 2147483647, %v5203
    %vm5214 = vcmp.eq.f32.partialorder %v5213, 8.507059e+37
    %v5215 = vand.u32 %v5203, 2147483648
    %v5216 = vor.u32 1.1754944e-38, %v5215
    %v5217 = vsel %vm5214, %v5216, %v5212
    %v5218 = vmul.f32 1.0, %v5217
    %v5219 = vtanh.pop %v4926
    %v5220 = vxor.u32 %v4927, 2147483648
    %v5221 = vmul.f32 %v5220, 1.442695
    %v5222 = vpow.pop %v5221
    %v5223 = vadd.f32 %v5222, 1.0
    %v5224 = vrcp.pop %v5223
    %v5225 = vmul.f32 %v5223, %v5224
    %v5226 = vsub.f32 1.0, %v5225
    %v5227 = vmul.f32 %v5224, %v5226
    %v5228 = vadd.f32 %v5224, %v5227
    %vm5229 = vweird.f32 %v5223
    %vm5230 = vweird.f32 %v5224
    %vm5231 = vmor %vm5229, %vm5230
    %v5232 = vsel %vm5231, %v5224, %v5228
    %v5233 = vand.u32 2147483647, %v5223
    %vm5234 = vcmp.eq.f32.partialorder %v5233, 8.507059e+37
    %v5235 = vand.u32 %v5223, 2147483648
    %v5236 = vor.u32 1.1754944e-38, %v5235
    %v5237 = vsel %vm5234, %v5236, %v5232
    %v5238 = vmul.f32 1.0, %v5237
    %v5239 = vmul.f32 %v5218, %v4668
    %v5240 = vmul.f32 %v5199, %v5219
    %v5241 = vadd.f32 %v5239, %v5240
    %v5242 = vtanh.pop %v5241
    %v5243 = vmul.f32 %v5238, %v5242
    %v5244 = vxor.u32 %v5177, 2147483648
    %v5245 = vmul.f32 %v5244, 1.442695
    %v5246 = vpow.pop %v5245
    %v5247 = vadd.f32 %v5246, 1.0
    %v5248 = vrcp.pop %v5247
    %v5249 = vmul.f32 %v5247, %v5248
    %v5250 = vsub.f32 1.0, %v5249
    %v5251 = vmul.f32 %v5248, %v5250
    %v5252 = vadd.f32 %v5248, %v5251
    %vm5253 = vweird.f32 %v5247
    %vm5254 = vweird.f32 %v5248
    %vm5255 = vmor %vm5253, %vm5254
    %v5256 = vsel %vm5255, %v5248, %v5252
    %v5257 = vand.u32 2147483647, %v5247
    %vm5258 = vcmp.eq.f32.partialorder %v5257, 8.507059e+37
    %v5259 = vand.u32 %v5247, 2147483648
    %v5260 = vor.u32 1.1754944e-38, %v5259
    %v5261 = vsel %vm5258, %v5260, %v5256
    %v5262 = vmul.f32 1.0, %v5261
    %v5263 = vxor.u32 %v5178, 2147483648
    %v5264 = vmul.f32 %v5263, 1.442695
    %v5265 = vpow.pop %v5264
    %v5266 = vadd.f32 %v5265, 1.0
    %v5267 = vrcp.pop %v5266
    %v5268 = vmul.f32 %v5266, %v5267
    %v5269 = vsub.f32 1.0, %v5268
    %v5270 = vmul.f32 %v5267, %v5269
    %v5271 = vadd.f32 %v5267, %v5270
    %vm5272 = vweird.f32 %v5266
    %vm5273 = vweird.f32 %v5267
    %vm5274 = vmor %vm5272, %vm5273
    %v5275 = vsel %vm5274, %v5267, %v5271
    %v5276 = vand.u32 2147483647, %v5266
    %vm5277 = vcmp.eq.f32.partialorder %v5276, 8.507059e+37
    %v5278 = vand.u32 %v5266, 2147483648
    %v5279 = vor.u32 1.1754944e-38, %v5278
    %v5280 = vsel %vm5277, %v5279, %v5275
    %v5281 = vmul.f32 1.0, %v5280
    %v5282 = vtanh.pop %v5179
    %v5283 = vxor.u32 %v5180, 2147483648
    %v5284 = vmul.f32 %v5283, 1.442695
    %v5285 = vpow.pop %v5284
    %v5286 = vadd.f32 %v5285, 1.0
    %v5287 = vrcp.pop %v5286
    %v5288 = vmul.f32 %v5286, %v5287
    %v5289 = vsub.f32 1.0, %v5288
    %v5290 = vmul.f32 %v5287, %v5289
    %v5291 = vadd.f32 %v5287, %v5290
    %vm5292 = vweird.f32 %v5286
    %vm5293 = vweird.f32 %v5287
    %vm5294 = vmor %vm5292, %vm5293
    %v5295 = vsel %vm5294, %v5287, %v5291
    %v5296 = vand.u32 2147483647, %v5286
    %vm5297 = vcmp.eq.f32.partialorder %v5296, 8.507059e+37
    %v5298 = vand.u32 %v5286, 2147483648
    %v5299 = vor.u32 1.1754944e-38, %v5298
    %v5300 = vsel %vm5297, %v5299, %v5295
    %v5301 = vmul.f32 1.0, %v5300
    %v5302 = vmul.f32 %v5281, %v4670
    %v5303 = vmul.f32 %v5262, %v5282
    %v5304 = vadd.f32 %v5302, %v5303
    %v5305 = vtanh.pop %v5304
    %v5306 = vmul.f32 %v5301, %v5305
    %v5307 = vld [vmem:[%s2074] sm:$0xff]
    %vm5308 = vcmp.ne.f32.partialorder %v5307, 0.0
    %v5309 = vld [vmem:[%s2071] sm:$0xff]
    %vm5310 = vcmp.ne.f32.partialorder %v5309, 0.0
    %v5311 = vsel %vm5308, %v5243, %v4667
    %v5312 = vsel %vm5308, %v5241, %v4668
    %v5313 = vsel %vm5310, %v5306, %v4669
    %v5314 = vsel %vm5310, %v5304, %v4670
    %v5315 = vsel %vm5308, %v5243, 0.0
    %5316 = vst [vmem:[%s2085] sm:$0xff] %v5315
    %v5317 = vsel %vm5310, %v5306, 0.0
    %5318 = vst [vmem:[%s2082 + $0x8] sm:$0xff] %v5317
    %v5319 = vld [vmem:[%s1045] sm:$0xff]
    %v5320 = vld [vmem:[%s1045 + $0x8] sm:$0xff]
    %v5321 = vld [vmem:[%s1045 + $0x10] sm:$0xff]
    %v5322 = vld [vmem:[%s1045 + $0x18] sm:$0xff]
    %v5323 = vpack.c.bf16 %v5311, %v5311
    %v5324 = vld [vmem:[#allocation4] sm:$0xff]
    %v5325 = vld [vmem:[#allocation4 + $0x8] sm:$0xff]
    %v5326 = vld [vmem:[#allocation4 + $0x10] sm:$0xff]
    %v5327 = vld [vmem:[#allocation4 + $0x18] sm:$0xff]
    %v5328 = vld [vmem:[#allocation4 + $0x20] sm:$0xff]
    %v5329 = vld [vmem:[#allocation4 + $0x28] sm:$0xff]
    %v5330 = vld [vmem:[#allocation4 + $0x30] sm:$0xff]
    %v5331 = vld [vmem:[#allocation4 + $0x38] sm:$0xff]
    %v5332 = vld [vmem:[#allocation4 + $0x40] sm:$0xff]
    %v5333 = vld [vmem:[#allocation4 + $0x48] sm:$0xff]
    %v5334 = vld [vmem:[#allocation4 + $0x50] sm:$0xff]
    %v5335 = vld [vmem:[#allocation4 + $0x58] sm:$0xff]
    %v5336 = vld [vmem:[#allocation4 + $0x60] sm:$0xff]
    %v5337 = vld [vmem:[#allocation4 + $0x68] sm:$0xff]
    %v5338 = vld [vmem:[#allocation4 + $0x70] sm:$0xff]
    %v5339 = vld [vmem:[#allocation4 + $0x78] sm:$0xff]
    %v5340 = vld [vmem:[#allocation4 + $0x80] sm:$0xff]
    %v5341 = vld [vmem:[#allocation4 + $0x88] sm:$0xff]
    %v5342 = vld [vmem:[#allocation4 + $0x90] sm:$0xff]
    %v5343 = vld [vmem:[#allocation4 + $0x98] sm:$0xff]
    %v5344 = vld [vmem:[#allocation4 + $0xa0] sm:$0xff]
    %v5345 = vld [vmem:[#allocation4 + $0xa8] sm:$0xff]
    %v5346 = vld [vmem:[#allocation4 + $0xb0] sm:$0xff]
    %v5347 = vld [vmem:[#allocation4 + $0xb8] sm:$0xff]
    %v5348 = vld [vmem:[#allocation4 + $0xc0] sm:$0xff]
    %v5349 = vld [vmem:[#allocation4 + $0xc8] sm:$0xff]
    %v5350 = vld [vmem:[#allocation4 + $0xd0] sm:$0xff]
    %v5351 = vld [vmem:[#allocation4 + $0xd8] sm:$0xff]
    %v5352 = vld [vmem:[#allocation4 + $0xe0] sm:$0xff]
    %v5353 = vld [vmem:[#allocation4 + $0xe8] sm:$0xff]
    %v5354 = vld [vmem:[#allocation4 + $0xf0] sm:$0xff]
    %v5355 = vld [vmem:[#allocation4 + $0xf8] sm:$0xff]
    %v5388 = vunpack.c.l.b16 %v5324
    %v5389 = vunpack.c.h.b16 %v5324
    %v5390 = vunpack.c.l.b16 %v5325
    %v5391 = vunpack.c.h.b16 %v5325
    %v5392 = vunpack.c.l.b16 %v5326
    %v5393 = vunpack.c.h.b16 %v5326
    %v5394 = vunpack.c.l.b16 %v5327
    %v5395 = vunpack.c.h.b16 %v5327
    %v5396 = vunpack.c.l.b16 %v5328
    %v5397 = vunpack.c.h.b16 %v5328
    %v5398 = vunpack.c.l.b16 %v5329
    %v5399 = vunpack.c.h.b16 %v5329
    %v5400 = vunpack.c.l.b16 %v5330
    %v5401 = vunpack.c.h.b16 %v5330
    %v5402 = vunpack.c.l.b16 %v5331
    %v5403 = vunpack.c.h.b16 %v5331
    %v5404 = vunpack.c.l.b16 %v5332
    %v5405 = vunpack.c.h.b16 %v5332
    %v5406 = vunpack.c.l.b16 %v5333
    %v5407 = vunpack.c.h.b16 %v5333
    %v5408 = vunpack.c.l.b16 %v5334
    %v5409 = vunpack.c.h.b16 %v5334
    %v5410 = vunpack.c.l.b16 %v5335
    %v5411 = vunpack.c.h.b16 %v5335
    %v5412 = vunpack.c.l.b16 %v5336
    %v5413 = vunpack.c.h.b16 %v5336
    %v5414 = vunpack.c.l.b16 %v5337
    %v5415 = vunpack.c.h.b16 %v5337
    %v5416 = vunpack.c.l.b16 %v5338
    %v5417 = vunpack.c.h.b16 %v5338
    %v5418 = vunpack.c.l.b16 %v5339
    %v5419 = vunpack.c.h.b16 %v5339
    %v5420 = vunpack.c.l.b16 %v5340
    %v5421 = vunpack.c.h.b16 %v5340
    %v5422 = vunpack.c.l.b16 %v5341
    %v5423 = vunpack.c.h.b16 %v5341
    %v5424 = vunpack.c.l.b16 %v5342
    %v5425 = vunpack.c.h.b16 %v5342
    %v5426 = vunpack.c.l.b16 %v5343
    %v5427 = vunpack.c.h.b16 %v5343
    %v5428 = vunpack.c.l.b16 %v5344
    %v5429 = vunpack.c.h.b16 %v5344
    %v5430 = vunpack.c.l.b16 %v5345
    %v5431 = vunpack.c.h.b16 %v5345
    %v5432 = vunpack.c.l.b16 %v5346
    %v5433 = vunpack.c.h.b16 %v5346
    %v5434 = vunpack.c.l.b16 %v5347
    %v5435 = vunpack.c.h.b16 %v5347
    %v5436 = vunpack.c.l.b16 %v5348
    %v5437 = vunpack.c.h.b16 %v5348
    %v5438 = vunpack.c.l.b16 %v5349
    %v5439 = vunpack.c.h.b16 %v5349
    %v5440 = vunpack.c.l.b16 %v5350
    %v5441 = vunpack.c.h.b16 %v5350
    %v5442 = vunpack.c.l.b16 %v5351
    %v5443 = vunpack.c.h.b16 %v5351
    %v5444 = vunpack.c.l.b16 %v5352
    %v5445 = vunpack.c.h.b16 %v5352
    %v5446 = vunpack.c.l.b16 %v5353
    %v5447 = vunpack.c.h.b16 %v5353
    %v5448 = vunpack.c.l.b16 %v5354
    %v5449 = vunpack.c.h.b16 %v5354
    %v5450 = vunpack.c.l.b16 %v5355
    %v5451 = vunpack.c.h.b16 %v5355
    %v5452 = vpack.c.b16 %v5392, %v5388
    %v5453 = vpack.c.b16 %v5393, %v5389
    %v5454 = vpack.c.b16 %v5394, %v5390
    %v5455 = vpack.c.b16 %v5395, %v5391
    %v5456 = vpack.c.b16 %v5400, %v5396
    %v5457 = vpack.c.b16 %v5401, %v5397
    %v5458 = vpack.c.b16 %v5402, %v5398
    %v5459 = vpack.c.b16 %v5403, %v5399
    %v5460 = vpack.c.b16 %v5408, %v5404
    %v5461 = vpack.c.b16 %v5409, %v5405
    %v5462 = vpack.c.b16 %v5410, %v5406
    %v5463 = vpack.c.b16 %v5411, %v5407
    %v5464 = vpack.c.b16 %v5416, %v5412
    %v5465 = vpack.c.b16 %v5417, %v5413
    %v5466 = vpack.c.b16 %v5418, %v5414
    %v5467 = vpack.c.b16 %v5419, %v5415
    %v5468 = vpack.c.b16 %v5424, %v5420
    %v5469 = vpack.c.b16 %v5425, %v5421
    %v5470 = vpack.c.b16 %v5426, %v5422
    %v5471 = vpack.c.b16 %v5427, %v5423
    %v5472 = vpack.c.b16 %v5432, %v5428
    %v5473 = vpack.c.b16 %v5433, %v5429
    %v5474 = vpack.c.b16 %v5434, %v5430
    %v5475 = vpack.c.b16 %v5435, %v5431
    %v5476 = vpack.c.b16 %v5440, %v5436
    %v5477 = vpack.c.b16 %v5441, %v5437
    %v5478 = vpack.c.b16 %v5442, %v5438
    %v5479 = vpack.c.b16 %v5443, %v5439
    %v5480 = vpack.c.b16 %v5448, %v5444
    %v5481 = vpack.c.b16 %v5449, %v5445
    %v5482 = vpack.c.b16 %v5450, %v5446
    %v5483 = vpack.c.b16 %v5451, %v5447
    %5516 = vmatpush.bf16.msra.mxu0 %v5480
    %5517 = vmatpush.bf16.msra.mxu0 %v5476
    %5518 = vmatpush.bf16.msra.mxu0 %v5472
    %5519 = vmatpush.bf16.msra.mxu0 %v5468
    %5520 = vmatpush.bf16.msra.mxu0 %v5464
    %5521 = vmatpush.bf16.msra.mxu0 %v5460
    %5522 = vmatpush.bf16.msra.mxu0 %v5456
    %5523 = vmatpush.bf16.msra.mxu0 %v5452
    %5524 = vmatmul.bf16.gmra.mxu0 %v5323
    %v5525 = vpop.f32.mrf.mxu0
    %v5526 = vadd.f32 0.0, %v5525
    %v5527 = vpop.f32.mrf.mxu0
    %5528 = vdwg.mxu0
    %5529 = vmatpush.bf16.msra.mxu0 %v5481
    %5530 = vmatpush.bf16.msra.mxu0 %v5477
    %5531 = vmatpush.bf16.msra.mxu0 %v5473
    %5532 = vmatpush.bf16.msra.mxu0 %v5469
    %5533 = vmatpush.bf16.msra.mxu0 %v5465
    %5534 = vmatpush.bf16.msra.mxu0 %v5461
    %5535 = vmatpush.bf16.msra.mxu0 %v5457
    %5536 = vmatpush.bf16.msra.mxu0 %v5453
    %5537 = vmatmul.bf16.gmra.mxu0 %v5323
    %v5538 = vpop.f32.mrf.mxu0
    %v5539 = vadd.f32 0.0, %v5538
    %v5540 = vpop.f32.mrf.mxu0
    %5541 = vdwg.mxu0
    %5542 = vmatpush.bf16.msra.mxu0 %v5482
    %5543 = vmatpush.bf16.msra.mxu0 %v5478
    %5544 = vmatpush.bf16.msra.mxu0 %v5474
    %5545 = vmatpush.bf16.msra.mxu0 %v5470
    %5546 = vmatpush.bf16.msra.mxu0 %v5466
    %5547 = vmatpush.bf16.msra.mxu0 %v5462
    %5548 = vmatpush.bf16.msra.mxu0 %v5458
    %5549 = vmatpush.bf16.msra.mxu0 %v5454
    %5550 = vmatmul.bf16.gmra.mxu0 %v5323
    %v5551 = vpop.f32.mrf.mxu0
    %v5552 = vadd.f32 0.0, %v5551
    %v5553 = vpop.f32.mrf.mxu0
    %5554 = vdwg.mxu0
    %5555 = vmatpush.bf16.msra.mxu0 %v5483
    %5556 = vmatpush.bf16.msra.mxu0 %v5479
    %5557 = vmatpush.bf16.msra.mxu0 %v5475
    %5558 = vmatpush.bf16.msra.mxu0 %v5471
    %5559 = vmatpush.bf16.msra.mxu0 %v5467
    %5560 = vmatpush.bf16.msra.mxu0 %v5463
    %5561 = vmatpush.bf16.msra.mxu0 %v5459
    %5562 = vmatpush.bf16.msra.mxu0 %v5455
    %5563 = vmatmul.bf16.gmra.mxu0 %v5323
    %v5564 = vpop.f32.mrf.mxu0
    %v5565 = vadd.f32 0.0, %v5564
    %v5566 = vpop.f32.mrf.mxu0
    %5567 = vdwg.mxu0
    %v5568 = vadd.f32 %v5319, %v5526
    %v5569 = vadd.f32 %v5320, %v5539
    %v5570 = vadd.f32 %v5321, %v5552
    %v5571 = vadd.f32 %v5322, %v5565
    %v5572 = vld [vmem:[#allocation2 + $0x20] sm:$0xff]
    %v5573 = vld [vmem:[#allocation2 + $0x28] sm:$0xff]
    %v5574 = vld [vmem:[#allocation2 + $0x30] sm:$0xff]
    %v5575 = vld [vmem:[#allocation2 + $0x38] sm:$0xff]
    %v5576 = vpack.c.bf16 %v5313, %v5313
    %v5577 = vld [vmem:[%s1050] sm:$0xff]
    %v5578 = vld [vmem:[%s1050 + $0x8] sm:$0xff]
    %v5579 = vld [vmem:[%s1050 + $0x10] sm:$0xff]
    %v5580 = vld [vmem:[%s1050 + $0x18] sm:$0xff]
    %v5581 = vld [vmem:[%s1050 + $0x20] sm:$0xff]
    %v5582 = vld [vmem:[%s1050 + $0x28] sm:$0xff]
    %v5583 = vld [vmem:[%s1050 + $0x30] sm:$0xff]
    %v5584 = vld [vmem:[%s1050 + $0x38] sm:$0xff]
    %v5585 = vld [vmem:[%s1050 + $0x40] sm:$0xff]
    %v5586 = vld [vmem:[%s1050 + $0x48] sm:$0xff]
    %v5587 = vld [vmem:[%s1050 + $0x50] sm:$0xff]
    %v5588 = vld [vmem:[%s1050 + $0x58] sm:$0xff]
    %v5589 = vld [vmem:[%s1050 + $0x60] sm:$0xff]
    %v5590 = vld [vmem:[%s1050 + $0x68] sm:$0xff]
    %v5591 = vld [vmem:[%s1050 + $0x70] sm:$0xff]
    %v5592 = vld [vmem:[%s1050 + $0x78] sm:$0xff]
    %v5593 = vld [vmem:[%s1050 + $0x80] sm:$0xff]
    %v5594 = vld [vmem:[%s1050 + $0x88] sm:$0xff]
    %v5595 = vld [vmem:[%s1050 + $0x90] sm:$0xff]
    %v5596 = vld [vmem:[%s1050 + $0x98] sm:$0xff]
    %v5597 = vld [vmem:[%s1050 + $0xa0] sm:$0xff]
    %v5598 = vld [vmem:[%s1050 + $0xa8] sm:$0xff]
    %v5599 = vld [vmem:[%s1050 + $0xb0] sm:$0xff]
    %v5600 = vld [vmem:[%s1050 + $0xb8] sm:$0xff]
    %v5601 = vld [vmem:[%s1050 + $0xc0] sm:$0xff]
    %v5602 = vld [vmem:[%s1050 + $0xc8] sm:$0xff]
    %v5603 = vld [vmem:[%s1050 + $0xd0] sm:$0xff]
    %v5604 = vld [vmem:[%s1050 + $0xd8] sm:$0xff]
    %v5605 = vld [vmem:[%s1050 + $0xe0] sm:$0xff]
    %v5606 = vld [vmem:[%s1050 + $0xe8] sm:$0xff]
    %v5607 = vld [vmem:[%s1050 + $0xf0] sm:$0xff]
    %v5608 = vld [vmem:[%s1050 + $0xf8] sm:$0xff]
    %v5641 = vunpack.c.l.b16 %v5577
    %v5642 = vunpack.c.h.b16 %v5577
    %v5643 = vunpack.c.l.b16 %v5578
    %v5644 = vunpack.c.h.b16 %v5578
    %v5645 = vunpack.c.l.b16 %v5579
    %v5646 = vunpack.c.h.b16 %v5579
    %v5647 = vunpack.c.l.b16 %v5580
    %v5648 = vunpack.c.h.b16 %v5580
    %v5649 = vunpack.c.l.b16 %v5581
    %v5650 = vunpack.c.h.b16 %v5581
    %v5651 = vunpack.c.l.b16 %v5582
    %v5652 = vunpack.c.h.b16 %v5582
    %v5653 = vunpack.c.l.b16 %v5583
    %v5654 = vunpack.c.h.b16 %v5583
    %v5655 = vunpack.c.l.b16 %v5584
    %v5656 = vunpack.c.h.b16 %v5584
    %v5657 = vunpack.c.l.b16 %v5585
    %v5658 = vunpack.c.h.b16 %v5585
    %v5659 = vunpack.c.l.b16 %v5586
    %v5660 = vunpack.c.h.b16 %v5586
    %v5661 = vunpack.c.l.b16 %v5587
    %v5662 = vunpack.c.h.b16 %v5587
    %v5663 = vunpack.c.l.b16 %v5588
    %v5664 = vunpack.c.h.b16 %v5588
    %v5665 = vunpack.c.l.b16 %v5589
    %v5666 = vunpack.c.h.b16 %v5589
    %v5667 = vunpack.c.l.b16 %v5590
    %v5668 = vunpack.c.h.b16 %v5590
    %v5669 = vunpack.c.l.b16 %v5591
    %v5670 = vunpack.c.h.b16 %v5591
    %v5671 = vunpack.c.l.b16 %v5592
    %v5672 = vunpack.c.h.b16 %v5592
    %v5673 = vunpack.c.l.b16 %v5593
    %v5674 = vunpack.c.h.b16 %v5593
    %v5675 = vunpack.c.l.b16 %v5594
    %v5676 = vunpack.c.h.b16 %v5594
    %v5677 = vunpack.c.l.b16 %v5595
    %v5678 = vunpack.c.h.b16 %v5595
    %v5679 = vunpack.c.l.b16 %v5596
    %v5680 = vunpack.c.h.b16 %v5596
    %v5681 = vunpack.c.l.b16 %v5597
    %v5682 = vunpack.c.h.b16 %v5597
    %v5683 = vunpack.c.l.b16 %v5598
    %v5684 = vunpack.c.h.b16 %v5598
    %v5685 = vunpack.c.l.b16 %v5599
    %v5686 = vunpack.c.h.b16 %v5599
    %v5687 = vunpack.c.l.b16 %v5600
    %v5688 = vunpack.c.h.b16 %v5600
    %v5689 = vunpack.c.l.b16 %v5601
    %v5690 = vunpack.c.h.b16 %v5601
    %v5691 = vunpack.c.l.b16 %v5602
    %v5692 = vunpack.c.h.b16 %v5602
    %v5693 = vunpack.c.l.b16 %v5603
    %v5694 = vunpack.c.h.b16 %v5603
    %v5695 = vunpack.c.l.b16 %v5604
    %v5696 = vunpack.c.h.b16 %v5604
    %v5697 = vunpack.c.l.b16 %v5605
    %v5698 = vunpack.c.h.b16 %v5605
    %v5699 = vunpack.c.l.b16 %v5606
    %v5700 = vunpack.c.h.b16 %v5606
    %v5701 = vunpack.c.l.b16 %v5607
    %v5702 = vunpack.c.h.b16 %v5607
    %v5703 = vunpack.c.l.b16 %v5608
    %v5704 = vunpack.c.h.b16 %v5608
    %v5705 = vpack.c.b16 %v5645, %v5641
    %v5706 = vpack.c.b16 %v5646, %v5642
    %v5707 = vpack.c.b16 %v5647, %v5643
    %v5708 = vpack.c.b16 %v5648, %v5644
    %v5709 = vpack.c.b16 %v5653, %v5649
    %v5710 = vpack.c.b16 %v5654, %v5650
    %v5711 = vpack.c.b16 %v5655, %v5651
    %v5712 = vpack.c.b16 %v5656, %v5652
    %v5713 = vpack.c.b16 %v5661, %v5657
    %v5714 = vpack.c.b16 %v5662, %v5658
    %v5715 = vpack.c.b16 %v5663, %v5659
    %v5716 = vpack.c.b16 %v5664, %v5660
    %v5717 = vpack.c.b16 %v5669, %v5665
    %v5718 = vpack.c.b16 %v5670, %v5666
    %v5719 = vpack.c.b16 %v5671, %v5667
    %v5720 = vpack.c.b16 %v5672, %v5668
    %v5721 = vpack.c.b16 %v5677, %v5673
    %v5722 = vpack.c.b16 %v5678, %v5674
    %v5723 = vpack.c.b16 %v5679, %v5675
    %v5724 = vpack.c.b16 %v5680, %v5676
    %v5725 = vpack.c.b16 %v5685, %v5681
    %v5726 = vpack.c.b16 %v5686, %v5682
    %v5727 = vpack.c.b16 %v5687, %v5683
    %v5728 = vpack.c.b16 %v5688, %v5684
    %v5729 = vpack.c.b16 %v5693, %v5689
    %v5730 = vpack.c.b16 %v5694, %v5690
    %v5731 = vpack.c.b16 %v5695, %v5691
    %v5732 = vpack.c.b16 %v5696, %v5692
    %v5733 = vpack.c.b16 %v5701, %v5697
    %v5734 = vpack.c.b16 %v5702, %v5698
    %v5735 = vpack.c.b16 %v5703, %v5699
    %v5736 = vpack.c.b16 %v5704, %v5700
    %5769 = vmatpush.bf16.msra.mxu0 %v5733
    %5770 = vmatpush.bf16.msra.mxu0 %v5729
    %5771 = vmatpush.bf16.msra.mxu0 %v5725
    %5772 = vmatpush.bf16.msra.mxu0 %v5721
    %5773 = vmatpush.bf16.msra.mxu0 %v5717
    %5774 = vmatpush.bf16.msra.mxu0 %v5713
    %5775 = vmatpush.bf16.msra.mxu0 %v5709
    %5776 = vmatpush.bf16.msra.mxu0 %v5705
    %5777 = vmatmul.bf16.gmra.mxu0 %v5576
    %v5778 = vpop.f32.mrf.mxu0
    %v5779 = vadd.f32 0.0, %v5778
    %v5780 = vpop.f32.mrf.mxu0
    %5781 = vdwg.mxu0
    %5782 = vmatpush.bf16.msra.mxu0 %v5734
    %5783 = vmatpush.bf16.msra.mxu0 %v5730
    %5784 = vmatpush.bf16.msra.mxu0 %v5726
    %5785 = vmatpush.bf16.msra.mxu0 %v5722
    %5786 = vmatpush.bf16.msra.mxu0 %v5718
    %5787 = vmatpush.bf16.msra.mxu0 %v5714
    %5788 = vmatpush.bf16.msra.mxu0 %v5710
    %5789 = vmatpush.bf16.msra.mxu0 %v5706
    %5790 = vmatmul.bf16.gmra.mxu0 %v5576
    %v5791 = vpop.f32.mrf.mxu0
    %v5792 = vadd.f32 0.0, %v5791
    %v5793 = vpop.f32.mrf.mxu0
    %5794 = vdwg.mxu0
    %5795 = vmatpush.bf16.msra.mxu0 %v5735
    %5796 = vmatpush.bf16.msra.mxu0 %v5731
    %5797 = vmatpush.bf16.msra.mxu0 %v5727
    %5798 = vmatpush.bf16.msra.mxu0 %v5723
    %5799 = vmatpush.bf16.msra.mxu0 %v5719
    %5800 = vmatpush.bf16.msra.mxu0 %v5715
    %5801 = vmatpush.bf16.msra.mxu0 %v5711
    %5802 = vmatpush.bf16.msra.mxu0 %v5707
    %5803 = vmatmul.bf16.gmra.mxu0 %v5576
    %v5804 = vpop.f32.mrf.mxu0
    %v5805 = vadd.f32 0.0, %v5804
    %v5806 = vpop.f32.mrf.mxu0
    %5807 = vdwg.mxu0
    %5808 = vmatpush.bf16.msra.mxu0 %v5736
    %5809 = vmatpush.bf16.msra.mxu0 %v5732
    %5810 = vmatpush.bf16.msra.mxu0 %v5728
    %5811 = vmatpush.bf16.msra.mxu0 %v5724
    %5812 = vmatpush.bf16.msra.mxu0 %v5720
    %5813 = vmatpush.bf16.msra.mxu0 %v5716
    %5814 = vmatpush.bf16.msra.mxu0 %v5712
    %5815 = vmatpush.bf16.msra.mxu0 %v5708
    %5816 = vmatmul.bf16.gmra.mxu0 %v5576
    %v5817 = vpop.f32.mrf.mxu0
    %v5818 = vadd.f32 0.0, %v5817
    %v5819 = vpop.f32.mrf.mxu0
    %5820 = vdwg.mxu0
    %v5821 = vadd.f32 %v5572, %v5779
    %v5822 = vadd.f32 %v5573, %v5792
    %v5823 = vadd.f32 %v5574, %v5805
    %v5824 = vadd.f32 %v5575, %v5818
    %v5825 = vxor.u32 %v5568, 2147483648
    %v5826 = vmul.f32 %v5825, 1.442695
    %v5827 = vpow.pop %v5826
    %v5828 = vadd.f32 %v5827, 1.0
    %v5829 = vrcp.pop %v5828
    %v5830 = vmul.f32 %v5828, %v5829
    %v5831 = vsub.f32 1.0, %v5830
    %v5832 = vmul.f32 %v5829, %v5831
    %v5833 = vadd.f32 %v5829, %v5832
    %vm5834 = vweird.f32 %v5828
    %vm5835 = vweird.f32 %v5829
    %vm5836 = vmor %vm5834, %vm5835
    %v5837 = vsel %vm5836, %v5829, %v5833
    %v5838 = vand.u32 2147483647, %v5828
    %vm5839 = vcmp.eq.f32.partialorder %v5838, 8.507059e+37
    %v5840 = vand.u32 %v5828, 2147483648
    %v5841 = vor.u32 1.1754944e-38, %v5840
    %v5842 = vsel %vm5839, %v5841, %v5837
    %v5843 = vmul.f32 1.0, %v5842
    %v5844 = vxor.u32 %v5569, 2147483648
    %v5845 = vmul.f32 %v5844, 1.442695
    %v5846 = vpow.pop %v5845
    %v5847 = vadd.f32 %v5846, 1.0
    %v5848 = vrcp.pop %v5847
    %v5849 = vmul.f32 %v5847, %v5848
    %v5850 = vsub.f32 1.0, %v5849
    %v5851 = vmul.f32 %v5848, %v5850
    %v5852 = vadd.f32 %v5848, %v5851
    %vm5853 = vweird.f32 %v5847
    %vm5854 = vweird.f32 %v5848
    %vm5855 = vmor %vm5853, %vm5854
    %v5856 = vsel %vm5855, %v5848, %v5852
    %v5857 = vand.u32 2147483647, %v5847
    %vm5858 = vcmp.eq.f32.partialorder %v5857, 8.507059e+37
    %v5859 = vand.u32 %v5847, 2147483648
    %v5860 = vor.u32 1.1754944e-38, %v5859
    %v5861 = vsel %vm5858, %v5860, %v5856
    %v5862 = vmul.f32 1.0, %v5861
    %v5863 = vtanh.pop %v5570
    %v5864 = vxor.u32 %v5571, 2147483648
    %v5865 = vmul.f32 %v5864, 1.442695
    %v5866 = vpow.pop %v5865
    %v5867 = vadd.f32 %v5866, 1.0
    %v5868 = vrcp.pop %v5867
    %v5869 = vmul.f32 %v5867, %v5868
    %v5870 = vsub.f32 1.0, %v5869
    %v5871 = vmul.f32 %v5868, %v5870
    %v5872 = vadd.f32 %v5868, %v5871
    %vm5873 = vweird.f32 %v5867
    %vm5874 = vweird.f32 %v5868
    %vm5875 = vmor %vm5873, %vm5874
    %v5876 = vsel %vm5875, %v5868, %v5872
    %v5877 = vand.u32 2147483647, %v5867
    %vm5878 = vcmp.eq.f32.partialorder %v5877, 8.507059e+37
    %v5879 = vand.u32 %v5867, 2147483648
    %v5880 = vor.u32 1.1754944e-38, %v5879
    %v5881 = vsel %vm5878, %v5880, %v5876
    %v5882 = vmul.f32 1.0, %v5881
    %v5883 = vmul.f32 %v5862, %v5312
    %v5884 = vmul.f32 %v5843, %v5863
    %v5885 = vadd.f32 %v5883, %v5884
    %v5886 = vtanh.pop %v5885
    %v5887 = vmul.f32 %v5882, %v5886
    %v5888 = vxor.u32 %v5821, 2147483648
    %v5889 = vmul.f32 %v5888, 1.442695
    %v5890 = vpow.pop %v5889
    %v5891 = vadd.f32 %v5890, 1.0
    %v5892 = vrcp.pop %v5891
    %v5893 = vmul.f32 %v5891, %v5892
    %v5894 = vsub.f32 1.0, %v5893
    %v5895 = vmul.f32 %v5892, %v5894
    %v5896 = vadd.f32 %v5892, %v5895
    %vm5897 = vweird.f32 %v5891
    %vm5898 = vweird.f32 %v5892
    %vm5899 = vmor %vm5897, %vm5898
    %v5900 = vsel %vm5899, %v5892, %v5896
    %v5901 = vand.u32 2147483647, %v5891
    %vm5902 = vcmp.eq.f32.partialorder %v5901, 8.507059e+37
    %v5903 = vand.u32 %v5891, 2147483648
    %v5904 = vor.u32 1.1754944e-38, %v5903
    %v5905 = vsel %vm5902, %v5904, %v5900
    %v5906 = vmul.f32 1.0, %v5905
    %v5907 = vxor.u32 %v5822, 2147483648
    %v5908 = vmul.f32 %v5907, 1.442695
    %v5909 = vpow.pop %v5908
    %v5910 = vadd.f32 %v5909, 1.0
    %v5911 = vrcp.pop %v5910
    %v5912 = vmul.f32 %v5910, %v5911
    %v5913 = vsub.f32 1.0, %v5912
    %v5914 = vmul.f32 %v5911, %v5913
    %v5915 = vadd.f32 %v5911, %v5914
    %vm5916 = vweird.f32 %v5910
    %vm5917 = vweird.f32 %v5911
    %vm5918 = vmor %vm5916, %vm5917
    %v5919 = vsel %vm5918, %v5911, %v5915
    %v5920 = vand.u32 2147483647, %v5910
    %vm5921 = vcmp.eq.f32.partialorder %v5920, 8.507059e+37
    %v5922 = vand.u32 %v5910, 2147483648
    %v5923 = vor.u32 1.1754944e-38, %v5922
    %v5924 = vsel %vm5921, %v5923, %v5919
    %v5925 = vmul.f32 1.0, %v5924
    %v5926 = vtanh.pop %v5823
    %v5927 = vxor.u32 %v5824, 2147483648
    %v5928 = vmul.f32 %v5927, 1.442695
    %v5929 = vpow.pop %v5928
    %v5930 = vadd.f32 %v5929, 1.0
    %v5931 = vrcp.pop %v5930
    %v5932 = vmul.f32 %v5930, %v5931
    %v5933 = vsub.f32 1.0, %v5932
    %v5934 = vmul.f32 %v5931, %v5933
    %v5935 = vadd.f32 %v5931, %v5934
    %vm5936 = vweird.f32 %v5930
    %vm5937 = vweird.f32 %v5931
    %vm5938 = vmor %vm5936, %vm5937
    %v5939 = vsel %vm5938, %v5931, %v5935
    %v5940 = vand.u32 2147483647, %v5930
    %vm5941 = vcmp.eq.f32.partialorder %v5940, 8.507059e+37
    %v5942 = vand.u32 %v5930, 2147483648
    %v5943 = vor.u32 1.1754944e-38, %v5942
    %v5944 = vsel %vm5941, %v5943, %v5939
    %v5945 = vmul.f32 1.0, %v5944
    %v5946 = vmul.f32 %v5925, %v5314
    %v5947 = vmul.f32 %v5906, %v5926
    %v5948 = vadd.f32 %v5946, %v5947
    %v5949 = vtanh.pop %v5948
    %v5950 = vmul.f32 %v5945, %v5949
    %v5951 = vld [vmem:[%s1427] sm:$0xff]
    %vm5952 = vcmp.ne.f32.partialorder %v5951, 0.0
    %v5953 = vld [vmem:[%s1] sm:$0xff]
    %vm5954 = vcmp.ne.f32.partialorder %v5953, 0.0
    %v5955 = vsel %vm5952, %v5887, 0.0
    %5956 = vst [vmem:[%s1435] sm:$0xff] %v5955
    %v5957 = vsel %vm5954, %v5950, 0.0
    %5958 = vst [vmem:[#allocation3 + $0x8] sm:$0xff] %v5957
    %v5959 = vld [vmem:[#allocation3] sm:$0xff]
    %v5960 = vld [vmem:[#allocation3 + $0x8] sm:$0xff]
    %v5961 = vld [vmem:[#allocation3 + $0x10] sm:$0xff]
    %v5962 = vld [vmem:[#allocation3 + $0x18] sm:$0xff]
    %v5963 = vld [vmem:[#allocation3 + $0x20] sm:$0xff]
    %v5964 = vld [vmem:[#allocation3 + $0x28] sm:$0xff]
    %v5965 = vld [vmem:[#allocation3 + $0x30] sm:$0xff]
    %v5966 = vld [vmem:[#allocation3 + $0x38] sm:$0xff]
    %v5967 = vld [vmem:[#allocation3 + $0x40] sm:$0xff]
    %v5968 = vld [vmem:[#allocation3 + $0x48] sm:$0xff]
    %v5969 = vld [vmem:[#allocation3 + $0x50] sm:$0xff]
    %v5970 = vld [vmem:[#allocation3 + $0x58] sm:$0xff]
    %v5971 = vld [vmem:[#allocation3 + $0x60] sm:$0xff]
    %v5972 = vld [vmem:[#allocation3 + $0x68] sm:$0xff]
    %v5973 = vld [vmem:[#allocation3 + $0x70] sm:$0xff]
    %v5974 = vld [vmem:[#allocation3 + $0x78] sm:$0xff]
    %v5975 = vpack.c.bf16 %v5961, %v5959
    %v5976 = vpack.c.bf16 %v5962, %v5960
    %v5977 = vpack.c.bf16 %v5965, %v5963
    %v5978 = vpack.c.bf16 %v5966, %v5964
    %v5979 = vpack.c.bf16 %v5969, %v5967
    %v5980 = vpack.c.bf16 %v5970, %v5968
    %v5981 = vpack.c.bf16 %v5973, %v5971
    %v5982 = vpack.c.bf16 %v5974, %v5972
    %v5983 = vld [vmem:[#allocation6] sm:$0xff]
    %v5984 = vld [vmem:[#allocation6 + $0x8] sm:$0xff]
    %v5985 = vld [vmem:[#allocation6 + $0x10] sm:$0xff]
    %v5986 = vld [vmem:[#allocation6 + $0x18] sm:$0xff]
    %v5987 = vld [vmem:[#allocation6 + $0x20] sm:$0xff]
    %v5988 = vld [vmem:[#allocation6 + $0x28] sm:$0xff]
    %v5989 = vld [vmem:[#allocation6 + $0x30] sm:$0xff]
    %v5990 = vld [vmem:[#allocation6 + $0x38] sm:$0xff]
    %v5991 = vld [vmem:[#allocation6 + $0x40] sm:$0xff]
    %v5992 = vld [vmem:[#allocation6 + $0x48] sm:$0xff]
    %v5993 = vld [vmem:[#allocation6 + $0x50] sm:$0xff]
    %v5994 = vld [vmem:[#allocation6 + $0x58] sm:$0xff]
    %v5995 = vld [vmem:[#allocation6 + $0x60] sm:$0xff]
    %v5996 = vld [vmem:[#allocation6 + $0x68] sm:$0xff]
    %v5997 = vld [vmem:[#allocation6 + $0x70] sm:$0xff]
    %v5998 = vld [vmem:[#allocation6 + $0x78] sm:$0xff]
    %v5999 = vld [vmem:[#allocation6 + $0x80] sm:$0xff]
    %v6000 = vld [vmem:[#allocation6 + $0x88] sm:$0xff]
    %v6001 = vld [vmem:[#allocation6 + $0x90] sm:$0xff]
    %v6002 = vld [vmem:[#allocation6 + $0x98] sm:$0xff]
    %v6003 = vld [vmem:[#allocation6 + $0xa0] sm:$0xff]
    %v6004 = vld [vmem:[#allocation6 + $0xa8] sm:$0xff]
    %v6005 = vld [vmem:[#allocation6 + $0xb0] sm:$0xff]
    %v6006 = vld [vmem:[#allocation6 + $0xb8] sm:$0xff]
    %v6007 = vld [vmem:[#allocation6 + $0xc0] sm:$0xff]
    %v6008 = vld [vmem:[#allocation6 + $0xc8] sm:$0xff]
    %v6009 = vld [vmem:[#allocation6 + $0xd0] sm:$0xff]
    %v6010 = vld [vmem:[#allocation6 + $0xd8] sm:$0xff]
    %v6011 = vld [vmem:[#allocation6 + $0xe0] sm:$0xff]
    %v6012 = vld [vmem:[#allocation6 + $0xe8] sm:$0xff]
    %v6013 = vld [vmem:[#allocation6 + $0xf0] sm:$0xff]
    %v6014 = vld [vmem:[#allocation6 + $0xf8] sm:$0xff]
    %v6015 = vld [vmem:[#allocation6 + $0x100] sm:$0xff]
    %v6016 = vld [vmem:[#allocation6 + $0x108] sm:$0xff]
    %v6017 = vld [vmem:[#allocation6 + $0x110] sm:$0xff]
    %v6018 = vld [vmem:[#allocation6 + $0x118] sm:$0xff]
    %v6019 = vld [vmem:[#allocation6 + $0x120] sm:$0xff]
    %v6020 = vld [vmem:[#allocation6 + $0x128] sm:$0xff]
    %v6021 = vld [vmem:[#allocation6 + $0x130] sm:$0xff]
    %v6022 = vld [vmem:[#allocation6 + $0x138] sm:$0xff]
    %v6023 = vld [vmem:[#allocation6 + $0x140] sm:$0xff]
    %v6024 = vld [vmem:[#allocation6 + $0x148] sm:$0xff]
    %v6025 = vld [vmem:[#allocation6 + $0x150] sm:$0xff]
    %v6026 = vld [vmem:[#allocation6 + $0x158] sm:$0xff]
    %v6027 = vld [vmem:[#allocation6 + $0x160] sm:$0xff]
    %v6028 = vld [vmem:[#allocation6 + $0x168] sm:$0xff]
    %v6029 = vld [vmem:[#allocation6 + $0x170] sm:$0xff]
    %v6030 = vld [vmem:[#allocation6 + $0x178] sm:$0xff]
    %v6031 = vld [vmem:[#allocation6 + $0x180] sm:$0xff]
    %v6032 = vld [vmem:[#allocation6 + $0x188] sm:$0xff]
    %v6033 = vld [vmem:[#allocation6 + $0x190] sm:$0xff]
    %v6034 = vld [vmem:[#allocation6 + $0x198] sm:$0xff]
    %v6035 = vld [vmem:[#allocation6 + $0x1a0] sm:$0xff]
    %v6036 = vld [vmem:[#allocation6 + $0x1a8] sm:$0xff]
    %v6037 = vld [vmem:[#allocation6 + $0x1b0] sm:$0xff]
    %v6038 = vld [vmem:[#allocation6 + $0x1b8] sm:$0xff]
    %v6039 = vld [vmem:[#allocation6 + $0x1c0] sm:$0xff]
    %v6040 = vld [vmem:[#allocation6 + $0x1c8] sm:$0xff]
    %v6041 = vld [vmem:[#allocation6 + $0x1d0] sm:$0xff]
    %v6042 = vld [vmem:[#allocation6 + $0x1d8] sm:$0xff]
    %v6043 = vld [vmem:[#allocation6 + $0x1e0] sm:$0xff]
    %v6044 = vld [vmem:[#allocation6 + $0x1e8] sm:$0xff]
    %v6045 = vld [vmem:[#allocation6 + $0x1f0] sm:$0xff]
    %v6046 = vld [vmem:[#allocation6 + $0x1f8] sm:$0xff]
    %v6047 = vld [vmem:[#allocation6 + $0x200] sm:$0xff]
    %v6048 = vld [vmem:[#allocation6 + $0x208] sm:$0xff]
    %v6049 = vld [vmem:[#allocation6 + $0x210] sm:$0xff]
    %v6050 = vld [vmem:[#allocation6 + $0x218] sm:$0xff]
    %v6051 = vld [vmem:[#allocation6 + $0x220] sm:$0xff]
    %v6052 = vld [vmem:[#allocation6 + $0x228] sm:$0xff]
    %v6053 = vld [vmem:[#allocation6 + $0x230] sm:$0xff]
    %v6054 = vld [vmem:[#allocation6 + $0x238] sm:$0xff]
    %v6055 = vld [vmem:[#allocation6 + $0x240] sm:$0xff]
    %v6056 = vld [vmem:[#allocation6 + $0x248] sm:$0xff]
    %v6057 = vld [vmem:[#allocation6 + $0x250] sm:$0xff]
    %v6058 = vld [vmem:[#allocation6 + $0x258] sm:$0xff]
    %v6059 = vld [vmem:[#allocation6 + $0x260] sm:$0xff]
    %v6060 = vld [vmem:[#allocation6 + $0x268] sm:$0xff]
    %v6061 = vld [vmem:[#allocation6 + $0x270] sm:$0xff]
    %v6062 = vld [vmem:[#allocation6 + $0x278] sm:$0xff]
    %v6063 = vld [vmem:[#allocation6 + $0x280] sm:$0xff]
    %v6064 = vld [vmem:[#allocation6 + $0x288] sm:$0xff]
    %v6065 = vld [vmem:[#allocation6 + $0x290] sm:$0xff]
    %v6066 = vld [vmem:[#allocation6 + $0x298] sm:$0xff]
    %v6067 = vld [vmem:[#allocation6 + $0x2a0] sm:$0xff]
    %v6068 = vld [vmem:[#allocation6 + $0x2a8] sm:$0xff]
    %v6069 = vld [vmem:[#allocation6 + $0x2b0] sm:$0xff]
    %v6070 = vld [vmem:[#allocation6 + $0x2b8] sm:$0xff]
    %v6071 = vld [vmem:[#allocation6 + $0x2c0] sm:$0xff]
    %v6072 = vld [vmem:[#allocation6 + $0x2c8] sm:$0xff]
    %v6073 = vld [vmem:[#allocation6 + $0x2d0] sm:$0xff]
    %v6074 = vld [vmem:[#allocation6 + $0x2d8] sm:$0xff]
    %v6075 = vld [vmem:[#allocation6 + $0x2e0] sm:$0xff]
    %v6076 = vld [vmem:[#allocation6 + $0x2e8] sm:$0xff]
    %v6077 = vld [vmem:[#allocation6 + $0x2f0] sm:$0xff]
    %v6078 = vld [vmem:[#allocation6 + $0x2f8] sm:$0xff]
    %v6079 = vld [vmem:[#allocation6 + $0x300] sm:$0xff]
    %v6080 = vld [vmem:[#allocation6 + $0x308] sm:$0xff]
    %v6081 = vld [vmem:[#allocation6 + $0x310] sm:$0xff]
    %v6082 = vld [vmem:[#allocation6 + $0x318] sm:$0xff]
    %v6083 = vld [vmem:[#allocation6 + $0x320] sm:$0xff]
    %v6084 = vld [vmem:[#allocation6 + $0x328] sm:$0xff]
    %v6085 = vld [vmem:[#allocation6 + $0x330] sm:$0xff]
    %v6086 = vld [vmem:[#allocation6 + $0x338] sm:$0xff]
    %v6087 = vld [vmem:[#allocation6 + $0x340] sm:$0xff]
    %v6088 = vld [vmem:[#allocation6 + $0x348] sm:$0xff]
    %v6089 = vld [vmem:[#allocation6 + $0x350] sm:$0xff]
    %v6090 = vld [vmem:[#allocation6 + $0x358] sm:$0xff]
    %v6091 = vld [vmem:[#allocation6 + $0x360] sm:$0xff]
    %v6092 = vld [vmem:[#allocation6 + $0x368] sm:$0xff]
    %v6093 = vld [vmem:[#allocation6 + $0x370] sm:$0xff]
    %v6094 = vld [vmem:[#allocation6 + $0x378] sm:$0xff]
    %v6095 = vld [vmem:[#allocation6 + $0x380] sm:$0xff]
    %v6096 = vld [vmem:[#allocation6 + $0x388] sm:$0xff]
    %v6097 = vld [vmem:[#allocation6 + $0x390] sm:$0xff]
    %v6098 = vld [vmem:[#allocation6 + $0x398] sm:$0xff]
    %v6099 = vld [vmem:[#allocation6 + $0x3a0] sm:$0xff]
    %v6100 = vld [vmem:[#allocation6 + $0x3a8] sm:$0xff]
    %v6101 = vld [vmem:[#allocation6 + $0x3b0] sm:$0xff]
    %v6102 = vld [vmem:[#allocation6 + $0x3b8] sm:$0xff]
    %v6103 = vld [vmem:[#allocation6 + $0x3c0] sm:$0xff]
    %v6104 = vld [vmem:[#allocation6 + $0x3c8] sm:$0xff]
    %v6105 = vld [vmem:[#allocation6 + $0x3d0] sm:$0xff]
    %v6106 = vld [vmem:[#allocation6 + $0x3d8] sm:$0xff]
    %v6107 = vld [vmem:[#allocation6 + $0x3e0] sm:$0xff]
    %v6108 = vld [vmem:[#allocation6 + $0x3e8] sm:$0xff]
    %v6109 = vld [vmem:[#allocation6 + $0x3f0] sm:$0xff]
    %v6110 = vld [vmem:[#allocation6 + $0x3f8] sm:$0xff]
    %v6111 = vld [vmem:[%s7] sm:$0xff]
    %v6113 = vperm.slane %v6111, 0
    %v6114 = vperm.slane %v6111, 1
    %v6115 = vperm.slane %v6111, 2
    %v6116 = vperm.slane %v6111, 3
    %v6117 = vperm.slane %v6111, 4
    %v6118 = vperm.slane %v6111, 5
    %v6119 = vperm.slane %v6111, 6
    %v6120 = vperm.slane %v6111, 7
    %v6257 = vunpack.c.l.b16 %v5983
    %v6258 = vunpack.c.h.b16 %v5983
    %v6259 = vunpack.c.l.b16 %v5984
    %v6260 = vunpack.c.h.b16 %v5984
    %v6261 = vunpack.c.l.b16 %v5985
    %v6262 = vunpack.c.h.b16 %v5985
    %v6263 = vunpack.c.l.b16 %v5986
    %v6264 = vunpack.c.h.b16 %v5986
    %v6265 = vunpack.c.l.b16 %v5987
    %v6266 = vunpack.c.h.b16 %v5987
    %v6267 = vunpack.c.l.b16 %v5988
    %v6268 = vunpack.c.h.b16 %v5988
    %v6269 = vunpack.c.l.b16 %v5989
    %v6270 = vunpack.c.h.b16 %v5989
    %v6271 = vunpack.c.l.b16 %v5990
    %v6272 = vunpack.c.h.b16 %v5990
    %v6273 = vunpack.c.l.b16 %v5991
    %v6274 = vunpack.c.h.b16 %v5991
    %v6275 = vunpack.c.l.b16 %v5992
    %v6276 = vunpack.c.h.b16 %v5992
    %v6277 = vunpack.c.l.b16 %v5993
    %v6278 = vunpack.c.h.b16 %v5993
    %v6279 = vunpack.c.l.b16 %v5994
    %v6280 = vunpack.c.h.b16 %v5994
    %v6281 = vunpack.c.l.b16 %v5995
    %v6282 = vunpack.c.h.b16 %v5995
    %v6283 = vunpack.c.l.b16 %v5996
    %v6284 = vunpack.c.h.b16 %v5996
    %v6285 = vunpack.c.l.b16 %v5997
    %v6286 = vunpack.c.h.b16 %v5997
    %v6287 = vunpack.c.l.b16 %v5998
    %v6288 = vunpack.c.h.b16 %v5998
    %v6289 = vunpack.c.l.b16 %v5999
    %v6290 = vunpack.c.h.b16 %v5999
    %v6291 = vunpack.c.l.b16 %v6000
    %v6292 = vunpack.c.h.b16 %v6000
    %v6293 = vunpack.c.l.b16 %v6001
    %v6294 = vunpack.c.h.b16 %v6001
    %v6295 = vunpack.c.l.b16 %v6002
    %v6296 = vunpack.c.h.b16 %v6002
    %v6297 = vunpack.c.l.b16 %v6003
    %v6298 = vunpack.c.h.b16 %v6003
    %v6299 = vunpack.c.l.b16 %v6004
    %v6300 = vunpack.c.h.b16 %v6004
    %v6301 = vunpack.c.l.b16 %v6005
    %v6302 = vunpack.c.h.b16 %v6005
    %v6303 = vunpack.c.l.b16 %v6006
    %v6304 = vunpack.c.h.b16 %v6006
    %v6305 = vunpack.c.l.b16 %v6007
    %v6306 = vunpack.c.h.b16 %v6007
    %v6307 = vunpack.c.l.b16 %v6008
    %v6308 = vunpack.c.h.b16 %v6008
    %v6309 = vunpack.c.l.b16 %v6009
    %v6310 = vunpack.c.h.b16 %v6009
    %v6311 = vunpack.c.l.b16 %v6010
    %v6312 = vunpack.c.h.b16 %v6010
    %v6313 = vunpack.c.l.b16 %v6011
    %v6314 = vunpack.c.h.b16 %v6011
    %v6315 = vunpack.c.l.b16 %v6012
    %v6316 = vunpack.c.h.b16 %v6012
    %v6317 = vunpack.c.l.b16 %v6013
    %v6318 = vunpack.c.h.b16 %v6013
    %v6319 = vunpack.c.l.b16 %v6014
    %v6320 = vunpack.c.h.b16 %v6014
    %v6321 = vunpack.c.l.b16 %v6015
    %v6322 = vunpack.c.h.b16 %v6015
    %v6323 = vunpack.c.l.b16 %v6016
    %v6324 = vunpack.c.h.b16 %v6016
    %v6325 = vunpack.c.l.b16 %v6017
    %v6326 = vunpack.c.h.b16 %v6017
    %v6327 = vunpack.c.l.b16 %v6018
    %v6328 = vunpack.c.h.b16 %v6018
    %v6329 = vunpack.c.l.b16 %v6019
    %v6330 = vunpack.c.h.b16 %v6019
    %v6331 = vunpack.c.l.b16 %v6020
    %v6332 = vunpack.c.h.b16 %v6020
    %v6333 = vunpack.c.l.b16 %v6021
    %v6334 = vunpack.c.h.b16 %v6021
    %v6335 = vunpack.c.l.b16 %v6022
    %v6336 = vunpack.c.h.b16 %v6022
    %v6337 = vunpack.c.l.b16 %v6023
    %v6338 = vunpack.c.h.b16 %v6023
    %v6339 = vunpack.c.l.b16 %v6024
    %v6340 = vunpack.c.h.b16 %v6024
    %v6341 = vunpack.c.l.b16 %v6025
    %v6342 = vunpack.c.h.b16 %v6025
    %v6343 = vunpack.c.l.b16 %v6026
    %v6344 = vunpack.c.h.b16 %v6026
    %v6345 = vunpack.c.l.b16 %v6027
    %v6346 = vunpack.c.h.b16 %v6027
    %v6347 = vunpack.c.l.b16 %v6028
    %v6348 = vunpack.c.h.b16 %v6028
    %v6349 = vunpack.c.l.b16 %v6029
    %v6350 = vunpack.c.h.b16 %v6029
    %v6351 = vunpack.c.l.b16 %v6030
    %v6352 = vunpack.c.h.b16 %v6030
    %v6353 = vunpack.c.l.b16 %v6031
    %v6354 = vunpack.c.h.b16 %v6031
    %v6355 = vunpack.c.l.b16 %v6032
    %v6356 = vunpack.c.h.b16 %v6032
    %v6357 = vunpack.c.l.b16 %v6033
    %v6358 = vunpack.c.h.b16 %v6033
    %v6359 = vunpack.c.l.b16 %v6034
    %v6360 = vunpack.c.h.b16 %v6034
    %v6361 = vunpack.c.l.b16 %v6035
    %v6362 = vunpack.c.h.b16 %v6035
    %v6363 = vunpack.c.l.b16 %v6036
    %v6364 = vunpack.c.h.b16 %v6036
    %v6365 = vunpack.c.l.b16 %v6037
    %v6366 = vunpack.c.h.b16 %v6037
    %v6367 = vunpack.c.l.b16 %v6038
    %v6368 = vunpack.c.h.b16 %v6038
    %v6369 = vunpack.c.l.b16 %v6039
    %v6370 = vunpack.c.h.b16 %v6039
    %v6371 = vunpack.c.l.b16 %v6040
    %v6372 = vunpack.c.h.b16 %v6040
    %v6373 = vunpack.c.l.b16 %v6041
    %v6374 = vunpack.c.h.b16 %v6041
    %v6375 = vunpack.c.l.b16 %v6042
    %v6376 = vunpack.c.h.b16 %v6042
    %v6377 = vunpack.c.l.b16 %v6043
    %v6378 = vunpack.c.h.b16 %v6043
    %v6379 = vunpack.c.l.b16 %v6044
    %v6380 = vunpack.c.h.b16 %v6044
    %v6381 = vunpack.c.l.b16 %v6045
    %v6382 = vunpack.c.h.b16 %v6045
    %v6383 = vunpack.c.l.b16 %v6046
    %v6384 = vunpack.c.h.b16 %v6046
    %v6385 = vunpack.c.l.b16 %v6047
    %v6386 = vunpack.c.h.b16 %v6047
    %v6387 = vunpack.c.l.b16 %v6048
    %v6388 = vunpack.c.h.b16 %v6048
    %v6389 = vunpack.c.l.b16 %v6049
    %v6390 = vunpack.c.h.b16 %v6049
    %v6391 = vunpack.c.l.b16 %v6050
    %v6392 = vunpack.c.h.b16 %v6050
    %v6393 = vunpack.c.l.b16 %v6051
    %v6394 = vunpack.c.h.b16 %v6051
    %v6395 = vunpack.c.l.b16 %v6052
    %v6396 = vunpack.c.h.b16 %v6052
    %v6397 = vunpack.c.l.b16 %v6053
    %v6398 = vunpack.c.h.b16 %v6053
    %v6399 = vunpack.c.l.b16 %v6054
    %v6400 = vunpack.c.h.b16 %v6054
    %v6401 = vunpack.c.l.b16 %v6055
    %v6402 = vunpack.c.h.b16 %v6055
    %v6403 = vunpack.c.l.b16 %v6056
    %v6404 = vunpack.c.h.b16 %v6056
    %v6405 = vunpack.c.l.b16 %v6057
    %v6406 = vunpack.c.h.b16 %v6057
    %v6407 = vunpack.c.l.b16 %v6058
    %v6408 = vunpack.c.h.b16 %v6058
    %v6409 = vunpack.c.l.b16 %v6059
    %v6410 = vunpack.c.h.b16 %v6059
    %v6411 = vunpack.c.l.b16 %v6060
    %v6412 = vunpack.c.h.b16 %v6060
    %v6413 = vunpack.c.l.b16 %v6061
    %v6414 = vunpack.c.h.b16 %v6061
    %v6415 = vunpack.c.l.b16 %v6062
    %v6416 = vunpack.c.h.b16 %v6062
    %v6417 = vunpack.c.l.b16 %v6063
    %v6418 = vunpack.c.h.b16 %v6063
    %v6419 = vunpack.c.l.b16 %v6064
    %v6420 = vunpack.c.h.b16 %v6064
    %v6421 = vunpack.c.l.b16 %v6065
    %v6422 = vunpack.c.h.b16 %v6065
    %v6423 = vunpack.c.l.b16 %v6066
    %v6424 = vunpack.c.h.b16 %v6066
    %v6425 = vunpack.c.l.b16 %v6067
    %v6426 = vunpack.c.h.b16 %v6067
    %v6427 = vunpack.c.l.b16 %v6068
    %v6428 = vunpack.c.h.b16 %v6068
    %v6429 = vunpack.c.l.b16 %v6069
    %v6430 = vunpack.c.h.b16 %v6069
    %v6431 = vunpack.c.l.b16 %v6070
    %v6432 = vunpack.c.h.b16 %v6070
    %v6433 = vunpack.c.l.b16 %v6071
    %v6434 = vunpack.c.h.b16 %v6071
    %v6435 = vunpack.c.l.b16 %v6072
    %v6436 = vunpack.c.h.b16 %v6072
    %v6437 = vunpack.c.l.b16 %v6073
    %v6438 = vunpack.c.h.b16 %v6073
    %v6439 = vunpack.c.l.b16 %v6074
    %v6440 = vunpack.c.h.b16 %v6074
    %v6441 = vunpack.c.l.b16 %v6075
    %v6442 = vunpack.c.h.b16 %v6075
    %v6443 = vunpack.c.l.b16 %v6076
    %v6444 = vunpack.c.h.b16 %v6076
    %v6445 = vunpack.c.l.b16 %v6077
    %v6446 = vunpack.c.h.b16 %v6077
    %v6447 = vunpack.c.l.b16 %v6078
    %v6448 = vunpack.c.h.b16 %v6078
    %v6449 = vunpack.c.l.b16 %v6079
    %v6450 = vunpack.c.h.b16 %v6079
    %v6451 = vunpack.c.l.b16 %v6080
    %v6452 = vunpack.c.h.b16 %v6080
    %v6453 = vunpack.c.l.b16 %v6081
    %v6454 = vunpack.c.h.b16 %v6081
    %v6455 = vunpack.c.l.b16 %v6082
    %v6456 = vunpack.c.h.b16 %v6082
    %v6457 = vunpack.c.l.b16 %v6083
    %v6458 = vunpack.c.h.b16 %v6083
    %v6459 = vunpack.c.l.b16 %v6084
    %v6460 = vunpack.c.h.b16 %v6084
    %v6461 = vunpack.c.l.b16 %v6085
    %v6462 = vunpack.c.h.b16 %v6085
    %v6463 = vunpack.c.l.b16 %v6086
    %v6464 = vunpack.c.h.b16 %v6086
    %v6465 = vunpack.c.l.b16 %v6087
    %v6466 = vunpack.c.h.b16 %v6087
    %v6467 = vunpack.c.l.b16 %v6088
    %v6468 = vunpack.c.h.b16 %v6088
    %v6469 = vunpack.c.l.b16 %v6089
    %v6470 = vunpack.c.h.b16 %v6089
    %v6471 = vunpack.c.l.b16 %v6090
    %v6472 = vunpack.c.h.b16 %v6090
    %v6473 = vunpack.c.l.b16 %v6091
    %v6474 = vunpack.c.h.b16 %v6091
    %v6475 = vunpack.c.l.b16 %v6092
    %v6476 = vunpack.c.h.b16 %v6092
    %v6477 = vunpack.c.l.b16 %v6093
    %v6478 = vunpack.c.h.b16 %v6093
    %v6479 = vunpack.c.l.b16 %v6094
    %v6480 = vunpack.c.h.b16 %v6094
    %v6481 = vunpack.c.l.b16 %v6095
    %v6482 = vunpack.c.h.b16 %v6095
    %v6483 = vunpack.c.l.b16 %v6096
    %v6484 = vunpack.c.h.b16 %v6096
    %v6485 = vunpack.c.l.b16 %v6097
    %v6486 = vunpack.c.h.b16 %v6097
    %v6487 = vunpack.c.l.b16 %v6098
    %v6488 = vunpack.c.h.b16 %v6098
    %v6489 = vunpack.c.l.b16 %v6099
    %v6490 = vunpack.c.h.b16 %v6099
    %v6491 = vunpack.c.l.b16 %v6100
    %v6492 = vunpack.c.h.b16 %v6100
    %v6493 = vunpack.c.l.b16 %v6101
    %v6494 = vunpack.c.h.b16 %v6101
    %v6495 = vunpack.c.l.b16 %v6102
    %v6496 = vunpack.c.h.b16 %v6102
    %v6497 = vunpack.c.l.b16 %v6103
    %v6498 = vunpack.c.h.b16 %v6103
    %v6499 = vunpack.c.l.b16 %v6104
    %v6500 = vunpack.c.h.b16 %v6104
    %v6501 = vunpack.c.l.b16 %v6105
    %v6502 = vunpack.c.h.b16 %v6105
    %v6503 = vunpack.c.l.b16 %v6106
    %v6504 = vunpack.c.h.b16 %v6106
    %v6505 = vunpack.c.l.b16 %v6107
    %v6506 = vunpack.c.h.b16 %v6107
    %v6507 = vunpack.c.l.b16 %v6108
    %v6508 = vunpack.c.h.b16 %v6108
    %v6509 = vunpack.c.l.b16 %v6109
    %v6510 = vunpack.c.h.b16 %v6109
    %v6511 = vunpack.c.l.b16 %v6110
    %v6512 = vunpack.c.h.b16 %v6110
    %v6513 = vpack.c.b16 %v6265, %v6257
    %v6514 = vpack.c.b16 %v6266, %v6258
    %v6515 = vpack.c.b16 %v6267, %v6259
    %v6516 = vpack.c.b16 %v6268, %v6260
    %v6517 = vpack.c.b16 %v6269, %v6261
    %v6518 = vpack.c.b16 %v6270, %v6262
    %v6519 = vpack.c.b16 %v6271, %v6263
    %v6520 = vpack.c.b16 %v6272, %v6264
    %v6521 = vpack.c.b16 %v6281, %v6273
    %v6522 = vpack.c.b16 %v6282, %v6274
    %v6523 = vpack.c.b16 %v6283, %v6275
    %v6524 = vpack.c.b16 %v6284, %v6276
    %v6525 = vpack.c.b16 %v6285, %v6277
    %v6526 = vpack.c.b16 %v6286, %v6278
    %v6527 = vpack.c.b16 %v6287, %v6279
    %v6528 = vpack.c.b16 %v6288, %v6280
    %v6529 = vpack.c.b16 %v6297, %v6289
    %v6530 = vpack.c.b16 %v6298, %v6290
    %v6531 = vpack.c.b16 %v6299, %v6291
    %v6532 = vpack.c.b16 %v6300, %v6292
    %v6533 = vpack.c.b16 %v6301, %v6293
    %v6534 = vpack.c.b16 %v6302, %v6294
    %v6535 = vpack.c.b16 %v6303, %v6295
    %v6536 = vpack.c.b16 %v6304, %v6296
    %v6537 = vpack.c.b16 %v6313, %v6305
    %v6538 = vpack.c.b16 %v6314, %v6306
    %v6539 = vpack.c.b16 %v6315, %v6307
    %v6540 = vpack.c.b16 %v6316, %v6308
    %v6541 = vpack.c.b16 %v6317, %v6309
    %v6542 = vpack.c.b16 %v6318, %v6310
    %v6543 = vpack.c.b16 %v6319, %v6311
    %v6544 = vpack.c.b16 %v6320, %v6312
    %v6545 = vpack.c.b16 %v6329, %v6321
    %v6546 = vpack.c.b16 %v6330, %v6322
    %v6547 = vpack.c.b16 %v6331, %v6323
    %v6548 = vpack.c.b16 %v6332, %v6324
    %v6549 = vpack.c.b16 %v6333, %v6325
    %v6550 = vpack.c.b16 %v6334, %v6326
    %v6551 = vpack.c.b16 %v6335, %v6327
    %v6552 = vpack.c.b16 %v6336, %v6328
    %v6553 = vpack.c.b16 %v6345, %v6337
    %v6554 = vpack.c.b16 %v6346, %v6338
    %v6555 = vpack.c.b16 %v6347, %v6339
    %v6556 = vpack.c.b16 %v6348, %v6340
    %v6557 = vpack.c.b16 %v6349, %v6341
    %v6558 = vpack.c.b16 %v6350, %v6342
    %v6559 = vpack.c.b16 %v6351, %v6343
    %v6560 = vpack.c.b16 %v6352, %v6344
    %v6561 = vpack.c.b16 %v6361, %v6353
    %v6562 = vpack.c.b16 %v6362, %v6354
    %v6563 = vpack.c.b16 %v6363, %v6355
    %v6564 = vpack.c.b16 %v6364, %v6356
    %v6565 = vpack.c.b16 %v6365, %v6357
    %v6566 = vpack.c.b16 %v6366, %v6358
    %v6567 = vpack.c.b16 %v6367, %v6359
    %v6568 = vpack.c.b16 %v6368, %v6360
    %v6569 = vpack.c.b16 %v6377, %v6369
    %v6570 = vpack.c.b16 %v6378, %v6370
    %v6571 = vpack.c.b16 %v6379, %v6371
    %v6572 = vpack.c.b16 %v6380, %v6372
    %v6573 = vpack.c.b16 %v6381, %v6373
    %v6574 = vpack.c.b16 %v6382, %v6374
    %v6575 = vpack.c.b16 %v6383, %v6375
    %v6576 = vpack.c.b16 %v6384, %v6376
    %v6577 = vpack.c.b16 %v6393, %v6385
    %v6578 = vpack.c.b16 %v6394, %v6386
    %v6579 = vpack.c.b16 %v6395, %v6387
    %v6580 = vpack.c.b16 %v6396, %v6388
    %v6581 = vpack.c.b16 %v6397, %v6389
    %v6582 = vpack.c.b16 %v6398, %v6390
    %v6583 = vpack.c.b16 %v6399, %v6391
    %v6584 = vpack.c.b16 %v6400, %v6392
    %v6585 = vpack.c.b16 %v6409, %v6401
    %v6586 = vpack.c.b16 %v6410, %v6402
    %v6587 = vpack.c.b16 %v6411, %v6403
    %v6588 = vpack.c.b16 %v6412, %v6404
    %v6589 = vpack.c.b16 %v6413, %v6405
    %v6590 = vpack.c.b16 %v6414, %v6406
    %v6591 = vpack.c.b16 %v6415, %v6407
    %v6592 = vpack.c.b16 %v6416, %v6408
    %v6593 = vpack.c.b16 %v6425, %v6417
    %v6594 = vpack.c.b16 %v6426, %v6418
    %v6595 = vpack.c.b16 %v6427, %v6419
    %v6596 = vpack.c.b16 %v6428, %v6420
    %v6597 = vpack.c.b16 %v6429, %v6421
    %v6598 = vpack.c.b16 %v6430, %v6422
    %v6599 = vpack.c.b16 %v6431, %v6423
    %v6600 = vpack.c.b16 %v6432, %v6424
    %v6601 = vpack.c.b16 %v6441, %v6433
    %v6602 = vpack.c.b16 %v6442, %v6434
    %v6603 = vpack.c.b16 %v6443, %v6435
    %v6604 = vpack.c.b16 %v6444, %v6436
    %v6605 = vpack.c.b16 %v6445, %v6437
    %v6606 = vpack.c.b16 %v6446, %v6438
    %v6607 = vpack.c.b16 %v6447, %v6439
    %v6608 = vpack.c.b16 %v6448, %v6440
    %v6609 = vpack.c.b16 %v6457, %v6449
    %v6610 = vpack.c.b16 %v6458, %v6450
    %v6611 = vpack.c.b16 %v6459, %v6451
    %v6612 = vpack.c.b16 %v6460, %v6452
    %v6613 = vpack.c.b16 %v6461, %v6453
    %v6614 = vpack.c.b16 %v6462, %v6454
    %v6615 = vpack.c.b16 %v6463, %v6455
    %v6616 = vpack.c.b16 %v6464, %v6456
    %v6617 = vpack.c.b16 %v6473, %v6465
    %v6618 = vpack.c.b16 %v6474, %v6466
    %v6619 = vpack.c.b16 %v6475, %v6467
    %v6620 = vpack.c.b16 %v6476, %v6468
    %v6621 = vpack.c.b16 %v6477, %v6469
    %v6622 = vpack.c.b16 %v6478, %v6470
    %v6623 = vpack.c.b16 %v6479, %v6471
    %v6624 = vpack.c.b16 %v6480, %v6472
    %v6625 = vpack.c.b16 %v6489, %v6481
    %v6626 = vpack.c.b16 %v6490, %v6482
    %v6627 = vpack.c.b16 %v6491, %v6483
    %v6628 = vpack.c.b16 %v6492, %v6484
    %v6629 = vpack.c.b16 %v6493, %v6485
    %v6630 = vpack.c.b16 %v6494, %v6486
    %v6631 = vpack.c.b16 %v6495, %v6487
    %v6632 = vpack.c.b16 %v6496, %v6488
    %v6633 = vpack.c.b16 %v6505, %v6497
    %v6634 = vpack.c.b16 %v6506, %v6498
    %v6635 = vpack.c.b16 %v6507, %v6499
    %v6636 = vpack.c.b16 %v6508, %v6500
    %v6637 = vpack.c.b16 %v6509, %v6501
    %v6638 = vpack.c.b16 %v6510, %v6502
    %v6639 = vpack.c.b16 %v6511, %v6503
    %v6640 = vpack.c.b16 %v6512, %v6504
    %6769 = vmatpush.bf16.msra.mxu0 %v6569
    %6770 = vmatpush.bf16.msra.mxu0 %v6561
    %6771 = vmatpush.bf16.msra.mxu0 %v6553
    %6772 = vmatpush.bf16.msra.mxu0 %v6545
    %6773 = vmatpush.bf16.msra.mxu0 %v6537
    %6774 = vmatpush.bf16.msra.mxu0 %v6529
    %6775 = vmatpush.bf16.msra.mxu0 %v6521
    %6776 = vmatpush.bf16.msra.mxu0 %v6513
    %6777 = vmatmul.bf16.gmra.mxu0 %v5975
    %v6778 = vpop.f32.mrf.mxu0
    %v6779 = vadd.f32 %v6113, %v6778
    %v6780 = vpop.f32.mrf.mxu0
    %v6781 = vadd.f32 %v6113, %v6780
    %6782 = vmatmul.bf16.gmra.mxu0 %v5977
    %v6783 = vpop.f32.mrf.mxu0
    %v6784 = vadd.f32 %v6113, %v6783
    %v6785 = vpop.f32.mrf.mxu0
    %v6786 = vadd.f32 %v6113, %v6785
    %6787 = vmatmul.bf16.gmra.mxu0 %v5979
    %v6788 = vpop.f32.mrf.mxu0
    %v6789 = vadd.f32 %v6113, %v6788
    %v6790 = vpop.f32.mrf.mxu0
    %v6791 = vadd.f32 %v6113, %v6790
    %6792 = vmatmul.bf16.gmra.mxu0 %v5981
    %v6793 = vpop.f32.mrf.mxu0
    %v6794 = vadd.f32 %v6113, %v6793
    %v6795 = vpop.f32.mrf.mxu0
    %v6796 = vadd.f32 %v6113, %v6795
    %6797 = vdwg.mxu0
    %6798 = vmatpush.bf16.msra.mxu0 %v6633
    %6799 = vmatpush.bf16.msra.mxu0 %v6625
    %6800 = vmatpush.bf16.msra.mxu0 %v6617
    %6801 = vmatpush.bf16.msra.mxu0 %v6609
    %6802 = vmatpush.bf16.msra.mxu0 %v6601
    %6803 = vmatpush.bf16.msra.mxu0 %v6593
    %6804 = vmatpush.bf16.msra.mxu0 %v6585
    %6805 = vmatpush.bf16.msra.mxu0 %v6577
    %6806 = vmatmul.bf16.gmra.mxu0 %v5976
    %v6807 = vpop.f32.mrf.mxu0
    %v6808 = vadd.f32 %v6779, %v6807
    %v6809 = vpop.f32.mrf.mxu0
    %v6810 = vadd.f32 %v6781, %v6809
    %6811 = vmatmul.bf16.gmra.mxu0 %v5978
    %v6812 = vpop.f32.mrf.mxu0
    %v6813 = vadd.f32 %v6784, %v6812
    %v6814 = vpop.f32.mrf.mxu0
    %v6815 = vadd.f32 %v6786, %v6814
    %6816 = vmatmul.bf16.gmra.mxu0 %v5980
    %v6817 = vpop.f32.mrf.mxu0
    %v6818 = vadd.f32 %v6789, %v6817
    %v6819 = vpop.f32.mrf.mxu0
    %v6820 = vadd.f32 %v6791, %v6819
    %6821 = vmatmul.bf16.gmra.mxu0 %v5982
    %v6822 = vpop.f32.mrf.mxu0
    %v6823 = vadd.f32 %v6794, %v6822
    %v6824 = vpop.f32.mrf.mxu0
    %v6825 = vadd.f32 %v6796, %v6824
    %6826 = vdwg.mxu0
    %6827 = vmatpush.bf16.msra.mxu0 %v6570
    %6828 = vmatpush.bf16.msra.mxu0 %v6562
    %6829 = vmatpush.bf16.msra.mxu0 %v6554
    %6830 = vmatpush.bf16.msra.mxu0 %v6546
    %6831 = vmatpush.bf16.msra.mxu0 %v6538
    %6832 = vmatpush.bf16.msra.mxu0 %v6530
    %6833 = vmatpush.bf16.msra.mxu0 %v6522
    %6834 = vmatpush.bf16.msra.mxu0 %v6514
    %6835 = vmatmul.bf16.gmra.mxu0 %v5975
    %v6836 = vpop.f32.mrf.mxu0
    %v6837 = vadd.f32 %v6114, %v6836
    %v6838 = vpop.f32.mrf.mxu0
    %v6839 = vadd.f32 %v6114, %v6838
    %6840 = vmatmul.bf16.gmra.mxu0 %v5977
    %v6841 = vpop.f32.mrf.mxu0
    %v6842 = vadd.f32 %v6114, %v6841
    %v6843 = vpop.f32.mrf.mxu0
    %v6844 = vadd.f32 %v6114, %v6843
    %6845 = vmatmul.bf16.gmra.mxu0 %v5979
    %v6846 = vpop.f32.mrf.mxu0
    %v6847 = vadd.f32 %v6114, %v6846
    %v6848 = vpop.f32.mrf.mxu0
    %v6849 = vadd.f32 %v6114, %v6848
    %6850 = vmatmul.bf16.gmra.mxu0 %v5981
    %v6851 = vpop.f32.mrf.mxu0
    %v6852 = vadd.f32 %v6114, %v6851
    %v6853 = vpop.f32.mrf.mxu0
    %v6854 = vadd.f32 %v6114, %v6853
    %6855 = vdwg.mxu0
    %6856 = vmatpush.bf16.msra.mxu0 %v6634
    %6857 = vmatpush.bf16.msra.mxu0 %v6626
    %6858 = vmatpush.bf16.msra.mxu0 %v6618
    %6859 = vmatpush.bf16.msra.mxu0 %v6610
    %6860 = vmatpush.bf16.msra.mxu0 %v6602
    %6861 = vmatpush.bf16.msra.mxu0 %v6594
    %6862 = vmatpush.bf16.msra.mxu0 %v6586
    %6863 = vmatpush.bf16.msra.mxu0 %v6578
    %6864 = vmatmul.bf16.gmra.mxu0 %v5976
    %v6865 = vpop.f32.mrf.mxu0
    %v6866 = vadd.f32 %v6837, %v6865
    %v6867 = vpop.f32.mrf.mxu0
    %v6868 = vadd.f32 %v6839, %v6867
    %6869 = vmatmul.bf16.gmra.mxu0 %v5978
    %v6870 = vpop.f32.mrf.mxu0
    %v6871 = vadd.f32 %v6842, %v6870
    %v6872 = vpop.f32.mrf.mxu0
    %v6873 = vadd.f32 %v6844, %v6872
    %6874 = vmatmul.bf16.gmra.mxu0 %v5980
    %v6875 = vpop.f32.mrf.mxu0
    %v6876 = vadd.f32 %v6847, %v6875
    %v6877 = vpop.f32.mrf.mxu0
    %v6878 = vadd.f32 %v6849, %v6877
    %6879 = vmatmul.bf16.gmra.mxu0 %v5982
    %v6880 = vpop.f32.mrf.mxu0
    %v6881 = vadd.f32 %v6852, %v6880
    %v6882 = vpop.f32.mrf.mxu0
    %v6883 = vadd.f32 %v6854, %v6882
    %6884 = vdwg.mxu0
    %6885 = vmatpush.bf16.msra.mxu0 %v6571
    %6886 = vmatpush.bf16.msra.mxu0 %v6563
    %6887 = vmatpush.bf16.msra.mxu0 %v6555
    %6888 = vmatpush.bf16.msra.mxu0 %v6547
    %6889 = vmatpush.bf16.msra.mxu0 %v6539
    %6890 = vmatpush.bf16.msra.mxu0 %v6531
    %6891 = vmatpush.bf16.msra.mxu0 %v6523
    %6892 = vmatpush.bf16.msra.mxu0 %v6515
    %6893 = vmatmul.bf16.gmra.mxu0 %v5975
    %v6894 = vpop.f32.mrf.mxu0
    %v6895 = vadd.f32 %v6115, %v6894
    %v6896 = vpop.f32.mrf.mxu0
    %v6897 = vadd.f32 %v6115, %v6896
    %6898 = vmatmul.bf16.gmra.mxu0 %v5977
    %v6899 = vpop.f32.mrf.mxu0
    %v6900 = vadd.f32 %v6115, %v6899
    %v6901 = vpop.f32.mrf.mxu0
    %v6902 = vadd.f32 %v6115, %v6901
    %6903 = vmatmul.bf16.gmra.mxu0 %v5979
    %v6904 = vpop.f32.mrf.mxu0
    %v6905 = vadd.f32 %v6115, %v6904
    %v6906 = vpop.f32.mrf.mxu0
    %v6907 = vadd.f32 %v6115, %v6906
    %6908 = vmatmul.bf16.gmra.mxu0 %v5981
    %v6909 = vpop.f32.mrf.mxu0
    %v6910 = vadd.f32 %v6115, %v6909
    %v6911 = vpop.f32.mrf.mxu0
    %v6912 = vadd.f32 %v6115, %v6911
    %6913 = vdwg.mxu0
    %6914 = vmatpush.bf16.msra.mxu0 %v6635
    %6915 = vmatpush.bf16.msra.mxu0 %v6627
    %6916 = vmatpush.bf16.msra.mxu0 %v6619
    %6917 = vmatpush.bf16.msra.mxu0 %v6611
    %6918 = vmatpush.bf16.msra.mxu0 %v6603
    %6919 = vmatpush.bf16.msra.mxu0 %v6595
    %6920 = vmatpush.bf16.msra.mxu0 %v6587
    %6921 = vmatpush.bf16.msra.mxu0 %v6579
    %6922 = vmatmul.bf16.gmra.mxu0 %v5976
    %v6923 = vpop.f32.mrf.mxu0
    %v6924 = vadd.f32 %v6895, %v6923
    %v6925 = vpop.f32.mrf.mxu0
    %v6926 = vadd.f32 %v6897, %v6925
    %6927 = vmatmul.bf16.gmra.mxu0 %v5978
    %v6928 = vpop.f32.mrf.mxu0
    %v6929 = vadd.f32 %v6900, %v6928
    %v6930 = vpop.f32.mrf.mxu0
    %v6931 = vadd.f32 %v6902, %v6930
    %6932 = vmatmul.bf16.gmra.mxu0 %v5980
    %v6933 = vpop.f32.mrf.mxu0
    %v6934 = vadd.f32 %v6905, %v6933
    %v6935 = vpop.f32.mrf.mxu0
    %v6936 = vadd.f32 %v6907, %v6935
    %6937 = vmatmul.bf16.gmra.mxu0 %v5982
    %v6938 = vpop.f32.mrf.mxu0
    %v6939 = vadd.f32 %v6910, %v6938
    %v6940 = vpop.f32.mrf.mxu0
    %v6941 = vadd.f32 %v6912, %v6940
    %6942 = vdwg.mxu0
    %6943 = vmatpush.bf16.msra.mxu0 %v6572
    %6944 = vmatpush.bf16.msra.mxu0 %v6564
    %6945 = vmatpush.bf16.msra.mxu0 %v6556
    %6946 = vmatpush.bf16.msra.mxu0 %v6548
    %6947 = vmatpush.bf16.msra.mxu0 %v6540
    %6948 = vmatpush.bf16.msra.mxu0 %v6532
    %6949 = vmatpush.bf16.msra.mxu0 %v6524
    %6950 = vmatpush.bf16.msra.mxu0 %v6516
    %6951 = vmatmul.bf16.gmra.mxu0 %v5975
    %v6952 = vpop.f32.mrf.mxu0
    %v6953 = vadd.f32 %v6116, %v6952
    %v6954 = vpop.f32.mrf.mxu0
    %v6955 = vadd.f32 %v6116, %v6954
    %6956 = vmatmul.bf16.gmra.mxu0 %v5977
    %v6957 = vpop.f32.mrf.mxu0
    %v6958 = vadd.f32 %v6116, %v6957
    %v6959 = vpop.f32.mrf.mxu0
    %v6960 = vadd.f32 %v6116, %v6959
    %6961 = vmatmul.bf16.gmra.mxu0 %v5979
    %v6962 = vpop.f32.mrf.mxu0
    %v6963 = vadd.f32 %v6116, %v6962
    %v6964 = vpop.f32.mrf.mxu0
    %v6965 = vadd.f32 %v6116, %v6964
    %6966 = vmatmul.bf16.gmra.mxu0 %v5981
    %v6967 = vpop.f32.mrf.mxu0
    %v6968 = vadd.f32 %v6116, %v6967
    %v6969 = vpop.f32.mrf.mxu0
    %v6970 = vadd.f32 %v6116, %v6969
    %6971 = vdwg.mxu0
    %6972 = vmatpush.bf16.msra.mxu0 %v6636
    %6973 = vmatpush.bf16.msra.mxu0 %v6628
    %6974 = vmatpush.bf16.msra.mxu0 %v6620
    %6975 = vmatpush.bf16.msra.mxu0 %v6612
    %6976 = vmatpush.bf16.msra.mxu0 %v6604
    %6977 = vmatpush.bf16.msra.mxu0 %v6596
    %6978 = vmatpush.bf16.msra.mxu0 %v6588
    %6979 = vmatpush.bf16.msra.mxu0 %v6580
    %6980 = vmatmul.bf16.gmra.mxu0 %v5976
    %v6981 = vpop.f32.mrf.mxu0
    %v6982 = vadd.f32 %v6953, %v6981
    %v6983 = vpop.f32.mrf.mxu0
    %v6984 = vadd.f32 %v6955, %v6983
    %6985 = vmatmul.bf16.gmra.mxu0 %v5978
    %v6986 = vpop.f32.mrf.mxu0
    %v6987 = vadd.f32 %v6958, %v6986
    %v6988 = vpop.f32.mrf.mxu0
    %v6989 = vadd.f32 %v6960, %v6988
    %6990 = vmatmul.bf16.gmra.mxu0 %v5980
    %v6991 = vpop.f32.mrf.mxu0
    %v6992 = vadd.f32 %v6963, %v6991
    %v6993 = vpop.f32.mrf.mxu0
    %v6994 = vadd.f32 %v6965, %v6993
    %6995 = vmatmul.bf16.gmra.mxu0 %v5982
    %v6996 = vpop.f32.mrf.mxu0
    %v6997 = vadd.f32 %v6968, %v6996
    %v6998 = vpop.f32.mrf.mxu0
    %v6999 = vadd.f32 %v6970, %v6998
    %7000 = vdwg.mxu0
    %7001 = vmatpush.bf16.msra.mxu0 %v6573
    %7002 = vmatpush.bf16.msra.mxu0 %v6565
    %7003 = vmatpush.bf16.msra.mxu0 %v6557
    %7004 = vmatpush.bf16.msra.mxu0 %v6549
    %7005 = vmatpush.bf16.msra.mxu0 %v6541
    %7006 = vmatpush.bf16.msra.mxu0 %v6533
    %7007 = vmatpush.bf16.msra.mxu0 %v6525
    %7008 = vmatpush.bf16.msra.mxu0 %v6517
    %7009 = vmatmul.bf16.gmra.mxu0 %v5975
    %v7010 = vpop.f32.mrf.mxu0
    %v7011 = vadd.f32 %v6117, %v7010
    %v7012 = vpop.f32.mrf.mxu0
    %v7013 = vadd.f32 %v6117, %v7012
    %7014 = vmatmul.bf16.gmra.mxu0 %v5977
    %v7015 = vpop.f32.mrf.mxu0
    %v7016 = vadd.f32 %v6117, %v7015
    %v7017 = vpop.f32.mrf.mxu0
    %v7018 = vadd.f32 %v6117, %v7017
    %7019 = vmatmul.bf16.gmra.mxu0 %v5979
    %v7020 = vpop.f32.mrf.mxu0
    %v7021 = vadd.f32 %v6117, %v7020
    %v7022 = vpop.f32.mrf.mxu0
    %v7023 = vadd.f32 %v6117, %v7022
    %7024 = vmatmul.bf16.gmra.mxu0 %v5981
    %v7025 = vpop.f32.mrf.mxu0
    %v7026 = vadd.f32 %v6117, %v7025
    %v7027 = vpop.f32.mrf.mxu0
    %v7028 = vadd.f32 %v6117, %v7027
    %7029 = vdwg.mxu0
    %7030 = vmatpush.bf16.msra.mxu0 %v6637
    %7031 = vmatpush.bf16.msra.mxu0 %v6629
    %7032 = vmatpush.bf16.msra.mxu0 %v6621
    %7033 = vmatpush.bf16.msra.mxu0 %v6613
    %7034 = vmatpush.bf16.msra.mxu0 %v6605
    %7035 = vmatpush.bf16.msra.mxu0 %v6597
    %7036 = vmatpush.bf16.msra.mxu0 %v6589
    %7037 = vmatpush.bf16.msra.mxu0 %v6581
    %7038 = vmatmul.bf16.gmra.mxu0 %v5976
    %v7039 = vpop.f32.mrf.mxu0
    %v7040 = vadd.f32 %v7011, %v7039
    %v7041 = vpop.f32.mrf.mxu0
    %v7042 = vadd.f32 %v7013, %v7041
    %7043 = vmatmul.bf16.gmra.mxu0 %v5978
    %v7044 = vpop.f32.mrf.mxu0
    %v7045 = vadd.f32 %v7016, %v7044
    %v7046 = vpop.f32.mrf.mxu0
    %v7047 = vadd.f32 %v7018, %v7046
    %7048 = vmatmul.bf16.gmra.mxu0 %v5980
    %v7049 = vpop.f32.mrf.mxu0
    %v7050 = vadd.f32 %v7021, %v7049
    %v7051 = vpop.f32.mrf.mxu0
    %v7052 = vadd.f32 %v7023, %v7051
    %7053 = vmatmul.bf16.gmra.mxu0 %v5982
    %v7054 = vpop.f32.mrf.mxu0
    %v7055 = vadd.f32 %v7026, %v7054
    %v7056 = vpop.f32.mrf.mxu0
    %v7057 = vadd.f32 %v7028, %v7056
    %7058 = vdwg.mxu0
    %7059 = vmatpush.bf16.msra.mxu0 %v6574
    %7060 = vmatpush.bf16.msra.mxu0 %v6566
    %7061 = vmatpush.bf16.msra.mxu0 %v6558
    %7062 = vmatpush.bf16.msra.mxu0 %v6550
    %7063 = vmatpush.bf16.msra.mxu0 %v6542
    %7064 = vmatpush.bf16.msra.mxu0 %v6534
    %7065 = vmatpush.bf16.msra.mxu0 %v6526
    %7066 = vmatpush.bf16.msra.mxu0 %v6518
    %7067 = vmatmul.bf16.gmra.mxu0 %v5975
    %v7068 = vpop.f32.mrf.mxu0
    %v7069 = vadd.f32 %v6118, %v7068
    %v7070 = vpop.f32.mrf.mxu0
    %v7071 = vadd.f32 %v6118, %v7070
    %7072 = vmatmul.bf16.gmra.mxu0 %v5977
    %v7073 = vpop.f32.mrf.mxu0
    %v7074 = vadd.f32 %v6118, %v7073
    %v7075 = vpop.f32.mrf.mxu0
    %v7076 = vadd.f32 %v6118, %v7075
    %7077 = vmatmul.bf16.gmra.mxu0 %v5979
    %v7078 = vpop.f32.mrf.mxu0
    %v7079 = vadd.f32 %v6118, %v7078
    %v7080 = vpop.f32.mrf.mxu0
    %v7081 = vadd.f32 %v6118, %v7080
    %7082 = vmatmul.bf16.gmra.mxu0 %v5981
    %v7083 = vpop.f32.mrf.mxu0
    %v7084 = vadd.f32 %v6118, %v7083
    %v7085 = vpop.f32.mrf.mxu0
    %v7086 = vadd.f32 %v6118, %v7085
    %7087 = vdwg.mxu0
    %7088 = vmatpush.bf16.msra.mxu0 %v6638
    %7089 = vmatpush.bf16.msra.mxu0 %v6630
    %7090 = vmatpush.bf16.msra.mxu0 %v6622
    %7091 = vmatpush.bf16.msra.mxu0 %v6614
    %7092 = vmatpush.bf16.msra.mxu0 %v6606
    %7093 = vmatpush.bf16.msra.mxu0 %v6598
    %7094 = vmatpush.bf16.msra.mxu0 %v6590
    %7095 = vmatpush.bf16.msra.mxu0 %v6582
    %7096 = vmatmul.bf16.gmra.mxu0 %v5976
    %v7097 = vpop.f32.mrf.mxu0
    %v7098 = vadd.f32 %v7069, %v7097
    %v7099 = vpop.f32.mrf.mxu0
    %v7100 = vadd.f32 %v7071, %v7099
    %7101 = vmatmul.bf16.gmra.mxu0 %v5978
    %v7102 = vpop.f32.mrf.mxu0
    %v7103 = vadd.f32 %v7074, %v7102
    %v7104 = vpop.f32.mrf.mxu0
    %v7105 = vadd.f32 %v7076, %v7104
    %7106 = vmatmul.bf16.gmra.mxu0 %v5980
    %v7107 = vpop.f32.mrf.mxu0
    %v7108 = vadd.f32 %v7079, %v7107
    %v7109 = vpop.f32.mrf.mxu0
    %v7110 = vadd.f32 %v7081, %v7109
    %7111 = vmatmul.bf16.gmra.mxu0 %v5982
    %v7112 = vpop.f32.mrf.mxu0
    %v7113 = vadd.f32 %v7084, %v7112
    %v7114 = vpop.f32.mrf.mxu0
    %v7115 = vadd.f32 %v7086, %v7114
    %7116 = vdwg.mxu0
    %7117 = vmatpush.bf16.msra.mxu0 %v6575
    %7118 = vmatpush.bf16.msra.mxu0 %v6567
    %7119 = vmatpush.bf16.msra.mxu0 %v6559
    %7120 = vmatpush.bf16.msra.mxu0 %v6551
    %7121 = vmatpush.bf16.msra.mxu0 %v6543
    %7122 = vmatpush.bf16.msra.mxu0 %v6535
    %7123 = vmatpush.bf16.msra.mxu0 %v6527
    %7124 = vmatpush.bf16.msra.mxu0 %v6519
    %7125 = vmatmul.bf16.gmra.mxu0 %v5975
    %v7126 = vpop.f32.mrf.mxu0
    %v7127 = vadd.f32 %v6119, %v7126
    %v7128 = vpop.f32.mrf.mxu0
    %v7129 = vadd.f32 %v6119, %v7128
    %7130 = vmatmul.bf16.gmra.mxu0 %v5977
    %v7131 = vpop.f32.mrf.mxu0
    %v7132 = vadd.f32 %v6119, %v7131
    %v7133 = vpop.f32.mrf.mxu0
    %v7134 = vadd.f32 %v6119, %v7133
    %7135 = vmatmul.bf16.gmra.mxu0 %v5979
    %v7136 = vpop.f32.mrf.mxu0
    %v7137 = vadd.f32 %v6119, %v7136
    %v7138 = vpop.f32.mrf.mxu0
    %v7139 = vadd.f32 %v6119, %v7138
    %7140 = vmatmul.bf16.gmra.mxu0 %v5981
    %v7141 = vpop.f32.mrf.mxu0
    %v7142 = vadd.f32 %v6119, %v7141
    %v7143 = vpop.f32.mrf.mxu0
    %v7144 = vadd.f32 %v6119, %v7143
    %7145 = vdwg.mxu0
    %7146 = vmatpush.bf16.msra.mxu0 %v6639
    %7147 = vmatpush.bf16.msra.mxu0 %v6631
    %7148 = vmatpush.bf16.msra.mxu0 %v6623
    %7149 = vmatpush.bf16.msra.mxu0 %v6615
    %7150 = vmatpush.bf16.msra.mxu0 %v6607
    %7151 = vmatpush.bf16.msra.mxu0 %v6599
    %7152 = vmatpush.bf16.msra.mxu0 %v6591
    %7153 = vmatpush.bf16.msra.mxu0 %v6583
    %7154 = vmatmul.bf16.gmra.mxu0 %v5976
    %v7155 = vpop.f32.mrf.mxu0
    %v7156 = vadd.f32 %v7127, %v7155
    %v7157 = vpop.f32.mrf.mxu0
    %v7158 = vadd.f32 %v7129, %v7157
    %7159 = vmatmul.bf16.gmra.mxu0 %v5978
    %v7160 = vpop.f32.mrf.mxu0
    %v7161 = vadd.f32 %v7132, %v7160
    %v7162 = vpop.f32.mrf.mxu0
    %v7163 = vadd.f32 %v7134, %v7162
    %7164 = vmatmul.bf16.gmra.mxu0 %v5980
    %v7165 = vpop.f32.mrf.mxu0
    %v7166 = vadd.f32 %v7137, %v7165
    %v7167 = vpop.f32.mrf.mxu0
    %v7168 = vadd.f32 %v7139, %v7167
    %7169 = vmatmul.bf16.gmra.mxu0 %v5982
    %v7170 = vpop.f32.mrf.mxu0
    %v7171 = vadd.f32 %v7142, %v7170
    %v7172 = vpop.f32.mrf.mxu0
    %v7173 = vadd.f32 %v7144, %v7172
    %7174 = vdwg.mxu0
    %7175 = vmatpush.bf16.msra.mxu0 %v6576
    %7176 = vmatpush.bf16.msra.mxu0 %v6568
    %7177 = vmatpush.bf16.msra.mxu0 %v6560
    %7178 = vmatpush.bf16.msra.mxu0 %v6552
    %7179 = vmatpush.bf16.msra.mxu0 %v6544
    %7180 = vmatpush.bf16.msra.mxu0 %v6536
    %7181 = vmatpush.bf16.msra.mxu0 %v6528
    %7182 = vmatpush.bf16.msra.mxu0 %v6520
    %7183 = vmatmul.bf16.gmra.mxu0 %v5975
    %v7184 = vpop.f32.mrf.mxu0
    %v7185 = vadd.f32 %v6120, %v7184
    %v7186 = vpop.f32.mrf.mxu0
    %v7187 = vadd.f32 %v6120, %v7186
    %7188 = vmatmul.bf16.gmra.mxu0 %v5977
    %v7189 = vpop.f32.mrf.mxu0
    %v7190 = vadd.f32 %v6120, %v7189
    %v7191 = vpop.f32.mrf.mxu0
    %v7192 = vadd.f32 %v6120, %v7191
    %7193 = vmatmul.bf16.gmra.mxu0 %v5979
    %v7194 = vpop.f32.mrf.mxu0
    %v7195 = vadd.f32 %v6120, %v7194
    %v7196 = vpop.f32.mrf.mxu0
    %v7197 = vadd.f32 %v6120, %v7196
    %7198 = vmatmul.bf16.gmra.mxu0 %v5981
    %v7199 = vpop.f32.mrf.mxu0
    %v7200 = vadd.f32 %v6120, %v7199
    %v7201 = vpop.f32.mrf.mxu0
    %v7202 = vadd.f32 %v6120, %v7201
    %7203 = vdwg.mxu0
    %7204 = vmatpush.bf16.msra.mxu0 %v6640
    %7205 = vmatpush.bf16.msra.mxu0 %v6632
    %7206 = vmatpush.bf16.msra.mxu0 %v6624
    %7207 = vmatpush.bf16.msra.mxu0 %v6616
    %7208 = vmatpush.bf16.msra.mxu0 %v6608
    %7209 = vmatpush.bf16.msra.mxu0 %v6600
    %7210 = vmatpush.bf16.msra.mxu0 %v6592
    %7211 = vmatpush.bf16.msra.mxu0 %v6584
    %7212 = vmatmul.bf16.gmra.mxu0 %v5976
    %v7213 = vpop.f32.mrf.mxu0
    %v7214 = vadd.f32 %v7185, %v7213
    %v7215 = vpop.f32.mrf.mxu0
    %v7216 = vadd.f32 %v7187, %v7215
    %7217 = vmatmul.bf16.gmra.mxu0 %v5978
    %v7218 = vpop.f32.mrf.mxu0
    %v7219 = vadd.f32 %v7190, %v7218
    %v7220 = vpop.f32.mrf.mxu0
    %v7221 = vadd.f32 %v7192, %v7220
    %7222 = vmatmul.bf16.gmra.mxu0 %v5980
    %v7223 = vpop.f32.mrf.mxu0
    %v7224 = vadd.f32 %v7195, %v7223
    %v7225 = vpop.f32.mrf.mxu0
    %v7226 = vadd.f32 %v7197, %v7225
    %7227 = vmatmul.bf16.gmra.mxu0 %v5982
    %v7228 = vpop.f32.mrf.mxu0
    %v7229 = vadd.f32 %v7200, %v7228
    %v7230 = vpop.f32.mrf.mxu0
    %v7231 = vadd.f32 %v7202, %v7230
    %7232 = vdwg.mxu0
    %7233 = vst [vmem:[#allocation2] sm:$0xff] %v6808
    %7234 = vst [vmem:[#allocation2 + $0x8] sm:$0xff] %v6866
    %7235 = vst [vmem:[#allocation2 + $0x10] sm:$0xff] %v6924
    %7236 = vst [vmem:[#allocation2 + $0x18] sm:$0xff] %v6982
    %7237 = vst [vmem:[#allocation2 + $0x20] sm:$0xff] %v7040
    %7238 = vst [vmem:[#allocation2 + $0x28] sm:$0xff] %v7098
    %7239 = vst [vmem:[#allocation2 + $0x30] sm:$0xff] %v7156
    %7240 = vst [vmem:[#allocation2 + $0x38] sm:$0xff] %v7214
    %7241 = vst [vmem:[#allocation2 + $0x40] sm:$0xff] %v6810
    %7242 = vst [vmem:[#allocation2 + $0x48] sm:$0xff] %v6868
    %7243 = vst [vmem:[#allocation2 + $0x50] sm:$0xff] %v6926
    %7244 = vst [vmem:[#allocation2 + $0x58] sm:$0xff] %v6984
    %7245 = vst [vmem:[#allocation2 + $0x60] sm:$0xff] %v7042
    %7246 = vst [vmem:[#allocation2 + $0x68] sm:$0xff] %v7100
    %7247 = vst [vmem:[#allocation2 + $0x70] sm:$0xff] %v7158
    %7248 = vst [vmem:[#allocation2 + $0x78] sm:$0xff] %v7216
    %7249 = vst [vmem:[#allocation2 + $0x80] sm:$0xff] %v6813
    %7250 = vst [vmem:[#allocation2 + $0x88] sm:$0xff] %v6871
    %7251 = vst [vmem:[#allocation2 + $0x90] sm:$0xff] %v6929
    %7252 = vst [vmem:[#allocation2 + $0x98] sm:$0xff] %v6987
    %7253 = vst [vmem:[#allocation2 + $0xa0] sm:$0xff] %v7045
    %7254 = vst [vmem:[#allocation2 + $0xa8] sm:$0xff] %v7103
    %7255 = vst [vmem:[#allocation2 + $0xb0] sm:$0xff] %v7161
    %7256 = vst [vmem:[#allocation2 + $0xb8] sm:$0xff] %v7219
    %7257 = vst [vmem:[#allocation2 + $0xc0] sm:$0xff] %v6815
    %7258 = vst [vmem:[#allocation2 + $0xc8] sm:$0xff] %v6873
    %7259 = vst [vmem:[#allocation2 + $0xd0] sm:$0xff] %v6931
    %7260 = vst [vmem:[#allocation2 + $0xd8] sm:$0xff] %v6989
    %7261 = vst [vmem:[#allocation2 + $0xe0] sm:$0xff] %v7047
    %7262 = vst [vmem:[#allocation2 + $0xe8] sm:$0xff] %v7105
    %7263 = vst [vmem:[#allocation2 + $0xf0] sm:$0xff] %v7163
    %7264 = vst [vmem:[#allocation2 + $0xf8] sm:$0xff] %v7221
    %7265 = vst [vmem:[#allocation2 + $0x100] sm:$0xff] %v6818
    %7266 = vst [vmem:[#allocation2 + $0x108] sm:$0xff] %v6876
    %7267 = vst [vmem:[#allocation2 + $0x110] sm:$0xff] %v6934
    %7268 = vst [vmem:[#allocation2 + $0x118] sm:$0xff] %v6992
    %7269 = vst [vmem:[#allocation2 + $0x120] sm:$0xff] %v7050
    %7270 = vst [vmem:[#allocation2 + $0x128] sm:$0xff] %v7108
    %7271 = vst [vmem:[#allocation2 + $0x130] sm:$0xff] %v7166
    %7272 = vst [vmem:[#allocation2 + $0x138] sm:$0xff] %v7224
    %7273 = vst [vmem:[#allocation2 + $0x140] sm:$0xff] %v6820
    %7274 = vst [vmem:[#allocation2 + $0x148] sm:$0xff] %v6878
    %7275 = vst [vmem:[#allocation2 + $0x150] sm:$0xff] %v6936
    %7276 = vst [vmem:[#allocation2 + $0x158] sm:$0xff] %v6994
    %7277 = vst [vmem:[#allocation2 + $0x160] sm:$0xff] %v7052
    %7278 = vst [vmem:[#allocation2 + $0x168] sm:$0xff] %v7110
    %7279 = vst [vmem:[#allocation2 + $0x170] sm:$0xff] %v7168
    %7280 = vst [vmem:[#allocation2 + $0x178] sm:$0xff] %v7226
    %7281 = vst [vmem:[#allocation2 + $0x180] sm:$0xff] %v6823
    %7282 = vst [vmem:[#allocation2 + $0x188] sm:$0xff] %v6881
    %7283 = vst [vmem:[#allocation2 + $0x190] sm:$0xff] %v6939
    %7284 = vst [vmem:[#allocation2 + $0x198] sm:$0xff] %v6997
    %7285 = vst [vmem:[#allocation2 + $0x1a0] sm:$0xff] %v7055
    %7286 = vst [vmem:[#allocation2 + $0x1a8] sm:$0xff] %v7113
    %7287 = vst [vmem:[#allocation2 + $0x1b0] sm:$0xff] %v7171
    %7288 = vst [vmem:[#allocation2 + $0x1b8] sm:$0xff] %v7229
    %7289 = vst [vmem:[#allocation2 + $0x1c0] sm:$0xff] %v6825
    %7290 = vst [vmem:[#allocation2 + $0x1c8] sm:$0xff] %v6883
    %7291 = vst [vmem:[#allocation2 + $0x1d0] sm:$0xff] %v6941
    %7292 = vst [vmem:[#allocation2 + $0x1d8] sm:$0xff] %v6999
    %7293 = vst [vmem:[#allocation2 + $0x1e0] sm:$0xff] %v7057
    %7294 = vst [vmem:[#allocation2 + $0x1e8] sm:$0xff] %v7115
    %7295 = vst [vmem:[#allocation2 + $0x1f0] sm:$0xff] %v7173
    %7296 = vst [vmem:[#allocation2 + $0x1f8] sm:$0xff] %v7231
    %v7297 = vld [vmem:[#allocation2] sm:$0xff]
    %v7298 = vld [vmem:[#allocation2 + $0x8] sm:$0xff]
    %v7299 = vld [vmem:[#allocation2 + $0x10] sm:$0xff]
    %v7300 = vld [vmem:[#allocation2 + $0x18] sm:$0xff]
    %v7301 = vld [vmem:[#allocation8] sm:$0xff]
    %v7302 = vld [vmem:[#allocation8 + $0x8] sm:$0xff]
    %v7303 = vld [vmem:[#allocation8 + $0x10] sm:$0xff]
    %v7304 = vld [vmem:[#allocation8 + $0x18] sm:$0xff]
    %v7305 = vld [vmem:[#allocation8 + $0x20] sm:$0xff]
    %v7306 = vld [vmem:[#allocation8 + $0x28] sm:$0xff]
    %v7307 = vld [vmem:[#allocation8 + $0x30] sm:$0xff]
    %v7308 = vld [vmem:[#allocation8 + $0x38] sm:$0xff]
    %v7309 = vld [vmem:[#allocation8 + $0x40] sm:$0xff]
    %v7310 = vld [vmem:[#allocation8 + $0x48] sm:$0xff]
    %v7311 = vld [vmem:[#allocation8 + $0x50] sm:$0xff]
    %v7312 = vld [vmem:[#allocation8 + $0x58] sm:$0xff]
    %v7313 = vld [vmem:[#allocation8 + $0x60] sm:$0xff]
    %v7314 = vld [vmem:[#allocation8 + $0x68] sm:$0xff]
    %v7315 = vld [vmem:[#allocation8 + $0x70] sm:$0xff]
    %v7316 = vld [vmem:[#allocation8 + $0x78] sm:$0xff]
    %v7317 = vld [vmem:[#allocation8 + $0x80] sm:$0xff]
    %v7318 = vld [vmem:[#allocation8 + $0x88] sm:$0xff]
    %v7319 = vld [vmem:[#allocation8 + $0x90] sm:$0xff]
    %v7320 = vld [vmem:[#allocation8 + $0x98] sm:$0xff]
    %v7321 = vld [vmem:[#allocation8 + $0xa0] sm:$0xff]
    %v7322 = vld [vmem:[#allocation8 + $0xa8] sm:$0xff]
    %v7323 = vld [vmem:[#allocation8 + $0xb0] sm:$0xff]
    %v7324 = vld [vmem:[#allocation8 + $0xb8] sm:$0xff]
    %v7325 = vld [vmem:[#allocation8 + $0xc0] sm:$0xff]
    %v7326 = vld [vmem:[#allocation8 + $0xc8] sm:$0xff]
    %v7327 = vld [vmem:[#allocation8 + $0xd0] sm:$0xff]
    %v7328 = vld [vmem:[#allocation8 + $0xd8] sm:$0xff]
    %v7329 = vld [vmem:[#allocation8 + $0xe0] sm:$0xff]
    %v7330 = vld [vmem:[#allocation8 + $0xe8] sm:$0xff]
    %v7331 = vld [vmem:[#allocation8 + $0xf0] sm:$0xff]
    %v7332 = vld [vmem:[#allocation8 + $0xf8] sm:$0xff]
    %v7365 = vunpack.c.l.b16 %v7301
    %v7366 = vunpack.c.h.b16 %v7301
    %v7367 = vunpack.c.l.b16 %v7302
    %v7368 = vunpack.c.h.b16 %v7302
    %v7369 = vunpack.c.l.b16 %v7303
    %v7370 = vunpack.c.h.b16 %v7303
    %v7371 = vunpack.c.l.b16 %v7304
    %v7372 = vunpack.c.h.b16 %v7304
    %v7373 = vunpack.c.l.b16 %v7305
    %v7374 = vunpack.c.h.b16 %v7305
    %v7375 = vunpack.c.l.b16 %v7306
    %v7376 = vunpack.c.h.b16 %v7306
    %v7377 = vunpack.c.l.b16 %v7307
    %v7378 = vunpack.c.h.b16 %v7307
    %v7379 = vunpack.c.l.b16 %v7308
    %v7380 = vunpack.c.h.b16 %v7308
    %v7381 = vunpack.c.l.b16 %v7309
    %v7382 = vunpack.c.h.b16 %v7309
    %v7383 = vunpack.c.l.b16 %v7310
    %v7384 = vunpack.c.h.b16 %v7310
    %v7385 = vunpack.c.l.b16 %v7311
    %v7386 = vunpack.c.h.b16 %v7311
    %v7387 = vunpack.c.l.b16 %v7312
    %v7388 = vunpack.c.h.b16 %v7312
    %v7389 = vunpack.c.l.b16 %v7313
    %v7390 = vunpack.c.h.b16 %v7313
    %v7391 = vunpack.c.l.b16 %v7314
    %v7392 = vunpack.c.h.b16 %v7314
    %v7393 = vunpack.c.l.b16 %v7315
    %v7394 = vunpack.c.h.b16 %v7315
    %v7395 = vunpack.c.l.b16 %v7316
    %v7396 = vunpack.c.h.b16 %v7316
    %v7397 = vunpack.c.l.b16 %v7317
    %v7398 = vunpack.c.h.b16 %v7317
    %v7399 = vunpack.c.l.b16 %v7318
    %v7400 = vunpack.c.h.b16 %v7318
    %v7401 = vunpack.c.l.b16 %v7319
    %v7402 = vunpack.c.h.b16 %v7319
    %v7403 = vunpack.c.l.b16 %v7320
    %v7404 = vunpack.c.h.b16 %v7320
    %v7405 = vunpack.c.l.b16 %v7321
    %v7406 = vunpack.c.h.b16 %v7321
    %v7407 = vunpack.c.l.b16 %v7322
    %v7408 = vunpack.c.h.b16 %v7322
    %v7409 = vunpack.c.l.b16 %v7323
    %v7410 = vunpack.c.h.b16 %v7323
    %v7411 = vunpack.c.l.b16 %v7324
    %v7412 = vunpack.c.h.b16 %v7324
    %v7413 = vunpack.c.l.b16 %v7325
    %v7414 = vunpack.c.h.b16 %v7325
    %v7415 = vunpack.c.l.b16 %v7326
    %v7416 = vunpack.c.h.b16 %v7326
    %v7417 = vunpack.c.l.b16 %v7327
    %v7418 = vunpack.c.h.b16 %v7327
    %v7419 = vunpack.c.l.b16 %v7328
    %v7420 = vunpack.c.h.b16 %v7328
    %v7421 = vunpack.c.l.b16 %v7329
    %v7422 = vunpack.c.h.b16 %v7329
    %v7423 = vunpack.c.l.b16 %v7330
    %v7424 = vunpack.c.h.b16 %v7330
    %v7425 = vunpack.c.l.b16 %v7331
    %v7426 = vunpack.c.h.b16 %v7331
    %v7427 = vunpack.c.l.b16 %v7332
    %v7428 = vunpack.c.h.b16 %v7332
    %v7429 = vpack.c.b16 %v7369, %v7365
    %v7430 = vpack.c.b16 %v7370, %v7366
    %v7431 = vpack.c.b16 %v7371, %v7367
    %v7432 = vpack.c.b16 %v7372, %v7368
    %v7433 = vpack.c.b16 %v7377, %v7373
    %v7434 = vpack.c.b16 %v7378, %v7374
    %v7435 = vpack.c.b16 %v7379, %v7375
    %v7436 = vpack.c.b16 %v7380, %v7376
    %v7437 = vpack.c.b16 %v7385, %v7381
    %v7438 = vpack.c.b16 %v7386, %v7382
    %v7439 = vpack.c.b16 %v7387, %v7383
    %v7440 = vpack.c.b16 %v7388, %v7384
    %v7441 = vpack.c.b16 %v7393, %v7389
    %v7442 = vpack.c.b16 %v7394, %v7390
    %v7443 = vpack.c.b16 %v7395, %v7391
    %v7444 = vpack.c.b16 %v7396, %v7392
    %v7445 = vpack.c.b16 %v7401, %v7397
    %v7446 = vpack.c.b16 %v7402, %v7398
    %v7447 = vpack.c.b16 %v7403, %v7399
    %v7448 = vpack.c.b16 %v7404, %v7400
    %v7449 = vpack.c.b16 %v7409, %v7405
    %v7450 = vpack.c.b16 %v7410, %v7406
    %v7451 = vpack.c.b16 %v7411, %v7407
    %v7452 = vpack.c.b16 %v7412, %v7408
    %v7453 = vpack.c.b16 %v7417, %v7413
    %v7454 = vpack.c.b16 %v7418, %v7414
    %v7455 = vpack.c.b16 %v7419, %v7415
    %v7456 = vpack.c.b16 %v7420, %v7416
    %v7457 = vpack.c.b16 %v7425, %v7421
    %v7458 = vpack.c.b16 %v7426, %v7422
    %v7459 = vpack.c.b16 %v7427, %v7423
    %v7460 = vpack.c.b16 %v7428, %v7424
    %7493 = vmatpush.bf16.msra.mxu0 %v7457
    %7494 = vmatpush.bf16.msra.mxu0 %v7453
    %7495 = vmatpush.bf16.msra.mxu0 %v7449
    %7496 = vmatpush.bf16.msra.mxu0 %v7445
    %7497 = vmatpush.bf16.msra.mxu0 %v7441
    %7498 = vmatpush.bf16.msra.mxu0 %v7437
    %7499 = vmatpush.bf16.msra.mxu0 %v7433
    %7500 = vmatpush.bf16.msra.mxu0 %v7429
    %7501 = vmatmul.bf16.gmra.mxu0 0
    %v7502 = vpop.f32.mrf.mxu0
    %v7503 = vadd.f32 0.0, %v7502
    %v7504 = vpop.f32.mrf.mxu0
    %7505 = vdwg.mxu0
    %7506 = vmatpush.bf16.msra.mxu0 %v7458
    %7507 = vmatpush.bf16.msra.mxu0 %v7454
    %7508 = vmatpush.bf16.msra.mxu0 %v7450
    %7509 = vmatpush.bf16.msra.mxu0 %v7446
    %7510 = vmatpush.bf16.msra.mxu0 %v7442
    %7511 = vmatpush.bf16.msra.mxu0 %v7438
    %7512 = vmatpush.bf16.msra.mxu0 %v7434
    %7513 = vmatpush.bf16.msra.mxu0 %v7430
    %7514 = vmatmul.bf16.gmra.mxu0 0
    %v7515 = vpop.f32.mrf.mxu0
    %v7516 = vadd.f32 0.0, %v7515
    %v7517 = vpop.f32.mrf.mxu0
    %7518 = vdwg.mxu0
    %7519 = vmatpush.bf16.msra.mxu0 %v7459
    %7520 = vmatpush.bf16.msra.mxu0 %v7455
    %7521 = vmatpush.bf16.msra.mxu0 %v7451
    %7522 = vmatpush.bf16.msra.mxu0 %v7447
    %7523 = vmatpush.bf16.msra.mxu0 %v7443
    %7524 = vmatpush.bf16.msra.mxu0 %v7439
    %7525 = vmatpush.bf16.msra.mxu0 %v7435
    %7526 = vmatpush.bf16.msra.mxu0 %v7431
    %7527 = vmatmul.bf16.gmra.mxu0 0
    %v7528 = vpop.f32.mrf.mxu0
    %v7529 = vadd.f32 0.0, %v7528
    %v7530 = vpop.f32.mrf.mxu0
    %7531 = vdwg.mxu0
    %7532 = vmatpush.bf16.msra.mxu0 %v7460
    %7533 = vmatpush.bf16.msra.mxu0 %v7456
    %7534 = vmatpush.bf16.msra.mxu0 %v7452
    %7535 = vmatpush.bf16.msra.mxu0 %v7448
    %7536 = vmatpush.bf16.msra.mxu0 %v7444
    %7537 = vmatpush.bf16.msra.mxu0 %v7440
    %7538 = vmatpush.bf16.msra.mxu0 %v7436
    %7539 = vmatpush.bf16.msra.mxu0 %v7432
    %7540 = vmatmul.bf16.gmra.mxu0 0
    %v7541 = vpop.f32.mrf.mxu0
    %v7542 = vadd.f32 0.0, %v7541
    %v7543 = vpop.f32.mrf.mxu0
    %7544 = vdwg.mxu0
    %v7545 = vadd.f32 %v7297, %v7503
    %v7546 = vadd.f32 %v7298, %v7516
    %v7547 = vadd.f32 %v7299, %v7529
    %v7548 = vadd.f32 %v7300, %v7542
    %v7549 = vld [vmem:[%s1045 + $0x20] sm:$0xff]
    %v7550 = vld [vmem:[%s1045 + $0x28] sm:$0xff]
    %v7551 = vld [vmem:[%s1045 + $0x30] sm:$0xff]
    %v7552 = vld [vmem:[%s1045 + $0x38] sm:$0xff]
    %s7553 = scalar_lea.vmem [#allocation8], 256
    %v7554 = vld [vmem:[%s7553] sm:$0xff]
    %v7555 = vld [vmem:[%s7553 + $0x8] sm:$0xff]
    %v7556 = vld [vmem:[%s7553 + $0x10] sm:$0xff]
    %v7557 = vld [vmem:[%s7553 + $0x18] sm:$0xff]
    %v7558 = vld [vmem:[%s7553 + $0x20] sm:$0xff]
    %v7559 = vld [vmem:[%s7553 + $0x28] sm:$0xff]
    %v7560 = vld [vmem:[%s7553 + $0x30] sm:$0xff]
    %v7561 = vld [vmem:[%s7553 + $0x38] sm:$0xff]
    %v7562 = vld [vmem:[%s7553 + $0x40] sm:$0xff]
    %v7563 = vld [vmem:[%s7553 + $0x48] sm:$0xff]
    %v7564 = vld [vmem:[%s7553 + $0x50] sm:$0xff]
    %v7565 = vld [vmem:[%s7553 + $0x58] sm:$0xff]
    %v7566 = vld [vmem:[%s7553 + $0x60] sm:$0xff]
    %v7567 = vld [vmem:[%s7553 + $0x68] sm:$0xff]
    %v7568 = vld [vmem:[%s7553 + $0x70] sm:$0xff]
    %v7569 = vld [vmem:[%s7553 + $0x78] sm:$0xff]
    %v7570 = vld [vmem:[%s7553 + $0x80] sm:$0xff]
    %v7571 = vld [vmem:[%s7553 + $0x88] sm:$0xff]
    %v7572 = vld [vmem:[%s7553 + $0x90] sm:$0xff]
    %v7573 = vld [vmem:[%s7553 + $0x98] sm:$0xff]
    %v7574 = vld [vmem:[%s7553 + $0xa0] sm:$0xff]
    %v7575 = vld [vmem:[%s7553 + $0xa8] sm:$0xff]
    %v7576 = vld [vmem:[%s7553 + $0xb0] sm:$0xff]
    %v7577 = vld [vmem:[%s7553 + $0xb8] sm:$0xff]
    %v7578 = vld [vmem:[%s7553 + $0xc0] sm:$0xff]
    %v7579 = vld [vmem:[%s7553 + $0xc8] sm:$0xff]
    %v7580 = vld [vmem:[%s7553 + $0xd0] sm:$0xff]
    %v7581 = vld [vmem:[%s7553 + $0xd8] sm:$0xff]
    %v7582 = vld [vmem:[%s7553 + $0xe0] sm:$0xff]
    %v7583 = vld [vmem:[%s7553 + $0xe8] sm:$0xff]
    %v7584 = vld [vmem:[%s7553 + $0xf0] sm:$0xff]
    %v7585 = vld [vmem:[%s7553 + $0xf8] sm:$0xff]
    %v7618 = vunpack.c.l.b16 %v7554
    %v7619 = vunpack.c.h.b16 %v7554
    %v7620 = vunpack.c.l.b16 %v7555
    %v7621 = vunpack.c.h.b16 %v7555
    %v7622 = vunpack.c.l.b16 %v7556
    %v7623 = vunpack.c.h.b16 %v7556
    %v7624 = vunpack.c.l.b16 %v7557
    %v7625 = vunpack.c.h.b16 %v7557
    %v7626 = vunpack.c.l.b16 %v7558
    %v7627 = vunpack.c.h.b16 %v7558
    %v7628 = vunpack.c.l.b16 %v7559
    %v7629 = vunpack.c.h.b16 %v7559
    %v7630 = vunpack.c.l.b16 %v7560
    %v7631 = vunpack.c.h.b16 %v7560
    %v7632 = vunpack.c.l.b16 %v7561
    %v7633 = vunpack.c.h.b16 %v7561
    %v7634 = vunpack.c.l.b16 %v7562
    %v7635 = vunpack.c.h.b16 %v7562
    %v7636 = vunpack.c.l.b16 %v7563
    %v7637 = vunpack.c.h.b16 %v7563
    %v7638 = vunpack.c.l.b16 %v7564
    %v7639 = vunpack.c.h.b16 %v7564
    %v7640 = vunpack.c.l.b16 %v7565
    %v7641 = vunpack.c.h.b16 %v7565
    %v7642 = vunpack.c.l.b16 %v7566
    %v7643 = vunpack.c.h.b16 %v7566
    %v7644 = vunpack.c.l.b16 %v7567
    %v7645 = vunpack.c.h.b16 %v7567
    %v7646 = vunpack.c.l.b16 %v7568
    %v7647 = vunpack.c.h.b16 %v7568
    %v7648 = vunpack.c.l.b16 %v7569
    %v7649 = vunpack.c.h.b16 %v7569
    %v7650 = vunpack.c.l.b16 %v7570
    %v7651 = vunpack.c.h.b16 %v7570
    %v7652 = vunpack.c.l.b16 %v7571
    %v7653 = vunpack.c.h.b16 %v7571
    %v7654 = vunpack.c.l.b16 %v7572
    %v7655 = vunpack.c.h.b16 %v7572
    %v7656 = vunpack.c.l.b16 %v7573
    %v7657 = vunpack.c.h.b16 %v7573
    %v7658 = vunpack.c.l.b16 %v7574
    %v7659 = vunpack.c.h.b16 %v7574
    %v7660 = vunpack.c.l.b16 %v7575
    %v7661 = vunpack.c.h.b16 %v7575
    %v7662 = vunpack.c.l.b16 %v7576
    %v7663 = vunpack.c.h.b16 %v7576
    %v7664 = vunpack.c.l.b16 %v7577
    %v7665 = vunpack.c.h.b16 %v7577
    %v7666 = vunpack.c.l.b16 %v7578
    %v7667 = vunpack.c.h.b16 %v7578
    %v7668 = vunpack.c.l.b16 %v7579
    %v7669 = vunpack.c.h.b16 %v7579
    %v7670 = vunpack.c.l.b16 %v7580
    %v7671 = vunpack.c.h.b16 %v7580
    %v7672 = vunpack.c.l.b16 %v7581
    %v7673 = vunpack.c.h.b16 %v7581
    %v7674 = vunpack.c.l.b16 %v7582
    %v7675 = vunpack.c.h.b16 %v7582
    %v7676 = vunpack.c.l.b16 %v7583
    %v7677 = vunpack.c.h.b16 %v7583
    %v7678 = vunpack.c.l.b16 %v7584
    %v7679 = vunpack.c.h.b16 %v7584
    %v7680 = vunpack.c.l.b16 %v7585
    %v7681 = vunpack.c.h.b16 %v7585
    %v7682 = vpack.c.b16 %v7622, %v7618
    %v7683 = vpack.c.b16 %v7623, %v7619
    %v7684 = vpack.c.b16 %v7624, %v7620
    %v7685 = vpack.c.b16 %v7625, %v7621
    %v7686 = vpack.c.b16 %v7630, %v7626
    %v7687 = vpack.c.b16 %v7631, %v7627
    %v7688 = vpack.c.b16 %v7632, %v7628
    %v7689 = vpack.c.b16 %v7633, %v7629
    %v7690 = vpack.c.b16 %v7638, %v7634
    %v7691 = vpack.c.b16 %v7639, %v7635
    %v7692 = vpack.c.b16 %v7640, %v7636
    %v7693 = vpack.c.b16 %v7641, %v7637
    %v7694 = vpack.c.b16 %v7646, %v7642
    %v7695 = vpack.c.b16 %v7647, %v7643
    %v7696 = vpack.c.b16 %v7648, %v7644
    %v7697 = vpack.c.b16 %v7649, %v7645
    %v7698 = vpack.c.b16 %v7654, %v7650
    %v7699 = vpack.c.b16 %v7655, %v7651
    %v7700 = vpack.c.b16 %v7656, %v7652
    %v7701 = vpack.c.b16 %v7657, %v7653
    %v7702 = vpack.c.b16 %v7662, %v7658
    %v7703 = vpack.c.b16 %v7663, %v7659
    %v7704 = vpack.c.b16 %v7664, %v7660
    %v7705 = vpack.c.b16 %v7665, %v7661
    %v7706 = vpack.c.b16 %v7670, %v7666
    %v7707 = vpack.c.b16 %v7671, %v7667
    %v7708 = vpack.c.b16 %v7672, %v7668
    %v7709 = vpack.c.b16 %v7673, %v7669
    %v7710 = vpack.c.b16 %v7678, %v7674
    %v7711 = vpack.c.b16 %v7679, %v7675
    %v7712 = vpack.c.b16 %v7680, %v7676
    %v7713 = vpack.c.b16 %v7681, %v7677
    %7746 = vmatpush.bf16.msra.mxu0 %v7710
    %7747 = vmatpush.bf16.msra.mxu0 %v7706
    %7748 = vmatpush.bf16.msra.mxu0 %v7702
    %7749 = vmatpush.bf16.msra.mxu0 %v7698
    %7750 = vmatpush.bf16.msra.mxu0 %v7694
    %7751 = vmatpush.bf16.msra.mxu0 %v7690
    %7752 = vmatpush.bf16.msra.mxu0 %v7686
    %7753 = vmatpush.bf16.msra.mxu0 %v7682
    %7754 = vmatmul.bf16.gmra.mxu0 0
    %v7755 = vpop.f32.mrf.mxu0
    %v7756 = vadd.f32 0.0, %v7755
    %v7757 = vpop.f32.mrf.mxu0
    %7758 = vdwg.mxu0
    %7759 = vmatpush.bf16.msra.mxu0 %v7711
    %7760 = vmatpush.bf16.msra.mxu0 %v7707
    %7761 = vmatpush.bf16.msra.mxu0 %v7703
    %7762 = vmatpush.bf16.msra.mxu0 %v7699
    %7763 = vmatpush.bf16.msra.mxu0 %v7695
    %7764 = vmatpush.bf16.msra.mxu0 %v7691
    %7765 = vmatpush.bf16.msra.mxu0 %v7687
    %7766 = vmatpush.bf16.msra.mxu0 %v7683
    %7767 = vmatmul.bf16.gmra.mxu0 0
    %v7768 = vpop.f32.mrf.mxu0
    %v7769 = vadd.f32 0.0, %v7768
    %v7770 = vpop.f32.mrf.mxu0
    %7771 = vdwg.mxu0
    %7772 = vmatpush.bf16.msra.mxu0 %v7712
    %7773 = vmatpush.bf16.msra.mxu0 %v7708
    %7774 = vmatpush.bf16.msra.mxu0 %v7704
    %7775 = vmatpush.bf16.msra.mxu0 %v7700
    %7776 = vmatpush.bf16.msra.mxu0 %v7696
    %7777 = vmatpush.bf16.msra.mxu0 %v7692
    %7778 = vmatpush.bf16.msra.mxu0 %v7688
    %7779 = vmatpush.bf16.msra.mxu0 %v7684
    %7780 = vmatmul.bf16.gmra.mxu0 0
    %v7781 = vpop.f32.mrf.mxu0
    %v7782 = vadd.f32 0.0, %v7781
    %v7783 = vpop.f32.mrf.mxu0
    %7784 = vdwg.mxu0
    %7785 = vmatpush.bf16.msra.mxu0 %v7713
    %7786 = vmatpush.bf16.msra.mxu0 %v7709
    %7787 = vmatpush.bf16.msra.mxu0 %v7705
    %7788 = vmatpush.bf16.msra.mxu0 %v7701
    %7789 = vmatpush.bf16.msra.mxu0 %v7697
    %7790 = vmatpush.bf16.msra.mxu0 %v7693
    %7791 = vmatpush.bf16.msra.mxu0 %v7689
    %7792 = vmatpush.bf16.msra.mxu0 %v7685
    %7793 = vmatmul.bf16.gmra.mxu0 0
    %v7794 = vpop.f32.mrf.mxu0
    %v7795 = vadd.f32 0.0, %v7794
    %v7796 = vpop.f32.mrf.mxu0
    %7797 = vdwg.mxu0
    %v7798 = vadd.f32 %v7549, %v7756
    %v7799 = vadd.f32 %v7550, %v7769
    %v7800 = vadd.f32 %v7551, %v7782
    %v7801 = vadd.f32 %v7552, %v7795
    %v7802 = vxor.u32 %v7545, 2147483648
    %v7803 = vmul.f32 %v7802, 1.442695
    %v7804 = vpow.pop %v7803
    %v7805 = vadd.f32 %v7804, 1.0
    %v7806 = vrcp.pop %v7805
    %v7807 = vmul.f32 %v7805, %v7806
    %v7808 = vsub.f32 1.0, %v7807
    %v7809 = vmul.f32 %v7806, %v7808
    %v7810 = vadd.f32 %v7806, %v7809
    %vm7811 = vweird.f32 %v7805
    %vm7812 = vweird.f32 %v7806
    %vm7813 = vmor %vm7811, %vm7812
    %v7814 = vsel %vm7813, %v7806, %v7810
    %v7815 = vand.u32 2147483647, %v7805
    %vm7816 = vcmp.eq.f32.partialorder %v7815, 8.507059e+37
    %v7817 = vand.u32 %v7805, 2147483648
    %v7818 = vor.u32 1.1754944e-38, %v7817
    %v7819 = vsel %vm7816, %v7818, %v7814
    %v7820 = vmul.f32 1.0, %v7819
    %v7821 = vxor.u32 %v7546, 2147483648
    %v7822 = vmul.f32 %v7821, 1.442695
    %v7823 = vpow.pop %v7822
    %v7824 = vadd.f32 %v7823, 1.0
    %v7825 = vrcp.pop %v7824
    %v7826 = vmul.f32 %v7824, %v7825
    %v7827 = vsub.f32 1.0, %v7826
    %v7828 = vmul.f32 %v7825, %v7827
    %v7829 = vadd.f32 %v7825, %v7828
    %vm7830 = vweird.f32 %v7824
    %vm7831 = vweird.f32 %v7825
    %vm7832 = vmor %vm7830, %vm7831
    %v7833 = vsel %vm7832, %v7825, %v7829
    %v7834 = vand.u32 2147483647, %v7824
    %vm7835 = vcmp.eq.f32.partialorder %v7834, 8.507059e+37
    %v7836 = vand.u32 %v7824, 2147483648
    %v7837 = vor.u32 1.1754944e-38, %v7836
    %v7838 = vsel %vm7835, %v7837, %v7833
    %v7839 = vmul.f32 1.0, %v7838
    %v7840 = vtanh.pop %v7547
    %v7841 = vxor.u32 %v7548, 2147483648
    %v7842 = vmul.f32 %v7841, 1.442695
    %v7843 = vpow.pop %v7842
    %v7844 = vadd.f32 %v7843, 1.0
    %v7845 = vrcp.pop %v7844
    %v7846 = vmul.f32 %v7844, %v7845
    %v7847 = vsub.f32 1.0, %v7846
    %v7848 = vmul.f32 %v7845, %v7847
    %v7849 = vadd.f32 %v7845, %v7848
    %vm7850 = vweird.f32 %v7844
    %vm7851 = vweird.f32 %v7845
    %vm7852 = vmor %vm7850, %vm7851
    %v7853 = vsel %vm7852, %v7845, %v7849
    %v7854 = vand.u32 2147483647, %v7844
    %vm7855 = vcmp.eq.f32.partialorder %v7854, 8.507059e+37
    %v7856 = vand.u32 %v7844, 2147483648
    %v7857 = vor.u32 1.1754944e-38, %v7856
    %v7858 = vsel %vm7855, %v7857, %v7853
    %v7859 = vmul.f32 1.0, %v7858
    %v7860 = vmul.f32 %v7839, 0.0
    %v7861 = vmul.f32 %v7820, %v7840
    %v7862 = vadd.f32 %v7860, %v7861
    %v7863 = vtanh.pop %v7862
    %v7864 = vmul.f32 %v7859, %v7863
    %v7865 = vxor.u32 %v7798, 2147483648
    %v7866 = vmul.f32 %v7865, 1.442695
    %v7867 = vpow.pop %v7866
    %v7868 = vadd.f32 %v7867, 1.0
    %v7869 = vrcp.pop %v7868
    %v7870 = vmul.f32 %v7868, %v7869
    %v7871 = vsub.f32 1.0, %v7870
    %v7872 = vmul.f32 %v7869, %v7871
    %v7873 = vadd.f32 %v7869, %v7872
    %vm7874 = vweird.f32 %v7868
    %vm7875 = vweird.f32 %v7869
    %vm7876 = vmor %vm7874, %vm7875
    %v7877 = vsel %vm7876, %v7869, %v7873
    %v7878 = vand.u32 2147483647, %v7868
    %vm7879 = vcmp.eq.f32.partialorder %v7878, 8.507059e+37
    %v7880 = vand.u32 %v7868, 2147483648
    %v7881 = vor.u32 1.1754944e-38, %v7880
    %v7882 = vsel %vm7879, %v7881, %v7877
    %v7883 = vmul.f32 1.0, %v7882
    %v7884 = vxor.u32 %v7799, 2147483648
    %v7885 = vmul.f32 %v7884, 1.442695
    %v7886 = vpow.pop %v7885
    %v7887 = vadd.f32 %v7886, 1.0
    %v7888 = vrcp.pop %v7887
    %v7889 = vmul.f32 %v7887, %v7888
    %v7890 = vsub.f32 1.0, %v7889
    %v7891 = vmul.f32 %v7888, %v7890
    %v7892 = vadd.f32 %v7888, %v7891
    %vm7893 = vweird.f32 %v7887
    %vm7894 = vweird.f32 %v7888
    %vm7895 = vmor %vm7893, %vm7894
    %v7896 = vsel %vm7895, %v7888, %v7892
    %v7897 = vand.u32 2147483647, %v7887
    %vm7898 = vcmp.eq.f32.partialorder %v7897, 8.507059e+37
    %v7899 = vand.u32 %v7887, 2147483648
    %v7900 = vor.u32 1.1754944e-38, %v7899
    %v7901 = vsel %vm7898, %v7900, %v7896
    %v7902 = vmul.f32 1.0, %v7901
    %v7903 = vtanh.pop %v7800
    %v7904 = vxor.u32 %v7801, 2147483648
    %v7905 = vmul.f32 %v7904, 1.442695
    %v7906 = vpow.pop %v7905
    %v7907 = vadd.f32 %v7906, 1.0
    %v7908 = vrcp.pop %v7907
    %v7909 = vmul.f32 %v7907, %v7908
    %v7910 = vsub.f32 1.0, %v7909
    %v7911 = vmul.f32 %v7908, %v7910
    %v7912 = vadd.f32 %v7908, %v7911
    %vm7913 = vweird.f32 %v7907
    %vm7914 = vweird.f32 %v7908
    %vm7915 = vmor %vm7913, %vm7914
    %v7916 = vsel %vm7915, %v7908, %v7912
    %v7917 = vand.u32 2147483647, %v7907
    %vm7918 = vcmp.eq.f32.partialorder %v7917, 8.507059e+37
    %v7919 = vand.u32 %v7907, 2147483648
    %v7920 = vor.u32 1.1754944e-38, %v7919
    %v7921 = vsel %vm7918, %v7920, %v7916
    %v7922 = vmul.f32 1.0, %v7921
    %v7923 = vmul.f32 %v7902, 0.0
    %v7924 = vmul.f32 %v7883, %v7903
    %v7925 = vadd.f32 %v7923, %v7924
    %v7926 = vtanh.pop %v7925
    %v7927 = vmul.f32 %v7922, %v7926
    %v7928 = vld [vmem:[%s1] sm:$0xff]
    %vm7929 = vcmp.ne.f32.partialorder %v7928, 0.0
    %v7930 = vld [vmem:[%s1427] sm:$0xff]
    %vm7931 = vcmp.ne.f32.partialorder %v7930, 0.0
    %v7932 = vsel %vm7929, %v7864, 0.0
    %v7933 = vsel %vm7929, %v7862, 0.0
    %v7934 = vsel %vm7931, %v7927, 0.0
    %v7935 = vsel %vm7931, %v7925, 0.0
    %v7936 = vld [vmem:[%s1437] sm:$0xff]
    %v7937 = vld [vmem:[%s1437 + $0x8] sm:$0xff]
    %v7938 = vld [vmem:[%s1437 + $0x10] sm:$0xff]
    %v7939 = vld [vmem:[%s1437 + $0x18] sm:$0xff]
    %v7940 = vpack.c.bf16 %v7932, %v7932
    %7941 = vmatpush.bf16.msra.mxu0 %v7457
    %7942 = vmatpush.bf16.msra.mxu0 %v7453
    %7943 = vmatpush.bf16.msra.mxu0 %v7449
    %7944 = vmatpush.bf16.msra.mxu0 %v7445
    %7945 = vmatpush.bf16.msra.mxu0 %v7441
    %7946 = vmatpush.bf16.msra.mxu0 %v7437
    %7947 = vmatpush.bf16.msra.mxu0 %v7433
    %7948 = vmatpush.bf16.msra.mxu0 %v7429
    %7949 = vmatmul.bf16.gmra.mxu0 %v7940
    %v7950 = vpop.f32.mrf.mxu0
    %v7951 = vadd.f32 0.0, %v7950
    %v7952 = vpop.f32.mrf.mxu0
    %7953 = vdwg.mxu0
    %7954 = vmatpush.bf16.msra.mxu0 %v7458
    %7955 = vmatpush.bf16.msra.mxu0 %v7454
    %7956 = vmatpush.bf16.msra.mxu0 %v7450
    %7957 = vmatpush.bf16.msra.mxu0 %v7446
    %7958 = vmatpush.bf16.msra.mxu0 %v7442
    %7959 = vmatpush.bf16.msra.mxu0 %v7438
    %7960 = vmatpush.bf16.msra.mxu0 %v7434
    %7961 = vmatpush.bf16.msra.mxu0 %v7430
    %7962 = vmatmul.bf16.gmra.mxu0 %v7940
    %v7963 = vpop.f32.mrf.mxu0
    %v7964 = vadd.f32 0.0, %v7963
    %v7965 = vpop.f32.mrf.mxu0
    %7966 = vdwg.mxu0
    %7967 = vmatpush.bf16.msra.mxu0 %v7459
    %7968 = vmatpush.bf16.msra.mxu0 %v7455
    %7969 = vmatpush.bf16.msra.mxu0 %v7451
    %7970 = vmatpush.bf16.msra.mxu0 %v7447
    %7971 = vmatpush.bf16.msra.mxu0 %v7443
    %7972 = vmatpush.bf16.msra.mxu0 %v7439
    %7973 = vmatpush.bf16.msra.mxu0 %v7435
    %7974 = vmatpush.bf16.msra.mxu0 %v7431
    %7975 = vmatmul.bf16.gmra.mxu0 %v7940
    %v7976 = vpop.f32.mrf.mxu0
    %v7977 = vadd.f32 0.0, %v7976
    %v7978 = vpop.f32.mrf.mxu0
    %7979 = vdwg.mxu0
    %7980 = vmatpush.bf16.msra.mxu0 %v7460
    %7981 = vmatpush.bf16.msra.mxu0 %v7456
    %7982 = vmatpush.bf16.msra.mxu0 %v7452
    %7983 = vmatpush.bf16.msra.mxu0 %v7448
    %7984 = vmatpush.bf16.msra.mxu0 %v7444
    %7985 = vmatpush.bf16.msra.mxu0 %v7440
    %7986 = vmatpush.bf16.msra.mxu0 %v7436
    %7987 = vmatpush.bf16.msra.mxu0 %v7432
    %7988 = vmatmul.bf16.gmra.mxu0 %v7940
    %v7989 = vpop.f32.mrf.mxu0
    %v7990 = vadd.f32 0.0, %v7989
    %v7991 = vpop.f32.mrf.mxu0
    %7992 = vdwg.mxu0
    %v7993 = vadd.f32 %v7936, %v7951
    %v7994 = vadd.f32 %v7937, %v7964
    %v7995 = vadd.f32 %v7938, %v7977
    %v7996 = vadd.f32 %v7939, %v7990
    %v7997 = vld [vmem:[%s1691 + $0x20] sm:$0xff]
    %v7998 = vld [vmem:[%s1691 + $0x28] sm:$0xff]
    %v7999 = vld [vmem:[%s1691 + $0x30] sm:$0xff]
    %v8000 = vld [vmem:[%s1691 + $0x38] sm:$0xff]
    %v8001 = vpack.c.bf16 %v7934, %v7934
    %8002 = vmatpush.bf16.msra.mxu0 %v7710
    %8003 = vmatpush.bf16.msra.mxu0 %v7706
    %8004 = vmatpush.bf16.msra.mxu0 %v7702
    %8005 = vmatpush.bf16.msra.mxu0 %v7698
    %8006 = vmatpush.bf16.msra.mxu0 %v7694
    %8007 = vmatpush.bf16.msra.mxu0 %v7690
    %8008 = vmatpush.bf16.msra.mxu0 %v7686
    %8009 = vmatpush.bf16.msra.mxu0 %v7682
    %8010 = vmatmul.bf16.gmra.mxu0 %v8001
    %v8011 = vpop.f32.mrf.mxu0
    %v8012 = vadd.f32 0.0, %v8011
    %v8013 = vpop.f32.mrf.mxu0
    %8014 = vdwg.mxu0
    %8015 = vmatpush.bf16.msra.mxu0 %v7711
    %8016 = vmatpush.bf16.msra.mxu0 %v7707
    %8017 = vmatpush.bf16.msra.mxu0 %v7703
    %8018 = vmatpush.bf16.msra.mxu0 %v7699
    %8019 = vmatpush.bf16.msra.mxu0 %v7695
    %8020 = vmatpush.bf16.msra.mxu0 %v7691
    %8021 = vmatpush.bf16.msra.mxu0 %v7687
    %8022 = vmatpush.bf16.msra.mxu0 %v7683
    %8023 = vmatmul.bf16.gmra.mxu0 %v8001
    %v8024 = vpop.f32.mrf.mxu0
    %v8025 = vadd.f32 0.0, %v8024
    %v8026 = vpop.f32.mrf.mxu0
    %8027 = vdwg.mxu0
    %8028 = vmatpush.bf16.msra.mxu0 %v7712
    %8029 = vmatpush.bf16.msra.mxu0 %v7708
    %8030 = vmatpush.bf16.msra.mxu0 %v7704
    %8031 = vmatpush.bf16.msra.mxu0 %v7700
    %8032 = vmatpush.bf16.msra.mxu0 %v7696
    %8033 = vmatpush.bf16.msra.mxu0 %v7692
    %8034 = vmatpush.bf16.msra.mxu0 %v7688
    %8035 = vmatpush.bf16.msra.mxu0 %v7684
    %8036 = vmatmul.bf16.gmra.mxu0 %v8001
    %v8037 = vpop.f32.mrf.mxu0
    %v8038 = vadd.f32 0.0, %v8037
    %v8039 = vpop.f32.mrf.mxu0
    %8040 = vdwg.mxu0
    %8041 = vmatpush.bf16.msra.mxu0 %v7713
    %8042 = vmatpush.bf16.msra.mxu0 %v7709
    %8043 = vmatpush.bf16.msra.mxu0 %v7705
    %8044 = vmatpush.bf16.msra.mxu0 %v7701
    %8045 = vmatpush.bf16.msra.mxu0 %v7697
    %8046 = vmatpush.bf16.msra.mxu0 %v7693
    %8047 = vmatpush.bf16.msra.mxu0 %v7689
    %8048 = vmatpush.bf16.msra.mxu0 %v7685
    %8049 = vmatmul.bf16.gmra.mxu0 %v8001
    %v8050 = vpop.f32.mrf.mxu0
    %v8051 = vadd.f32 0.0, %v8050
    %v8052 = vpop.f32.mrf.mxu0
    %8053 = vdwg.mxu0
    %v8054 = vadd.f32 %v7997, %v8012
    %v8055 = vadd.f32 %v7998, %v8025
    %v8056 = vadd.f32 %v7999, %v8038
    %v8057 = vadd.f32 %v8000, %v8051
    %v8058 = vxor.u32 %v7993, 2147483648
    %v8059 = vmul.f32 %v8058, 1.442695
    %v8060 = vpow.pop %v8059
    %v8061 = vadd.f32 %v8060, 1.0
    %v8062 = vrcp.pop %v8061
    %v8063 = vmul.f32 %v8061, %v8062
    %v8064 = vsub.f32 1.0, %v8063
    %v8065 = vmul.f32 %v8062, %v8064
    %v8066 = vadd.f32 %v8062, %v8065
    %vm8067 = vweird.f32 %v8061
    %vm8068 = vweird.f32 %v8062
    %vm8069 = vmor %vm8067, %vm8068
    %v8070 = vsel %vm8069, %v8062, %v8066
    %v8071 = vand.u32 2147483647, %v8061
    %vm8072 = vcmp.eq.f32.partialorder %v8071, 8.507059e+37
    %v8073 = vand.u32 %v8061, 2147483648
    %v8074 = vor.u32 1.1754944e-38, %v8073
    %v8075 = vsel %vm8072, %v8074, %v8070
    %v8076 = vmul.f32 1.0, %v8075
    %v8077 = vxor.u32 %v7994, 2147483648
    %v8078 = vmul.f32 %v8077, 1.442695
    %v8079 = vpow.pop %v8078
    %v8080 = vadd.f32 %v8079, 1.0
    %v8081 = vrcp.pop %v8080
    %v8082 = vmul.f32 %v8080, %v8081
    %v8083 = vsub.f32 1.0, %v8082
    %v8084 = vmul.f32 %v8081, %v8083
    %v8085 = vadd.f32 %v8081, %v8084
    %vm8086 = vweird.f32 %v8080
    %vm8087 = vweird.f32 %v8081
    %vm8088 = vmor %vm8086, %vm8087
    %v8089 = vsel %vm8088, %v8081, %v8085
    %v8090 = vand.u32 2147483647, %v8080
    %vm8091 = vcmp.eq.f32.partialorder %v8090, 8.507059e+37
    %v8092 = vand.u32 %v8080, 2147483648
    %v8093 = vor.u32 1.1754944e-38, %v8092
    %v8094 = vsel %vm8091, %v8093, %v8089
    %v8095 = vmul.f32 1.0, %v8094
    %v8096 = vtanh.pop %v7995
    %v8097 = vxor.u32 %v7996, 2147483648
    %v8098 = vmul.f32 %v8097, 1.442695
    %v8099 = vpow.pop %v8098
    %v8100 = vadd.f32 %v8099, 1.0
    %v8101 = vrcp.pop %v8100
    %v8102 = vmul.f32 %v8100, %v8101
    %v8103 = vsub.f32 1.0, %v8102
    %v8104 = vmul.f32 %v8101, %v8103
    %v8105 = vadd.f32 %v8101, %v8104
    %vm8106 = vweird.f32 %v8100
    %vm8107 = vweird.f32 %v8101
    %vm8108 = vmor %vm8106, %vm8107
    %v8109 = vsel %vm8108, %v8101, %v8105
    %v8110 = vand.u32 2147483647, %v8100
    %vm8111 = vcmp.eq.f32.partialorder %v8110, 8.507059e+37
    %v8112 = vand.u32 %v8100, 2147483648
    %v8113 = vor.u32 1.1754944e-38, %v8112
    %v8114 = vsel %vm8111, %v8113, %v8109
    %v8115 = vmul.f32 1.0, %v8114
    %v8116 = vmul.f32 %v8095, %v7933
    %v8117 = vmul.f32 %v8076, %v8096
    %v8118 = vadd.f32 %v8116, %v8117
    %v8119 = vtanh.pop %v8118
    %v8120 = vmul.f32 %v8115, %v8119
    %v8121 = vxor.u32 %v8054, 2147483648
    %v8122 = vmul.f32 %v8121, 1.442695
    %v8123 = vpow.pop %v8122
    %v8124 = vadd.f32 %v8123, 1.0
    %v8125 = vrcp.pop %v8124
    %v8126 = vmul.f32 %v8124, %v8125
    %v8127 = vsub.f32 1.0, %v8126
    %v8128 = vmul.f32 %v8125, %v8127
    %v8129 = vadd.f32 %v8125, %v8128
    %vm8130 = vweird.f32 %v8124
    %vm8131 = vweird.f32 %v8125
    %vm8132 = vmor %vm8130, %vm8131
    %v8133 = vsel %vm8132, %v8125, %v8129
    %v8134 = vand.u32 2147483647, %v8124
    %vm8135 = vcmp.eq.f32.partialorder %v8134, 8.507059e+37
    %v8136 = vand.u32 %v8124, 2147483648
    %v8137 = vor.u32 1.1754944e-38, %v8136
    %v8138 = vsel %vm8135, %v8137, %v8133
    %v8139 = vmul.f32 1.0, %v8138
    %v8140 = vxor.u32 %v8055, 2147483648
    %v8141 = vmul.f32 %v8140, 1.442695
    %v8142 = vpow.pop %v8141
    %v8143 = vadd.f32 %v8142, 1.0
    %v8144 = vrcp.pop %v8143
    %v8145 = vmul.f32 %v8143, %v8144
    %v8146 = vsub.f32 1.0, %v8145
    %v8147 = vmul.f32 %v8144, %v8146
    %v8148 = vadd.f32 %v8144, %v8147
    %vm8149 = vweird.f32 %v8143
    %vm8150 = vweird.f32 %v8144
    %vm8151 = vmor %vm8149, %vm8150
    %v8152 = vsel %vm8151, %v8144, %v8148
    %v8153 = vand.u32 2147483647, %v8143
    %vm8154 = vcmp.eq.f32.partialorder %v8153, 8.507059e+37
    %v8155 = vand.u32 %v8143, 2147483648
    %v8156 = vor.u32 1.1754944e-38, %v8155
    %v8157 = vsel %vm8154, %v8156, %v8152
    %v8158 = vmul.f32 1.0, %v8157
    %v8159 = vtanh.pop %v8056
    %v8160 = vxor.u32 %v8057, 2147483648
    %v8161 = vmul.f32 %v8160, 1.442695
    %v8162 = vpow.pop %v8161
    %v8163 = vadd.f32 %v8162, 1.0
    %v8164 = vrcp.pop %v8163
    %v8165 = vmul.f32 %v8163, %v8164
    %v8166 = vsub.f32 1.0, %v8165
    %v8167 = vmul.f32 %v8164, %v8166
    %v8168 = vadd.f32 %v8164, %v8167
    %vm8169 = vweird.f32 %v8163
    %vm8170 = vweird.f32 %v8164
    %vm8171 = vmor %vm8169, %vm8170
    %v8172 = vsel %vm8171, %v8164, %v8168
    %v8173 = vand.u32 2147483647, %v8163
    %vm8174 = vcmp.eq.f32.partialorder %v8173, 8.507059e+37
    %v8175 = vand.u32 %v8163, 2147483648
    %v8176 = vor.u32 1.1754944e-38, %v8175
    %v8177 = vsel %vm8174, %v8176, %v8172
    %v8178 = vmul.f32 1.0, %v8177
    %v8179 = vmul.f32 %v8158, %v7935
    %v8180 = vmul.f32 %v8139, %v8159
    %v8181 = vadd.f32 %v8179, %v8180
    %v8182 = vtanh.pop %v8181
    %v8183 = vmul.f32 %v8178, %v8182
    %v8184 = vld [vmem:[%s2071] sm:$0xff]
    %vm8185 = vcmp.ne.f32.partialorder %v8184, 0.0
    %v8186 = vld [vmem:[%s2074] sm:$0xff]
    %vm8187 = vcmp.ne.f32.partialorder %v8186, 0.0
    %v8188 = vsel %vm8185, %v8120, %v7932
    %v8189 = vsel %vm8185, %v8118, %v7933
    %v8190 = vsel %vm8187, %v8183, %v7934
    %v8191 = vsel %vm8187, %v8181, %v7935
    %v8192 = vld [vmem:[%s2087] sm:$0xff]
    %v8193 = vld [vmem:[%s2087 + $0x8] sm:$0xff]
    %v8194 = vld [vmem:[%s2087 + $0x10] sm:$0xff]
    %v8195 = vld [vmem:[%s2087 + $0x18] sm:$0xff]
    %v8196 = vpack.c.bf16 %v8188, %v8188
    %8197 = vmatpush.bf16.msra.mxu0 %v7457
    %8198 = vmatpush.bf16.msra.mxu0 %v7453
    %8199 = vmatpush.bf16.msra.mxu0 %v7449
    %8200 = vmatpush.bf16.msra.mxu0 %v7445
    %8201 = vmatpush.bf16.msra.mxu0 %v7441
    %8202 = vmatpush.bf16.msra.mxu0 %v7437
    %8203 = vmatpush.bf16.msra.mxu0 %v7433
    %8204 = vmatpush.bf16.msra.mxu0 %v7429
    %8205 = vmatmul.bf16.gmra.mxu0 %v8196
    %v8206 = vpop.f32.mrf.mxu0
    %v8207 = vadd.f32 0.0, %v8206
    %v8208 = vpop.f32.mrf.mxu0
    %8209 = vdwg.mxu0
    %8210 = vmatpush.bf16.msra.mxu0 %v7458
    %8211 = vmatpush.bf16.msra.mxu0 %v7454
    %8212 = vmatpush.bf16.msra.mxu0 %v7450
    %8213 = vmatpush.bf16.msra.mxu0 %v7446
    %8214 = vmatpush.bf16.msra.mxu0 %v7442
    %8215 = vmatpush.bf16.msra.mxu0 %v7438
    %8216 = vmatpush.bf16.msra.mxu0 %v7434
    %8217 = vmatpush.bf16.msra.mxu0 %v7430
    %8218 = vmatmul.bf16.gmra.mxu0 %v8196
    %v8219 = vpop.f32.mrf.mxu0
    %v8220 = vadd.f32 0.0, %v8219
    %v8221 = vpop.f32.mrf.mxu0
    %8222 = vdwg.mxu0
    %8223 = vmatpush.bf16.msra.mxu0 %v7459
    %8224 = vmatpush.bf16.msra.mxu0 %v7455
    %8225 = vmatpush.bf16.msra.mxu0 %v7451
    %8226 = vmatpush.bf16.msra.mxu0 %v7447
    %8227 = vmatpush.bf16.msra.mxu0 %v7443
    %8228 = vmatpush.bf16.msra.mxu0 %v7439
    %8229 = vmatpush.bf16.msra.mxu0 %v7435
    %8230 = vmatpush.bf16.msra.mxu0 %v7431
    %8231 = vmatmul.bf16.gmra.mxu0 %v8196
    %v8232 = vpop.f32.mrf.mxu0
    %v8233 = vadd.f32 0.0, %v8232
    %v8234 = vpop.f32.mrf.mxu0
    %8235 = vdwg.mxu0
    %8236 = vmatpush.bf16.msra.mxu0 %v7460
    %8237 = vmatpush.bf16.msra.mxu0 %v7456
    %8238 = vmatpush.bf16.msra.mxu0 %v7452
    %8239 = vmatpush.bf16.msra.mxu0 %v7448
    %8240 = vmatpush.bf16.msra.mxu0 %v7444
    %8241 = vmatpush.bf16.msra.mxu0 %v7440
    %8242 = vmatpush.bf16.msra.mxu0 %v7436
    %8243 = vmatpush.bf16.msra.mxu0 %v7432
    %8244 = vmatmul.bf16.gmra.mxu0 %v8196
    %v8245 = vpop.f32.mrf.mxu0
    %v8246 = vadd.f32 0.0, %v8245
    %v8247 = vpop.f32.mrf.mxu0
    %8248 = vdwg.mxu0
    %v8249 = vadd.f32 %v8192, %v8207
    %v8250 = vadd.f32 %v8193, %v8220
    %v8251 = vadd.f32 %v8194, %v8233
    %v8252 = vadd.f32 %v8195, %v8246
    %v8253 = vld [vmem:[%s2341 + $0x20] sm:$0xff]
    %v8254 = vld [vmem:[%s2341 + $0x28] sm:$0xff]
    %v8255 = vld [vmem:[%s2341 + $0x30] sm:$0xff]
    %v8256 = vld [vmem:[%s2341 + $0x38] sm:$0xff]
    %v8257 = vpack.c.bf16 %v8190, %v8190
    %8258 = vmatpush.bf16.msra.mxu0 %v7710
    %8259 = vmatpush.bf16.msra.mxu0 %v7706
    %8260 = vmatpush.bf16.msra.mxu0 %v7702
    %8261 = vmatpush.bf16.msra.mxu0 %v7698
    %8262 = vmatpush.bf16.msra.mxu0 %v7694
    %8263 = vmatpush.bf16.msra.mxu0 %v7690
    %8264 = vmatpush.bf16.msra.mxu0 %v7686
    %8265 = vmatpush.bf16.msra.mxu0 %v7682
    %8266 = vmatmul.bf16.gmra.mxu0 %v8257
    %v8267 = vpop.f32.mrf.mxu0
    %v8268 = vadd.f32 0.0, %v8267
    %v8269 = vpop.f32.mrf.mxu0
    %8270 = vdwg.mxu0
    %8271 = vmatpush.bf16.msra.mxu0 %v7711
    %8272 = vmatpush.bf16.msra.mxu0 %v7707
    %8273 = vmatpush.bf16.msra.mxu0 %v7703
    %8274 = vmatpush.bf16.msra.mxu0 %v7699
    %8275 = vmatpush.bf16.msra.mxu0 %v7695
    %8276 = vmatpush.bf16.msra.mxu0 %v7691
    %8277 = vmatpush.bf16.msra.mxu0 %v7687
    %8278 = vmatpush.bf16.msra.mxu0 %v7683
    %8279 = vmatmul.bf16.gmra.mxu0 %v8257
    %v8280 = vpop.f32.mrf.mxu0
    %v8281 = vadd.f32 0.0, %v8280
    %v8282 = vpop.f32.mrf.mxu0
    %8283 = vdwg.mxu0
    %8284 = vmatpush.bf16.msra.mxu0 %v7712
    %8285 = vmatpush.bf16.msra.mxu0 %v7708
    %8286 = vmatpush.bf16.msra.mxu0 %v7704
    %8287 = vmatpush.bf16.msra.mxu0 %v7700
    %8288 = vmatpush.bf16.msra.mxu0 %v7696
    %8289 = vmatpush.bf16.msra.mxu0 %v7692
    %8290 = vmatpush.bf16.msra.mxu0 %v7688
    %8291 = vmatpush.bf16.msra.mxu0 %v7684
    %8292 = vmatmul.bf16.gmra.mxu0 %v8257
    %v8293 = vpop.f32.mrf.mxu0
    %v8294 = vadd.f32 0.0, %v8293
    %v8295 = vpop.f32.mrf.mxu0
    %8296 = vdwg.mxu0
    %8297 = vmatpush.bf16.msra.mxu0 %v7713
    %8298 = vmatpush.bf16.msra.mxu0 %v7709
    %8299 = vmatpush.bf16.msra.mxu0 %v7705
    %8300 = vmatpush.bf16.msra.mxu0 %v7701
    %8301 = vmatpush.bf16.msra.mxu0 %v7697
    %8302 = vmatpush.bf16.msra.mxu0 %v7693
    %8303 = vmatpush.bf16.msra.mxu0 %v7689
    %8304 = vmatpush.bf16.msra.mxu0 %v7685
    %8305 = vmatmul.bf16.gmra.mxu0 %v8257
    %v8306 = vpop.f32.mrf.mxu0
    %v8307 = vadd.f32 0.0, %v8306
    %v8308 = vpop.f32.mrf.mxu0
    %8309 = vdwg.mxu0
    %v8310 = vadd.f32 %v8253, %v8268
    %v8311 = vadd.f32 %v8254, %v8281
    %v8312 = vadd.f32 %v8255, %v8294
    %v8313 = vadd.f32 %v8256, %v8307
    %v8314 = vxor.u32 %v8249, 2147483648
    %v8315 = vmul.f32 %v8314, 1.442695
    %v8316 = vpow.pop %v8315
    %v8317 = vadd.f32 %v8316, 1.0
    %v8318 = vrcp.pop %v8317
    %v8319 = vmul.f32 %v8317, %v8318
    %v8320 = vsub.f32 1.0, %v8319
    %v8321 = vmul.f32 %v8318, %v8320
    %v8322 = vadd.f32 %v8318, %v8321
    %vm8323 = vweird.f32 %v8317
    %vm8324 = vweird.f32 %v8318
    %vm8325 = vmor %vm8323, %vm8324
    %v8326 = vsel %vm8325, %v8318, %v8322
    %v8327 = vand.u32 2147483647, %v8317
    %vm8328 = vcmp.eq.f32.partialorder %v8327, 8.507059e+37
    %v8329 = vand.u32 %v8317, 2147483648
    %v8330 = vor.u32 1.1754944e-38, %v8329
    %v8331 = vsel %vm8328, %v8330, %v8326
    %v8332 = vmul.f32 1.0, %v8331
    %v8333 = vxor.u32 %v8250, 2147483648
    %v8334 = vmul.f32 %v8333, 1.442695
    %v8335 = vpow.pop %v8334
    %v8336 = vadd.f32 %v8335, 1.0
    %v8337 = vrcp.pop %v8336
    %v8338 = vmul.f32 %v8336, %v8337
    %v8339 = vsub.f32 1.0, %v8338
    %v8340 = vmul.f32 %v8337, %v8339
    %v8341 = vadd.f32 %v8337, %v8340
    %vm8342 = vweird.f32 %v8336
    %vm8343 = vweird.f32 %v8337
    %vm8344 = vmor %vm8342, %vm8343
    %v8345 = vsel %vm8344, %v8337, %v8341
    %v8346 = vand.u32 2147483647, %v8336
    %vm8347 = vcmp.eq.f32.partialorder %v8346, 8.507059e+37
    %v8348 = vand.u32 %v8336, 2147483648
    %v8349 = vor.u32 1.1754944e-38, %v8348
    %v8350 = vsel %vm8347, %v8349, %v8345
    %v8351 = vmul.f32 1.0, %v8350
    %v8352 = vtanh.pop %v8251
    %v8353 = vxor.u32 %v8252, 2147483648
    %v8354 = vmul.f32 %v8353, 1.442695
    %v8355 = vpow.pop %v8354
    %v8356 = vadd.f32 %v8355, 1.0
    %v8357 = vrcp.pop %v8356
    %v8358 = vmul.f32 %v8356, %v8357
    %v8359 = vsub.f32 1.0, %v8358
    %v8360 = vmul.f32 %v8357, %v8359
    %v8361 = vadd.f32 %v8357, %v8360
    %vm8362 = vweird.f32 %v8356
    %vm8363 = vweird.f32 %v8357
    %vm8364 = vmor %vm8362, %vm8363
    %v8365 = vsel %vm8364, %v8357, %v8361
    %v8366 = vand.u32 2147483647, %v8356
    %vm8367 = vcmp.eq.f32.partialorder %v8366, 8.507059e+37
    %v8368 = vand.u32 %v8356, 2147483648
    %v8369 = vor.u32 1.1754944e-38, %v8368
    %v8370 = vsel %vm8367, %v8369, %v8365
    %v8371 = vmul.f32 1.0, %v8370
    %v8372 = vmul.f32 %v8351, %v8189
    %v8373 = vmul.f32 %v8332, %v8352
    %v8374 = vadd.f32 %v8372, %v8373
    %v8375 = vtanh.pop %v8374
    %v8376 = vmul.f32 %v8371, %v8375
    %v8377 = vxor.u32 %v8310, 2147483648
    %v8378 = vmul.f32 %v8377, 1.442695
    %v8379 = vpow.pop %v8378
    %v8380 = vadd.f32 %v8379, 1.0
    %v8381 = vrcp.pop %v8380
    %v8382 = vmul.f32 %v8380, %v8381
    %v8383 = vsub.f32 1.0, %v8382
    %v8384 = vmul.f32 %v8381, %v8383
    %v8385 = vadd.f32 %v8381, %v8384
    %vm8386 = vweird.f32 %v8380
    %vm8387 = vweird.f32 %v8381
    %vm8388 = vmor %vm8386, %vm8387
    %v8389 = vsel %vm8388, %v8381, %v8385
    %v8390 = vand.u32 2147483647, %v8380
    %vm8391 = vcmp.eq.f32.partialorder %v8390, 8.507059e+37
    %v8392 = vand.u32 %v8380, 2147483648
    %v8393 = vor.u32 1.1754944e-38, %v8392
    %v8394 = vsel %vm8391, %v8393, %v8389
    %v8395 = vmul.f32 1.0, %v8394
    %v8396 = vxor.u32 %v8311, 2147483648
    %v8397 = vmul.f32 %v8396, 1.442695
    %v8398 = vpow.pop %v8397
    %v8399 = vadd.f32 %v8398, 1.0
    %v8400 = vrcp.pop %v8399
    %v8401 = vmul.f32 %v8399, %v8400
    %v8402 = vsub.f32 1.0, %v8401
    %v8403 = vmul.f32 %v8400, %v8402
    %v8404 = vadd.f32 %v8400, %v8403
    %vm8405 = vweird.f32 %v8399
    %vm8406 = vweird.f32 %v8400
    %vm8407 = vmor %vm8405, %vm8406
    %v8408 = vsel %vm8407, %v8400, %v8404
    %v8409 = vand.u32 2147483647, %v8399
    %vm8410 = vcmp.eq.f32.partialorder %v8409, 8.507059e+37
    %v8411 = vand.u32 %v8399, 2147483648
    %v8412 = vor.u32 1.1754944e-38, %v8411
    %v8413 = vsel %vm8410, %v8412, %v8408
    %v8414 = vmul.f32 1.0, %v8413
    %v8415 = vtanh.pop %v8312
    %v8416 = vxor.u32 %v8313, 2147483648
    %v8417 = vmul.f32 %v8416, 1.442695
    %v8418 = vpow.pop %v8417
    %v8419 = vadd.f32 %v8418, 1.0
    %v8420 = vrcp.pop %v8419
    %v8421 = vmul.f32 %v8419, %v8420
    %v8422 = vsub.f32 1.0, %v8421
    %v8423 = vmul.f32 %v8420, %v8422
    %v8424 = vadd.f32 %v8420, %v8423
    %vm8425 = vweird.f32 %v8419
    %vm8426 = vweird.f32 %v8420
    %vm8427 = vmor %vm8425, %vm8426
    %v8428 = vsel %vm8427, %v8420, %v8424
    %v8429 = vand.u32 2147483647, %v8419
    %vm8430 = vcmp.eq.f32.partialorder %v8429, 8.507059e+37
    %v8431 = vand.u32 %v8419, 2147483648
    %v8432 = vor.u32 1.1754944e-38, %v8431
    %v8433 = vsel %vm8430, %v8432, %v8428
    %v8434 = vmul.f32 1.0, %v8433
    %v8435 = vmul.f32 %v8414, %v8191
    %v8436 = vmul.f32 %v8395, %v8415
    %v8437 = vadd.f32 %v8435, %v8436
    %v8438 = vtanh.pop %v8437
    %v8439 = vmul.f32 %v8434, %v8438
    %v8440 = vld [vmem:[%s2721] sm:$0xff]
    %vm8441 = vcmp.ne.f32.partialorder %v8440, 0.0
    %v8442 = vld [vmem:[%s2724] sm:$0xff]
    %vm8443 = vcmp.ne.f32.partialorder %v8442, 0.0
    %v8444 = vsel %vm8441, %v8376, %v8188
    %v8445 = vsel %vm8441, %v8374, %v8189
    %v8446 = vsel %vm8443, %v8439, %v8190
    %v8447 = vsel %vm8443, %v8437, %v8191
    %v8448 = vld [vmem:[%s2737] sm:$0xff]
    %v8449 = vld [vmem:[%s2737 + $0x8] sm:$0xff]
    %v8450 = vld [vmem:[%s2737 + $0x10] sm:$0xff]
    %v8451 = vld [vmem:[%s2737 + $0x18] sm:$0xff]
    %v8452 = vpack.c.bf16 %v8444, %v8444
    %8453 = vmatpush.bf16.msra.mxu0 %v7457
    %8454 = vmatpush.bf16.msra.mxu0 %v7453
    %8455 = vmatpush.bf16.msra.mxu0 %v7449
    %8456 = vmatpush.bf16.msra.mxu0 %v7445
    %8457 = vmatpush.bf16.msra.mxu0 %v7441
    %8458 = vmatpush.bf16.msra.mxu0 %v7437
    %8459 = vmatpush.bf16.msra.mxu0 %v7433
    %8460 = vmatpush.bf16.msra.mxu0 %v7429
    %8461 = vmatmul.bf16.gmra.mxu0 %v8452
    %v8462 = vpop.f32.mrf.mxu0
    %v8463 = vadd.f32 0.0, %v8462
    %v8464 = vpop.f32.mrf.mxu0
    %8465 = vdwg.mxu0
    %8466 = vmatpush.bf16.msra.mxu0 %v7458
    %8467 = vmatpush.bf16.msra.mxu0 %v7454
    %8468 = vmatpush.bf16.msra.mxu0 %v7450
    %8469 = vmatpush.bf16.msra.mxu0 %v7446
    %8470 = vmatpush.bf16.msra.mxu0 %v7442
    %8471 = vmatpush.bf16.msra.mxu0 %v7438
    %8472 = vmatpush.bf16.msra.mxu0 %v7434
    %8473 = vmatpush.bf16.msra.mxu0 %v7430
    %8474 = vmatmul.bf16.gmra.mxu0 %v8452
    %v8475 = vpop.f32.mrf.mxu0
    %v8476 = vadd.f32 0.0, %v8475
    %v8477 = vpop.f32.mrf.mxu0
    %8478 = vdwg.mxu0
    %8479 = vmatpush.bf16.msra.mxu0 %v7459
    %8480 = vmatpush.bf16.msra.mxu0 %v7455
    %8481 = vmatpush.bf16.msra.mxu0 %v7451
    %8482 = vmatpush.bf16.msra.mxu0 %v7447
    %8483 = vmatpush.bf16.msra.mxu0 %v7443
    %8484 = vmatpush.bf16.msra.mxu0 %v7439
    %8485 = vmatpush.bf16.msra.mxu0 %v7435
    %8486 = vmatpush.bf16.msra.mxu0 %v7431
    %8487 = vmatmul.bf16.gmra.mxu0 %v8452
    %v8488 = vpop.f32.mrf.mxu0
    %v8489 = vadd.f32 0.0, %v8488
    %v8490 = vpop.f32.mrf.mxu0
    %8491 = vdwg.mxu0
    %8492 = vmatpush.bf16.msra.mxu0 %v7460
    %8493 = vmatpush.bf16.msra.mxu0 %v7456
    %8494 = vmatpush.bf16.msra.mxu0 %v7452
    %8495 = vmatpush.bf16.msra.mxu0 %v7448
    %8496 = vmatpush.bf16.msra.mxu0 %v7444
    %8497 = vmatpush.bf16.msra.mxu0 %v7440
    %8498 = vmatpush.bf16.msra.mxu0 %v7436
    %8499 = vmatpush.bf16.msra.mxu0 %v7432
    %8500 = vmatmul.bf16.gmra.mxu0 %v8452
    %v8501 = vpop.f32.mrf.mxu0
    %v8502 = vadd.f32 0.0, %v8501
    %v8503 = vpop.f32.mrf.mxu0
    %8504 = vdwg.mxu0
    %v8505 = vadd.f32 %v8448, %v8463
    %v8506 = vadd.f32 %v8449, %v8476
    %v8507 = vadd.f32 %v8450, %v8489
    %v8508 = vadd.f32 %v8451, %v8502
    %v8509 = vld [vmem:[%s2991 + $0x20] sm:$0xff]
    %v8510 = vld [vmem:[%s2991 + $0x28] sm:$0xff]
    %v8511 = vld [vmem:[%s2991 + $0x30] sm:$0xff]
    %v8512 = vld [vmem:[%s2991 + $0x38] sm:$0xff]
    %v8513 = vpack.c.bf16 %v8446, %v8446
    %8514 = vmatpush.bf16.msra.mxu0 %v7710
    %8515 = vmatpush.bf16.msra.mxu0 %v7706
    %8516 = vmatpush.bf16.msra.mxu0 %v7702
    %8517 = vmatpush.bf16.msra.mxu0 %v7698
    %8518 = vmatpush.bf16.msra.mxu0 %v7694
    %8519 = vmatpush.bf16.msra.mxu0 %v7690
    %8520 = vmatpush.bf16.msra.mxu0 %v7686
    %8521 = vmatpush.bf16.msra.mxu0 %v7682
    %8522 = vmatmul.bf16.gmra.mxu0 %v8513
    %v8523 = vpop.f32.mrf.mxu0
    %v8524 = vadd.f32 0.0, %v8523
    %v8525 = vpop.f32.mrf.mxu0
    %8526 = vdwg.mxu0
    %8527 = vmatpush.bf16.msra.mxu0 %v7711
    %8528 = vmatpush.bf16.msra.mxu0 %v7707
    %8529 = vmatpush.bf16.msra.mxu0 %v7703
    %8530 = vmatpush.bf16.msra.mxu0 %v7699
    %8531 = vmatpush.bf16.msra.mxu0 %v7695
    %8532 = vmatpush.bf16.msra.mxu0 %v7691
    %8533 = vmatpush.bf16.msra.mxu0 %v7687
    %8534 = vmatpush.bf16.msra.mxu0 %v7683
    %8535 = vmatmul.bf16.gmra.mxu0 %v8513
    %v8536 = vpop.f32.mrf.mxu0
    %v8537 = vadd.f32 0.0, %v8536
    %v8538 = vpop.f32.mrf.mxu0
    %8539 = vdwg.mxu0
    %8540 = vmatpush.bf16.msra.mxu0 %v7712
    %8541 = vmatpush.bf16.msra.mxu0 %v7708
    %8542 = vmatpush.bf16.msra.mxu0 %v7704
    %8543 = vmatpush.bf16.msra.mxu0 %v7700
    %8544 = vmatpush.bf16.msra.mxu0 %v7696
    %8545 = vmatpush.bf16.msra.mxu0 %v7692
    %8546 = vmatpush.bf16.msra.mxu0 %v7688
    %8547 = vmatpush.bf16.msra.mxu0 %v7684
    %8548 = vmatmul.bf16.gmra.mxu0 %v8513
    %v8549 = vpop.f32.mrf.mxu0
    %v8550 = vadd.f32 0.0, %v8549
    %v8551 = vpop.f32.mrf.mxu0
    %8552 = vdwg.mxu0
    %8553 = vmatpush.bf16.msra.mxu0 %v7713
    %8554 = vmatpush.bf16.msra.mxu0 %v7709
    %8555 = vmatpush.bf16.msra.mxu0 %v7705
    %8556 = vmatpush.bf16.msra.mxu0 %v7701
    %8557 = vmatpush.bf16.msra.mxu0 %v7697
    %8558 = vmatpush.bf16.msra.mxu0 %v7693
    %8559 = vmatpush.bf16.msra.mxu0 %v7689
    %8560 = vmatpush.bf16.msra.mxu0 %v7685
    %8561 = vmatmul.bf16.gmra.mxu0 %v8513
    %v8562 = vpop.f32.mrf.mxu0
    %v8563 = vadd.f32 0.0, %v8562
    %v8564 = vpop.f32.mrf.mxu0
    %8565 = vdwg.mxu0
    %v8566 = vadd.f32 %v8509, %v8524
    %v8567 = vadd.f32 %v8510, %v8537
    %v8568 = vadd.f32 %v8511, %v8550
    %v8569 = vadd.f32 %v8512, %v8563
    %v8570 = vxor.u32 %v8505, 2147483648
    %v8571 = vmul.f32 %v8570, 1.442695
    %v8572 = vpow.pop %v8571
    %v8573 = vadd.f32 %v8572, 1.0
    %v8574 = vrcp.pop %v8573
    %v8575 = vmul.f32 %v8573, %v8574
    %v8576 = vsub.f32 1.0, %v8575
    %v8577 = vmul.f32 %v8574, %v8576
    %v8578 = vadd.f32 %v8574, %v8577
    %vm8579 = vweird.f32 %v8573
    %vm8580 = vweird.f32 %v8574
    %vm8581 = vmor %vm8579, %vm8580
    %v8582 = vsel %vm8581, %v8574, %v8578
    %v8583 = vand.u32 2147483647, %v8573
    %vm8584 = vcmp.eq.f32.partialorder %v8583, 8.507059e+37
    %v8585 = vand.u32 %v8573, 2147483648
    %v8586 = vor.u32 1.1754944e-38, %v8585
    %v8587 = vsel %vm8584, %v8586, %v8582
    %v8588 = vmul.f32 1.0, %v8587
    %v8589 = vxor.u32 %v8506, 2147483648
    %v8590 = vmul.f32 %v8589, 1.442695
    %v8591 = vpow.pop %v8590
    %v8592 = vadd.f32 %v8591, 1.0
    %v8593 = vrcp.pop %v8592
    %v8594 = vmul.f32 %v8592, %v8593
    %v8595 = vsub.f32 1.0, %v8594
    %v8596 = vmul.f32 %v8593, %v8595
    %v8597 = vadd.f32 %v8593, %v8596
    %vm8598 = vweird.f32 %v8592
    %vm8599 = vweird.f32 %v8593
    %vm8600 = vmor %vm8598, %vm8599
    %v8601 = vsel %vm8600, %v8593, %v8597
    %v8602 = vand.u32 2147483647, %v8592
    %vm8603 = vcmp.eq.f32.partialorder %v8602, 8.507059e+37
    %v8604 = vand.u32 %v8592, 2147483648
    %v8605 = vor.u32 1.1754944e-38, %v8604
    %v8606 = vsel %vm8603, %v8605, %v8601
    %v8607 = vmul.f32 1.0, %v8606
    %v8608 = vtanh.pop %v8507
    %v8609 = vxor.u32 %v8508, 2147483648
    %v8610 = vmul.f32 %v8609, 1.442695
    %v8611 = vpow.pop %v8610
    %v8612 = vadd.f32 %v8611, 1.0
    %v8613 = vrcp.pop %v8612
    %v8614 = vmul.f32 %v8612, %v8613
    %v8615 = vsub.f32 1.0, %v8614
    %v8616 = vmul.f32 %v8613, %v8615
    %v8617 = vadd.f32 %v8613, %v8616
    %vm8618 = vweird.f32 %v8612
    %vm8619 = vweird.f32 %v8613
    %vm8620 = vmor %vm8618, %vm8619
    %v8621 = vsel %vm8620, %v8613, %v8617
    %v8622 = vand.u32 2147483647, %v8612
    %vm8623 = vcmp.eq.f32.partialorder %v8622, 8.507059e+37
    %v8624 = vand.u32 %v8612, 2147483648
    %v8625 = vor.u32 1.1754944e-38, %v8624
    %v8626 = vsel %vm8623, %v8625, %v8621
    %v8627 = vmul.f32 1.0, %v8626
    %v8628 = vmul.f32 %v8607, %v8445
    %v8629 = vmul.f32 %v8588, %v8608
    %v8630 = vadd.f32 %v8628, %v8629
    %v8631 = vtanh.pop %v8630
    %v8632 = vmul.f32 %v8627, %v8631
    %v8633 = vxor.u32 %v8566, 2147483648
    %v8634 = vmul.f32 %v8633, 1.442695
    %v8635 = vpow.pop %v8634
    %v8636 = vadd.f32 %v8635, 1.0
    %v8637 = vrcp.pop %v8636
    %v8638 = vmul.f32 %v8636, %v8637
    %v8639 = vsub.f32 1.0, %v8638
    %v8640 = vmul.f32 %v8637, %v8639
    %v8641 = vadd.f32 %v8637, %v8640
    %vm8642 = vweird.f32 %v8636
    %vm8643 = vweird.f32 %v8637
    %vm8644 = vmor %vm8642, %vm8643
    %v8645 = vsel %vm8644, %v8637, %v8641
    %v8646 = vand.u32 2147483647, %v8636
    %vm8647 = vcmp.eq.f32.partialorder %v8646, 8.507059e+37
    %v8648 = vand.u32 %v8636, 2147483648
    %v8649 = vor.u32 1.1754944e-38, %v8648
    %v8650 = vsel %vm8647, %v8649, %v8645
    %v8651 = vmul.f32 1.0, %v8650
    %v8652 = vxor.u32 %v8567, 2147483648
    %v8653 = vmul.f32 %v8652, 1.442695
    %v8654 = vpow.pop %v8653
    %v8655 = vadd.f32 %v8654, 1.0
    %v8656 = vrcp.pop %v8655
    %v8657 = vmul.f32 %v8655, %v8656
    %v8658 = vsub.f32 1.0, %v8657
    %v8659 = vmul.f32 %v8656, %v8658
    %v8660 = vadd.f32 %v8656, %v8659
    %vm8661 = vweird.f32 %v8655
    %vm8662 = vweird.f32 %v8656
    %vm8663 = vmor %vm8661, %vm8662
    %v8664 = vsel %vm8663, %v8656, %v8660
    %v8665 = vand.u32 2147483647, %v8655
    %vm8666 = vcmp.eq.f32.partialorder %v8665, 8.507059e+37
    %v8667 = vand.u32 %v8655, 2147483648
    %v8668 = vor.u32 1.1754944e-38, %v8667
    %v8669 = vsel %vm8666, %v8668, %v8664
    %v8670 = vmul.f32 1.0, %v8669
    %v8671 = vtanh.pop %v8568
    %v8672 = vxor.u32 %v8569, 2147483648
    %v8673 = vmul.f32 %v8672, 1.442695
    %v8674 = vpow.pop %v8673
    %v8675 = vadd.f32 %v8674, 1.0
    %v8676 = vrcp.pop %v8675
    %v8677 = vmul.f32 %v8675, %v8676
    %v8678 = vsub.f32 1.0, %v8677
    %v8679 = vmul.f32 %v8676, %v8678
    %v8680 = vadd.f32 %v8676, %v8679
    %vm8681 = vweird.f32 %v8675
    %vm8682 = vweird.f32 %v8676
    %vm8683 = vmor %vm8681, %vm8682
    %v8684 = vsel %vm8683, %v8676, %v8680
    %v8685 = vand.u32 2147483647, %v8675
    %vm8686 = vcmp.eq.f32.partialorder %v8685, 8.507059e+37
    %v8687 = vand.u32 %v8675, 2147483648
    %v8688 = vor.u32 1.1754944e-38, %v8687
    %v8689 = vsel %vm8686, %v8688, %v8684
    %v8690 = vmul.f32 1.0, %v8689
    %v8691 = vmul.f32 %v8670, %v8447
    %v8692 = vmul.f32 %v8651, %v8671
    %v8693 = vadd.f32 %v8691, %v8692
    %v8694 = vtanh.pop %v8693
    %v8695 = vmul.f32 %v8690, %v8694
    %v8696 = vld [vmem:[%s3371] sm:$0xff]
    %vm8697 = vcmp.ne.f32.partialorder %v8696, 0.0
    %v8698 = vld [vmem:[%s3374] sm:$0xff]
    %vm8699 = vcmp.ne.f32.partialorder %v8698, 0.0
    %v8700 = vsel %vm8697, %v8632, %v8444
    %v8701 = vsel %vm8697, %v8630, %v8445
    %v8702 = vsel %vm8699, %v8695, %v8446
    %v8703 = vsel %vm8699, %v8693, %v8447
    %v8704 = vld [vmem:[%s2991] sm:$0xff]
    %v8705 = vld [vmem:[%s2991 + $0x8] sm:$0xff]
    %v8706 = vld [vmem:[%s2991 + $0x10] sm:$0xff]
    %v8707 = vld [vmem:[%s2991 + $0x18] sm:$0xff]
    %v8708 = vpack.c.bf16 %v8700, %v8700
    %8709 = vmatpush.bf16.msra.mxu0 %v7457
    %8710 = vmatpush.bf16.msra.mxu0 %v7453
    %8711 = vmatpush.bf16.msra.mxu0 %v7449
    %8712 = vmatpush.bf16.msra.mxu0 %v7445
    %8713 = vmatpush.bf16.msra.mxu0 %v7441
    %8714 = vmatpush.bf16.msra.mxu0 %v7437
    %8715 = vmatpush.bf16.msra.mxu0 %v7433
    %8716 = vmatpush.bf16.msra.mxu0 %v7429
    %8717 = vmatmul.bf16.gmra.mxu0 %v8708
    %v8718 = vpop.f32.mrf.mxu0
    %v8719 = vadd.f32 0.0, %v8718
    %v8720 = vpop.f32.mrf.mxu0
    %8721 = vdwg.mxu0
    %8722 = vmatpush.bf16.msra.mxu0 %v7458
    %8723 = vmatpush.bf16.msra.mxu0 %v7454
    %8724 = vmatpush.bf16.msra.mxu0 %v7450
    %8725 = vmatpush.bf16.msra.mxu0 %v7446
    %8726 = vmatpush.bf16.msra.mxu0 %v7442
    %8727 = vmatpush.bf16.msra.mxu0 %v7438
    %8728 = vmatpush.bf16.msra.mxu0 %v7434
    %8729 = vmatpush.bf16.msra.mxu0 %v7430
    %8730 = vmatmul.bf16.gmra.mxu0 %v8708
    %v8731 = vpop.f32.mrf.mxu0
    %v8732 = vadd.f32 0.0, %v8731
    %v8733 = vpop.f32.mrf.mxu0
    %8734 = vdwg.mxu0
    %8735 = vmatpush.bf16.msra.mxu0 %v7459
    %8736 = vmatpush.bf16.msra.mxu0 %v7455
    %8737 = vmatpush.bf16.msra.mxu0 %v7451
    %8738 = vmatpush.bf16.msra.mxu0 %v7447
    %8739 = vmatpush.bf16.msra.mxu0 %v7443
    %8740 = vmatpush.bf16.msra.mxu0 %v7439
    %8741 = vmatpush.bf16.msra.mxu0 %v7435
    %8742 = vmatpush.bf16.msra.mxu0 %v7431
    %8743 = vmatmul.bf16.gmra.mxu0 %v8708
    %v8744 = vpop.f32.mrf.mxu0
    %v8745 = vadd.f32 0.0, %v8744
    %v8746 = vpop.f32.mrf.mxu0
    %8747 = vdwg.mxu0
    %8748 = vmatpush.bf16.msra.mxu0 %v7460
    %8749 = vmatpush.bf16.msra.mxu0 %v7456
    %8750 = vmatpush.bf16.msra.mxu0 %v7452
    %8751 = vmatpush.bf16.msra.mxu0 %v7448
    %8752 = vmatpush.bf16.msra.mxu0 %v7444
    %8753 = vmatpush.bf16.msra.mxu0 %v7440
    %8754 = vmatpush.bf16.msra.mxu0 %v7436
    %8755 = vmatpush.bf16.msra.mxu0 %v7432
    %8756 = vmatmul.bf16.gmra.mxu0 %v8708
    %v8757 = vpop.f32.mrf.mxu0
    %v8758 = vadd.f32 0.0, %v8757
    %v8759 = vpop.f32.mrf.mxu0
    %8760 = vdwg.mxu0
    %v8761 = vadd.f32 %v8704, %v8719
    %v8762 = vadd.f32 %v8705, %v8732
    %v8763 = vadd.f32 %v8706, %v8745
    %v8764 = vadd.f32 %v8707, %v8758
    %v8765 = vld [vmem:[%s2737 + $0x20] sm:$0xff]
    %v8766 = vld [vmem:[%s2737 + $0x28] sm:$0xff]
    %v8767 = vld [vmem:[%s2737 + $0x30] sm:$0xff]
    %v8768 = vld [vmem:[%s2737 + $0x38] sm:$0xff]
    %v8769 = vpack.c.bf16 %v8702, %v8702
    %8770 = vmatpush.bf16.msra.mxu0 %v7710
    %8771 = vmatpush.bf16.msra.mxu0 %v7706
    %8772 = vmatpush.bf16.msra.mxu0 %v7702
    %8773 = vmatpush.bf16.msra.mxu0 %v7698
    %8774 = vmatpush.bf16.msra.mxu0 %v7694
    %8775 = vmatpush.bf16.msra.mxu0 %v7690
    %8776 = vmatpush.bf16.msra.mxu0 %v7686
    %8777 = vmatpush.bf16.msra.mxu0 %v7682
    %8778 = vmatmul.bf16.gmra.mxu0 %v8769
    %v8779 = vpop.f32.mrf.mxu0
    %v8780 = vadd.f32 0.0, %v8779
    %v8781 = vpop.f32.mrf.mxu0
    %8782 = vdwg.mxu0
    %8783 = vmatpush.bf16.msra.mxu0 %v7711
    %8784 = vmatpush.bf16.msra.mxu0 %v7707
    %8785 = vmatpush.bf16.msra.mxu0 %v7703
    %8786 = vmatpush.bf16.msra.mxu0 %v7699
    %8787 = vmatpush.bf16.msra.mxu0 %v7695
    %8788 = vmatpush.bf16.msra.mxu0 %v7691
    %8789 = vmatpush.bf16.msra.mxu0 %v7687
    %8790 = vmatpush.bf16.msra.mxu0 %v7683
    %8791 = vmatmul.bf16.gmra.mxu0 %v8769
    %v8792 = vpop.f32.mrf.mxu0
    %v8793 = vadd.f32 0.0, %v8792
    %v8794 = vpop.f32.mrf.mxu0
    %8795 = vdwg.mxu0
    %8796 = vmatpush.bf16.msra.mxu0 %v7712
    %8797 = vmatpush.bf16.msra.mxu0 %v7708
    %8798 = vmatpush.bf16.msra.mxu0 %v7704
    %8799 = vmatpush.bf16.msra.mxu0 %v7700
    %8800 = vmatpush.bf16.msra.mxu0 %v7696
    %8801 = vmatpush.bf16.msra.mxu0 %v7692
    %8802 = vmatpush.bf16.msra.mxu0 %v7688
    %8803 = vmatpush.bf16.msra.mxu0 %v7684
    %8804 = vmatmul.bf16.gmra.mxu0 %v8769
    %v8805 = vpop.f32.mrf.mxu0
    %v8806 = vadd.f32 0.0, %v8805
    %v8807 = vpop.f32.mrf.mxu0
    %8808 = vdwg.mxu0
    %8809 = vmatpush.bf16.msra.mxu0 %v7713
    %8810 = vmatpush.bf16.msra.mxu0 %v7709
    %8811 = vmatpush.bf16.msra.mxu0 %v7705
    %8812 = vmatpush.bf16.msra.mxu0 %v7701
    %8813 = vmatpush.bf16.msra.mxu0 %v7697
    %8814 = vmatpush.bf16.msra.mxu0 %v7693
    %8815 = vmatpush.bf16.msra.mxu0 %v7689
    %8816 = vmatpush.bf16.msra.mxu0 %v7685
    %8817 = vmatmul.bf16.gmra.mxu0 %v8769
    %v8818 = vpop.f32.mrf.mxu0
    %v8819 = vadd.f32 0.0, %v8818
    %v8820 = vpop.f32.mrf.mxu0
    %8821 = vdwg.mxu0
    %v8822 = vadd.f32 %v8765, %v8780
    %v8823 = vadd.f32 %v8766, %v8793
    %v8824 = vadd.f32 %v8767, %v8806
    %v8825 = vadd.f32 %v8768, %v8819
    %v8826 = vxor.u32 %v8761, 2147483648
    %v8827 = vmul.f32 %v8826, 1.442695
    %v8828 = vpow.pop %v8827
    %v8829 = vadd.f32 %v8828, 1.0
    %v8830 = vrcp.pop %v8829
    %v8831 = vmul.f32 %v8829, %v8830
    %v8832 = vsub.f32 1.0, %v8831
    %v8833 = vmul.f32 %v8830, %v8832
    %v8834 = vadd.f32 %v8830, %v8833
    %vm8835 = vweird.f32 %v8829
    %vm8836 = vweird.f32 %v8830
    %vm8837 = vmor %vm8835, %vm8836
    %v8838 = vsel %vm8837, %v8830, %v8834
    %v8839 = vand.u32 2147483647, %v8829
    %vm8840 = vcmp.eq.f32.partialorder %v8839, 8.507059e+37
    %v8841 = vand.u32 %v8829, 2147483648
    %v8842 = vor.u32 1.1754944e-38, %v8841
    %v8843 = vsel %vm8840, %v8842, %v8838
    %v8844 = vmul.f32 1.0, %v8843
    %v8845 = vxor.u32 %v8762, 2147483648
    %v8846 = vmul.f32 %v8845, 1.442695
    %v8847 = vpow.pop %v8846
    %v8848 = vadd.f32 %v8847, 1.0
    %v8849 = vrcp.pop %v8848
    %v8850 = vmul.f32 %v8848, %v8849
    %v8851 = vsub.f32 1.0, %v8850
    %v8852 = vmul.f32 %v8849, %v8851
    %v8853 = vadd.f32 %v8849, %v8852
    %vm8854 = vweird.f32 %v8848
    %vm8855 = vweird.f32 %v8849
    %vm8856 = vmor %vm8854, %vm8855
    %v8857 = vsel %vm8856, %v8849, %v8853
    %v8858 = vand.u32 2147483647, %v8848
    %vm8859 = vcmp.eq.f32.partialorder %v8858, 8.507059e+37
    %v8860 = vand.u32 %v8848, 2147483648
    %v8861 = vor.u32 1.1754944e-38, %v8860
    %v8862 = vsel %vm8859, %v8861, %v8857
    %v8863 = vmul.f32 1.0, %v8862
    %v8864 = vtanh.pop %v8763
    %v8865 = vxor.u32 %v8764, 2147483648
    %v8866 = vmul.f32 %v8865, 1.442695
    %v8867 = vpow.pop %v8866
    %v8868 = vadd.f32 %v8867, 1.0
    %v8869 = vrcp.pop %v8868
    %v8870 = vmul.f32 %v8868, %v8869
    %v8871 = vsub.f32 1.0, %v8870
    %v8872 = vmul.f32 %v8869, %v8871
    %v8873 = vadd.f32 %v8869, %v8872
    %vm8874 = vweird.f32 %v8868
    %vm8875 = vweird.f32 %v8869
    %vm8876 = vmor %vm8874, %vm8875
    %v8877 = vsel %vm8876, %v8869, %v8873
    %v8878 = vand.u32 2147483647, %v8868
    %vm8879 = vcmp.eq.f32.partialorder %v8878, 8.507059e+37
    %v8880 = vand.u32 %v8868, 2147483648
    %v8881 = vor.u32 1.1754944e-38, %v8880
    %v8882 = vsel %vm8879, %v8881, %v8877
    %v8883 = vmul.f32 1.0, %v8882
    %v8884 = vmul.f32 %v8863, %v8701
    %v8885 = vmul.f32 %v8844, %v8864
    %v8886 = vadd.f32 %v8884, %v8885
    %v8887 = vtanh.pop %v8886
    %v8888 = vmul.f32 %v8883, %v8887
    %v8889 = vxor.u32 %v8822, 2147483648
    %v8890 = vmul.f32 %v8889, 1.442695
    %v8891 = vpow.pop %v8890
    %v8892 = vadd.f32 %v8891, 1.0
    %v8893 = vrcp.pop %v8892
    %v8894 = vmul.f32 %v8892, %v8893
    %v8895 = vsub.f32 1.0, %v8894
    %v8896 = vmul.f32 %v8893, %v8895
    %v8897 = vadd.f32 %v8893, %v8896
    %vm8898 = vweird.f32 %v8892
    %vm8899 = vweird.f32 %v8893
    %vm8900 = vmor %vm8898, %vm8899
    %v8901 = vsel %vm8900, %v8893, %v8897
    %v8902 = vand.u32 2147483647, %v8892
    %vm8903 = vcmp.eq.f32.partialorder %v8902, 8.507059e+37
    %v8904 = vand.u32 %v8892, 2147483648
    %v8905 = vor.u32 1.1754944e-38, %v8904
    %v8906 = vsel %vm8903, %v8905, %v8901
    %v8907 = vmul.f32 1.0, %v8906
    %v8908 = vxor.u32 %v8823, 2147483648
    %v8909 = vmul.f32 %v8908, 1.442695
    %v8910 = vpow.pop %v8909
    %v8911 = vadd.f32 %v8910, 1.0
    %v8912 = vrcp.pop %v8911
    %v8913 = vmul.f32 %v8911, %v8912
    %v8914 = vsub.f32 1.0, %v8913
    %v8915 = vmul.f32 %v8912, %v8914
    %v8916 = vadd.f32 %v8912, %v8915
    %vm8917 = vweird.f32 %v8911
    %vm8918 = vweird.f32 %v8912
    %vm8919 = vmor %vm8917, %vm8918
    %v8920 = vsel %vm8919, %v8912, %v8916
    %v8921 = vand.u32 2147483647, %v8911
    %vm8922 = vcmp.eq.f32.partialorder %v8921, 8.507059e+37
    %v8923 = vand.u32 %v8911, 2147483648
    %v8924 = vor.u32 1.1754944e-38, %v8923
    %v8925 = vsel %vm8922, %v8924, %v8920
    %v8926 = vmul.f32 1.0, %v8925
    %v8927 = vtanh.pop %v8824
    %v8928 = vxor.u32 %v8825, 2147483648
    %v8929 = vmul.f32 %v8928, 1.442695
    %v8930 = vpow.pop %v8929
    %v8931 = vadd.f32 %v8930, 1.0
    %v8932 = vrcp.pop %v8931
    %v8933 = vmul.f32 %v8931, %v8932
    %v8934 = vsub.f32 1.0, %v8933
    %v8935 = vmul.f32 %v8932, %v8934
    %v8936 = vadd.f32 %v8932, %v8935
    %vm8937 = vweird.f32 %v8931
    %vm8938 = vweird.f32 %v8932
    %vm8939 = vmor %vm8937, %vm8938
    %v8940 = vsel %vm8939, %v8932, %v8936
    %v8941 = vand.u32 2147483647, %v8931
    %vm8942 = vcmp.eq.f32.partialorder %v8941, 8.507059e+37
    %v8943 = vand.u32 %v8931, 2147483648
    %v8944 = vor.u32 1.1754944e-38, %v8943
    %v8945 = vsel %vm8942, %v8944, %v8940
    %v8946 = vmul.f32 1.0, %v8945
    %v8947 = vmul.f32 %v8926, %v8703
    %v8948 = vmul.f32 %v8907, %v8927
    %v8949 = vadd.f32 %v8947, %v8948
    %v8950 = vtanh.pop %v8949
    %v8951 = vmul.f32 %v8946, %v8950
    %v8952 = vsel %vm8699, %v8888, %v8700
    %v8953 = vsel %vm8699, %v8886, %v8701
    %v8954 = vsel %vm8697, %v8951, %v8702
    %v8955 = vsel %vm8697, %v8949, %v8703
    %v8956 = vld [vmem:[%s2341] sm:$0xff]
    %v8957 = vld [vmem:[%s2341 + $0x8] sm:$0xff]
    %v8958 = vld [vmem:[%s2341 + $0x10] sm:$0xff]
    %v8959 = vld [vmem:[%s2341 + $0x18] sm:$0xff]
    %v8960 = vpack.c.bf16 %v8952, %v8952
    %8961 = vmatpush.bf16.msra.mxu0 %v7457
    %8962 = vmatpush.bf16.msra.mxu0 %v7453
    %8963 = vmatpush.bf16.msra.mxu0 %v7449
    %8964 = vmatpush.bf16.msra.mxu0 %v7445
    %8965 = vmatpush.bf16.msra.mxu0 %v7441
    %8966 = vmatpush.bf16.msra.mxu0 %v7437
    %8967 = vmatpush.bf16.msra.mxu0 %v7433
    %8968 = vmatpush.bf16.msra.mxu0 %v7429
    %8969 = vmatmul.bf16.gmra.mxu0 %v8960
    %v8970 = vpop.f32.mrf.mxu0
    %v8971 = vadd.f32 0.0, %v8970
    %v8972 = vpop.f32.mrf.mxu0
    %8973 = vdwg.mxu0
    %8974 = vmatpush.bf16.msra.mxu0 %v7458
    %8975 = vmatpush.bf16.msra.mxu0 %v7454
    %8976 = vmatpush.bf16.msra.mxu0 %v7450
    %8977 = vmatpush.bf16.msra.mxu0 %v7446
    %8978 = vmatpush.bf16.msra.mxu0 %v7442
    %8979 = vmatpush.bf16.msra.mxu0 %v7438
    %8980 = vmatpush.bf16.msra.mxu0 %v7434
    %8981 = vmatpush.bf16.msra.mxu0 %v7430
    %8982 = vmatmul.bf16.gmra.mxu0 %v8960
    %v8983 = vpop.f32.mrf.mxu0
    %v8984 = vadd.f32 0.0, %v8983
    %v8985 = vpop.f32.mrf.mxu0
    %8986 = vdwg.mxu0
    %8987 = vmatpush.bf16.msra.mxu0 %v7459
    %8988 = vmatpush.bf16.msra.mxu0 %v7455
    %8989 = vmatpush.bf16.msra.mxu0 %v7451
    %8990 = vmatpush.bf16.msra.mxu0 %v7447
    %8991 = vmatpush.bf16.msra.mxu0 %v7443
    %8992 = vmatpush.bf16.msra.mxu0 %v7439
    %8993 = vmatpush.bf16.msra.mxu0 %v7435
    %8994 = vmatpush.bf16.msra.mxu0 %v7431
    %8995 = vmatmul.bf16.gmra.mxu0 %v8960
    %v8996 = vpop.f32.mrf.mxu0
    %v8997 = vadd.f32 0.0, %v8996
    %v8998 = vpop.f32.mrf.mxu0
    %8999 = vdwg.mxu0
    %9000 = vmatpush.bf16.msra.mxu0 %v7460
    %9001 = vmatpush.bf16.msra.mxu0 %v7456
    %9002 = vmatpush.bf16.msra.mxu0 %v7452
    %9003 = vmatpush.bf16.msra.mxu0 %v7448
    %9004 = vmatpush.bf16.msra.mxu0 %v7444
    %9005 = vmatpush.bf16.msra.mxu0 %v7440
    %9006 = vmatpush.bf16.msra.mxu0 %v7436
    %9007 = vmatpush.bf16.msra.mxu0 %v7432
    %9008 = vmatmul.bf16.gmra.mxu0 %v8960
    %v9009 = vpop.f32.mrf.mxu0
    %v9010 = vadd.f32 0.0, %v9009
    %v9011 = vpop.f32.mrf.mxu0
    %9012 = vdwg.mxu0
    %v9013 = vadd.f32 %v8956, %v8971
    %v9014 = vadd.f32 %v8957, %v8984
    %v9015 = vadd.f32 %v8958, %v8997
    %v9016 = vadd.f32 %v8959, %v9010
    %v9017 = vld [vmem:[%s2087 + $0x20] sm:$0xff]
    %v9018 = vld [vmem:[%s2087 + $0x28] sm:$0xff]
    %v9019 = vld [vmem:[%s2087 + $0x30] sm:$0xff]
    %v9020 = vld [vmem:[%s2087 + $0x38] sm:$0xff]
    %v9021 = vpack.c.bf16 %v8954, %v8954
    %9022 = vmatpush.bf16.msra.mxu0 %v7710
    %9023 = vmatpush.bf16.msra.mxu0 %v7706
    %9024 = vmatpush.bf16.msra.mxu0 %v7702
    %9025 = vmatpush.bf16.msra.mxu0 %v7698
    %9026 = vmatpush.bf16.msra.mxu0 %v7694
    %9027 = vmatpush.bf16.msra.mxu0 %v7690
    %9028 = vmatpush.bf16.msra.mxu0 %v7686
    %9029 = vmatpush.bf16.msra.mxu0 %v7682
    %9030 = vmatmul.bf16.gmra.mxu0 %v9021
    %v9031 = vpop.f32.mrf.mxu0
    %v9032 = vadd.f32 0.0, %v9031
    %v9033 = vpop.f32.mrf.mxu0
    %9034 = vdwg.mxu0
    %9035 = vmatpush.bf16.msra.mxu0 %v7711
    %9036 = vmatpush.bf16.msra.mxu0 %v7707
    %9037 = vmatpush.bf16.msra.mxu0 %v7703
    %9038 = vmatpush.bf16.msra.mxu0 %v7699
    %9039 = vmatpush.bf16.msra.mxu0 %v7695
    %9040 = vmatpush.bf16.msra.mxu0 %v7691
    %9041 = vmatpush.bf16.msra.mxu0 %v7687
    %9042 = vmatpush.bf16.msra.mxu0 %v7683
    %9043 = vmatmul.bf16.gmra.mxu0 %v9021
    %v9044 = vpop.f32.mrf.mxu0
    %v9045 = vadd.f32 0.0, %v9044
    %v9046 = vpop.f32.mrf.mxu0
    %9047 = vdwg.mxu0
    %9048 = vmatpush.bf16.msra.mxu0 %v7712
    %9049 = vmatpush.bf16.msra.mxu0 %v7708
    %9050 = vmatpush.bf16.msra.mxu0 %v7704
    %9051 = vmatpush.bf16.msra.mxu0 %v7700
    %9052 = vmatpush.bf16.msra.mxu0 %v7696
    %9053 = vmatpush.bf16.msra.mxu0 %v7692
    %9054 = vmatpush.bf16.msra.mxu0 %v7688
    %9055 = vmatpush.bf16.msra.mxu0 %v7684
    %9056 = vmatmul.bf16.gmra.mxu0 %v9021
    %v9057 = vpop.f32.mrf.mxu0
    %v9058 = vadd.f32 0.0, %v9057
    %v9059 = vpop.f32.mrf.mxu0
    %9060 = vdwg.mxu0
    %9061 = vmatpush.bf16.msra.mxu0 %v7713
    %9062 = vmatpush.bf16.msra.mxu0 %v7709
    %9063 = vmatpush.bf16.msra.mxu0 %v7705
    %9064 = vmatpush.bf16.msra.mxu0 %v7701
    %9065 = vmatpush.bf16.msra.mxu0 %v7697
    %9066 = vmatpush.bf16.msra.mxu0 %v7693
    %9067 = vmatpush.bf16.msra.mxu0 %v7689
    %9068 = vmatpush.bf16.msra.mxu0 %v7685
    %9069 = vmatmul.bf16.gmra.mxu0 %v9021
    %v9070 = vpop.f32.mrf.mxu0
    %v9071 = vadd.f32 0.0, %v9070
    %v9072 = vpop.f32.mrf.mxu0
    %9073 = vdwg.mxu0
    %v9074 = vadd.f32 %v9017, %v9032
    %v9075 = vadd.f32 %v9018, %v9045
    %v9076 = vadd.f32 %v9019, %v9058
    %v9077 = vadd.f32 %v9020, %v9071
    %v9078 = vxor.u32 %v9013, 2147483648
    %v9079 = vmul.f32 %v9078, 1.442695
    %v9080 = vpow.pop %v9079
    %v9081 = vadd.f32 %v9080, 1.0
    %v9082 = vrcp.pop %v9081
    %v9083 = vmul.f32 %v9081, %v9082
    %v9084 = vsub.f32 1.0, %v9083
    %v9085 = vmul.f32 %v9082, %v9084
    %v9086 = vadd.f32 %v9082, %v9085
    %vm9087 = vweird.f32 %v9081
    %vm9088 = vweird.f32 %v9082
    %vm9089 = vmor %vm9087, %vm9088
    %v9090 = vsel %vm9089, %v9082, %v9086
    %v9091 = vand.u32 2147483647, %v9081
    %vm9092 = vcmp.eq.f32.partialorder %v9091, 8.507059e+37
    %v9093 = vand.u32 %v9081, 2147483648
    %v9094 = vor.u32 1.1754944e-38, %v9093
    %v9095 = vsel %vm9092, %v9094, %v9090
    %v9096 = vmul.f32 1.0, %v9095
    %v9097 = vxor.u32 %v9014, 2147483648
    %v9098 = vmul.f32 %v9097, 1.442695
    %v9099 = vpow.pop %v9098
    %v9100 = vadd.f32 %v9099, 1.0
    %v9101 = vrcp.pop %v9100
    %v9102 = vmul.f32 %v9100, %v9101
    %v9103 = vsub.f32 1.0, %v9102
    %v9104 = vmul.f32 %v9101, %v9103
    %v9105 = vadd.f32 %v9101, %v9104
    %vm9106 = vweird.f32 %v9100
    %vm9107 = vweird.f32 %v9101
    %vm9108 = vmor %vm9106, %vm9107
    %v9109 = vsel %vm9108, %v9101, %v9105
    %v9110 = vand.u32 2147483647, %v9100
    %vm9111 = vcmp.eq.f32.partialorder %v9110, 8.507059e+37
    %v9112 = vand.u32 %v9100, 2147483648
    %v9113 = vor.u32 1.1754944e-38, %v9112
    %v9114 = vsel %vm9111, %v9113, %v9109
    %v9115 = vmul.f32 1.0, %v9114
    %v9116 = vtanh.pop %v9015
    %v9117 = vxor.u32 %v9016, 2147483648
    %v9118 = vmul.f32 %v9117, 1.442695
    %v9119 = vpow.pop %v9118
    %v9120 = vadd.f32 %v9119, 1.0
    %v9121 = vrcp.pop %v9120
    %v9122 = vmul.f32 %v9120, %v9121
    %v9123 = vsub.f32 1.0, %v9122
    %v9124 = vmul.f32 %v9121, %v9123
    %v9125 = vadd.f32 %v9121, %v9124
    %vm9126 = vweird.f32 %v9120
    %vm9127 = vweird.f32 %v9121
    %vm9128 = vmor %vm9126, %vm9127
    %v9129 = vsel %vm9128, %v9121, %v9125
    %v9130 = vand.u32 2147483647, %v9120
    %vm9131 = vcmp.eq.f32.partialorder %v9130, 8.507059e+37
    %v9132 = vand.u32 %v9120, 2147483648
    %v9133 = vor.u32 1.1754944e-38, %v9132
    %v9134 = vsel %vm9131, %v9133, %v9129
    %v9135 = vmul.f32 1.0, %v9134
    %v9136 = vmul.f32 %v9115, %v8953
    %v9137 = vmul.f32 %v9096, %v9116
    %v9138 = vadd.f32 %v9136, %v9137
    %v9139 = vtanh.pop %v9138
    %v9140 = vmul.f32 %v9135, %v9139
    %v9141 = vxor.u32 %v9074, 2147483648
    %v9142 = vmul.f32 %v9141, 1.442695
    %v9143 = vpow.pop %v9142
    %v9144 = vadd.f32 %v9143, 1.0
    %v9145 = vrcp.pop %v9144
    %v9146 = vmul.f32 %v9144, %v9145
    %v9147 = vsub.f32 1.0, %v9146
    %v9148 = vmul.f32 %v9145, %v9147
    %v9149 = vadd.f32 %v9145, %v9148
    %vm9150 = vweird.f32 %v9144
    %vm9151 = vweird.f32 %v9145
    %vm9152 = vmor %vm9150, %vm9151
    %v9153 = vsel %vm9152, %v9145, %v9149
    %v9154 = vand.u32 2147483647, %v9144
    %vm9155 = vcmp.eq.f32.partialorder %v9154, 8.507059e+37
    %v9156 = vand.u32 %v9144, 2147483648
    %v9157 = vor.u32 1.1754944e-38, %v9156
    %v9158 = vsel %vm9155, %v9157, %v9153
    %v9159 = vmul.f32 1.0, %v9158
    %v9160 = vxor.u32 %v9075, 2147483648
    %v9161 = vmul.f32 %v9160, 1.442695
    %v9162 = vpow.pop %v9161
    %v9163 = vadd.f32 %v9162, 1.0
    %v9164 = vrcp.pop %v9163
    %v9165 = vmul.f32 %v9163, %v9164
    %v9166 = vsub.f32 1.0, %v9165
    %v9167 = vmul.f32 %v9164, %v9166
    %v9168 = vadd.f32 %v9164, %v9167
    %vm9169 = vweird.f32 %v9163
    %vm9170 = vweird.f32 %v9164
    %vm9171 = vmor %vm9169, %vm9170
    %v9172 = vsel %vm9171, %v9164, %v9168
    %v9173 = vand.u32 2147483647, %v9163
    %vm9174 = vcmp.eq.f32.partialorder %v9173, 8.507059e+37
    %v9175 = vand.u32 %v9163, 2147483648
    %v9176 = vor.u32 1.1754944e-38, %v9175
    %v9177 = vsel %vm9174, %v9176, %v9172
    %v9178 = vmul.f32 1.0, %v9177
    %v9179 = vtanh.pop %v9076
    %v9180 = vxor.u32 %v9077, 2147483648
    %v9181 = vmul.f32 %v9180, 1.442695
    %v9182 = vpow.pop %v9181
    %v9183 = vadd.f32 %v9182, 1.0
    %v9184 = vrcp.pop %v9183
    %v9185 = vmul.f32 %v9183, %v9184
    %v9186 = vsub.f32 1.0, %v9185
    %v9187 = vmul.f32 %v9184, %v9186
    %v9188 = vadd.f32 %v9184, %v9187
    %vm9189 = vweird.f32 %v9183
    %vm9190 = vweird.f32 %v9184
    %vm9191 = vmor %vm9189, %vm9190
    %v9192 = vsel %vm9191, %v9184, %v9188
    %v9193 = vand.u32 2147483647, %v9183
    %vm9194 = vcmp.eq.f32.partialorder %v9193, 8.507059e+37
    %v9195 = vand.u32 %v9183, 2147483648
    %v9196 = vor.u32 1.1754944e-38, %v9195
    %v9197 = vsel %vm9194, %v9196, %v9192
    %v9198 = vmul.f32 1.0, %v9197
    %v9199 = vmul.f32 %v9178, %v8955
    %v9200 = vmul.f32 %v9159, %v9179
    %v9201 = vadd.f32 %v9199, %v9200
    %v9202 = vtanh.pop %v9201
    %v9203 = vmul.f32 %v9198, %v9202
    %v9204 = vsel %vm8443, %v9140, %v8952
    %v9205 = vsel %vm8443, %v9138, %v8953
    %v9206 = vsel %vm8441, %v9203, %v8954
    %v9207 = vsel %vm8441, %v9201, %v8955
    %v9208 = vld [vmem:[%s1691] sm:$0xff]
    %v9209 = vld [vmem:[%s1691 + $0x8] sm:$0xff]
    %v9210 = vld [vmem:[%s1691 + $0x10] sm:$0xff]
    %v9211 = vld [vmem:[%s1691 + $0x18] sm:$0xff]
    %v9212 = vpack.c.bf16 %v9204, %v9204
    %9213 = vmatpush.bf16.msra.mxu0 %v7457
    %9214 = vmatpush.bf16.msra.mxu0 %v7453
    %9215 = vmatpush.bf16.msra.mxu0 %v7449
    %9216 = vmatpush.bf16.msra.mxu0 %v7445
    %9217 = vmatpush.bf16.msra.mxu0 %v7441
    %9218 = vmatpush.bf16.msra.mxu0 %v7437
    %9219 = vmatpush.bf16.msra.mxu0 %v7433
    %9220 = vmatpush.bf16.msra.mxu0 %v7429
    %9221 = vmatmul.bf16.gmra.mxu0 %v9212
    %v9222 = vpop.f32.mrf.mxu0
    %v9223 = vadd.f32 0.0, %v9222
    %v9224 = vpop.f32.mrf.mxu0
    %9225 = vdwg.mxu0
    %9226 = vmatpush.bf16.msra.mxu0 %v7458
    %9227 = vmatpush.bf16.msra.mxu0 %v7454
    %9228 = vmatpush.bf16.msra.mxu0 %v7450
    %9229 = vmatpush.bf16.msra.mxu0 %v7446
    %9230 = vmatpush.bf16.msra.mxu0 %v7442
    %9231 = vmatpush.bf16.msra.mxu0 %v7438
    %9232 = vmatpush.bf16.msra.mxu0 %v7434
    %9233 = vmatpush.bf16.msra.mxu0 %v7430
    %9234 = vmatmul.bf16.gmra.mxu0 %v9212
    %v9235 = vpop.f32.mrf.mxu0
    %v9236 = vadd.f32 0.0, %v9235
    %v9237 = vpop.f32.mrf.mxu0
    %9238 = vdwg.mxu0
    %9239 = vmatpush.bf16.msra.mxu0 %v7459
    %9240 = vmatpush.bf16.msra.mxu0 %v7455
    %9241 = vmatpush.bf16.msra.mxu0 %v7451
    %9242 = vmatpush.bf16.msra.mxu0 %v7447
    %9243 = vmatpush.bf16.msra.mxu0 %v7443
    %9244 = vmatpush.bf16.msra.mxu0 %v7439
    %9245 = vmatpush.bf16.msra.mxu0 %v7435
    %9246 = vmatpush.bf16.msra.mxu0 %v7431
    %9247 = vmatmul.bf16.gmra.mxu0 %v9212
    %v9248 = vpop.f32.mrf.mxu0
    %v9249 = vadd.f32 0.0, %v9248
    %v9250 = vpop.f32.mrf.mxu0
    %9251 = vdwg.mxu0
    %9252 = vmatpush.bf16.msra.mxu0 %v7460
    %9253 = vmatpush.bf16.msra.mxu0 %v7456
    %9254 = vmatpush.bf16.msra.mxu0 %v7452
    %9255 = vmatpush.bf16.msra.mxu0 %v7448
    %9256 = vmatpush.bf16.msra.mxu0 %v7444
    %9257 = vmatpush.bf16.msra.mxu0 %v7440
    %9258 = vmatpush.bf16.msra.mxu0 %v7436
    %9259 = vmatpush.bf16.msra.mxu0 %v7432
    %9260 = vmatmul.bf16.gmra.mxu0 %v9212
    %v9261 = vpop.f32.mrf.mxu0
    %v9262 = vadd.f32 0.0, %v9261
    %v9263 = vpop.f32.mrf.mxu0
    %9264 = vdwg.mxu0
    %v9265 = vadd.f32 %v9208, %v9223
    %v9266 = vadd.f32 %v9209, %v9236
    %v9267 = vadd.f32 %v9210, %v9249
    %v9268 = vadd.f32 %v9211, %v9262
    %v9269 = vld [vmem:[%s1437 + $0x20] sm:$0xff]
    %v9270 = vld [vmem:[%s1437 + $0x28] sm:$0xff]
    %v9271 = vld [vmem:[%s1437 + $0x30] sm:$0xff]
    %v9272 = vld [vmem:[%s1437 + $0x38] sm:$0xff]
    %v9273 = vpack.c.bf16 %v9206, %v9206
    %9274 = vmatpush.bf16.msra.mxu0 %v7710
    %9275 = vmatpush.bf16.msra.mxu0 %v7706
    %9276 = vmatpush.bf16.msra.mxu0 %v7702
    %9277 = vmatpush.bf16.msra.mxu0 %v7698
    %9278 = vmatpush.bf16.msra.mxu0 %v7694
    %9279 = vmatpush.bf16.msra.mxu0 %v7690
    %9280 = vmatpush.bf16.msra.mxu0 %v7686
    %9281 = vmatpush.bf16.msra.mxu0 %v7682
    %9282 = vmatmul.bf16.gmra.mxu0 %v9273
    %v9283 = vpop.f32.mrf.mxu0
    %v9284 = vadd.f32 0.0, %v9283
    %v9285 = vpop.f32.mrf.mxu0
    %9286 = vdwg.mxu0
    %9287 = vmatpush.bf16.msra.mxu0 %v7711
    %9288 = vmatpush.bf16.msra.mxu0 %v7707
    %9289 = vmatpush.bf16.msra.mxu0 %v7703
    %9290 = vmatpush.bf16.msra.mxu0 %v7699
    %9291 = vmatpush.bf16.msra.mxu0 %v7695
    %9292 = vmatpush.bf16.msra.mxu0 %v7691
    %9293 = vmatpush.bf16.msra.mxu0 %v7687
    %9294 = vmatpush.bf16.msra.mxu0 %v7683
    %9295 = vmatmul.bf16.gmra.mxu0 %v9273
    %v9296 = vpop.f32.mrf.mxu0
    %v9297 = vadd.f32 0.0, %v9296
    %v9298 = vpop.f32.mrf.mxu0
    %9299 = vdwg.mxu0
    %9300 = vmatpush.bf16.msra.mxu0 %v7712
    %9301 = vmatpush.bf16.msra.mxu0 %v7708
    %9302 = vmatpush.bf16.msra.mxu0 %v7704
    %9303 = vmatpush.bf16.msra.mxu0 %v7700
    %9304 = vmatpush.bf16.msra.mxu0 %v7696
    %9305 = vmatpush.bf16.msra.mxu0 %v7692
    %9306 = vmatpush.bf16.msra.mxu0 %v7688
    %9307 = vmatpush.bf16.msra.mxu0 %v7684
    %9308 = vmatmul.bf16.gmra.mxu0 %v9273
    %v9309 = vpop.f32.mrf.mxu0
    %v9310 = vadd.f32 0.0, %v9309
    %v9311 = vpop.f32.mrf.mxu0
    %9312 = vdwg.mxu0
    %9313 = vmatpush.bf16.msra.mxu0 %v7713
    %9314 = vmatpush.bf16.msra.mxu0 %v7709
    %9315 = vmatpush.bf16.msra.mxu0 %v7705
    %9316 = vmatpush.bf16.msra.mxu0 %v7701
    %9317 = vmatpush.bf16.msra.mxu0 %v7697
    %9318 = vmatpush.bf16.msra.mxu0 %v7693
    %9319 = vmatpush.bf16.msra.mxu0 %v7689
    %9320 = vmatpush.bf16.msra.mxu0 %v7685
    %9321 = vmatmul.bf16.gmra.mxu0 %v9273
    %v9322 = vpop.f32.mrf.mxu0
    %v9323 = vadd.f32 0.0, %v9322
    %v9324 = vpop.f32.mrf.mxu0
    %9325 = vdwg.mxu0
    %v9326 = vadd.f32 %v9269, %v9284
    %v9327 = vadd.f32 %v9270, %v9297
    %v9328 = vadd.f32 %v9271, %v9310
    %v9329 = vadd.f32 %v9272, %v9323
    %v9330 = vxor.u32 %v9265, 2147483648
    %v9331 = vmul.f32 %v9330, 1.442695
    %v9332 = vpow.pop %v9331
    %v9333 = vadd.f32 %v9332, 1.0
    %v9334 = vrcp.pop %v9333
    %v9335 = vmul.f32 %v9333, %v9334
    %v9336 = vsub.f32 1.0, %v9335
    %v9337 = vmul.f32 %v9334, %v9336
    %v9338 = vadd.f32 %v9334, %v9337
    %vm9339 = vweird.f32 %v9333
    %vm9340 = vweird.f32 %v9334
    %vm9341 = vmor %vm9339, %vm9340
    %v9342 = vsel %vm9341, %v9334, %v9338
    %v9343 = vand.u32 2147483647, %v9333
    %vm9344 = vcmp.eq.f32.partialorder %v9343, 8.507059e+37
    %v9345 = vand.u32 %v9333, 2147483648
    %v9346 = vor.u32 1.1754944e-38, %v9345
    %v9347 = vsel %vm9344, %v9346, %v9342
    %v9348 = vmul.f32 1.0, %v9347
    %v9349 = vxor.u32 %v9266, 2147483648
    %v9350 = vmul.f32 %v9349, 1.442695
    %v9351 = vpow.pop %v9350
    %v9352 = vadd.f32 %v9351, 1.0
    %v9353 = vrcp.pop %v9352
    %v9354 = vmul.f32 %v9352, %v9353
    %v9355 = vsub.f32 1.0, %v9354
    %v9356 = vmul.f32 %v9353, %v9355
    %v9357 = vadd.f32 %v9353, %v9356
    %vm9358 = vweird.f32 %v9352
    %vm9359 = vweird.f32 %v9353
    %vm9360 = vmor %vm9358, %vm9359
    %v9361 = vsel %vm9360, %v9353, %v9357
    %v9362 = vand.u32 2147483647, %v9352
    %vm9363 = vcmp.eq.f32.partialorder %v9362, 8.507059e+37
    %v9364 = vand.u32 %v9352, 2147483648
    %v9365 = vor.u32 1.1754944e-38, %v9364
    %v9366 = vsel %vm9363, %v9365, %v9361
    %v9367 = vmul.f32 1.0, %v9366
    %v9368 = vtanh.pop %v9267
    %v9369 = vxor.u32 %v9268, 2147483648
    %v9370 = vmul.f32 %v9369, 1.442695
    %v9371 = vpow.pop %v9370
    %v9372 = vadd.f32 %v9371, 1.0
    %v9373 = vrcp.pop %v9372
    %v9374 = vmul.f32 %v9372, %v9373
    %v9375 = vsub.f32 1.0, %v9374
    %v9376 = vmul.f32 %v9373, %v9375
    %v9377 = vadd.f32 %v9373, %v9376
    %vm9378 = vweird.f32 %v9372
    %vm9379 = vweird.f32 %v9373
    %vm9380 = vmor %vm9378, %vm9379
    %v9381 = vsel %vm9380, %v9373, %v9377
    %v9382 = vand.u32 2147483647, %v9372
    %vm9383 = vcmp.eq.f32.partialorder %v9382, 8.507059e+37
    %v9384 = vand.u32 %v9372, 2147483648
    %v9385 = vor.u32 1.1754944e-38, %v9384
    %v9386 = vsel %vm9383, %v9385, %v9381
    %v9387 = vmul.f32 1.0, %v9386
    %v9388 = vmul.f32 %v9367, %v9205
    %v9389 = vmul.f32 %v9348, %v9368
    %v9390 = vadd.f32 %v9388, %v9389
    %v9391 = vtanh.pop %v9390
    %v9392 = vmul.f32 %v9387, %v9391
    %v9393 = vxor.u32 %v9326, 2147483648
    %v9394 = vmul.f32 %v9393, 1.442695
    %v9395 = vpow.pop %v9394
    %v9396 = vadd.f32 %v9395, 1.0
    %v9397 = vrcp.pop %v9396
    %v9398 = vmul.f32 %v9396, %v9397
    %v9399 = vsub.f32 1.0, %v9398
    %v9400 = vmul.f32 %v9397, %v9399
    %v9401 = vadd.f32 %v9397, %v9400
    %vm9402 = vweird.f32 %v9396
    %vm9403 = vweird.f32 %v9397
    %vm9404 = vmor %vm9402, %vm9403
    %v9405 = vsel %vm9404, %v9397, %v9401
    %v9406 = vand.u32 2147483647, %v9396
    %vm9407 = vcmp.eq.f32.partialorder %v9406, 8.507059e+37
    %v9408 = vand.u32 %v9396, 2147483648
    %v9409 = vor.u32 1.1754944e-38, %v9408
    %v9410 = vsel %vm9407, %v9409, %v9405
    %v9411 = vmul.f32 1.0, %v9410
    %v9412 = vxor.u32 %v9327, 2147483648
    %v9413 = vmul.f32 %v9412, 1.442695
    %v9414 = vpow.pop %v9413
    %v9415 = vadd.f32 %v9414, 1.0
    %v9416 = vrcp.pop %v9415
    %v9417 = vmul.f32 %v9415, %v9416
    %v9418 = vsub.f32 1.0, %v9417
    %v9419 = vmul.f32 %v9416, %v9418
    %v9420 = vadd.f32 %v9416, %v9419
    %vm9421 = vweird.f32 %v9415
    %vm9422 = vweird.f32 %v9416
    %vm9423 = vmor %vm9421, %vm9422
    %v9424 = vsel %vm9423, %v9416, %v9420
    %v9425 = vand.u32 2147483647, %v9415
    %vm9426 = vcmp.eq.f32.partialorder %v9425, 8.507059e+37
    %v9427 = vand.u32 %v9415, 2147483648
    %v9428 = vor.u32 1.1754944e-38, %v9427
    %v9429 = vsel %vm9426, %v9428, %v9424
    %v9430 = vmul.f32 1.0, %v9429
    %v9431 = vtanh.pop %v9328
    %v9432 = vxor.u32 %v9329, 2147483648
    %v9433 = vmul.f32 %v9432, 1.442695
    %v9434 = vpow.pop %v9433
    %v9435 = vadd.f32 %v9434, 1.0
    %v9436 = vrcp.pop %v9435
    %v9437 = vmul.f32 %v9435, %v9436
    %v9438 = vsub.f32 1.0, %v9437
    %v9439 = vmul.f32 %v9436, %v9438
    %v9440 = vadd.f32 %v9436, %v9439
    %vm9441 = vweird.f32 %v9435
    %vm9442 = vweird.f32 %v9436
    %vm9443 = vmor %vm9441, %vm9442
    %v9444 = vsel %vm9443, %v9436, %v9440
    %v9445 = vand.u32 2147483647, %v9435
    %vm9446 = vcmp.eq.f32.partialorder %v9445, 8.507059e+37
    %v9447 = vand.u32 %v9435, 2147483648
    %v9448 = vor.u32 1.1754944e-38, %v9447
    %v9449 = vsel %vm9446, %v9448, %v9444
    %v9450 = vmul.f32 1.0, %v9449
    %v9451 = vmul.f32 %v9430, %v9207
    %v9452 = vmul.f32 %v9411, %v9431
    %v9453 = vadd.f32 %v9451, %v9452
    %v9454 = vtanh.pop %v9453
    %v9455 = vmul.f32 %v9450, %v9454
    %v9456 = vsel %vm8187, %v9392, %v9204
    %v9457 = vsel %vm8187, %v9390, %v9205
    %v9458 = vsel %vm8185, %v9455, %v9206
    %v9459 = vsel %vm8185, %v9453, %v9207
    %v9460 = vld [vmem:[%s1045] sm:$0xff]
    %v9461 = vld [vmem:[%s1045 + $0x8] sm:$0xff]
    %v9462 = vld [vmem:[%s1045 + $0x10] sm:$0xff]
    %v9463 = vld [vmem:[%s1045 + $0x18] sm:$0xff]
    %v9464 = vpack.c.bf16 %v9456, %v9456
    %9465 = vmatpush.bf16.msra.mxu0 %v7457
    %9466 = vmatpush.bf16.msra.mxu0 %v7453
    %9467 = vmatpush.bf16.msra.mxu0 %v7449
    %9468 = vmatpush.bf16.msra.mxu0 %v7445
    %9469 = vmatpush.bf16.msra.mxu0 %v7441
    %9470 = vmatpush.bf16.msra.mxu0 %v7437
    %9471 = vmatpush.bf16.msra.mxu0 %v7433
    %9472 = vmatpush.bf16.msra.mxu0 %v7429
    %9473 = vmatmul.bf16.gmra.mxu0 %v9464
    %v9474 = vpop.f32.mrf.mxu0
    %v9475 = vadd.f32 0.0, %v9474
    %v9476 = vpop.f32.mrf.mxu0
    %9477 = vdwg.mxu0
    %9478 = vmatpush.bf16.msra.mxu0 %v7458
    %9479 = vmatpush.bf16.msra.mxu0 %v7454
    %9480 = vmatpush.bf16.msra.mxu0 %v7450
    %9481 = vmatpush.bf16.msra.mxu0 %v7446
    %9482 = vmatpush.bf16.msra.mxu0 %v7442
    %9483 = vmatpush.bf16.msra.mxu0 %v7438
    %9484 = vmatpush.bf16.msra.mxu0 %v7434
    %9485 = vmatpush.bf16.msra.mxu0 %v7430
    %9486 = vmatmul.bf16.gmra.mxu0 %v9464
    %v9487 = vpop.f32.mrf.mxu0
    %v9488 = vadd.f32 0.0, %v9487
    %v9489 = vpop.f32.mrf.mxu0
    %9490 = vdwg.mxu0
    %9491 = vmatpush.bf16.msra.mxu0 %v7459
    %9492 = vmatpush.bf16.msra.mxu0 %v7455
    %9493 = vmatpush.bf16.msra.mxu0 %v7451
    %9494 = vmatpush.bf16.msra.mxu0 %v7447
    %9495 = vmatpush.bf16.msra.mxu0 %v7443
    %9496 = vmatpush.bf16.msra.mxu0 %v7439
    %9497 = vmatpush.bf16.msra.mxu0 %v7435
    %9498 = vmatpush.bf16.msra.mxu0 %v7431
    %9499 = vmatmul.bf16.gmra.mxu0 %v9464
    %v9500 = vpop.f32.mrf.mxu0
    %v9501 = vadd.f32 0.0, %v9500
    %v9502 = vpop.f32.mrf.mxu0
    %9503 = vdwg.mxu0
    %9504 = vmatpush.bf16.msra.mxu0 %v7460
    %9505 = vmatpush.bf16.msra.mxu0 %v7456
    %9506 = vmatpush.bf16.msra.mxu0 %v7452
    %9507 = vmatpush.bf16.msra.mxu0 %v7448
    %9508 = vmatpush.bf16.msra.mxu0 %v7444
    %9509 = vmatpush.bf16.msra.mxu0 %v7440
    %9510 = vmatpush.bf16.msra.mxu0 %v7436
    %9511 = vmatpush.bf16.msra.mxu0 %v7432
    %9512 = vmatmul.bf16.gmra.mxu0 %v9464
    %v9513 = vpop.f32.mrf.mxu0
    %v9514 = vadd.f32 0.0, %v9513
    %v9515 = vpop.f32.mrf.mxu0
    %9516 = vdwg.mxu0
    %v9517 = vadd.f32 %v9460, %v9475
    %v9518 = vadd.f32 %v9461, %v9488
    %v9519 = vadd.f32 %v9462, %v9501
    %v9520 = vadd.f32 %v9463, %v9514
    %v9521 = vld [vmem:[#allocation2 + $0x20] sm:$0xff]
    %v9522 = vld [vmem:[#allocation2 + $0x28] sm:$0xff]
    %v9523 = vld [vmem:[#allocation2 + $0x30] sm:$0xff]
    %v9524 = vld [vmem:[#allocation2 + $0x38] sm:$0xff]
    %v9525 = vpack.c.bf16 %v9458, %v9458
    %9526 = vmatpush.bf16.msra.mxu0 %v7710
    %9527 = vmatpush.bf16.msra.mxu0 %v7706
    %9528 = vmatpush.bf16.msra.mxu0 %v7702
    %9529 = vmatpush.bf16.msra.mxu0 %v7698
    %9530 = vmatpush.bf16.msra.mxu0 %v7694
    %9531 = vmatpush.bf16.msra.mxu0 %v7690
    %9532 = vmatpush.bf16.msra.mxu0 %v7686
    %9533 = vmatpush.bf16.msra.mxu0 %v7682
    %9534 = vmatmul.bf16.gmra.mxu0 %v9525
    %v9535 = vpop.f32.mrf.mxu0
    %v9536 = vadd.f32 0.0, %v9535
    %v9537 = vpop.f32.mrf.mxu0
    %9538 = vdwg.mxu0
    %9539 = vmatpush.bf16.msra.mxu0 %v7711
    %9540 = vmatpush.bf16.msra.mxu0 %v7707
    %9541 = vmatpush.bf16.msra.mxu0 %v7703
    %9542 = vmatpush.bf16.msra.mxu0 %v7699
    %9543 = vmatpush.bf16.msra.mxu0 %v7695
    %9544 = vmatpush.bf16.msra.mxu0 %v7691
    %9545 = vmatpush.bf16.msra.mxu0 %v7687
    %9546 = vmatpush.bf16.msra.mxu0 %v7683
    %9547 = vmatmul.bf16.gmra.mxu0 %v9525
    %v9548 = vpop.f32.mrf.mxu0
    %v9549 = vadd.f32 0.0, %v9548
    %v9550 = vpop.f32.mrf.mxu0
    %9551 = vdwg.mxu0
    %9552 = vmatpush.bf16.msra.mxu0 %v7712
    %9553 = vmatpush.bf16.msra.mxu0 %v7708
    %9554 = vmatpush.bf16.msra.mxu0 %v7704
    %9555 = vmatpush.bf16.msra.mxu0 %v7700
    %9556 = vmatpush.bf16.msra.mxu0 %v7696
    %9557 = vmatpush.bf16.msra.mxu0 %v7692
    %9558 = vmatpush.bf16.msra.mxu0 %v7688
    %9559 = vmatpush.bf16.msra.mxu0 %v7684
    %9560 = vmatmul.bf16.gmra.mxu0 %v9525
    %v9561 = vpop.f32.mrf.mxu0
    %v9562 = vadd.f32 0.0, %v9561
    %v9563 = vpop.f32.mrf.mxu0
    %9564 = vdwg.mxu0
    %9565 = vmatpush.bf16.msra.mxu0 %v7713
    %9566 = vmatpush.bf16.msra.mxu0 %v7709
    %9567 = vmatpush.bf16.msra.mxu0 %v7705
    %9568 = vmatpush.bf16.msra.mxu0 %v7701
    %9569 = vmatpush.bf16.msra.mxu0 %v7697
    %9570 = vmatpush.bf16.msra.mxu0 %v7693
    %9571 = vmatpush.bf16.msra.mxu0 %v7689
    %9572 = vmatpush.bf16.msra.mxu0 %v7685
    %9573 = vmatmul.bf16.gmra.mxu0 %v9525
    %v9574 = vpop.f32.mrf.mxu0
    %v9575 = vadd.f32 0.0, %v9574
    %v9576 = vpop.f32.mrf.mxu0
    %9577 = vdwg.mxu0
    %v9578 = vadd.f32 %v9521, %v9536
    %v9579 = vadd.f32 %v9522, %v9549
    %v9580 = vadd.f32 %v9523, %v9562
    %v9581 = vadd.f32 %v9524, %v9575
    %v9582 = vxor.u32 %v9517, 2147483648
    %v9583 = vmul.f32 %v9582, 1.442695
    %v9584 = vpow.pop %v9583
    %v9585 = vadd.f32 %v9584, 1.0
    %v9586 = vrcp.pop %v9585
    %v9587 = vmul.f32 %v9585, %v9586
    %v9588 = vsub.f32 1.0, %v9587
    %v9589 = vmul.f32 %v9586, %v9588
    %v9590 = vadd.f32 %v9586, %v9589
    %vm9591 = vweird.f32 %v9585
    %vm9592 = vweird.f32 %v9586
    %vm9593 = vmor %vm9591, %vm9592
    %v9594 = vsel %vm9593, %v9586, %v9590
    %v9595 = vand.u32 2147483647, %v9585
    %vm9596 = vcmp.eq.f32.partialorder %v9595, 8.507059e+37
    %v9597 = vand.u32 %v9585, 2147483648
    %v9598 = vor.u32 1.1754944e-38, %v9597
    %v9599 = vsel %vm9596, %v9598, %v9594
    %v9600 = vmul.f32 1.0, %v9599
    %v9601 = vxor.u32 %v9518, 2147483648
    %v9602 = vmul.f32 %v9601, 1.442695
    %v9603 = vpow.pop %v9602
    %v9604 = vadd.f32 %v9603, 1.0
    %v9605 = vrcp.pop %v9604
    %v9606 = vmul.f32 %v9604, %v9605
    %v9607 = vsub.f32 1.0, %v9606
    %v9608 = vmul.f32 %v9605, %v9607
    %v9609 = vadd.f32 %v9605, %v9608
    %vm9610 = vweird.f32 %v9604
    %vm9611 = vweird.f32 %v9605
    %vm9612 = vmor %vm9610, %vm9611
    %v9613 = vsel %vm9612, %v9605, %v9609
    %v9614 = vand.u32 2147483647, %v9604
    %vm9615 = vcmp.eq.f32.partialorder %v9614, 8.507059e+37
    %v9616 = vand.u32 %v9604, 2147483648
    %v9617 = vor.u32 1.1754944e-38, %v9616
    %v9618 = vsel %vm9615, %v9617, %v9613
    %v9619 = vmul.f32 1.0, %v9618
    %v9620 = vtanh.pop %v9519
    %v9621 = vxor.u32 %v9520, 2147483648
    %v9622 = vmul.f32 %v9621, 1.442695
    %v9623 = vpow.pop %v9622
    %v9624 = vadd.f32 %v9623, 1.0
    %v9625 = vrcp.pop %v9624
    %v9626 = vmul.f32 %v9624, %v9625
    %v9627 = vsub.f32 1.0, %v9626
    %v9628 = vmul.f32 %v9625, %v9627
    %v9629 = vadd.f32 %v9625, %v9628
    %vm9630 = vweird.f32 %v9624
    %vm9631 = vweird.f32 %v9625
    %vm9632 = vmor %vm9630, %vm9631
    %v9633 = vsel %vm9632, %v9625, %v9629
    %v9634 = vand.u32 2147483647, %v9624
    %vm9635 = vcmp.eq.f32.partialorder %v9634, 8.507059e+37
    %v9636 = vand.u32 %v9624, 2147483648
    %v9637 = vor.u32 1.1754944e-38, %v9636
    %v9638 = vsel %vm9635, %v9637, %v9633
    %v9639 = vmul.f32 1.0, %v9638
    %v9640 = vmul.f32 %v9619, %v9457
    %v9641 = vmul.f32 %v9600, %v9620
    %v9642 = vadd.f32 %v9640, %v9641
    %v9643 = vtanh.pop %v9642
    %v9644 = vmul.f32 %v9639, %v9643
    %v9645 = vxor.u32 %v9578, 2147483648
    %v9646 = vmul.f32 %v9645, 1.442695
    %v9647 = vpow.pop %v9646
    %v9648 = vadd.f32 %v9647, 1.0
    %v9649 = vrcp.pop %v9648
    %v9650 = vmul.f32 %v9648, %v9649
    %v9651 = vsub.f32 1.0, %v9650
    %v9652 = vmul.f32 %v9649, %v9651
    %v9653 = vadd.f32 %v9649, %v9652
    %vm9654 = vweird.f32 %v9648
    %vm9655 = vweird.f32 %v9649
    %vm9656 = vmor %vm9654, %vm9655
    %v9657 = vsel %vm9656, %v9649, %v9653
    %v9658 = vand.u32 2147483647, %v9648
    %vm9659 = vcmp.eq.f32.partialorder %v9658, 8.507059e+37
    %v9660 = vand.u32 %v9648, 2147483648
    %v9661 = vor.u32 1.1754944e-38, %v9660
    %v9662 = vsel %vm9659, %v9661, %v9657
    %v9663 = vmul.f32 1.0, %v9662
    %v9664 = vxor.u32 %v9579, 2147483648
    %v9665 = vmul.f32 %v9664, 1.442695
    %v9666 = vpow.pop %v9665
    %v9667 = vadd.f32 %v9666, 1.0
    %v9668 = vrcp.pop %v9667
    %v9669 = vmul.f32 %v9667, %v9668
    %v9670 = vsub.f32 1.0, %v9669
    %v9671 = vmul.f32 %v9668, %v9670
    %v9672 = vadd.f32 %v9668, %v9671
    %vm9673 = vweird.f32 %v9667
    %vm9674 = vweird.f32 %v9668
    %vm9675 = vmor %vm9673, %vm9674
    %v9676 = vsel %vm9675, %v9668, %v9672
    %v9677 = vand.u32 2147483647, %v9667
    %vm9678 = vcmp.eq.f32.partialorder %v9677, 8.507059e+37
    %v9679 = vand.u32 %v9667, 2147483648
    %v9680 = vor.u32 1.1754944e-38, %v9679
    %v9681 = vsel %vm9678, %v9680, %v9676
    %v9682 = vmul.f32 1.0, %v9681
    %v9683 = vtanh.pop %v9580
    %v9684 = vxor.u32 %v9581, 2147483648
    %v9685 = vmul.f32 %v9684, 1.442695
    %v9686 = vpow.pop %v9685
    %v9687 = vadd.f32 %v9686, 1.0
    %v9688 = vrcp.pop %v9687
    %v9689 = vmul.f32 %v9687, %v9688
    %v9690 = vsub.f32 1.0, %v9689
    %v9691 = vmul.f32 %v9688, %v9690
    %v9692 = vadd.f32 %v9688, %v9691
    %vm9693 = vweird.f32 %v9687
    %vm9694 = vweird.f32 %v9688
    %vm9695 = vmor %vm9693, %vm9694
    %v9696 = vsel %vm9695, %v9688, %v9692
    %v9697 = vand.u32 2147483647, %v9687
    %vm9698 = vcmp.eq.f32.partialorder %v9697, 8.507059e+37
    %v9699 = vand.u32 %v9687, 2147483648
    %v9700 = vor.u32 1.1754944e-38, %v9699
    %v9701 = vsel %vm9698, %v9700, %v9696
    %v9702 = vmul.f32 1.0, %v9701
    %v9703 = vmul.f32 %v9682, %v9459
    %v9704 = vmul.f32 %v9663, %v9683
    %v9705 = vadd.f32 %v9703, %v9704
    %v9706 = vtanh.pop %v9705
    %v9707 = vmul.f32 %v9702, %v9706
    %v9708 = vsel %vm7931, %v9644, %v9456
    %v9709 = vsel %vm7929, %v9707, %v9458
    %v9710 = vpack.c.bf16 %v9709, %v9709
    %v9711 = vpack.c.bf16 %v9708, %v9708
    %v9712 = vld [vmem:[%s8] sm:$0xf]
    %v9713 = vld [vmem:[%s8 + $0x4] sm:$0xf]
    %v9714 = vld [vmem:[%s8 + $0x8] sm:$0xf]
    %v9715 = vld [vmem:[%s8 + $0xc] sm:$0xf]
    %v9716 = vld [vmem:[%s8 + $0x10] sm:$0xf]
    %v9717 = vld [vmem:[%s8 + $0x14] sm:$0xf]
    %v9718 = vld [vmem:[%s8 + $0x18] sm:$0xf]
    %v9719 = vld [vmem:[%s8 + $0x1c] sm:$0xf]
    %v9720 = vld [vmem:[%s8 + $0x20] sm:$0xf]
    %v9721 = vld [vmem:[%s8 + $0x24] sm:$0xf]
    %v9722 = vld [vmem:[%s8 + $0x28] sm:$0xf]
    %v9723 = vld [vmem:[%s8 + $0x2c] sm:$0xf]
    %v9724 = vld [vmem:[%s8 + $0x30] sm:$0xf]
    %v9725 = vld [vmem:[%s8 + $0x34] sm:$0xf]
    %v9726 = vld [vmem:[%s8 + $0x38] sm:$0xf]
    %v9727 = vld [vmem:[%s8 + $0x3c] sm:$0xf]
    %v9728 = vld [vmem:[%s8 + $0x40] sm:$0xf]
    %v9729 = vld [vmem:[%s8 + $0x44] sm:$0xf]
    %v9730 = vld [vmem:[%s8 + $0x48] sm:$0xf]
    %v9731 = vld [vmem:[%s8 + $0x4c] sm:$0xf]
    %v9732 = vld [vmem:[%s8 + $0x50] sm:$0xf]
    %v9733 = vld [vmem:[%s8 + $0x54] sm:$0xf]
    %v9734 = vld [vmem:[%s8 + $0x58] sm:$0xf]
    %v9735 = vld [vmem:[%s8 + $0x5c] sm:$0xf]
    %v9736 = vld [vmem:[%s8 + $0x60] sm:$0xf]
    %v9737 = vld [vmem:[%s8 + $0x64] sm:$0xf]
    %v9738 = vld [vmem:[%s8 + $0x68] sm:$0xf]
    %v9739 = vld [vmem:[%s8 + $0x6c] sm:$0xf]
    %v9740 = vld [vmem:[%s8 + $0x70] sm:$0xf]
    %v9741 = vld [vmem:[%s8 + $0x74] sm:$0xf]
    %v9742 = vld [vmem:[%s8 + $0x78] sm:$0xf]
    %v9743 = vld [vmem:[%s8 + $0x7c] sm:$0xf]
    %v9744 = vld [vmem:[%s9] sm:$0x1]
    %v9746 = vperm.slane %v9744, 0
    %v9780 = vunpack.c.l.b16 %v9712
    %v9781 = vunpack.c.l.b16 %v9713
    %v9782 = vunpack.c.l.b16 %v9714
    %v9783 = vunpack.c.l.b16 %v9715
    %v9784 = vunpack.c.l.b16 %v9716
    %v9785 = vunpack.c.l.b16 %v9717
    %v9786 = vunpack.c.l.b16 %v9718
    %v9787 = vunpack.c.l.b16 %v9719
    %v9788 = vunpack.c.l.b16 %v9720
    %v9789 = vunpack.c.l.b16 %v9721
    %v9790 = vunpack.c.l.b16 %v9722
    %v9791 = vunpack.c.l.b16 %v9723
    %v9792 = vunpack.c.l.b16 %v9724
    %v9793 = vunpack.c.l.b16 %v9725
    %v9794 = vunpack.c.l.b16 %v9726
    %v9795 = vunpack.c.l.b16 %v9727
    %v9796 = vunpack.c.l.b16 %v9728
    %v9797 = vunpack.c.l.b16 %v9729
    %v9798 = vunpack.c.l.b16 %v9730
    %v9799 = vunpack.c.l.b16 %v9731
    %v9800 = vunpack.c.l.b16 %v9732
    %v9801 = vunpack.c.l.b16 %v9733
    %v9802 = vunpack.c.l.b16 %v9734
    %v9803 = vunpack.c.l.b16 %v9735
    %v9804 = vunpack.c.l.b16 %v9736
    %v9805 = vunpack.c.l.b16 %v9737
    %v9806 = vunpack.c.l.b16 %v9738
    %v9807 = vunpack.c.l.b16 %v9739
    %v9808 = vunpack.c.l.b16 %v9740
    %v9809 = vunpack.c.l.b16 %v9741
    %v9810 = vunpack.c.l.b16 %v9742
    %v9811 = vunpack.c.l.b16 %v9743
    %v9812 = vpack.c.b16 %v9781, %v9780
    %v9813 = vpack.c.b16 %v9783, %v9782
    %v9814 = vpack.c.b16 %v9785, %v9784
    %v9815 = vpack.c.b16 %v9787, %v9786
    %v9816 = vpack.c.b16 %v9789, %v9788
    %v9817 = vpack.c.b16 %v9791, %v9790
    %v9818 = vpack.c.b16 %v9793, %v9792
    %v9819 = vpack.c.b16 %v9795, %v9794
    %v9820 = vpack.c.b16 %v9797, %v9796
    %v9821 = vpack.c.b16 %v9799, %v9798
    %v9822 = vpack.c.b16 %v9801, %v9800
    %v9823 = vpack.c.b16 %v9803, %v9802
    %v9824 = vpack.c.b16 %v9805, %v9804
    %v9825 = vpack.c.b16 %v9807, %v9806
    %v9826 = vpack.c.b16 %v9809, %v9808
    %v9827 = vpack.c.b16 %v9811, %v9810
    %9844 = vmatpush.bf16.msra.mxu0 %v9819
    %9845 = vmatpush.bf16.msra.mxu0 %v9818
    %9846 = vmatpush.bf16.msra.mxu0 %v9817
    %9847 = vmatpush.bf16.msra.mxu0 %v9816
    %9848 = vmatpush.bf16.msra.mxu0 %v9815
    %9849 = vmatpush.bf16.msra.mxu0 %v9814
    %9850 = vmatpush.bf16.msra.mxu0 %v9813
    %9851 = vmatpush.bf16.msra.mxu0 %v9812
    %9852 = vmatmul.bf16.gmra.mxu0 %v9710
    %v9853 = vpop.f32.mrf.mxu0
    %v9854 = vadd.f32 %v9746, %v9853
    %v9855 = vpop.f32.mrf.mxu0
    %9856 = vdwg.mxu0
    %9857 = vmatpush.bf16.msra.mxu0 %v9827
    %9858 = vmatpush.bf16.msra.mxu0 %v9826
    %9859 = vmatpush.bf16.msra.mxu0 %v9825
    %9860 = vmatpush.bf16.msra.mxu0 %v9824
    %9861 = vmatpush.bf16.msra.mxu0 %v9823
    %9862 = vmatpush.bf16.msra.mxu0 %v9822
    %9863 = vmatpush.bf16.msra.mxu0 %v9821
    %9864 = vmatpush.bf16.msra.mxu0 %v9820
    %9865 = vmatmul.bf16.gmra.mxu0 %v9711
    %v9866 = vpop.f32.mrf.mxu0
    %v9867 = vadd.f32 %v9854, %v9866
    %v9868 = vpop.f32.mrf.mxu0
    %9869 = vdwg.mxu0
    %9870 = vst [vmem:[%s10] sm:$0xff] %v9867
    // Predicated region
    $region54: #{lstm_model_forward.1} parent=1 // pred_check
      _
    $region55: #{lstm_model_forward.1} parent=1 // pred_check_branch
      %9872 = sbr.rel (0) target = $region57
    $region56: #{lstm_model_forward.1} parent=1 // pred_region
      _
    $region57: #{lstm_model_forward.1} parent=1 // pred_fallthru
      _
    // Predicated region
    $region58: #{lstm_model_forward.1} parent=1 // pred_check
      _
    $region59: #{lstm_model_forward.1} parent=1 // pred_check_branch
      %9874 = sbr.rel (0) target = $region61
    $region60: #{lstm_model_forward.1} parent=1 // pred_region
      _
    $region61: #{lstm_model_forward.1} parent=1 // pred_fallthru
      _
    %9875 = vsyncpa [#allocation5], 1
    %9876 = vsyncpa [#allocation7], 1

</llo_original>
